<compile_context>
chip_gen: v6e
topology: v6e:2x2x1
jax: 0.10.0
libtpu: 0.0.40
codegen_flags: <defaults>
</compile_context>

<pallas_src>
import functools

import jax
import jax.numpy as jnp
import numpy as np
from jax.experimental import pallas as pl
from jax.experimental.pallas import tpu as pltpu

EPS = 1e-6          # bias_epsilon in the PyTorch module
NEG_SLOPE = 0.2     # default act_layer = LeakyReLU(0.2)


# --------------------------------------------------------------------------
# helpers traced inside the Pallas kernel (operate on [3, N, C] tiles)
# --------------------------------------------------------------------------
def _vec_layernorm(x, gamma, beta):
    """VecLayerNorm(mode='sim3'): LayerNorm of per-channel vector norms, then
    rescale each 3-vector.  x: [3, N, C] f32, gamma/beta: [1, C] f32."""
    sq = x[0] * x[0] + x[1] * x[1] + x[2] * x[2]                 # [N, C]
    norms = jnp.sqrt(sq)
    mu = jnp.mean(norms, axis=-1, keepdims=True)
    diff = norms - mu
    var = jnp.mean(diff * diff, axis=-1, keepdims=True)
    ln = diff * jax.lax.rsqrt(var + EPS) * gamma + beta          # EUP rsqrt
    # Exact divide: norms can be ~0, where approx reciprocal error amplifies.
    factor = ln / (norms + EPS)
    return x * factor[None]                                      # [3, N, C]


def _vn_leaky_act(h, w_dir_bf16):
    """VecActivation: LeakyReLU on the component of each vector parallel to a
    learned direction.  h: [3, N, H] f32, w_dir: [H, H] bf16."""
    _, N, H = h.shape
    d = jnp.dot(h.reshape(3 * N, H).astype(jnp.bfloat16), w_dir_bf16,
                preferred_element_type=jnp.float32).reshape(3, N, H)
    d_norm = jnp.sqrt(d[0] * d[0] + d[1] * d[1] + d[2] * d[2])   # [N, H]
    d_dir = d / (d_norm + EPS)[None]                             # exact
    para = h[0] * d_dir[0] + h[1] * d_dir[1] + h[2] * d_dir[2]   # [N, H]
    ortho = h - para[None] * d_dir
    para_act = jnp.where(para >= 0, para, NEG_SLOPE * para)
    return ortho + para_act[None] * d_dir


def _dot_nt(a, b):
    """[N, d] x [M, d] -> [N, M] with f32 accumulation (A @ B^T form, same
    dimension numbers the Pallas flash-attention reference uses)."""
    return jax.lax.dot_general(a, b, (((1,), (1,)), ((), ())),
                               preferred_element_type=jnp.float32)


# --------------------------------------------------------------------------
# Pallas kernel: `batch_block` batch elements per grid step, all in VMEM
# --------------------------------------------------------------------------
def _vec_block_kernel(x_ref, g1_ref, b1_ref, wqkv_ref, wproj_ref,
                      g2_ref, b2_ref, w1_ref, wd_ref, w2_ref,
                      o_ref, qkv_scr, attn_scr, *, num_heads, batch_block):
    N = x_ref.shape[2]
    C = x_ref.shape[3]
    hd = C // num_heads
    hidden = w1_ref.shape[1]

    for bi in range(batch_block):
        x = x_ref[bi]                              # [3, N, C] f32

        # ------------- attention branch: x = x + proj(softmax(qk^T) v) -----
        xn = _vec_layernorm(x, g1_ref[...], b1_ref[...])
        # Single dense qkv projection; softmax scale is pre-folded into the q
        # columns of w_qkv (host side).  Cast ONCE to bf16 at the store; every
        # consumer below reads bf16 slices directly (no re-casts).
        qkv_scr[...] = jnp.dot(xn.reshape(3 * N, C).astype(jnp.bfloat16),
                               wqkv_ref[...],
                               preferred_element_type=jnp.float32
                               ).astype(jnp.bfloat16)            # [3N, 3C]

        for h in range(num_heads):
            lo = h * hd
            # Component-accumulating score: s = sum_j q_j @ k_j^T.  No packing
            # copies; on v7x the MRB accumulates in the MXU result buffer.
            s = _dot_nt(qkv_scr[0:N, lo:lo + hd],
                        qkv_scr[0:N, C + lo:C + lo + hd])
            s += _dot_nt(qkv_scr[N:2 * N, lo:lo + hd],
                         qkv_scr[N:2 * N, C + lo:C + lo + hd])
            s += _dot_nt(qkv_scr[2 * N:3 * N, lo:lo + hd],
                         qkv_scr[2 * N:3 * N, C + lo:C + lo + hd])  # [N, N]

            s = s - jnp.max(s, axis=-1, keepdims=True)
            p = jnp.exp(s)
            p = (p * pl.reciprocal(jnp.sum(p, axis=-1, keepdims=True),
                                   approx=True)                  # EUP, sum>=1
                 ).astype(jnp.bfloat16)                           # [N, N]

            # AV per component, written straight into the bf16 accumulator.
            for j in range(3):
                vj = qkv_scr[j * N:(j + 1) * N, 2 * C + lo:2 * C + lo + hd]
                av = jnp.dot(p, vj, preferred_element_type=jnp.float32)
                attn_scr[j * N:(j + 1) * N, lo:lo + hd] = av.astype(jnp.bfloat16)

        proj = jnp.dot(attn_scr[...], wproj_ref[...],
                       preferred_element_type=jnp.float32)        # [3N, C]
        # ls1 / transform_restore are identity (init_values=None, scale=None)
        x = x + proj.reshape(3, N, C)

        # ------------- MLP branch: x = x + W2(VNAct(W1 * norm2(x))) --------
        xn2 = _vec_layernorm(x, g2_ref[...], b2_ref[...])
        hfeat = jnp.dot(xn2.reshape(3 * N, C).astype(jnp.bfloat16), w1_ref[...],
                        preferred_element_type=jnp.float32)       # [3N, Hid]
        hfeat = _vn_leaky_act(hfeat.reshape(3, N, hidden), wd_ref[...])
        mlp = jnp.dot(hfeat.reshape(3 * N, hidden).astype(jnp.bfloat16),
                      w2_ref[...], preferred_element_type=jnp.float32)
        x = x + mlp.reshape(3, N, C)

        o_ref[bi] = x.astype(o_ref.dtype)


# --------------------------------------------------------------------------
# wrapper
# --------------------------------------------------------------------------
def vec_self_attn_block(x, pos, params, *, num_heads, idx=None,
                        batch_block=1, x_layout="bnc3",
                        vmem_limit_bytes=48 * 1024 * 1024):
    """x: [B, N, C, 3] (PyTorch layout, x_layout='bnc3') or [B, 3, N, C]
    (kernel layout, x_layout='b3nc', skips the HBM transpose round-trips).
    pos/idx: accepted for API parity, unused ('vnattn' only)."""
    del pos, idx
    if x_layout == "bnc3":
        xk = jnp.transpose(x, (0, 3, 1, 2))        # [B, 3, N, C]
    elif x_layout == "b3nc":
        xk = x
    else:
        raise ValueError(f"unknown x_layout: {x_layout}")

    B, _, N, C = xk.shape
    if C % num_heads:
        raise ValueError(f"dim={C} must be divisible by num_heads={num_heads}")
    hd = C // num_heads
    scale = hd ** -0.5

    # largest batch_block that divides B (keeps the grid exact)
    batch_block = max(1, min(batch_block, B))
    while B % batch_block:
        batch_block -= 1

    # Fold the softmax scale into the q columns of w_qkv (host side, zero
    # in-kernel cost) and ship all matmul weights in bf16 (f32 MXU acc).
    w_qkv = params["w_qkv"]
    w_qkv = jnp.concatenate([w_qkv[:, :C] * scale, w_qkv[:, C:]], axis=1)
    f32 = lambda a: a.astype(jnp.float32)
    bf16 = lambda a: a.astype(jnp.bfloat16)
    op_list = [f32(params["ln1_g"]), f32(params["ln1_b"]),
               bf16(w_qkv), bf16(params["w_proj"]),
               f32(params["ln2_g"]), f32(params["ln2_b"]),
               bf16(params["w_mlp1"]), bf16(params["w_act_dir"]),
               bf16(params["w_mlp2"])]

    kernel = functools.partial(_vec_block_kernel, num_heads=num_heads,
                               batch_block=batch_block)

    def weight_spec(p):
        nd = p.ndim
        return pl.BlockSpec(p.shape, lambda b, _nd=nd: (0,) * _nd)

    out = pl.pallas_call(
        kernel,
        out_shape=jax.ShapeDtypeStruct((B, 3, N, C), xk.dtype),
        grid=(B // batch_block,),
        in_specs=[pl.BlockSpec((batch_block, 3, N, C), lambda b: (b, 0, 0, 0))]
                 + [weight_spec(p) for p in op_list],
        out_specs=pl.BlockSpec((batch_block, 3, N, C), lambda b: (b, 0, 0, 0)),
        scratch_shapes=[pltpu.VMEM((3 * N, 3 * C), jnp.bfloat16),   # qkv
                        pltpu.VMEM((3 * N, C), jnp.bfloat16)],      # attn acc
        compiler_params=pltpu.CompilerParams(
            dimension_semantics=("parallel",),
            vmem_limit_bytes=vmem_limit_bytes),
    )(xk, *op_list)

    if x_layout == "bnc3":
        return jnp.transpose(out, (0, 2, 3, 1))    # back to [B, N, C, 3]
    return out


# --------------------------------------------------------------------------
# pure-JAX reference (different code path: rank-5 einsums, jax.nn.softmax)
# --------------------------------------------------------------------------
def _ref_forward(x, params, num_heads):
    B, N, C, _ = x.shape
    hd = C // num_heads
    scale = hd ** -0.5
    hi = jax.lax.Precision.HIGHEST
    xk = jnp.transpose(x, (0, 1, 3, 2))           # [B, N, 3, C]

    def ln(v, g, b):
        n = jnp.linalg.norm(v, axis=2)            # [B, N, C]
        mu = n.mean(-1, keepdims=True)
        var = ((n - mu) ** 2).mean(-1, keepdims=True)
        nn_ = (n - mu) / jnp.sqrt(var + EPS) * g[0] + b[0]
        return v / (n + EPS)[:, :, None, :] * nn_[:, :, None, :]

    xn = ln(xk, params["ln1_g"], params["ln1_b"])
    qkv = jnp.einsum('bnjc,cd->bnjd', xn, params["w_qkv"], precision=hi)
    qkv = qkv.reshape(B, N, 3, 3, num_heads, hd)
    q, k, v = qkv[:, :, :, 0], qkv[:, :, :, 1], qkv[:, :, :, 2]
    a = jnp.einsum('bajhd,bcjhd->bhac', q, k, precision=hi) * scale
    a = jax.nn.softmax(a, axis=-1)
    o = jnp.einsum('bhac,bcjhd->bajhd', a, v, precision=hi)
    o = o.reshape(B, N, 3, C)
    o = jnp.einsum('bnjc,cd->bnjd', o, params["w_proj"], precision=hi)
    xk = xk + o

    xn2 = ln(xk, params["ln2_g"], params["ln2_b"])
    h = jnp.einsum('bnjc,cd->bnjd', xn2, params["w_mlp1"], precision=hi)
    d = jnp.einsum('bnjc,cd->bnjd', h, params["w_act_dir"], precision=hi)
    dn = jnp.linalg.norm(d, axis=2, keepdims=True) + EPS
    dd = d / dn
    plen = jnp.sum(h * dd, axis=2, keepdims=True)
    h = (h - plen * dd) + jnp.where(plen >= 0, plen, NEG_SLOPE * plen) * dd
    h = jnp.einsum('bnjc,cd->bnjd', h, params["w_mlp2"], precision=hi)
    xk = xk + h
    return jnp.transpose(xk, (0, 1, 3, 2))


# --------------------------------------------------------------------------
if __name__ == "__main__":
    B, N, dim, num_heads = 4, 16, 32, 4
    hidden = int(dim * 4.0)

    key = jax.random.PRNGKey(0)
    ks = jax.random.split(key, 8)

    def w_init(k, fan_in, shape):
        return jax.random.normal(k, shape, jnp.float32) / np.sqrt(fan_in)

    params = {
        "ln1_g": jnp.ones((1, dim), jnp.float32),
        "ln1_b": jnp.zeros((1, dim), jnp.float32),
        "w_qkv": w_init(ks[0], dim, (dim, 3 * dim)),
        "w_proj": w_init(ks[1], dim, (dim, dim)),
        "ln2_g": jnp.ones((1, dim), jnp.float32),
        "ln2_b": jnp.zeros((1, dim), jnp.float32),
        "w_mlp1": w_init(ks[2], dim, (dim, hidden)),
        "w_act_dir": w_init(ks[3], hidden, (hidden, hidden)),
        "w_mlp2": w_init(ks[4], hidden, (hidden, dim)),
    }

    x = jax.random.normal(ks[5], (B, N, dim, 3), jnp.float32)
    pos = jax.random.normal(ks[6], (B, N, 3), jnp.float32)

    out = jax.block_until_ready(
        vec_self_attn_block(x, pos, params, num_heads=num_heads,
                            batch_block=2))
    ref = jax.block_until_ready(_ref_forward(x, params, num_heads))

    assert out.shape == x.shape
    err = float(jnp.max(jnp.abs(out - ref)))
    ref_scale = float(jnp.max(jnp.abs(ref)))
    # bf16 MXU operands + approx EUP softmax reciprocal -> data-scaled tol.
    tol = 5e-2 * max(1.0, ref_scale)
    assert np.isfinite(err) and err < tol, f"max abs diff {err} (tol {tol})"
    print("KERNEL_OK")
</pallas_src>

<mosaic_0001>
module attributes {stable_mosaic.version = 11 : i64} {
  func.func @_vec_block_kernel(%arg0: i32, %arg1: memref<2x3x16x32xf32, #tpu.memory_space<vmem>>, %arg2: memref<1x32xf32, #tpu.memory_space<vmem>>, %arg3: memref<1x32xf32, #tpu.memory_space<vmem>>, %arg4: memref<32x96xbf16, #tpu.memory_space<vmem>>, %arg5: memref<32x32xbf16, #tpu.memory_space<vmem>>, %arg6: memref<1x32xf32, #tpu.memory_space<vmem>>, %arg7: memref<1x32xf32, #tpu.memory_space<vmem>>, %arg8: memref<32x128xbf16, #tpu.memory_space<vmem>>, %arg9: memref<128x128xbf16, #tpu.memory_space<vmem>>, %arg10: memref<128x32xbf16, #tpu.memory_space<vmem>>, %arg11: memref<2x3x16x32xf32, #tpu.memory_space<vmem>>, %arg12: memref<48x96xbf16, #tpu.memory_space<vmem>>, %arg13: memref<48x32xbf16, #tpu.memory_space<vmem>>) attributes {dimension_semantics = [#tpu.dimension_semantics<parallel>], iteration_bounds = array<i64: 2>, scalar_prefetch = 0 : i64, scratch_operands = 2 : i64, tpu.core_type = #tpu.core_type<tc>, window_params = [{transform_indices = @transform_0, window_bounds = array<i64: 2, 3, 16, 32>}, {pipeline_mode = #tpu.pipeline_mode<synchronous>, transform_indices = @transform_1, window_bounds = array<i64: 1, 32>}, {pipeline_mode = #tpu.pipeline_mode<synchronous>, transform_indices = @transform_2, window_bounds = array<i64: 1, 32>}, {pipeline_mode = #tpu.pipeline_mode<synchronous>, transform_indices = @transform_3, window_bounds = array<i64: 32, 96>}, {pipeline_mode = #tpu.pipeline_mode<synchronous>, transform_indices = @transform_4, window_bounds = array<i64: 32, 32>}, {pipeline_mode = #tpu.pipeline_mode<synchronous>, transform_indices = @transform_5, window_bounds = array<i64: 1, 32>}, {pipeline_mode = #tpu.pipeline_mode<synchronous>, transform_indices = @transform_6, window_bounds = array<i64: 1, 32>}, {pipeline_mode = #tpu.pipeline_mode<synchronous>, transform_indices = @transform_7, window_bounds = array<i64: 32, 128>}, {pipeline_mode = #tpu.pipeline_mode<synchronous>, transform_indices = @transform_8, window_bounds = array<i64: 128, 128>}, {pipeline_mode = #tpu.pipeline_mode<synchronous>, transform_indices = @transform_9, window_bounds = array<i64: 128, 32>}, {transform_indices = @transform_10, window_bounds = array<i64: 2, 3, 16, 32>}]} {
    %c0 = arith.constant 0 : index
    %c0_0 = arith.constant 0 : index
    %c0_1 = arith.constant 0 : index
    %c0_2 = arith.constant 0 : index
    %0 = vector.load %arg1[%c0, %c0_0, %c0_1, %c0_2] : memref<2x3x16x32xf32, #tpu.memory_space<vmem>>, vector<1x3x16x32xf32>
    %1 = vector.shape_cast %0 : vector<1x3x16x32xf32> to vector<3x16x32xf32>
    %c0_3 = arith.constant 0 : index
    %c0_4 = arith.constant 0 : index
    %2 = vector.load %arg2[%c0_3, %c0_4] : memref<1x32xf32, #tpu.memory_space<vmem>>, vector<1x32xf32>
    %c0_5 = arith.constant 0 : index
    %c0_6 = arith.constant 0 : index
    %3 = vector.load %arg3[%c0_5, %c0_6] : memref<1x32xf32, #tpu.memory_space<vmem>>, vector<1x32xf32>
    %4 = vector.extract_strided_slice %1 {offsets = [0, 0, 0], sizes = [1, 16, 32], strides = [1, 1, 1]} : vector<3x16x32xf32> to vector<1x16x32xf32>
    %5 = vector.shape_cast %4 : vector<1x16x32xf32> to vector<16x32xf32>
    %6 = vector.extract_strided_slice %1 {offsets = [0, 0, 0], sizes = [1, 16, 32], strides = [1, 1, 1]} : vector<3x16x32xf32> to vector<1x16x32xf32>
    %7 = vector.shape_cast %6 : vector<1x16x32xf32> to vector<16x32xf32>
    %8 = arith.mulf %5, %7 : vector<16x32xf32>
    %9 = vector.extract_strided_slice %1 {offsets = [1, 0, 0], sizes = [1, 16, 32], strides = [1, 1, 1]} : vector<3x16x32xf32> to vector<1x16x32xf32>
    %10 = vector.shape_cast %9 : vector<1x16x32xf32> to vector<16x32xf32>
    %11 = vector.extract_strided_slice %1 {offsets = [1, 0, 0], sizes = [1, 16, 32], strides = [1, 1, 1]} : vector<3x16x32xf32> to vector<1x16x32xf32>
    %12 = vector.shape_cast %11 : vector<1x16x32xf32> to vector<16x32xf32>
    %13 = arith.mulf %10, %12 : vector<16x32xf32>
    %14 = arith.addf %8, %13 : vector<16x32xf32>
    %15 = vector.extract_strided_slice %1 {offsets = [2, 0, 0], sizes = [1, 16, 32], strides = [1, 1, 1]} : vector<3x16x32xf32> to vector<1x16x32xf32>
    %16 = vector.shape_cast %15 : vector<1x16x32xf32> to vector<16x32xf32>
    %17 = vector.extract_strided_slice %1 {offsets = [2, 0, 0], sizes = [1, 16, 32], strides = [1, 1, 1]} : vector<3x16x32xf32> to vector<1x16x32xf32>
    %18 = vector.shape_cast %17 : vector<1x16x32xf32> to vector<16x32xf32>
    %19 = arith.mulf %16, %18 : vector<16x32xf32>
    %20 = arith.addf %14, %19 : vector<16x32xf32>
    %21 = math.sqrt %20 : vector<16x32xf32>
    %cst = arith.constant dense<0.000000e+00> : vector<16xf32>
    %22 = vector.multi_reduction <add>, %21, %cst [1] : vector<16x32xf32> to vector<16xf32>
    %23 = vector.shape_cast %22 : vector<16xf32> to vector<16x1xf32>
    %cst_7 = arith.constant 3.200000e+01 : f32
    %24 = vector.broadcast %cst_7 : f32 to vector<16x1xf32>
    %25 = arith.divf %23, %24 : vector<16x1xf32>
    %26 = vector.broadcast %25 : vector<16x1xf32> to vector<16x32xf32>
    %27 = arith.subf %21, %26 : vector<16x32xf32>
    %28 = arith.mulf %27, %27 : vector<16x32xf32>
    %cst_8 = arith.constant dense<0.000000e+00> : vector<16xf32>
    %29 = vector.multi_reduction <add>, %28, %cst_8 [1] : vector<16x32xf32> to vector<16xf32>
    %30 = vector.shape_cast %29 : vector<16xf32> to vector<16x1xf32>
    %cst_9 = arith.constant 3.200000e+01 : f32
    %31 = vector.broadcast %cst_9 : f32 to vector<16x1xf32>
    %32 = arith.divf %30, %31 : vector<16x1xf32>
    %cst_10 = arith.constant 9.99999997E-7 : f32
    %33 = vector.broadcast %cst_10 : f32 to vector<16x1xf32>
    %34 = arith.addf %32, %33 : vector<16x1xf32>
    %35 = math.rsqrt %34 : vector<16x1xf32>
    %36 = vector.broadcast %35 : vector<16x1xf32> to vector<16x32xf32>
    %37 = arith.mulf %27, %36 : vector<16x32xf32>
    %38 = vector.broadcast %2 : vector<1x32xf32> to vector<16x32xf32>
    %39 = arith.mulf %37, %38 : vector<16x32xf32>
    %40 = vector.broadcast %3 : vector<1x32xf32> to vector<16x32xf32>
    %41 = arith.addf %39, %40 : vector<16x32xf32>
    %cst_11 = arith.constant 9.99999997E-7 : f32
    %42 = vector.broadcast %cst_11 : f32 to vector<16x32xf32>
    %43 = arith.addf %21, %42 : vector<16x32xf32>
    %44 = arith.divf %41, %43 : vector<16x32xf32>
    %45 = vector.shape_cast %44 : vector<16x32xf32> to vector<1x16x32xf32>
    %46 = vector.broadcast %45 : vector<1x16x32xf32> to vector<3x16x32xf32>
    %47 = arith.mulf %1, %46 : vector<3x16x32xf32>
    %48 = vector.shape_cast %47 : vector<3x16x32xf32> to vector<48x32xf32>
    %49 = arith.truncf %48 : vector<48x32xf32> to vector<48x32xbf16>
    %c0_12 = arith.constant 0 : index
    %c0_13 = arith.constant 0 : index
    %50 = vector.load %arg4[%c0_12, %c0_13] : memref<32x96xbf16, #tpu.memory_space<vmem>>, vector<32x96xbf16>
    %cst_14 = arith.constant dense<0.000000e+00> : vector<48x96xf32>
    %51 = tpu.matmul %49, %50, %cst_14 {dimension_numbers = #tpu.dot_dimension_numbers<[1], [0], [0], [1], [0, 0, 1, 1], [], []>} : vector<48x32xbf16>, vector<32x96xbf16>, vector<48x96xf32> -> vector<48x96xf32>
    %52 = arith.truncf %51 : vector<48x96xf32> to vector<48x96xbf16>
    %c0_15 = arith.constant 0 : index
    %c0_16 = arith.constant 0 : index
    %53 = vector.load %arg12[%c0_15, %c0_16] : memref<48x96xbf16, #tpu.memory_space<vmem>>, vector<48x96xbf16>
    tpu.vector_store %arg12[%c0_15, %c0_16], %52 {strides = array<i32>} : memref<48x96xbf16, #tpu.memory_space<vmem>>, vector<48x96xbf16>,
    %c0_17 = arith.constant 0 : index
    %c0_18 = arith.constant 0 : index
    %54 = vector.load %arg12[%c0_17, %c0_18] : memref<48x96xbf16, #tpu.memory_space<vmem>>, vector<16x8xbf16>
    %c0_19 = arith.constant 0 : index
    %c32 = arith.constant 32 : index
    %55 = vector.load %arg12[%c0_19, %c32] : memref<48x96xbf16, #tpu.memory_space<vmem>>, vector<16x8xbf16>
    %cst_20 = arith.constant dense<0.000000e+00> : vector<16x16xf32>
    %56 = tpu.matmul %54, %55, %cst_20 {dimension_numbers = #tpu.dot_dimension_numbers<[1], [1], [0], [0], [0, 0, 1, 0], [], []>} : vector<16x8xbf16>, vector<16x8xbf16>, vector<16x16xf32> -> vector<16x16xf32>
    %c16 = arith.constant 16 : index
    %c0_21 = arith.constant 0 : index
    %57 = vector.load %arg12[%c16, %c0_21] : memref<48x96xbf16, #tpu.memory_space<vmem>>, vector<16x8xbf16>
    %c16_22 = arith.constant 16 : index
    %c32_23 = arith.constant 32 : index
    %58 = vector.load %arg12[%c16_22, %c32_23] : memref<48x96xbf16, #tpu.memory_space<vmem>>, vector<16x8xbf16>
    %cst_24 = arith.constant dense<0.000000e+00> : vector<16x16xf32>
    %59 = tpu.matmul %57, %58, %cst_24 {dimension_numbers = #tpu.dot_dimension_numbers<[1], [1], [0], [0], [0, 0, 1, 0], [], []>} : vector<16x8xbf16>, vector<16x8xbf16>, vector<16x16xf32> -> vector<16x16xf32>
    %60 = arith.addf %56, %59 : vector<16x16xf32>
    %c32_25 = arith.constant 32 : index
    %c0_26 = arith.constant 0 : index
    %61 = vector.load %arg12[%c32_25, %c0_26] : memref<48x96xbf16, #tpu.memory_space<vmem>>, vector<16x8xbf16>
    %c32_27 = arith.constant 32 : index
    %c32_28 = arith.constant 32 : index
    %62 = vector.load %arg12[%c32_27, %c32_28] : memref<48x96xbf16, #tpu.memory_space<vmem>>, vector<16x8xbf16>
    %cst_29 = arith.constant dense<0.000000e+00> : vector<16x16xf32>
    %63 = tpu.matmul %61, %62, %cst_29 {dimension_numbers = #tpu.dot_dimension_numbers<[1], [1], [0], [0], [0, 0, 1, 0], [], []>} : vector<16x8xbf16>, vector<16x8xbf16>, vector<16x16xf32> -> vector<16x16xf32>
    %64 = arith.addf %60, %63 : vector<16x16xf32>
    %cst_30 = arith.constant dense<0xFF800000> : vector<16xf32>
    %65 = vector.multi_reduction <maximumf>, %64, %cst_30 [1] : vector<16x16xf32> to vector<16xf32>
    %66 = vector.shape_cast %65 : vector<16xf32> to vector<16x1xf32>
    %67 = vector.broadcast %66 : vector<16x1xf32> to vector<16x16xf32>
    %68 = arith.subf %64, %67 : vector<16x16xf32>
    %69 = math.exp %68 : vector<16x16xf32>
    %cst_31 = arith.constant dense<0.000000e+00> : vector<16xf32>
    %70 = vector.multi_reduction <add>, %69, %cst_31 [1] : vector<16x16xf32> to vector<16xf32>
    %71 = vector.shape_cast %70 : vector<16xf32> to vector<16x1xf32>
    %72 = tpu.reciprocal %71 {approx = true} : vector<16x1xf32> -> vector<16x1xf32>
    %73 = vector.broadcast %72 : vector<16x1xf32> to vector<16x16xf32>
    %74 = arith.mulf %69, %73 : vector<16x16xf32>
    %75 = arith.truncf %74 : vector<16x16xf32> to vector<16x16xbf16>
    %c0_32 = arith.constant 0 : index
    %c64 = arith.constant 64 : index
    %76 = vector.load %arg12[%c0_32, %c64] : memref<48x96xbf16, #tpu.memory_space<vmem>>, vector<16x8xbf16>
    %cst_33 = arith.constant dense<0.000000e+00> : vector<16x8xf32>
    %77 = tpu.matmul %75, %76, %cst_33 {dimension_numbers = #tpu.dot_dimension_numbers<[1], [0], [0], [1], [0, 0, 1, 1], [], []>} : vector<16x16xbf16>, vector<16x8xbf16>, vector<16x8xf32> -> vector<16x8xf32>
    %78 = arith.truncf %77 : vector<16x8xf32> to vector<16x8xbf16>
    %c0_34 = arith.constant 0 : index
    %c0_35 = arith.constant 0 : index
    %79 = vector.load %arg13[%c0_34, %c0_35] : memref<48x32xbf16, #tpu.memory_space<vmem>>, vector<16x8xbf16>
    tpu.vector_store %arg13[%c0_34, %c0_35], %78 {strides = array<i32>} : memref<48x32xbf16, #tpu.memory_space<vmem>>, vector<16x8xbf16>,
    %c16_36 = arith.constant 16 : index
    %c64_37 = arith.constant 64 : index
    %80 = vector.load %arg12[%c16_36, %c64_37] : memref<48x96xbf16, #tpu.memory_space<vmem>>, vector<16x8xbf16>
    %cst_38 = arith.constant dense<0.000000e+00> : vector<16x8xf32>
    %81 = tpu.matmul %75, %80, %cst_38 {dimension_numbers = #tpu.dot_dimension_numbers<[1], [0], [0], [1], [0, 0, 1, 1], [], []>} : vector<16x16xbf16>, vector<16x8xbf16>, vector<16x8xf32> -> vector<16x8xf32>
    %82 = arith.truncf %81 : vector<16x8xf32> to vector<16x8xbf16>
    %c16_39 = arith.constant 16 : index
    %c0_40 = arith.constant 0 : index
    %83 = vector.load %arg13[%c16_39, %c0_40] : memref<48x32xbf16, #tpu.memory_space<vmem>>, vector<16x8xbf16>
    tpu.vector_store %arg13[%c16_39, %c0_40], %82 {strides = array<i32>} : memref<48x32xbf16, #tpu.memory_space<vmem>>, vector<16x8xbf16>,
    %c32_41 = arith.constant 32 : index
    %c64_42 = arith.constant 64 : index
    %84 = vector.load %arg12[%c32_41, %c64_42] : memref<48x96xbf16, #tpu.memory_space<vmem>>, vector<16x8xbf16>
    %cst_43 = arith.constant dense<0.000000e+00> : vector<16x8xf32>
    %85 = tpu.matmul %75, %84, %cst_43 {dimension_numbers = #tpu.dot_dimension_numbers<[1], [0], [0], [1], [0, 0, 1, 1], [], []>} : vector<16x16xbf16>, vector<16x8xbf16>, vector<16x8xf32> -> vector<16x8xf32>
    %86 = arith.truncf %85 : vector<16x8xf32> to vector<16x8xbf16>
    %c32_44 = arith.constant 32 : index
    %c0_45 = arith.constant 0 : index
    %87 = vector.load %arg13[%c32_44, %c0_45] : memref<48x32xbf16, #tpu.memory_space<vmem>>, vector<16x8xbf16>
    tpu.vector_store %arg13[%c32_44, %c0_45], %86 {strides = array<i32>} : memref<48x32xbf16, #tpu.memory_space<vmem>>, vector<16x8xbf16>,
    %c0_46 = arith.constant 0 : index
    %c8 = arith.constant 8 : index
    %88 = vector.load %arg12[%c0_46, %c8] : memref<48x96xbf16, #tpu.memory_space<vmem>>, vector<16x8xbf16>
    %c0_47 = arith.constant 0 : index
    %c40 = arith.constant 40 : index
    %89 = vector.load %arg12[%c0_47, %c40] : memref<48x96xbf16, #tpu.memory_space<vmem>>, vector<16x8xbf16>
    %cst_48 = arith.constant dense<0.000000e+00> : vector<16x16xf32>
    %90 = tpu.matmul %88, %89, %cst_48 {dimension_numbers = #tpu.dot_dimension_numbers<[1], [1], [0], [0], [0, 0, 1, 0], [], []>} : vector<16x8xbf16>, vector<16x8xbf16>, vector<16x16xf32> -> vector<16x16xf32>
    %c16_49 = arith.constant 16 : index
    %c8_50 = arith.constant 8 : index
    %91 = vector.load %arg12[%c16_49, %c8_50] : memref<48x96xbf16, #tpu.memory_space<vmem>>, vector<16x8xbf16>
    %c16_51 = arith.constant 16 : index
    %c40_52 = arith.constant 40 : index
    %92 = vector.load %arg12[%c16_51, %c40_52] : memref<48x96xbf16, #tpu.memory_space<vmem>>, vector<16x8xbf16>
    %cst_53 = arith.constant dense<0.000000e+00> : vector<16x16xf32>
    %93 = tpu.matmul %91, %92, %cst_53 {dimension_numbers = #tpu.dot_dimension_numbers<[1], [1], [0], [0], [0, 0, 1, 0], [], []>} : vector<16x8xbf16>, vector<16x8xbf16>, vector<16x16xf32> -> vector<16x16xf32>
    %94 = arith.addf %90, %93 : vector<16x16xf32>
    %c32_54 = arith.constant 32 : index
    %c8_55 = arith.constant 8 : index
    %95 = vector.load %arg12[%c32_54, %c8_55] : memref<48x96xbf16, #tpu.memory_space<vmem>>, vector<16x8xbf16>
    %c32_56 = arith.constant 32 : index
    %c40_57 = arith.constant 40 : index
    %96 = vector.load %arg12[%c32_56, %c40_57] : memref<48x96xbf16, #tpu.memory_space<vmem>>, vector<16x8xbf16>
    %cst_58 = arith.constant dense<0.000000e+00> : vector<16x16xf32>
    %97 = tpu.matmul %95, %96, %cst_58 {dimension_numbers = #tpu.dot_dimension_numbers<[1], [1], [0], [0], [0, 0, 1, 0], [], []>} : vector<16x8xbf16>, vector<16x8xbf16>, vector<16x16xf32> -> vector<16x16xf32>
    %98 = arith.addf %94, %97 : vector<16x16xf32>
    %cst_59 = arith.constant dense<0xFF800000> : vector<16xf32>
    %99 = vector.multi_reduction <maximumf>, %98, %cst_59 [1] : vector<16x16xf32> to vector<16xf32>
    %100 = vector.shape_cast %99 : vector<16xf32> to vector<16x1xf32>
    %101 = vector.broadcast %100 : vector<16x1xf32> to vector<16x16xf32>
    %102 = arith.subf %98, %101 : vector<16x16xf32>
    %103 = math.exp %102 : vector<16x16xf32>
    %cst_60 = arith.constant dense<0.000000e+00> : vector<16xf32>
    %104 = vector.multi_reduction <add>, %103, %cst_60 [1] : vector<16x16xf32> to vector<16xf32>
    %105 = vector.shape_cast %104 : vector<16xf32> to vector<16x1xf32>
    %106 = tpu.reciprocal %105 {approx = true} : vector<16x1xf32> -> vector<16x1xf32>
    %107 = vector.broadcast %106 : vector<16x1xf32> to vector<16x16xf32>
    %108 = arith.mulf %103, %107 : vector<16x16xf32>
    %109 = arith.truncf %108 : vector<16x16xf32> to vector<16x16xbf16>
    %c0_61 = arith.constant 0 : index
    %c72 = arith.constant 72 : index
    %110 = vector.load %arg12[%c0_61, %c72] : memref<48x96xbf16, #tpu.memory_space<vmem>>, vector<16x8xbf16>
    %cst_62 = arith.constant dense<0.000000e+00> : vector<16x8xf32>
    %111 = tpu.matmul %109, %110, %cst_62 {dimension_numbers = #tpu.dot_dimension_numbers<[1], [0], [0], [1], [0, 0, 1, 1], [], []>} : vector<16x16xbf16>, vector<16x8xbf16>, vector<16x8xf32> -> vector<16x8xf32>
    %112 = arith.truncf %111 : vector<16x8xf32> to vector<16x8xbf16>
    %c0_63 = arith.constant 0 : index
    %c8_64 = arith.constant 8 : index
    %113 = vector.load %arg13[%c0_63, %c8_64] : memref<48x32xbf16, #tpu.memory_space<vmem>>, vector<16x8xbf16>
    tpu.vector_store %arg13[%c0_63, %c8_64], %112 {strides = array<i32>} : memref<48x32xbf16, #tpu.memory_space<vmem>>, vector<16x8xbf16>,
    %c16_65 = arith.constant 16 : index
    %c72_66 = arith.constant 72 : index
    %114 = vector.load %arg12[%c16_65, %c72_66] : memref<48x96xbf16, #tpu.memory_space<vmem>>, vector<16x8xbf16>
    %cst_67 = arith.constant dense<0.000000e+00> : vector<16x8xf32>
    %115 = tpu.matmul %109, %114, %cst_67 {dimension_numbers = #tpu.dot_dimension_numbers<[1], [0], [0], [1], [0, 0, 1, 1], [], []>} : vector<16x16xbf16>, vector<16x8xbf16>, vector<16x8xf32> -> vector<16x8xf32>
    %116 = arith.truncf %115 : vector<16x8xf32> to vector<16x8xbf16>
    %c16_68 = arith.constant 16 : index
    %c8_69 = arith.constant 8 : index
    %117 = vector.load %arg13[%c16_68, %c8_69] : memref<48x32xbf16, #tpu.memory_space<vmem>>, vector<16x8xbf16>
    tpu.vector_store %arg13[%c16_68, %c8_69], %116 {strides = array<i32>} : memref<48x32xbf16, #tpu.memory_space<vmem>>, vector<16x8xbf16>,
    %c32_70 = arith.constant 32 : index
    %c72_71 = arith.constant 72 : index
    %118 = vector.load %arg12[%c32_70, %c72_71] : memref<48x96xbf16, #tpu.memory_space<vmem>>, vector<16x8xbf16>
    %cst_72 = arith.constant dense<0.000000e+00> : vector<16x8xf32>
    %119 = tpu.matmul %109, %118, %cst_72 {dimension_numbers = #tpu.dot_dimension_numbers<[1], [0], [0], [1], [0, 0, 1, 1], [], []>} : vector<16x16xbf16>, vector<16x8xbf16>, vector<16x8xf32> -> vector<16x8xf32>
    %120 = arith.truncf %119 : vector<16x8xf32> to vector<16x8xbf16>
    %c32_73 = arith.constant 32 : index
    %c8_74 = arith.constant 8 : index
    %121 = vector.load %arg13[%c32_73, %c8_74] : memref<48x32xbf16, #tpu.memory_space<vmem>>, vector<16x8xbf16>
    tpu.vector_store %arg13[%c32_73, %c8_74], %120 {strides = array<i32>} : memref<48x32xbf16, #tpu.memory_space<vmem>>, vector<16x8xbf16>,
    %c0_75 = arith.constant 0 : index
    %c16_76 = arith.constant 16 : index
    %122 = vector.load %arg12[%c0_75, %c16_76] : memref<48x96xbf16, #tpu.memory_space<vmem>>, vector<16x8xbf16>
    %c0_77 = arith.constant 0 : index
    %c48 = arith.constant 48 : index
    %123 = vector.load %arg12[%c0_77, %c48] : memref<48x96xbf16, #tpu.memory_space<vmem>>, vector<16x8xbf16>
    %cst_78 = arith.constant dense<0.000000e+00> : vector<16x16xf32>
    %124 = tpu.matmul %122, %123, %cst_78 {dimension_numbers = #tpu.dot_dimension_numbers<[1], [1], [0], [0], [0, 0, 1, 0], [], []>} : vector<16x8xbf16>, vector<16x8xbf16>, vector<16x16xf32> -> vector<16x16xf32>
    %c16_79 = arith.constant 16 : index
    %c16_80 = arith.constant 16 : index
    %125 = vector.load %arg12[%c16_79, %c16_80] : memref<48x96xbf16, #tpu.memory_space<vmem>>, vector<16x8xbf16>
    %c16_81 = arith.constant 16 : index
    %c48_82 = arith.constant 48 : index
    %126 = vector.load %arg12[%c16_81, %c48_82] : memref<48x96xbf16, #tpu.memory_space<vmem>>, vector<16x8xbf16>
    %cst_83 = arith.constant dense<0.000000e+00> : vector<16x16xf32>
    %127 = tpu.matmul %125, %126, %cst_83 {dimension_numbers = #tpu.dot_dimension_numbers<[1], [1], [0], [0], [0, 0, 1, 0], [], []>} : vector<16x8xbf16>, vector<16x8xbf16>, vector<16x16xf32> -> vector<16x16xf32>
    %128 = arith.addf %124, %127 : vector<16x16xf32>
    %c32_84 = arith.constant 32 : index
    %c16_85 = arith.constant 16 : index
    %129 = vector.load %arg12[%c32_84, %c16_85] : memref<48x96xbf16, #tpu.memory_space<vmem>>, vector<16x8xbf16>
    %c32_86 = arith.constant 32 : index
    %c48_87 = arith.constant 48 : index
    %130 = vector.load %arg12[%c32_86, %c48_87] : memref<48x96xbf16, #tpu.memory_space<vmem>>, vector<16x8xbf16>
    %cst_88 = arith.constant dense<0.000000e+00> : vector<16x16xf32>
    %131 = tpu.matmul %129, %130, %cst_88 {dimension_numbers = #tpu.dot_dimension_numbers<[1], [1], [0], [0], [0, 0, 1, 0], [], []>} : vector<16x8xbf16>, vector<16x8xbf16>, vector<16x16xf32> -> vector<16x16xf32>
    %132 = arith.addf %128, %131 : vector<16x16xf32>
    %cst_89 = arith.constant dense<0xFF800000> : vector<16xf32>
    %133 = vector.multi_reduction <maximumf>, %132, %cst_89 [1] : vector<16x16xf32> to vector<16xf32>
    %134 = vector.shape_cast %133 : vector<16xf32> to vector<16x1xf32>
    %135 = vector.broadcast %134 : vector<16x1xf32> to vector<16x16xf32>
    %136 = arith.subf %132, %135 : vector<16x16xf32>
    %137 = math.exp %136 : vector<16x16xf32>
    %cst_90 = arith.constant dense<0.000000e+00> : vector<16xf32>
    %138 = vector.multi_reduction <add>, %137, %cst_90 [1] : vector<16x16xf32> to vector<16xf32>
    %139 = vector.shape_cast %138 : vector<16xf32> to vector<16x1xf32>
    %140 = tpu.reciprocal %139 {approx = true} : vector<16x1xf32> -> vector<16x1xf32>
    %141 = vector.broadcast %140 : vector<16x1xf32> to vector<16x16xf32>
    %142 = arith.mulf %137, %141 : vector<16x16xf32>
    %143 = arith.truncf %142 : vector<16x16xf32> to vector<16x16xbf16>
    %c0_91 = arith.constant 0 : index
    %c80 = arith.constant 80 : index
    %144 = vector.load %arg12[%c0_91, %c80] : memref<48x96xbf16, #tpu.memory_space<vmem>>, vector<16x8xbf16>
    %cst_92 = arith.constant dense<0.000000e+00> : vector<16x8xf32>
    %145 = tpu.matmul %143, %144, %cst_92 {dimension_numbers = #tpu.dot_dimension_numbers<[1], [0], [0], [1], [0, 0, 1, 1], [], []>} : vector<16x16xbf16>, vector<16x8xbf16>, vector<16x8xf32> -> vector<16x8xf32>
    %146 = arith.truncf %145 : vector<16x8xf32> to vector<16x8xbf16>
    %c0_93 = arith.constant 0 : index
    %c16_94 = arith.constant 16 : index
    %147 = vector.load %arg13[%c0_93, %c16_94] : memref<48x32xbf16, #tpu.memory_space<vmem>>, vector<16x8xbf16>
    tpu.vector_store %arg13[%c0_93, %c16_94], %146 {strides = array<i32>} : memref<48x32xbf16, #tpu.memory_space<vmem>>, vector<16x8xbf16>,
    %c16_95 = arith.constant 16 : index
    %c80_96 = arith.constant 80 : index
    %148 = vector.load %arg12[%c16_95, %c80_96] : memref<48x96xbf16, #tpu.memory_space<vmem>>, vector<16x8xbf16>
    %cst_97 = arith.constant dense<0.000000e+00> : vector<16x8xf32>
    %149 = tpu.matmul %143, %148, %cst_97 {dimension_numbers = #tpu.dot_dimension_numbers<[1], [0], [0], [1], [0, 0, 1, 1], [], []>} : vector<16x16xbf16>, vector<16x8xbf16>, vector<16x8xf32> -> vector<16x8xf32>
    %150 = arith.truncf %149 : vector<16x8xf32> to vector<16x8xbf16>
    %c16_98 = arith.constant 16 : index
    %c16_99 = arith.constant 16 : index
    %151 = vector.load %arg13[%c16_98, %c16_99] : memref<48x32xbf16, #tpu.memory_space<vmem>>, vector<16x8xbf16>
    tpu.vector_store %arg13[%c16_98, %c16_99], %150 {strides = array<i32>} : memref<48x32xbf16, #tpu.memory_space<vmem>>, vector<16x8xbf16>,
    %c32_100 = arith.constant 32 : index
    %c80_101 = arith.constant 80 : index
    %152 = vector.load %arg12[%c32_100, %c80_101] : memref<48x96xbf16, #tpu.memory_space<vmem>>, vector<16x8xbf16>
    %cst_102 = arith.constant dense<0.000000e+00> : vector<16x8xf32>
    %153 = tpu.matmul %143, %152, %cst_102 {dimension_numbers = #tpu.dot_dimension_numbers<[1], [0], [0], [1], [0, 0, 1, 1], [], []>} : vector<16x16xbf16>, vector<16x8xbf16>, vector<16x8xf32> -> vector<16x8xf32>
    %154 = arith.truncf %153 : vector<16x8xf32> to vector<16x8xbf16>
    %c32_103 = arith.constant 32 : index
    %c16_104 = arith.constant 16 : index
    %155 = vector.load %arg13[%c32_103, %c16_104] : memref<48x32xbf16, #tpu.memory_space<vmem>>, vector<16x8xbf16>
    tpu.vector_store %arg13[%c32_103, %c16_104], %154 {strides = array<i32>} : memref<48x32xbf16, #tpu.memory_space<vmem>>, vector<16x8xbf16>,
    %c0_105 = arith.constant 0 : index
    %c24 = arith.constant 24 : index
    %156 = vector.load %arg12[%c0_105, %c24] : memref<48x96xbf16, #tpu.memory_space<vmem>>, vector<16x8xbf16>
    %c0_106 = arith.constant 0 : index
    %c56 = arith.constant 56 : index
    %157 = vector.load %arg12[%c0_106, %c56] : memref<48x96xbf16, #tpu.memory_space<vmem>>, vector<16x8xbf16>
    %cst_107 = arith.constant dense<0.000000e+00> : vector<16x16xf32>
    %158 = tpu.matmul %156, %157, %cst_107 {dimension_numbers = #tpu.dot_dimension_numbers<[1], [1], [0], [0], [0, 0, 1, 0], [], []>} : vector<16x8xbf16>, vector<16x8xbf16>, vector<16x16xf32> -> vector<16x16xf32>
    %c16_108 = arith.constant 16 : index
    %c24_109 = arith.constant 24 : index
    %159 = vector.load %arg12[%c16_108, %c24_109] : memref<48x96xbf16, #tpu.memory_space<vmem>>, vector<16x8xbf16>
    %c16_110 = arith.constant 16 : index
    %c56_111 = arith.constant 56 : index
    %160 = vector.load %arg12[%c16_110, %c56_111] : memref<48x96xbf16, #tpu.memory_space<vmem>>, vector<16x8xbf16>
    %cst_112 = arith.constant dense<0.000000e+00> : vector<16x16xf32>
    %161 = tpu.matmul %159, %160, %cst_112 {dimension_numbers = #tpu.dot_dimension_numbers<[1], [1], [0], [0], [0, 0, 1, 0], [], []>} : vector<16x8xbf16>, vector<16x8xbf16>, vector<16x16xf32> -> vector<16x16xf32>
    %162 = arith.addf %158, %161 : vector<16x16xf32>
    %c32_113 = arith.constant 32 : index
    %c24_114 = arith.constant 24 : index
    %163 = vector.load %arg12[%c32_113, %c24_114] : memref<48x96xbf16, #tpu.memory_space<vmem>>, vector<16x8xbf16>
    %c32_115 = arith.constant 32 : index
    %c56_116 = arith.constant 56 : index
    %164 = vector.load %arg12[%c32_115, %c56_116] : memref<48x96xbf16, #tpu.memory_space<vmem>>, vector<16x8xbf16>
    %cst_117 = arith.constant dense<0.000000e+00> : vector<16x16xf32>
    %165 = tpu.matmul %163, %164, %cst_117 {dimension_numbers = #tpu.dot_dimension_numbers<[1], [1], [0], [0], [0, 0, 1, 0], [], []>} : vector<16x8xbf16>, vector<16x8xbf16>, vector<16x16xf32> -> vector<16x16xf32>
    %166 = arith.addf %162, %165 : vector<16x16xf32>
    %cst_118 = arith.constant dense<0xFF800000> : vector<16xf32>
    %167 = vector.multi_reduction <maximumf>, %166, %cst_118 [1] : vector<16x16xf32> to vector<16xf32>
    %168 = vector.shape_cast %167 : vector<16xf32> to vector<16x1xf32>
    %169 = vector.broadcast %168 : vector<16x1xf32> to vector<16x16xf32>
    %170 = arith.subf %166, %169 : vector<16x16xf32>
    %171 = math.exp %170 : vector<16x16xf32>
    %cst_119 = arith.constant dense<0.000000e+00> : vector<16xf32>
    %172 = vector.multi_reduction <add>, %171, %cst_119 [1] : vector<16x16xf32> to vector<16xf32>
    %173 = vector.shape_cast %172 : vector<16xf32> to vector<16x1xf32>
    %174 = tpu.reciprocal %173 {approx = true} : vector<16x1xf32> -> vector<16x1xf32>
    %175 = vector.broadcast %174 : vector<16x1xf32> to vector<16x16xf32>
    %176 = arith.mulf %171, %175 : vector<16x16xf32>
    %177 = arith.truncf %176 : vector<16x16xf32> to vector<16x16xbf16>
    %c0_120 = arith.constant 0 : index
    %c88 = arith.constant 88 : index
    %178 = vector.load %arg12[%c0_120, %c88] : memref<48x96xbf16, #tpu.memory_space<vmem>>, vector<16x8xbf16>
    %cst_121 = arith.constant dense<0.000000e+00> : vector<16x8xf32>
    %179 = tpu.matmul %177, %178, %cst_121 {dimension_numbers = #tpu.dot_dimension_numbers<[1], [0], [0], [1], [0, 0, 1, 1], [], []>} : vector<16x16xbf16>, vector<16x8xbf16>, vector<16x8xf32> -> vector<16x8xf32>
    %180 = arith.truncf %179 : vector<16x8xf32> to vector<16x8xbf16>
    %c0_122 = arith.constant 0 : index
    %c24_123 = arith.constant 24 : index
    %181 = vector.load %arg13[%c0_122, %c24_123] : memref<48x32xbf16, #tpu.memory_space<vmem>>, vector<16x8xbf16>
    tpu.vector_store %arg13[%c0_122, %c24_123], %180 {strides = array<i32>} : memref<48x32xbf16, #tpu.memory_space<vmem>>, vector<16x8xbf16>,
    %c16_124 = arith.constant 16 : index
    %c88_125 = arith.constant 88 : index
    %182 = vector.load %arg12[%c16_124, %c88_125] : memref<48x96xbf16, #tpu.memory_space<vmem>>, vector<16x8xbf16>
    %cst_126 = arith.constant dense<0.000000e+00> : vector<16x8xf32>
    %183 = tpu.matmul %177, %182, %cst_126 {dimension_numbers = #tpu.dot_dimension_numbers<[1], [0], [0], [1], [0, 0, 1, 1], [], []>} : vector<16x16xbf16>, vector<16x8xbf16>, vector<16x8xf32> -> vector<16x8xf32>
    %184 = arith.truncf %183 : vector<16x8xf32> to vector<16x8xbf16>
    %c16_127 = arith.constant 16 : index
    %c24_128 = arith.constant 24 : index
    %185 = vector.load %arg13[%c16_127, %c24_128] : memref<48x32xbf16, #tpu.memory_space<vmem>>, vector<16x8xbf16>
    tpu.vector_store %arg13[%c16_127, %c24_128], %184 {strides = array<i32>} : memref<48x32xbf16, #tpu.memory_space<vmem>>, vector<16x8xbf16>,
    %c32_129 = arith.constant 32 : index
    %c88_130 = arith.constant 88 : index
    %186 = vector.load %arg12[%c32_129, %c88_130] : memref<48x96xbf16, #tpu.memory_space<vmem>>, vector<16x8xbf16>
    %cst_131 = arith.constant dense<0.000000e+00> : vector<16x8xf32>
    %187 = tpu.matmul %177, %186, %cst_131 {dimension_numbers = #tpu.dot_dimension_numbers<[1], [0], [0], [1], [0, 0, 1, 1], [], []>} : vector<16x16xbf16>, vector<16x8xbf16>, vector<16x8xf32> -> vector<16x8xf32>
    %188 = arith.truncf %187 : vector<16x8xf32> to vector<16x8xbf16>
    %c32_132 = arith.constant 32 : index
    %c24_133 = arith.constant 24 : index
    %189 = vector.load %arg13[%c32_132, %c24_133] : memref<48x32xbf16, #tpu.memory_space<vmem>>, vector<16x8xbf16>
    tpu.vector_store %arg13[%c32_132, %c24_133], %188 {strides = array<i32>} : memref<48x32xbf16, #tpu.memory_space<vmem>>, vector<16x8xbf16>,
    %c0_134 = arith.constant 0 : index
    %c0_135 = arith.constant 0 : index
    %190 = vector.load %arg13[%c0_134, %c0_135] : memref<48x32xbf16, #tpu.memory_space<vmem>>, vector<48x32xbf16>
    %c0_136 = arith.constant 0 : index
    %c0_137 = arith.constant 0 : index
    %191 = vector.load %arg5[%c0_136, %c0_137] : memref<32x32xbf16, #tpu.memory_space<vmem>>, vector<32x32xbf16>
    %cst_138 = arith.constant dense<0.000000e+00> : vector<48x32xf32>
    %192 = tpu.matmul %190, %191, %cst_138 {dimension_numbers = #tpu.dot_dimension_numbers<[1], [0], [0], [1], [0, 0, 1, 1], [], []>} : vector<48x32xbf16>, vector<32x32xbf16>, vector<48x32xf32> -> vector<48x32xf32>
    %193 = vector.shape_cast %192 : vector<48x32xf32> to vector<3x16x32xf32>
    %194 = arith.addf %1, %193 : vector<3x16x32xf32>
    %c0_139 = arith.constant 0 : index
    %c0_140 = arith.constant 0 : index
    %195 = vector.load %arg6[%c0_139, %c0_140] : memref<1x32xf32, #tpu.memory_space<vmem>>, vector<1x32xf32>
    %c0_141 = arith.constant 0 : index
    %c0_142 = arith.constant 0 : index
    %196 = vector.load %arg7[%c0_141, %c0_142] : memref<1x32xf32, #tpu.memory_space<vmem>>, vector<1x32xf32>
    %197 = vector.extract_strided_slice %194 {offsets = [0, 0, 0], sizes = [1, 16, 32], strides = [1, 1, 1]} : vector<3x16x32xf32> to vector<1x16x32xf32>
    %198 = vector.shape_cast %197 : vector<1x16x32xf32> to vector<16x32xf32>
    %199 = vector.extract_strided_slice %194 {offsets = [0, 0, 0], sizes = [1, 16, 32], strides = [1, 1, 1]} : vector<3x16x32xf32> to vector<1x16x32xf32>
    %200 = vector.shape_cast %199 : vector<1x16x32xf32> to vector<16x32xf32>
    %201 = arith.mulf %198, %200 : vector<16x32xf32>
    %202 = vector.extract_strided_slice %194 {offsets = [1, 0, 0], sizes = [1, 16, 32], strides = [1, 1, 1]} : vector<3x16x32xf32> to vector<1x16x32xf32>
    %203 = vector.shape_cast %202 : vector<1x16x32xf32> to vector<16x32xf32>
    %204 = vector.extract_strided_slice %194 {offsets = [1, 0, 0], sizes = [1, 16, 32], strides = [1, 1, 1]} : vector<3x16x32xf32> to vector<1x16x32xf32>
    %205 = vector.shape_cast %204 : vector<1x16x32xf32> to vector<16x32xf32>
    %206 = arith.mulf %203, %205 : vector<16x32xf32>
    %207 = arith.addf %201, %206 : vector<16x32xf32>
    %208 = vector.extract_strided_slice %194 {offsets = [2, 0, 0], sizes = [1, 16, 32], strides = [1, 1, 1]} : vector<3x16x32xf32> to vector<1x16x32xf32>
    %209 = vector.shape_cast %208 : vector<1x16x32xf32> to vector<16x32xf32>
    %210 = vector.extract_strided_slice %194 {offsets = [2, 0, 0], sizes = [1, 16, 32], strides = [1, 1, 1]} : vector<3x16x32xf32> to vector<1x16x32xf32>
    %211 = vector.shape_cast %210 : vector<1x16x32xf32> to vector<16x32xf32>
    %212 = arith.mulf %209, %211 : vector<16x32xf32>
    %213 = arith.addf %207, %212 : vector<16x32xf32>
    %214 = math.sqrt %213 : vector<16x32xf32>
    %cst_143 = arith.constant dense<0.000000e+00> : vector<16xf32>
    %215 = vector.multi_reduction <add>, %214, %cst_143 [1] : vector<16x32xf32> to vector<16xf32>
    %216 = vector.shape_cast %215 : vector<16xf32> to vector<16x1xf32>
    %cst_144 = arith.constant 3.200000e+01 : f32
    %217 = vector.broadcast %cst_144 : f32 to vector<16x1xf32>
    %218 = arith.divf %216, %217 : vector<16x1xf32>
    %219 = vector.broadcast %218 : vector<16x1xf32> to vector<16x32xf32>
    %220 = arith.subf %214, %219 : vector<16x32xf32>
    %221 = arith.mulf %220, %220 : vector<16x32xf32>
    %cst_145 = arith.constant dense<0.000000e+00> : vector<16xf32>
    %222 = vector.multi_reduction <add>, %221, %cst_145 [1] : vector<16x32xf32> to vector<16xf32>
    %223 = vector.shape_cast %222 : vector<16xf32> to vector<16x1xf32>
    %cst_146 = arith.constant 3.200000e+01 : f32
    %224 = vector.broadcast %cst_146 : f32 to vector<16x1xf32>
    %225 = arith.divf %223, %224 : vector<16x1xf32>
    %cst_147 = arith.constant 9.99999997E-7 : f32
    %226 = vector.broadcast %cst_147 : f32 to vector<16x1xf32>
    %227 = arith.addf %225, %226 : vector<16x1xf32>
    %228 = math.rsqrt %227 : vector<16x1xf32>
    %229 = vector.broadcast %228 : vector<16x1xf32> to vector<16x32xf32>
    %230 = arith.mulf %220, %229 : vector<16x32xf32>
    %231 = vector.broadcast %195 : vector<1x32xf32> to vector<16x32xf32>
    %232 = arith.mulf %230, %231 : vector<16x32xf32>
    %233 = vector.broadcast %196 : vector<1x32xf32> to vector<16x32xf32>
    %234 = arith.addf %232, %233 : vector<16x32xf32>
    %cst_148 = arith.constant 9.99999997E-7 : f32
    %235 = vector.broadcast %cst_148 : f32 to vector<16x32xf32>
    %236 = arith.addf %214, %235 : vector<16x32xf32>
    %237 = arith.divf %234, %236 : vector<16x32xf32>
    %238 = vector.shape_cast %237 : vector<16x32xf32> to vector<1x16x32xf32>
    %239 = vector.broadcast %238 : vector<1x16x32xf32> to vector<3x16x32xf32>
    %240 = arith.mulf %194, %239 : vector<3x16x32xf32>
    %241 = vector.shape_cast %240 : vector<3x16x32xf32> to vector<48x32xf32>
    %242 = arith.truncf %241 : vector<48x32xf32> to vector<48x32xbf16>
    %c0_149 = arith.constant 0 : index
    %c0_150 = arith.constant 0 : index
    %243 = vector.load %arg8[%c0_149, %c0_150] : memref<32x128xbf16, #tpu.memory_space<vmem>>, vector<32x128xbf16>
    %cst_151 = arith.constant dense<0.000000e+00> : vector<48x128xf32>
    %244 = tpu.matmul %242, %243, %cst_151 {dimension_numbers = #tpu.dot_dimension_numbers<[1], [0], [0], [1], [0, 0, 1, 1], [], []>} : vector<48x32xbf16>, vector<32x128xbf16>, vector<48x128xf32> -> vector<48x128xf32>
    %245 = vector.shape_cast %244 : vector<48x128xf32> to vector<3x16x128xf32>
    %c0_152 = arith.constant 0 : index
    %c0_153 = arith.constant 0 : index
    %246 = vector.load %arg9[%c0_152, %c0_153] : memref<128x128xbf16, #tpu.memory_space<vmem>>, vector<128x128xbf16>
    %247 = vector.shape_cast %245 : vector<3x16x128xf32> to vector<48x128xf32>
    %248 = arith.truncf %247 : vector<48x128xf32> to vector<48x128xbf16>
    %cst_154 = arith.constant dense<0.000000e+00> : vector<48x128xf32>
    %249 = tpu.matmul %248, %246, %cst_154 {dimension_numbers = #tpu.dot_dimension_numbers<[1], [0], [0], [1], [0, 0, 1, 1], [], []>} : vector<48x128xbf16>, vector<128x128xbf16>, vector<48x128xf32> -> vector<48x128xf32>
    %250 = vector.shape_cast %249 : vector<48x128xf32> to vector<3x16x128xf32>
    %251 = vector.extract_strided_slice %250 {offsets = [0, 0, 0], sizes = [1, 16, 128], strides = [1, 1, 1]} : vector<3x16x128xf32> to vector<1x16x128xf32>
    %252 = vector.shape_cast %251 : vector<1x16x128xf32> to vector<16x128xf32>
    %253 = vector.extract_strided_slice %250 {offsets = [0, 0, 0], sizes = [1, 16, 128], strides = [1, 1, 1]} : vector<3x16x128xf32> to vector<1x16x128xf32>
    %254 = vector.shape_cast %253 : vector<1x16x128xf32> to vector<16x128xf32>
    %255 = arith.mulf %252, %254 : vector<16x128xf32>
    %256 = vector.extract_strided_slice %250 {offsets = [1, 0, 0], sizes = [1, 16, 128], strides = [1, 1, 1]} : vector<3x16x128xf32> to vector<1x16x128xf32>
    %257 = vector.shape_cast %256 : vector<1x16x128xf32> to vector<16x128xf32>
    %258 = vector.extract_strided_slice %250 {offsets = [1, 0, 0], sizes = [1, 16, 128], strides = [1, 1, 1]} : vector<3x16x128xf32> to vector<1x16x128xf32>
    %259 = vector.shape_cast %258 : vector<1x16x128xf32> to vector<16x128xf32>
    %260 = arith.mulf %257, %259 : vector<16x128xf32>
    %261 = arith.addf %255, %260 : vector<16x128xf32>
    %262 = vector.extract_strided_slice %250 {offsets = [2, 0, 0], sizes = [1, 16, 128], strides = [1, 1, 1]} : vector<3x16x128xf32> to vector<1x16x128xf32>
    %263 = vector.shape_cast %262 : vector<1x16x128xf32> to vector<16x128xf32>
    %264 = vector.extract_strided_slice %250 {offsets = [2, 0, 0], sizes = [1, 16, 128], strides = [1, 1, 1]} : vector<3x16x128xf32> to vector<1x16x128xf32>
    %265 = vector.shape_cast %264 : vector<1x16x128xf32> to vector<16x128xf32>
    %266 = arith.mulf %263, %265 : vector<16x128xf32>
    %267 = arith.addf %261, %266 : vector<16x128xf32>
    %268 = math.sqrt %267 : vector<16x128xf32>
    %cst_155 = arith.constant 9.99999997E-7 : f32
    %269 = vector.broadcast %cst_155 : f32 to vector<16x128xf32>
    %270 = arith.addf %268, %269 : vector<16x128xf32>
    %271 = vector.shape_cast %270 : vector<16x128xf32> to vector<1x16x128xf32>
    %272 = vector.broadcast %271 : vector<1x16x128xf32> to vector<3x16x128xf32>
    %273 = arith.divf %250, %272 : vector<3x16x128xf32>
    %274 = vector.extract_strided_slice %245 {offsets = [0, 0, 0], sizes = [1, 16, 128], strides = [1, 1, 1]} : vector<3x16x128xf32> to vector<1x16x128xf32>
    %275 = vector.shape_cast %274 : vector<1x16x128xf32> to vector<16x128xf32>
    %276 = vector.extract_strided_slice %273 {offsets = [0, 0, 0], sizes = [1, 16, 128], strides = [1, 1, 1]} : vector<3x16x128xf32> to vector<1x16x128xf32>
    %277 = vector.shape_cast %276 : vector<1x16x128xf32> to vector<16x128xf32>
    %278 = arith.mulf %275, %277 : vector<16x128xf32>
    %279 = vector.extract_strided_slice %245 {offsets = [1, 0, 0], sizes = [1, 16, 128], strides = [1, 1, 1]} : vector<3x16x128xf32> to vector<1x16x128xf32>
    %280 = vector.shape_cast %279 : vector<1x16x128xf32> to vector<16x128xf32>
    %281 = vector.extract_strided_slice %273 {offsets = [1, 0, 0], sizes = [1, 16, 128], strides = [1, 1, 1]} : vector<3x16x128xf32> to vector<1x16x128xf32>
    %282 = vector.shape_cast %281 : vector<1x16x128xf32> to vector<16x128xf32>
    %283 = arith.mulf %280, %282 : vector<16x128xf32>
    %284 = arith.addf %278, %283 : vector<16x128xf32>
    %285 = vector.extract_strided_slice %245 {offsets = [2, 0, 0], sizes = [1, 16, 128], strides = [1, 1, 1]} : vector<3x16x128xf32> to vector<1x16x128xf32>
    %286 = vector.shape_cast %285 : vector<1x16x128xf32> to vector<16x128xf32>
    %287 = vector.extract_strided_slice %273 {offsets = [2, 0, 0], sizes = [1, 16, 128], strides = [1, 1, 1]} : vector<3x16x128xf32> to vector<1x16x128xf32>
    %288 = vector.shape_cast %287 : vector<1x16x128xf32> to vector<16x128xf32>
    %289 = arith.mulf %286, %288 : vector<16x128xf32>
    %290 = arith.addf %284, %289 : vector<16x128xf32>
    %291 = vector.shape_cast %290 : vector<16x128xf32> to vector<1x16x128xf32>
    %292 = vector.broadcast %291 : vector<1x16x128xf32> to vector<3x16x128xf32>
    %293 = arith.mulf %292, %273 : vector<3x16x128xf32>
    %294 = arith.subf %245, %293 : vector<3x16x128xf32>
    %cst_156 = arith.constant 0.000000e+00 : f32
    %295 = vector.broadcast %cst_156 : f32 to vector<16x128xf32>
    %296 = arith.cmpf oge, %290, %295 : vector<16x128xf32>
    %cst_157 = arith.constant 2.000000e-01 : f32
    %297 = vector.broadcast %cst_157 : f32 to vector<16x128xf32>
    %298 = arith.mulf %297, %290 : vector<16x128xf32>
    %299 = arith.select %296, %290, %298 : vector<16x128xi1>, vector<16x128xf32>
    %300 = vector.shape_cast %299 : vector<16x128xf32> to vector<1x16x128xf32>
    %301 = vector.broadcast %300 : vector<1x16x128xf32> to vector<3x16x128xf32>
    %302 = arith.mulf %301, %273 : vector<3x16x128xf32>
    %303 = arith.addf %294, %302 : vector<3x16x128xf32>
    %304 = vector.shape_cast %303 : vector<3x16x128xf32> to vector<48x128xf32>
    %305 = arith.truncf %304 : vector<48x128xf32> to vector<48x128xbf16>
    %c0_158 = arith.constant 0 : index
    %c0_159 = arith.constant 0 : index
    %306 = vector.load %arg10[%c0_158, %c0_159] : memref<128x32xbf16, #tpu.memory_space<vmem>>, vector<128x32xbf16>
    %cst_160 = arith.constant dense<0.000000e+00> : vector<48x32xf32>
    %307 = tpu.matmul %305, %306, %cst_160 {dimension_numbers = #tpu.dot_dimension_numbers<[1], [0], [0], [1], [0, 0, 1, 1], [], []>} : vector<48x128xbf16>, vector<128x32xbf16>, vector<48x32xf32> -> vector<48x32xf32>
    %308 = vector.shape_cast %307 : vector<48x32xf32> to vector<3x16x32xf32>
    %309 = arith.addf %194, %308 : vector<3x16x32xf32>
    %c0_161 = arith.constant 0 : index
    %c0_162 = arith.constant 0 : index
    %c0_163 = arith.constant 0 : index
    %c0_164 = arith.constant 0 : index
    %310 = vector.load %arg11[%c0_161, %c0_162, %c0_163, %c0_164] : memref<2x3x16x32xf32, #tpu.memory_space<vmem>>, vector<1x3x16x32xf32>
    %311 = vector.shape_cast %310 : vector<1x3x16x32xf32> to vector<3x16x32xf32>
    %312 = vector.shape_cast %309 : vector<3x16x32xf32> to vector<1x3x16x32xf32>
    tpu.vector_store %arg11[%c0_161, %c0_162, %c0_163, %c0_164], %312 {strides = array<i32>} : memref<2x3x16x32xf32, #tpu.memory_space<vmem>>, vector<1x3x16x32xf32>,
    %c1 = arith.constant 1 : index
    %c0_165 = arith.constant 0 : index
    %c0_166 = arith.constant 0 : index
    %c0_167 = arith.constant 0 : index
    %313 = vector.load %arg1[%c1, %c0_165, %c0_166, %c0_167] : memref<2x3x16x32xf32, #tpu.memory_space<vmem>>, vector<1x3x16x32xf32>
    %314 = vector.shape_cast %313 : vector<1x3x16x32xf32> to vector<3x16x32xf32>
    %c0_168 = arith.constant 0 : index
    %c0_169 = arith.constant 0 : index
    %315 = vector.load %arg2[%c0_168, %c0_169] : memref<1x32xf32, #tpu.memory_space<vmem>>, vector<1x32xf32>
    %c0_170 = arith.constant 0 : index
    %c0_171 = arith.constant 0 : index
    %316 = vector.load %arg3[%c0_170, %c0_171] : memref<1x32xf32, #tpu.memory_space<vmem>>, vector<1x32xf32>
    %317 = vector.extract_strided_slice %314 {offsets = [0, 0, 0], sizes = [1, 16, 32], strides = [1, 1, 1]} : vector<3x16x32xf32> to vector<1x16x32xf32>
    %318 = vector.shape_cast %317 : vector<1x16x32xf32> to vector<16x32xf32>
    %319 = vector.extract_strided_slice %314 {offsets = [0, 0, 0], sizes = [1, 16, 32], strides = [1, 1, 1]} : vector<3x16x32xf32> to vector<1x16x32xf32>
    %320 = vector.shape_cast %319 : vector<1x16x32xf32> to vector<16x32xf32>
    %321 = arith.mulf %318, %320 : vector<16x32xf32>
    %322 = vector.extract_strided_slice %314 {offsets = [1, 0, 0], sizes = [1, 16, 32], strides = [1, 1, 1]} : vector<3x16x32xf32> to vector<1x16x32xf32>
    %323 = vector.shape_cast %322 : vector<1x16x32xf32> to vector<16x32xf32>
    %324 = vector.extract_strided_slice %314 {offsets = [1, 0, 0], sizes = [1, 16, 32], strides = [1, 1, 1]} : vector<3x16x32xf32> to vector<1x16x32xf32>
    %325 = vector.shape_cast %324 : vector<1x16x32xf32> to vector<16x32xf32>
    %326 = arith.mulf %323, %325 : vector<16x32xf32>
    %327 = arith.addf %321, %326 : vector<16x32xf32>
    %328 = vector.extract_strided_slice %314 {offsets = [2, 0, 0], sizes = [1, 16, 32], strides = [1, 1, 1]} : vector<3x16x32xf32> to vector<1x16x32xf32>
    %329 = vector.shape_cast %328 : vector<1x16x32xf32> to vector<16x32xf32>
    %330 = vector.extract_strided_slice %314 {offsets = [2, 0, 0], sizes = [1, 16, 32], strides = [1, 1, 1]} : vector<3x16x32xf32> to vector<1x16x32xf32>
    %331 = vector.shape_cast %330 : vector<1x16x32xf32> to vector<16x32xf32>
    %332 = arith.mulf %329, %331 : vector<16x32xf32>
    %333 = arith.addf %327, %332 : vector<16x32xf32>
    %334 = math.sqrt %333 : vector<16x32xf32>
    %cst_172 = arith.constant dense<0.000000e+00> : vector<16xf32>
    %335 = vector.multi_reduction <add>, %334, %cst_172 [1] : vector<16x32xf32> to vector<16xf32>
    %336 = vector.shape_cast %335 : vector<16xf32> to vector<16x1xf32>
    %cst_173 = arith.constant 3.200000e+01 : f32
    %337 = vector.broadcast %cst_173 : f32 to vector<16x1xf32>
    %338 = arith.divf %336, %337 : vector<16x1xf32>
    %339 = vector.broadcast %338 : vector<16x1xf32> to vector<16x32xf32>
    %340 = arith.subf %334, %339 : vector<16x32xf32>
    %341 = arith.mulf %340, %340 : vector<16x32xf32>
    %cst_174 = arith.constant dense<0.000000e+00> : vector<16xf32>
    %342 = vector.multi_reduction <add>, %341, %cst_174 [1] : vector<16x32xf32> to vector<16xf32>
    %343 = vector.shape_cast %342 : vector<16xf32> to vector<16x1xf32>
    %cst_175 = arith.constant 3.200000e+01 : f32
    %344 = vector.broadcast %cst_175 : f32 to vector<16x1xf32>
    %345 = arith.divf %343, %344 : vector<16x1xf32>
    %cst_176 = arith.constant 9.99999997E-7 : f32
    %346 = vector.broadcast %cst_176 : f32 to vector<16x1xf32>
    %347 = arith.addf %345, %346 : vector<16x1xf32>
    %348 = math.rsqrt %347 : vector<16x1xf32>
    %349 = vector.broadcast %348 : vector<16x1xf32> to vector<16x32xf32>
    %350 = arith.mulf %340, %349 : vector<16x32xf32>
    %351 = vector.broadcast %315 : vector<1x32xf32> to vector<16x32xf32>
    %352 = arith.mulf %350, %351 : vector<16x32xf32>
    %353 = vector.broadcast %316 : vector<1x32xf32> to vector<16x32xf32>
    %354 = arith.addf %352, %353 : vector<16x32xf32>
    %cst_177 = arith.constant 9.99999997E-7 : f32
    %355 = vector.broadcast %cst_177 : f32 to vector<16x32xf32>
    %356 = arith.addf %334, %355 : vector<16x32xf32>
    %357 = arith.divf %354, %356 : vector<16x32xf32>
    %358 = vector.shape_cast %357 : vector<16x32xf32> to vector<1x16x32xf32>
    %359 = vector.broadcast %358 : vector<1x16x32xf32> to vector<3x16x32xf32>
    %360 = arith.mulf %314, %359 : vector<3x16x32xf32>
    %361 = vector.shape_cast %360 : vector<3x16x32xf32> to vector<48x32xf32>
    %362 = arith.truncf %361 : vector<48x32xf32> to vector<48x32xbf16>
    %c0_178 = arith.constant 0 : index
    %c0_179 = arith.constant 0 : index
    %363 = vector.load %arg4[%c0_178, %c0_179] : memref<32x96xbf16, #tpu.memory_space<vmem>>, vector<32x96xbf16>
    %cst_180 = arith.constant dense<0.000000e+00> : vector<48x96xf32>
    %364 = tpu.matmul %362, %363, %cst_180 {dimension_numbers = #tpu.dot_dimension_numbers<[1], [0], [0], [1], [0, 0, 1, 1], [], []>} : vector<48x32xbf16>, vector<32x96xbf16>, vector<48x96xf32> -> vector<48x96xf32>
    %365 = arith.truncf %364 : vector<48x96xf32> to vector<48x96xbf16>
    %c0_181 = arith.constant 0 : index
    %c0_182 = arith.constant 0 : index
    %366 = vector.load %arg12[%c0_181, %c0_182] : memref<48x96xbf16, #tpu.memory_space<vmem>>, vector<48x96xbf16>
    tpu.vector_store %arg12[%c0_181, %c0_182], %365 {strides = array<i32>} : memref<48x96xbf16, #tpu.memory_space<vmem>>, vector<48x96xbf16>,
    %c0_183 = arith.constant 0 : index
    %c0_184 = arith.constant 0 : index
    %367 = vector.load %arg12[%c0_183, %c0_184] : memref<48x96xbf16, #tpu.memory_space<vmem>>, vector<16x8xbf16>
    %c0_185 = arith.constant 0 : index
    %c32_186 = arith.constant 32 : index
    %368 = vector.load %arg12[%c0_185, %c32_186] : memref<48x96xbf16, #tpu.memory_space<vmem>>, vector<16x8xbf16>
    %cst_187 = arith.constant dense<0.000000e+00> : vector<16x16xf32>
    %369 = tpu.matmul %367, %368, %cst_187 {dimension_numbers = #tpu.dot_dimension_numbers<[1], [1], [0], [0], [0, 0, 1, 0], [], []>} : vector<16x8xbf16>, vector<16x8xbf16>, vector<16x16xf32> -> vector<16x16xf32>
    %c16_188 = arith.constant 16 : index
    %c0_189 = arith.constant 0 : index
    %370 = vector.load %arg12[%c16_188, %c0_189] : memref<48x96xbf16, #tpu.memory_space<vmem>>, vector<16x8xbf16>
    %c16_190 = arith.constant 16 : index
    %c32_191 = arith.constant 32 : index
    %371 = vector.load %arg12[%c16_190, %c32_191] : memref<48x96xbf16, #tpu.memory_space<vmem>>, vector<16x8xbf16>
    %cst_192 = arith.constant dense<0.000000e+00> : vector<16x16xf32>
    %372 = tpu.matmul %370, %371, %cst_192 {dimension_numbers = #tpu.dot_dimension_numbers<[1], [1], [0], [0], [0, 0, 1, 0], [], []>} : vector<16x8xbf16>, vector<16x8xbf16>, vector<16x16xf32> -> vector<16x16xf32>
    %373 = arith.addf %369, %372 : vector<16x16xf32>
    %c32_193 = arith.constant 32 : index
    %c0_194 = arith.constant 0 : index
    %374 = vector.load %arg12[%c32_193, %c0_194] : memref<48x96xbf16, #tpu.memory_space<vmem>>, vector<16x8xbf16>
    %c32_195 = arith.constant 32 : index
    %c32_196 = arith.constant 32 : index
    %375 = vector.load %arg12[%c32_195, %c32_196] : memref<48x96xbf16, #tpu.memory_space<vmem>>, vector<16x8xbf16>
    %cst_197 = arith.constant dense<0.000000e+00> : vector<16x16xf32>
    %376 = tpu.matmul %374, %375, %cst_197 {dimension_numbers = #tpu.dot_dimension_numbers<[1], [1], [0], [0], [0, 0, 1, 0], [], []>} : vector<16x8xbf16>, vector<16x8xbf16>, vector<16x16xf32> -> vector<16x16xf32>
    %377 = arith.addf %373, %376 : vector<16x16xf32>
    %cst_198 = arith.constant dense<0xFF800000> : vector<16xf32>
    %378 = vector.multi_reduction <maximumf>, %377, %cst_198 [1] : vector<16x16xf32> to vector<16xf32>
    %379 = vector.shape_cast %378 : vector<16xf32> to vector<16x1xf32>
    %380 = vector.broadcast %379 : vector<16x1xf32> to vector<16x16xf32>
    %381 = arith.subf %377, %380 : vector<16x16xf32>
    %382 = math.exp %381 : vector<16x16xf32>
    %cst_199 = arith.constant dense<0.000000e+00> : vector<16xf32>
    %383 = vector.multi_reduction <add>, %382, %cst_199 [1] : vector<16x16xf32> to vector<16xf32>
    %384 = vector.shape_cast %383 : vector<16xf32> to vector<16x1xf32>
    %385 = tpu.reciprocal %384 {approx = true} : vector<16x1xf32> -> vector<16x1xf32>
    %386 = vector.broadcast %385 : vector<16x1xf32> to vector<16x16xf32>
    %387 = arith.mulf %382, %386 : vector<16x16xf32>
    %388 = arith.truncf %387 : vector<16x16xf32> to vector<16x16xbf16>
    %c0_200 = arith.constant 0 : index
    %c64_201 = arith.constant 64 : index
    %389 = vector.load %arg12[%c0_200, %c64_201] : memref<48x96xbf16, #tpu.memory_space<vmem>>, vector<16x8xbf16>
    %cst_202 = arith.constant dense<0.000000e+00> : vector<16x8xf32>
    %390 = tpu.matmul %388, %389, %cst_202 {dimension_numbers = #tpu.dot_dimension_numbers<[1], [0], [0], [1], [0, 0, 1, 1], [], []>} : vector<16x16xbf16>, vector<16x8xbf16>, vector<16x8xf32> -> vector<16x8xf32>
    %391 = arith.truncf %390 : vector<16x8xf32> to vector<16x8xbf16>
    %c0_203 = arith.constant 0 : index
    %c0_204 = arith.constant 0 : index
    %392 = vector.load %arg13[%c0_203, %c0_204] : memref<48x32xbf16, #tpu.memory_space<vmem>>, vector<16x8xbf16>
    tpu.vector_store %arg13[%c0_203, %c0_204], %391 {strides = array<i32>} : memref<48x32xbf16, #tpu.memory_space<vmem>>, vector<16x8xbf16>,
    %c16_205 = arith.constant 16 : index
    %c64_206 = arith.constant 64 : index
    %393 = vector.load %arg12[%c16_205, %c64_206] : memref<48x96xbf16, #tpu.memory_space<vmem>>, vector<16x8xbf16>
    %cst_207 = arith.constant dense<0.000000e+00> : vector<16x8xf32>
    %394 = tpu.matmul %388, %393, %cst_207 {dimension_numbers = #tpu.dot_dimension_numbers<[1], [0], [0], [1], [0, 0, 1, 1], [], []>} : vector<16x16xbf16>, vector<16x8xbf16>, vector<16x8xf32> -> vector<16x8xf32>
    %395 = arith.truncf %394 : vector<16x8xf32> to vector<16x8xbf16>
    %c16_208 = arith.constant 16 : index
    %c0_209 = arith.constant 0 : index
    %396 = vector.load %arg13[%c16_208, %c0_209] : memref<48x32xbf16, #tpu.memory_space<vmem>>, vector<16x8xbf16>
    tpu.vector_store %arg13[%c16_208, %c0_209], %395 {strides = array<i32>} : memref<48x32xbf16, #tpu.memory_space<vmem>>, vector<16x8xbf16>,
    %c32_210 = arith.constant 32 : index
    %c64_211 = arith.constant 64 : index
    %397 = vector.load %arg12[%c32_210, %c64_211] : memref<48x96xbf16, #tpu.memory_space<vmem>>, vector<16x8xbf16>
    %cst_212 = arith.constant dense<0.000000e+00> : vector<16x8xf32>
    %398 = tpu.matmul %388, %397, %cst_212 {dimension_numbers = #tpu.dot_dimension_numbers<[1], [0], [0], [1], [0, 0, 1, 1], [], []>} : vector<16x16xbf16>, vector<16x8xbf16>, vector<16x8xf32> -> vector<16x8xf32>
    %399 = arith.truncf %398 : vector<16x8xf32> to vector<16x8xbf16>
    %c32_213 = arith.constant 32 : index
    %c0_214 = arith.constant 0 : index
    %400 = vector.load %arg13[%c32_213, %c0_214] : memref<48x32xbf16, #tpu.memory_space<vmem>>, vector<16x8xbf16>
    tpu.vector_store %arg13[%c32_213, %c0_214], %399 {strides = array<i32>} : memref<48x32xbf16, #tpu.memory_space<vmem>>, vector<16x8xbf16>,
    %c0_215 = arith.constant 0 : index
    %c8_216 = arith.constant 8 : index
    %401 = vector.load %arg12[%c0_215, %c8_216] : memref<48x96xbf16, #tpu.memory_space<vmem>>, vector<16x8xbf16>
    %c0_217 = arith.constant 0 : index
    %c40_218 = arith.constant 40 : index
    %402 = vector.load %arg12[%c0_217, %c40_218] : memref<48x96xbf16, #tpu.memory_space<vmem>>, vector<16x8xbf16>
    %cst_219 = arith.constant dense<0.000000e+00> : vector<16x16xf32>
    %403 = tpu.matmul %401, %402, %cst_219 {dimension_numbers = #tpu.dot_dimension_numbers<[1], [1], [0], [0], [0, 0, 1, 0], [], []>} : vector<16x8xbf16>, vector<16x8xbf16>, vector<16x16xf32> -> vector<16x16xf32>
    %c16_220 = arith.constant 16 : index
    %c8_221 = arith.constant 8 : index
    %404 = vector.load %arg12[%c16_220, %c8_221] : memref<48x96xbf16, #tpu.memory_space<vmem>>, vector<16x8xbf16>
    %c16_222 = arith.constant 16 : index
    %c40_223 = arith.constant 40 : index
    %405 = vector.load %arg12[%c16_222, %c40_223] : memref<48x96xbf16, #tpu.memory_space<vmem>>, vector<16x8xbf16>
    %cst_224 = arith.constant dense<0.000000e+00> : vector<16x16xf32>
    %406 = tpu.matmul %404, %405, %cst_224 {dimension_numbers = #tpu.dot_dimension_numbers<[1], [1], [0], [0], [0, 0, 1, 0], [], []>} : vector<16x8xbf16>, vector<16x8xbf16>, vector<16x16xf32> -> vector<16x16xf32>
    %407 = arith.addf %403, %406 : vector<16x16xf32>
    %c32_225 = arith.constant 32 : index
    %c8_226 = arith.constant 8 : index
    %408 = vector.load %arg12[%c32_225, %c8_226] : memref<48x96xbf16, #tpu.memory_space<vmem>>, vector<16x8xbf16>
    %c32_227 = arith.constant 32 : index
    %c40_228 = arith.constant 40 : index
    %409 = vector.load %arg12[%c32_227, %c40_228] : memref<48x96xbf16, #tpu.memory_space<vmem>>, vector<16x8xbf16>
    %cst_229 = arith.constant dense<0.000000e+00> : vector<16x16xf32>
    %410 = tpu.matmul %408, %409, %cst_229 {dimension_numbers = #tpu.dot_dimension_numbers<[1], [1], [0], [0], [0, 0, 1, 0], [], []>} : vector<16x8xbf16>, vector<16x8xbf16>, vector<16x16xf32> -> vector<16x16xf32>
    %411 = arith.addf %407, %410 : vector<16x16xf32>
    %cst_230 = arith.constant dense<0xFF800000> : vector<16xf32>
    %412 = vector.multi_reduction <maximumf>, %411, %cst_230 [1] : vector<16x16xf32> to vector<16xf32>
    %413 = vector.shape_cast %412 : vector<16xf32> to vector<16x1xf32>
    %414 = vector.broadcast %413 : vector<16x1xf32> to vector<16x16xf32>
    %415 = arith.subf %411, %414 : vector<16x16xf32>
    %416 = math.exp %415 : vector<16x16xf32>
    %cst_231 = arith.constant dense<0.000000e+00> : vector<16xf32>
    %417 = vector.multi_reduction <add>, %416, %cst_231 [1] : vector<16x16xf32> to vector<16xf32>
    %418 = vector.shape_cast %417 : vector<16xf32> to vector<16x1xf32>
    %419 = tpu.reciprocal %418 {approx = true} : vector<16x1xf32> -> vector<16x1xf32>
    %420 = vector.broadcast %419 : vector<16x1xf32> to vector<16x16xf32>
    %421 = arith.mulf %416, %420 : vector<16x16xf32>
    %422 = arith.truncf %421 : vector<16x16xf32> to vector<16x16xbf16>
    %c0_232 = arith.constant 0 : index
    %c72_233 = arith.constant 72 : index
    %423 = vector.load %arg12[%c0_232, %c72_233] : memref<48x96xbf16, #tpu.memory_space<vmem>>, vector<16x8xbf16>
    %cst_234 = arith.constant dense<0.000000e+00> : vector<16x8xf32>
    %424 = tpu.matmul %422, %423, %cst_234 {dimension_numbers = #tpu.dot_dimension_numbers<[1], [0], [0], [1], [0, 0, 1, 1], [], []>} : vector<16x16xbf16>, vector<16x8xbf16>, vector<16x8xf32> -> vector<16x8xf32>
    %425 = arith.truncf %424 : vector<16x8xf32> to vector<16x8xbf16>
    %c0_235 = arith.constant 0 : index
    %c8_236 = arith.constant 8 : index
    %426 = vector.load %arg13[%c0_235, %c8_236] : memref<48x32xbf16, #tpu.memory_space<vmem>>, vector<16x8xbf16>
    tpu.vector_store %arg13[%c0_235, %c8_236], %425 {strides = array<i32>} : memref<48x32xbf16, #tpu.memory_space<vmem>>, vector<16x8xbf16>,
    %c16_237 = arith.constant 16 : index
    %c72_238 = arith.constant 72 : index
    %427 = vector.load %arg12[%c16_237, %c72_238] : memref<48x96xbf16, #tpu.memory_space<vmem>>, vector<16x8xbf16>
    %cst_239 = arith.constant dense<0.000000e+00> : vector<16x8xf32>
    %428 = tpu.matmul %422, %427, %cst_239 {dimension_numbers = #tpu.dot_dimension_numbers<[1], [0], [0], [1], [0, 0, 1, 1], [], []>} : vector<16x16xbf16>, vector<16x8xbf16>, vector<16x8xf32> -> vector<16x8xf32>
    %429 = arith.truncf %428 : vector<16x8xf32> to vector<16x8xbf16>
    %c16_240 = arith.constant 16 : index
    %c8_241 = arith.constant 8 : index
    %430 = vector.load %arg13[%c16_240, %c8_241] : memref<48x32xbf16, #tpu.memory_space<vmem>>, vector<16x8xbf16>
    tpu.vector_store %arg13[%c16_240, %c8_241], %429 {strides = array<i32>} : memref<48x32xbf16, #tpu.memory_space<vmem>>, vector<16x8xbf16>,
    %c32_242 = arith.constant 32 : index
    %c72_243 = arith.constant 72 : index
    %431 = vector.load %arg12[%c32_242, %c72_243] : memref<48x96xbf16, #tpu.memory_space<vmem>>, vector<16x8xbf16>
    %cst_244 = arith.constant dense<0.000000e+00> : vector<16x8xf32>
    %432 = tpu.matmul %422, %431, %cst_244 {dimension_numbers = #tpu.dot_dimension_numbers<[1], [0], [0], [1], [0, 0, 1, 1], [], []>} : vector<16x16xbf16>, vector<16x8xbf16>, vector<16x8xf32> -> vector<16x8xf32>
    %433 = arith.truncf %432 : vector<16x8xf32> to vector<16x8xbf16>
    %c32_245 = arith.constant 32 : index
    %c8_246 = arith.constant 8 : index
    %434 = vector.load %arg13[%c32_245, %c8_246] : memref<48x32xbf16, #tpu.memory_space<vmem>>, vector<16x8xbf16>
    tpu.vector_store %arg13[%c32_245, %c8_246], %433 {strides = array<i32>} : memref<48x32xbf16, #tpu.memory_space<vmem>>, vector<16x8xbf16>,
    %c0_247 = arith.constant 0 : index
    %c16_248 = arith.constant 16 : index
    %435 = vector.load %arg12[%c0_247, %c16_248] : memref<48x96xbf16, #tpu.memory_space<vmem>>, vector<16x8xbf16>
    %c0_249 = arith.constant 0 : index
    %c48_250 = arith.constant 48 : index
    %436 = vector.load %arg12[%c0_249, %c48_250] : memref<48x96xbf16, #tpu.memory_space<vmem>>, vector<16x8xbf16>
    %cst_251 = arith.constant dense<0.000000e+00> : vector<16x16xf32>
    %437 = tpu.matmul %435, %436, %cst_251 {dimension_numbers = #tpu.dot_dimension_numbers<[1], [1], [0], [0], [0, 0, 1, 0], [], []>} : vector<16x8xbf16>, vector<16x8xbf16>, vector<16x16xf32> -> vector<16x16xf32>
    %c16_252 = arith.constant 16 : index
    %c16_253 = arith.constant 16 : index
    %438 = vector.load %arg12[%c16_252, %c16_253] : memref<48x96xbf16, #tpu.memory_space<vmem>>, vector<16x8xbf16>
    %c16_254 = arith.constant 16 : index
    %c48_255 = arith.constant 48 : index
    %439 = vector.load %arg12[%c16_254, %c48_255] : memref<48x96xbf16, #tpu.memory_space<vmem>>, vector<16x8xbf16>
    %cst_256 = arith.constant dense<0.000000e+00> : vector<16x16xf32>
    %440 = tpu.matmul %438, %439, %cst_256 {dimension_numbers = #tpu.dot_dimension_numbers<[1], [1], [0], [0], [0, 0, 1, 0], [], []>} : vector<16x8xbf16>, vector<16x8xbf16>, vector<16x16xf32> -> vector<16x16xf32>
    %441 = arith.addf %437, %440 : vector<16x16xf32>
    %c32_257 = arith.constant 32 : index
    %c16_258 = arith.constant 16 : index
    %442 = vector.load %arg12[%c32_257, %c16_258] : memref<48x96xbf16, #tpu.memory_space<vmem>>, vector<16x8xbf16>
    %c32_259 = arith.constant 32 : index
    %c48_260 = arith.constant 48 : index
    %443 = vector.load %arg12[%c32_259, %c48_260] : memref<48x96xbf16, #tpu.memory_space<vmem>>, vector<16x8xbf16>
    %cst_261 = arith.constant dense<0.000000e+00> : vector<16x16xf32>
    %444 = tpu.matmul %442, %443, %cst_261 {dimension_numbers = #tpu.dot_dimension_numbers<[1], [1], [0], [0], [0, 0, 1, 0], [], []>} : vector<16x8xbf16>, vector<16x8xbf16>, vector<16x16xf32> -> vector<16x16xf32>
    %445 = arith.addf %441, %444 : vector<16x16xf32>
    %cst_262 = arith.constant dense<0xFF800000> : vector<16xf32>
    %446 = vector.multi_reduction <maximumf>, %445, %cst_262 [1] : vector<16x16xf32> to vector<16xf32>
    %447 = vector.shape_cast %446 : vector<16xf32> to vector<16x1xf32>
    %448 = vector.broadcast %447 : vector<16x1xf32> to vector<16x16xf32>
    %449 = arith.subf %445, %448 : vector<16x16xf32>
    %450 = math.exp %449 : vector<16x16xf32>
    %cst_263 = arith.constant dense<0.000000e+00> : vector<16xf32>
    %451 = vector.multi_reduction <add>, %450, %cst_263 [1] : vector<16x16xf32> to vector<16xf32>
    %452 = vector.shape_cast %451 : vector<16xf32> to vector<16x1xf32>
    %453 = tpu.reciprocal %452 {approx = true} : vector<16x1xf32> -> vector<16x1xf32>
    %454 = vector.broadcast %453 : vector<16x1xf32> to vector<16x16xf32>
    %455 = arith.mulf %450, %454 : vector<16x16xf32>
    %456 = arith.truncf %455 : vector<16x16xf32> to vector<16x16xbf16>
    %c0_264 = arith.constant 0 : index
    %c80_265 = arith.constant 80 : index
    %457 = vector.load %arg12[%c0_264, %c80_265] : memref<48x96xbf16, #tpu.memory_space<vmem>>, vector<16x8xbf16>
    %cst_266 = arith.constant dense<0.000000e+00> : vector<16x8xf32>
    %458 = tpu.matmul %456, %457, %cst_266 {dimension_numbers = #tpu.dot_dimension_numbers<[1], [0], [0], [1], [0, 0, 1, 1], [], []>} : vector<16x16xbf16>, vector<16x8xbf16>, vector<16x8xf32> -> vector<16x8xf32>
    %459 = arith.truncf %458 : vector<16x8xf32> to vector<16x8xbf16>
    %c0_267 = arith.constant 0 : index
    %c16_268 = arith.constant 16 : index
    %460 = vector.load %arg13[%c0_267, %c16_268] : memref<48x32xbf16, #tpu.memory_space<vmem>>, vector<16x8xbf16>
    tpu.vector_store %arg13[%c0_267, %c16_268], %459 {strides = array<i32>} : memref<48x32xbf16, #tpu.memory_space<vmem>>, vector<16x8xbf16>,
    %c16_269 = arith.constant 16 : index
    %c80_270 = arith.constant 80 : index
    %461 = vector.load %arg12[%c16_269, %c80_270] : memref<48x96xbf16, #tpu.memory_space<vmem>>, vector<16x8xbf16>
    %cst_271 = arith.constant dense<0.000000e+00> : vector<16x8xf32>
    %462 = tpu.matmul %456, %461, %cst_271 {dimension_numbers = #tpu.dot_dimension_numbers<[1], [0], [0], [1], [0, 0, 1, 1], [], []>} : vector<16x16xbf16>, vector<16x8xbf16>, vector<16x8xf32> -> vector<16x8xf32>
    %463 = arith.truncf %462 : vector<16x8xf32> to vector<16x8xbf16>
    %c16_272 = arith.constant 16 : index
    %c16_273 = arith.constant 16 : index
    %464 = vector.load %arg13[%c16_272, %c16_273] : memref<48x32xbf16, #tpu.memory_space<vmem>>, vector<16x8xbf16>
    tpu.vector_store %arg13[%c16_272, %c16_273], %463 {strides = array<i32>} : memref<48x32xbf16, #tpu.memory_space<vmem>>, vector<16x8xbf16>,
    %c32_274 = arith.constant 32 : index
    %c80_275 = arith.constant 80 : index
    %465 = vector.load %arg12[%c32_274, %c80_275] : memref<48x96xbf16, #tpu.memory_space<vmem>>, vector<16x8xbf16>
    %cst_276 = arith.constant dense<0.000000e+00> : vector<16x8xf32>
    %466 = tpu.matmul %456, %465, %cst_276 {dimension_numbers = #tpu.dot_dimension_numbers<[1], [0], [0], [1], [0, 0, 1, 1], [], []>} : vector<16x16xbf16>, vector<16x8xbf16>, vector<16x8xf32> -> vector<16x8xf32>
    %467 = arith.truncf %466 : vector<16x8xf32> to vector<16x8xbf16>
    %c32_277 = arith.constant 32 : index
    %c16_278 = arith.constant 16 : index
    %468 = vector.load %arg13[%c32_277, %c16_278] : memref<48x32xbf16, #tpu.memory_space<vmem>>, vector<16x8xbf16>
    tpu.vector_store %arg13[%c32_277, %c16_278], %467 {strides = array<i32>} : memref<48x32xbf16, #tpu.memory_space<vmem>>, vector<16x8xbf16>,
    %c0_279 = arith.constant 0 : index
    %c24_280 = arith.constant 24 : index
    %469 = vector.load %arg12[%c0_279, %c24_280] : memref<48x96xbf16, #tpu.memory_space<vmem>>, vector<16x8xbf16>
    %c0_281 = arith.constant 0 : index
    %c56_282 = arith.constant 56 : index
    %470 = vector.load %arg12[%c0_281, %c56_282] : memref<48x96xbf16, #tpu.memory_space<vmem>>, vector<16x8xbf16>
    %cst_283 = arith.constant dense<0.000000e+00> : vector<16x16xf32>
    %471 = tpu.matmul %469, %470, %cst_283 {dimension_numbers = #tpu.dot_dimension_numbers<[1], [1], [0], [0], [0, 0, 1, 0], [], []>} : vector<16x8xbf16>, vector<16x8xbf16>, vector<16x16xf32> -> vector<16x16xf32>
    %c16_284 = arith.constant 16 : index
    %c24_285 = arith.constant 24 : index
    %472 = vector.load %arg12[%c16_284, %c24_285] : memref<48x96xbf16, #tpu.memory_space<vmem>>, vector<16x8xbf16>
    %c16_286 = arith.constant 16 : index
    %c56_287 = arith.constant 56 : index
    %473 = vector.load %arg12[%c16_286, %c56_287] : memref<48x96xbf16, #tpu.memory_space<vmem>>, vector<16x8xbf16>
    %cst_288 = arith.constant dense<0.000000e+00> : vector<16x16xf32>
    %474 = tpu.matmul %472, %473, %cst_288 {dimension_numbers = #tpu.dot_dimension_numbers<[1], [1], [0], [0], [0, 0, 1, 0], [], []>} : vector<16x8xbf16>, vector<16x8xbf16>, vector<16x16xf32> -> vector<16x16xf32>
    %475 = arith.addf %471, %474 : vector<16x16xf32>
    %c32_289 = arith.constant 32 : index
    %c24_290 = arith.constant 24 : index
    %476 = vector.load %arg12[%c32_289, %c24_290] : memref<48x96xbf16, #tpu.memory_space<vmem>>, vector<16x8xbf16>
    %c32_291 = arith.constant 32 : index
    %c56_292 = arith.constant 56 : index
    %477 = vector.load %arg12[%c32_291, %c56_292] : memref<48x96xbf16, #tpu.memory_space<vmem>>, vector<16x8xbf16>
    %cst_293 = arith.constant dense<0.000000e+00> : vector<16x16xf32>
    %478 = tpu.matmul %476, %477, %cst_293 {dimension_numbers = #tpu.dot_dimension_numbers<[1], [1], [0], [0], [0, 0, 1, 0], [], []>} : vector<16x8xbf16>, vector<16x8xbf16>, vector<16x16xf32> -> vector<16x16xf32>
    %479 = arith.addf %475, %478 : vector<16x16xf32>
    %cst_294 = arith.constant dense<0xFF800000> : vector<16xf32>
    %480 = vector.multi_reduction <maximumf>, %479, %cst_294 [1] : vector<16x16xf32> to vector<16xf32>
    %481 = vector.shape_cast %480 : vector<16xf32> to vector<16x1xf32>
    %482 = vector.broadcast %481 : vector<16x1xf32> to vector<16x16xf32>
    %483 = arith.subf %479, %482 : vector<16x16xf32>
    %484 = math.exp %483 : vector<16x16xf32>
    %cst_295 = arith.constant dense<0.000000e+00> : vector<16xf32>
    %485 = vector.multi_reduction <add>, %484, %cst_295 [1] : vector<16x16xf32> to vector<16xf32>
    %486 = vector.shape_cast %485 : vector<16xf32> to vector<16x1xf32>
    %487 = tpu.reciprocal %486 {approx = true} : vector<16x1xf32> -> vector<16x1xf32>
    %488 = vector.broadcast %487 : vector<16x1xf32> to vector<16x16xf32>
    %489 = arith.mulf %484, %488 : vector<16x16xf32>
    %490 = arith.truncf %489 : vector<16x16xf32> to vector<16x16xbf16>
    %c0_296 = arith.constant 0 : index
    %c88_297 = arith.constant 88 : index
    %491 = vector.load %arg12[%c0_296, %c88_297] : memref<48x96xbf16, #tpu.memory_space<vmem>>, vector<16x8xbf16>
    %cst_298 = arith.constant dense<0.000000e+00> : vector<16x8xf32>
    %492 = tpu.matmul %490, %491, %cst_298 {dimension_numbers = #tpu.dot_dimension_numbers<[1], [0], [0], [1], [0, 0, 1, 1], [], []>} : vector<16x16xbf16>, vector<16x8xbf16>, vector<16x8xf32> -> vector<16x8xf32>
    %493 = arith.truncf %492 : vector<16x8xf32> to vector<16x8xbf16>
    %c0_299 = arith.constant 0 : index
    %c24_300 = arith.constant 24 : index
    %494 = vector.load %arg13[%c0_299, %c24_300] : memref<48x32xbf16, #tpu.memory_space<vmem>>, vector<16x8xbf16>
    tpu.vector_store %arg13[%c0_299, %c24_300], %493 {strides = array<i32>} : memref<48x32xbf16, #tpu.memory_space<vmem>>, vector<16x8xbf16>,
    %c16_301 = arith.constant 16 : index
    %c88_302 = arith.constant 88 : index
    %495 = vector.load %arg12[%c16_301, %c88_302] : memref<48x96xbf16, #tpu.memory_space<vmem>>, vector<16x8xbf16>
    %cst_303 = arith.constant dense<0.000000e+00> : vector<16x8xf32>
    %496 = tpu.matmul %490, %495, %cst_303 {dimension_numbers = #tpu.dot_dimension_numbers<[1], [0], [0], [1], [0, 0, 1, 1], [], []>} : vector<16x16xbf16>, vector<16x8xbf16>, vector<16x8xf32> -> vector<16x8xf32>
    %497 = arith.truncf %496 : vector<16x8xf32> to vector<16x8xbf16>
    %c16_304 = arith.constant 16 : index
    %c24_305 = arith.constant 24 : index
    %498 = vector.load %arg13[%c16_304, %c24_305] : memref<48x32xbf16, #tpu.memory_space<vmem>>, vector<16x8xbf16>
    tpu.vector_store %arg13[%c16_304, %c24_305], %497 {strides = array<i32>} : memref<48x32xbf16, #tpu.memory_space<vmem>>, vector<16x8xbf16>,
    %c32_306 = arith.constant 32 : index
    %c88_307 = arith.constant 88 : index
    %499 = vector.load %arg12[%c32_306, %c88_307] : memref<48x96xbf16, #tpu.memory_space<vmem>>, vector<16x8xbf16>
    %cst_308 = arith.constant dense<0.000000e+00> : vector<16x8xf32>
    %500 = tpu.matmul %490, %499, %cst_308 {dimension_numbers = #tpu.dot_dimension_numbers<[1], [0], [0], [1], [0, 0, 1, 1], [], []>} : vector<16x16xbf16>, vector<16x8xbf16>, vector<16x8xf32> -> vector<16x8xf32>
    %501 = arith.truncf %500 : vector<16x8xf32> to vector<16x8xbf16>
    %c32_309 = arith.constant 32 : index
    %c24_310 = arith.constant 24 : index
    %502 = vector.load %arg13[%c32_309, %c24_310] : memref<48x32xbf16, #tpu.memory_space<vmem>>, vector<16x8xbf16>
    tpu.vector_store %arg13[%c32_309, %c24_310], %501 {strides = array<i32>} : memref<48x32xbf16, #tpu.memory_space<vmem>>, vector<16x8xbf16>,
    %c0_311 = arith.constant 0 : index
    %c0_312 = arith.constant 0 : index
    %503 = vector.load %arg13[%c0_311, %c0_312] : memref<48x32xbf16, #tpu.memory_space<vmem>>, vector<48x32xbf16>
    %c0_313 = arith.constant 0 : index
    %c0_314 = arith.constant 0 : index
    %504 = vector.load %arg5[%c0_313, %c0_314] : memref<32x32xbf16, #tpu.memory_space<vmem>>, vector<32x32xbf16>
    %cst_315 = arith.constant dense<0.000000e+00> : vector<48x32xf32>
    %505 = tpu.matmul %503, %504, %cst_315 {dimension_numbers = #tpu.dot_dimension_numbers<[1], [0], [0], [1], [0, 0, 1, 1], [], []>} : vector<48x32xbf16>, vector<32x32xbf16>, vector<48x32xf32> -> vector<48x32xf32>
    %506 = vector.shape_cast %505 : vector<48x32xf32> to vector<3x16x32xf32>
    %507 = arith.addf %314, %506 : vector<3x16x32xf32>
    %c0_316 = arith.constant 0 : index
    %c0_317 = arith.constant 0 : index
    %508 = vector.load %arg6[%c0_316, %c0_317] : memref<1x32xf32, #tpu.memory_space<vmem>>, vector<1x32xf32>
    %c0_318 = arith.constant 0 : index
    %c0_319 = arith.constant 0 : index
    %509 = vector.load %arg7[%c0_318, %c0_319] : memref<1x32xf32, #tpu.memory_space<vmem>>, vector<1x32xf32>
    %510 = vector.extract_strided_slice %507 {offsets = [0, 0, 0], sizes = [1, 16, 32], strides = [1, 1, 1]} : vector<3x16x32xf32> to vector<1x16x32xf32>
    %511 = vector.shape_cast %510 : vector<1x16x32xf32> to vector<16x32xf32>
    %512 = vector.extract_strided_slice %507 {offsets = [0, 0, 0], sizes = [1, 16, 32], strides = [1, 1, 1]} : vector<3x16x32xf32> to vector<1x16x32xf32>
    %513 = vector.shape_cast %512 : vector<1x16x32xf32> to vector<16x32xf32>
    %514 = arith.mulf %511, %513 : vector<16x32xf32>
    %515 = vector.extract_strided_slice %507 {offsets = [1, 0, 0], sizes = [1, 16, 32], strides = [1, 1, 1]} : vector<3x16x32xf32> to vector<1x16x32xf32>
    %516 = vector.shape_cast %515 : vector<1x16x32xf32> to vector<16x32xf32>
    %517 = vector.extract_strided_slice %507 {offsets = [1, 0, 0], sizes = [1, 16, 32], strides = [1, 1, 1]} : vector<3x16x32xf32> to vector<1x16x32xf32>
    %518 = vector.shape_cast %517 : vector<1x16x32xf32> to vector<16x32xf32>
    %519 = arith.mulf %516, %518 : vector<16x32xf32>
    %520 = arith.addf %514, %519 : vector<16x32xf32>
    %521 = vector.extract_strided_slice %507 {offsets = [2, 0, 0], sizes = [1, 16, 32], strides = [1, 1, 1]} : vector<3x16x32xf32> to vector<1x16x32xf32>
    %522 = vector.shape_cast %521 : vector<1x16x32xf32> to vector<16x32xf32>
    %523 = vector.extract_strided_slice %507 {offsets = [2, 0, 0], sizes = [1, 16, 32], strides = [1, 1, 1]} : vector<3x16x32xf32> to vector<1x16x32xf32>
    %524 = vector.shape_cast %523 : vector<1x16x32xf32> to vector<16x32xf32>
    %525 = arith.mulf %522, %524 : vector<16x32xf32>
    %526 = arith.addf %520, %525 : vector<16x32xf32>
    %527 = math.sqrt %526 : vector<16x32xf32>
    %cst_320 = arith.constant dense<0.000000e+00> : vector<16xf32>
    %528 = vector.multi_reduction <add>, %527, %cst_320 [1] : vector<16x32xf32> to vector<16xf32>
    %529 = vector.shape_cast %528 : vector<16xf32> to vector<16x1xf32>
    %cst_321 = arith.constant 3.200000e+01 : f32
    %530 = vector.broadcast %cst_321 : f32 to vector<16x1xf32>
    %531 = arith.divf %529, %530 : vector<16x1xf32>
    %532 = vector.broadcast %531 : vector<16x1xf32> to vector<16x32xf32>
    %533 = arith.subf %527, %532 : vector<16x32xf32>
    %534 = arith.mulf %533, %533 : vector<16x32xf32>
    %cst_322 = arith.constant dense<0.000000e+00> : vector<16xf32>
    %535 = vector.multi_reduction <add>, %534, %cst_322 [1] : vector<16x32xf32> to vector<16xf32>
    %536 = vector.shape_cast %535 : vector<16xf32> to vector<16x1xf32>
    %cst_323 = arith.constant 3.200000e+01 : f32
    %537 = vector.broadcast %cst_323 : f32 to vector<16x1xf32>
    %538 = arith.divf %536, %537 : vector<16x1xf32>
    %cst_324 = arith.constant 9.99999997E-7 : f32
    %539 = vector.broadcast %cst_324 : f32 to vector<16x1xf32>
    %540 = arith.addf %538, %539 : vector<16x1xf32>
    %541 = math.rsqrt %540 : vector<16x1xf32>
    %542 = vector.broadcast %541 : vector<16x1xf32> to vector<16x32xf32>
    %543 = arith.mulf %533, %542 : vector<16x32xf32>
    %544 = vector.broadcast %508 : vector<1x32xf32> to vector<16x32xf32>
    %545 = arith.mulf %543, %544 : vector<16x32xf32>
    %546 = vector.broadcast %509 : vector<1x32xf32> to vector<16x32xf32>
    %547 = arith.addf %545, %546 : vector<16x32xf32>
    %cst_325 = arith.constant 9.99999997E-7 : f32
    %548 = vector.broadcast %cst_325 : f32 to vector<16x32xf32>
    %549 = arith.addf %527, %548 : vector<16x32xf32>
    %550 = arith.divf %547, %549 : vector<16x32xf32>
    %551 = vector.shape_cast %550 : vector<16x32xf32> to vector<1x16x32xf32>
    %552 = vector.broadcast %551 : vector<1x16x32xf32> to vector<3x16x32xf32>
    %553 = arith.mulf %507, %552 : vector<3x16x32xf32>
    %554 = vector.shape_cast %553 : vector<3x16x32xf32> to vector<48x32xf32>
    %555 = arith.truncf %554 : vector<48x32xf32> to vector<48x32xbf16>
    %c0_326 = arith.constant 0 : index
    %c0_327 = arith.constant 0 : index
    %556 = vector.load %arg8[%c0_326, %c0_327] : memref<32x128xbf16, #tpu.memory_space<vmem>>, vector<32x128xbf16>
    %cst_328 = arith.constant dense<0.000000e+00> : vector<48x128xf32>
    %557 = tpu.matmul %555, %556, %cst_328 {dimension_numbers = #tpu.dot_dimension_numbers<[1], [0], [0], [1], [0, 0, 1, 1], [], []>} : vector<48x32xbf16>, vector<32x128xbf16>, vector<48x128xf32> -> vector<48x128xf32>
    %558 = vector.shape_cast %557 : vector<48x128xf32> to vector<3x16x128xf32>
    %c0_329 = arith.constant 0 : index
    %c0_330 = arith.constant 0 : index
    %559 = vector.load %arg9[%c0_329, %c0_330] : memref<128x128xbf16, #tpu.memory_space<vmem>>, vector<128x128xbf16>
    %560 = vector.shape_cast %558 : vector<3x16x128xf32> to vector<48x128xf32>
    %561 = arith.truncf %560 : vector<48x128xf32> to vector<48x128xbf16>
    %cst_331 = arith.constant dense<0.000000e+00> : vector<48x128xf32>
    %562 = tpu.matmul %561, %559, %cst_331 {dimension_numbers = #tpu.dot_dimension_numbers<[1], [0], [0], [1], [0, 0, 1, 1], [], []>} : vector<48x128xbf16>, vector<128x128xbf16>, vector<48x128xf32> -> vector<48x128xf32>
    %563 = vector.shape_cast %562 : vector<48x128xf32> to vector<3x16x128xf32>
    %564 = vector.extract_strided_slice %563 {offsets = [0, 0, 0], sizes = [1, 16, 128], strides = [1, 1, 1]} : vector<3x16x128xf32> to vector<1x16x128xf32>
    %565 = vector.shape_cast %564 : vector<1x16x128xf32> to vector<16x128xf32>
    %566 = vector.extract_strided_slice %563 {offsets = [0, 0, 0], sizes = [1, 16, 128], strides = [1, 1, 1]} : vector<3x16x128xf32> to vector<1x16x128xf32>
    %567 = vector.shape_cast %566 : vector<1x16x128xf32> to vector<16x128xf32>
    %568 = arith.mulf %565, %567 : vector<16x128xf32>
    %569 = vector.extract_strided_slice %563 {offsets = [1, 0, 0], sizes = [1, 16, 128], strides = [1, 1, 1]} : vector<3x16x128xf32> to vector<1x16x128xf32>
    %570 = vector.shape_cast %569 : vector<1x16x128xf32> to vector<16x128xf32>
    %571 = vector.extract_strided_slice %563 {offsets = [1, 0, 0], sizes = [1, 16, 128], strides = [1, 1, 1]} : vector<3x16x128xf32> to vector<1x16x128xf32>
    %572 = vector.shape_cast %571 : vector<1x16x128xf32> to vector<16x128xf32>
    %573 = arith.mulf %570, %572 : vector<16x128xf32>
    %574 = arith.addf %568, %573 : vector<16x128xf32>
    %575 = vector.extract_strided_slice %563 {offsets = [2, 0, 0], sizes = [1, 16, 128], strides = [1, 1, 1]} : vector<3x16x128xf32> to vector<1x16x128xf32>
    %576 = vector.shape_cast %575 : vector<1x16x128xf32> to vector<16x128xf32>
    %577 = vector.extract_strided_slice %563 {offsets = [2, 0, 0], sizes = [1, 16, 128], strides = [1, 1, 1]} : vector<3x16x128xf32> to vector<1x16x128xf32>
    %578 = vector.shape_cast %577 : vector<1x16x128xf32> to vector<16x128xf32>
    %579 = arith.mulf %576, %578 : vector<16x128xf32>
    %580 = arith.addf %574, %579 : vector<16x128xf32>
    %581 = math.sqrt %580 : vector<16x128xf32>
    %cst_332 = arith.constant 9.99999997E-7 : f32
    %582 = vector.broadcast %cst_332 : f32 to vector<16x128xf32>
    %583 = arith.addf %581, %582 : vector<16x128xf32>
    %584 = vector.shape_cast %583 : vector<16x128xf32> to vector<1x16x128xf32>
    %585 = vector.broadcast %584 : vector<1x16x128xf32> to vector<3x16x128xf32>
    %586 = arith.divf %563, %585 : vector<3x16x128xf32>
    %587 = vector.extract_strided_slice %558 {offsets = [0, 0, 0], sizes = [1, 16, 128], strides = [1, 1, 1]} : vector<3x16x128xf32> to vector<1x16x128xf32>
    %588 = vector.shape_cast %587 : vector<1x16x128xf32> to vector<16x128xf32>
    %589 = vector.extract_strided_slice %586 {offsets = [0, 0, 0], sizes = [1, 16, 128], strides = [1, 1, 1]} : vector<3x16x128xf32> to vector<1x16x128xf32>
    %590 = vector.shape_cast %589 : vector<1x16x128xf32> to vector<16x128xf32>
    %591 = arith.mulf %588, %590 : vector<16x128xf32>
    %592 = vector.extract_strided_slice %558 {offsets = [1, 0, 0], sizes = [1, 16, 128], strides = [1, 1, 1]} : vector<3x16x128xf32> to vector<1x16x128xf32>
    %593 = vector.shape_cast %592 : vector<1x16x128xf32> to vector<16x128xf32>
    %594 = vector.extract_strided_slice %586 {offsets = [1, 0, 0], sizes = [1, 16, 128], strides = [1, 1, 1]} : vector<3x16x128xf32> to vector<1x16x128xf32>
    %595 = vector.shape_cast %594 : vector<1x16x128xf32> to vector<16x128xf32>
    %596 = arith.mulf %593, %595 : vector<16x128xf32>
    %597 = arith.addf %591, %596 : vector<16x128xf32>
    %598 = vector.extract_strided_slice %558 {offsets = [2, 0, 0], sizes = [1, 16, 128], strides = [1, 1, 1]} : vector<3x16x128xf32> to vector<1x16x128xf32>
    %599 = vector.shape_cast %598 : vector<1x16x128xf32> to vector<16x128xf32>
    %600 = vector.extract_strided_slice %586 {offsets = [2, 0, 0], sizes = [1, 16, 128], strides = [1, 1, 1]} : vector<3x16x128xf32> to vector<1x16x128xf32>
    %601 = vector.shape_cast %600 : vector<1x16x128xf32> to vector<16x128xf32>
    %602 = arith.mulf %599, %601 : vector<16x128xf32>
    %603 = arith.addf %597, %602 : vector<16x128xf32>
    %604 = vector.shape_cast %603 : vector<16x128xf32> to vector<1x16x128xf32>
    %605 = vector.broadcast %604 : vector<1x16x128xf32> to vector<3x16x128xf32>
    %606 = arith.mulf %605, %586 : vector<3x16x128xf32>
    %607 = arith.subf %558, %606 : vector<3x16x128xf32>
    %cst_333 = arith.constant 0.000000e+00 : f32
    %608 = vector.broadcast %cst_333 : f32 to vector<16x128xf32>
    %609 = arith.cmpf oge, %603, %608 : vector<16x128xf32>
    %cst_334 = arith.constant 2.000000e-01 : f32
    %610 = vector.broadcast %cst_334 : f32 to vector<16x128xf32>
    %611 = arith.mulf %610, %603 : vector<16x128xf32>
    %612 = arith.select %609, %603, %611 : vector<16x128xi1>, vector<16x128xf32>
    %613 = vector.shape_cast %612 : vector<16x128xf32> to vector<1x16x128xf32>
    %614 = vector.broadcast %613 : vector<1x16x128xf32> to vector<3x16x128xf32>
    %615 = arith.mulf %614, %586 : vector<3x16x128xf32>
    %616 = arith.addf %607, %615 : vector<3x16x128xf32>
    %617 = vector.shape_cast %616 : vector<3x16x128xf32> to vector<48x128xf32>
    %618 = arith.truncf %617 : vector<48x128xf32> to vector<48x128xbf16>
    %c0_335 = arith.constant 0 : index
    %c0_336 = arith.constant 0 : index
    %619 = vector.load %arg10[%c0_335, %c0_336] : memref<128x32xbf16, #tpu.memory_space<vmem>>, vector<128x32xbf16>
    %cst_337 = arith.constant dense<0.000000e+00> : vector<48x32xf32>
    %620 = tpu.matmul %618, %619, %cst_337 {dimension_numbers = #tpu.dot_dimension_numbers<[1], [0], [0], [1], [0, 0, 1, 1], [], []>} : vector<48x128xbf16>, vector<128x32xbf16>, vector<48x32xf32> -> vector<48x32xf32>
    %621 = vector.shape_cast %620 : vector<48x32xf32> to vector<3x16x32xf32>
    %622 = arith.addf %507, %621 : vector<3x16x32xf32>
    %c1_338 = arith.constant 1 : index
    %c0_339 = arith.constant 0 : index
    %c0_340 = arith.constant 0 : index
    %c0_341 = arith.constant 0 : index
    %623 = vector.load %arg11[%c1_338, %c0_339, %c0_340, %c0_341] : memref<2x3x16x32xf32, #tpu.memory_space<vmem>>, vector<1x3x16x32xf32>
    %624 = vector.shape_cast %623 : vector<1x3x16x32xf32> to vector<3x16x32xf32>
    %625 = vector.shape_cast %622 : vector<3x16x32xf32> to vector<1x3x16x32xf32>
    tpu.vector_store %arg11[%c1_338, %c0_339, %c0_340, %c0_341], %625 {strides = array<i32>} : memref<2x3x16x32xf32, #tpu.memory_space<vmem>>, vector<1x3x16x32xf32>,
    return
  }
  func.func @transform_0(%arg0: i32) -> (i32, i32, i32, i32) {
    %c0_i32 = arith.constant 0 : i32
    %c0_i32_0 = arith.constant 0 : i32
    %c0_i32_1 = arith.constant 0 : i32
    %c0_i32_2 = arith.constant 0 : i32
    return %arg0, %c0_i32, %c0_i32_0, %c0_i32_1 : i32, i32, i32, i32
  }
  func.func @transform_1(%arg0: i32) -> (i32, i32) {
    %c0_i32 = arith.constant 0 : i32
    %c0_i32_0 = arith.constant 0 : i32
    %c0_i32_1 = arith.constant 0 : i32
    return %c0_i32, %c0_i32_0 : i32, i32
  }
  func.func @transform_2(%arg0: i32) -> (i32, i32) {
    %c0_i32 = arith.constant 0 : i32
    %c0_i32_0 = arith.constant 0 : i32
    %c0_i32_1 = arith.constant 0 : i32
    return %c0_i32, %c0_i32_0 : i32, i32
  }
  func.func @transform_3(%arg0: i32) -> (i32, i32) {
    %c0_i32 = arith.constant 0 : i32
    %c0_i32_0 = arith.constant 0 : i32
    %c0_i32_1 = arith.constant 0 : i32
    return %c0_i32, %c0_i32_0 : i32, i32
  }
  func.func @transform_4(%arg0: i32) -> (i32, i32) {
    %c0_i32 = arith.constant 0 : i32
    %c0_i32_0 = arith.constant 0 : i32
    %c0_i32_1 = arith.constant 0 : i32
    return %c0_i32, %c0_i32_0 : i32, i32
  }
  func.func @transform_5(%arg0: i32) -> (i32, i32) {
    %c0_i32 = arith.constant 0 : i32
    %c0_i32_0 = arith.constant 0 : i32
    %c0_i32_1 = arith.constant 0 : i32
    return %c0_i32, %c0_i32_0 : i32, i32
  }
  func.func @transform_6(%arg0: i32) -> (i32, i32) {
    %c0_i32 = arith.constant 0 : i32
    %c0_i32_0 = arith.constant 0 : i32
    %c0_i32_1 = arith.constant 0 : i32
    return %c0_i32, %c0_i32_0 : i32, i32
  }
  func.func @transform_7(%arg0: i32) -> (i32, i32) {
    %c0_i32 = arith.constant 0 : i32
    %c0_i32_0 = arith.constant 0 : i32
    %c0_i32_1 = arith.constant 0 : i32
    return %c0_i32, %c0_i32_0 : i32, i32
  }
  func.func @transform_8(%arg0: i32) -> (i32, i32) {
    %c0_i32 = arith.constant 0 : i32
    %c0_i32_0 = arith.constant 0 : i32
    %c0_i32_1 = arith.constant 0 : i32
    return %c0_i32, %c0_i32_0 : i32, i32
  }
  func.func @transform_9(%arg0: i32) -> (i32, i32) {
    %c0_i32 = arith.constant 0 : i32
    %c0_i32_0 = arith.constant 0 : i32
    %c0_i32_1 = arith.constant 0 : i32
    return %c0_i32, %c0_i32_0 : i32, i32
  }
  func.func @transform_10(%arg0: i32) -> (i32, i32, i32, i32) {
    %c0_i32 = arith.constant 0 : i32
    %c0_i32_0 = arith.constant 0 : i32
    %c0_i32_1 = arith.constant 0 : i32
    %c0_i32_2 = arith.constant 0 : i32
    return %arg0, %c0_i32, %c0_i32_0, %c0_i32_1 : i32, i32, i32, i32
  }
}

</mosaic_0001>

<llo_original>
// kernel: tpu_custom_call.1
$region0: #{tpu_custom_call.1}
  #allocation0 [shape = 'u32[]', space=smem, size = 0x4, offset = 0x4, fixed_abs, tag = 'smem constant byte address 0x4 - core index']
  #allocation1 [shape = 'u32[144,128]{1,0:T(1,128)}', space=vmem, size = 0x12000, scoped, tag = 'internal scratch']
  #allocation2 [shape = 'bf16[48,96]{1,0:T(8,128)(2,1)}', space=vmem, size = 0x3000, scoped, tag = 'scratch operand']
  #allocation3 [shape = 'bf16[48,32]{1,0:T(8,128)(2,1)}', space=vmem, size = 0x3000, scoped, tag = 'scratch operand']
  %s0 = inlined_call_operand.hbm [shape: f32[4,3,16,32], index: 0, kind: input, shape index: {}]
  %s1 = inlined_call_operand.hbm [shape: f32[1,32], index: 1, kind: input, shape index: {}]
  %s2 = inlined_call_operand.hbm [shape: f32[1,32], index: 2, kind: input, shape index: {}]
  %s3 = inlined_call_operand.vmem [shape: bf16[32,96], index: 3, kind: input, shape index: {}]
  %s4 = inlined_call_operand.hbm [shape: bf16[32,32], index: 4, kind: input, shape index: {}]
  %s5 = inlined_call_operand.hbm [shape: f32[1,32], index: 5, kind: input, shape index: {}]
  %s6 = inlined_call_operand.hbm [shape: f32[1,32], index: 6, kind: input, shape index: {}]
  %s7 = inlined_call_operand.hbm [shape: bf16[32,128], index: 7, kind: input, shape index: {}]
  %s8 = inlined_call_operand.vmem [shape: bf16[128,128], index: 8, kind: input, shape index: {}]
  %s9 = inlined_call_operand.vmem [shape: bf16[128,32], index: 9, kind: input, shape index: {}]
  %s10 = inlined_call_operand.hbm [shape: f32[4,3,16,32], index: 10, kind: output, shape index: {}]
  %s11 = sld [smem:[#allocation0]]
  $region101: #{tpu_custom_call.1} parent=0
    _
  %s13 = ssub.s32 1, %s11
  %s14 = scalar_select 0, %s13, %s11
  $region1: #{tpu_custom_call.1} parent=0
    #allocation4 [shape = 'u8[98304]{0}', space=vmem, size = 0x18000, scoped, tag = 'input window, operand 0']
    #allocation5 [shape = 's32[2]{0}', space=sflag, size = 0x8, scoped, tag = 'scoped memory for tpu_custom_call.1']
    #allocation6 [shape = 's32[2]{0}', space=sflag, size = 0x8, scoped, tag = 'scoped memory for tpu_custom_call.1']
    #allocation7 [shape = 'u8[512]{0}', space=vmem, size = 0x400, scoped, tag = 'input window, operand 1, single buffered']
    #allocation8 [shape = 's32[1]{0}', space=sflag, size = 0x4, scoped, tag = 'scoped memory for tpu_custom_call.1']
    #allocation9 [shape = 'u8[512]{0}', space=vmem, size = 0x400, scoped, tag = 'input window, operand 2, single buffered']
    #allocation10 [shape = 'u8[8192]{0}', space=vmem, size = 0x2000, scoped, tag = 'input window, operand 4, single buffered']
    #allocation11 [shape = 's32[1]{0}', space=sflag, size = 0x4, scoped, tag = 'scoped memory for tpu_custom_call.1']
    #allocation12 [shape = 'u8[512]{0}', space=vmem, size = 0x400, scoped, tag = 'input window, operand 5, single buffered']
    #allocation13 [shape = 'u8[512]{0}', space=vmem, size = 0x400, scoped, tag = 'input window, operand 6, single buffered']
    #allocation14 [shape = 's32[1]{0}', space=sflag, size = 0x4, scoped, tag = 'scoped memory for tpu_custom_call.1']
    #allocation15 [shape = 'u8[8192]{0}', space=vmem, size = 0x2000, scoped, tag = 'input window, operand 7, single buffered']
    #allocation16 [shape = 'u8[98304]{0}', space=vmem, size = 0x18000, scoped, tag = 'output window, operand 0']
    %15 = vsyncpa [#allocation5], 0
    %s16 = scalar_lea.sflag [#allocation5], 1
    %17 = vsyncpa %s16, 0
    %18 = vsyncpa [#allocation8], 0
    %19 = vsyncpa [#allocation11], 0
    %20 = vsyncpa [#allocation14], 0
    %21 = vsyncpa [#allocation6], 0
    %s22 = scalar_lea.sflag [#allocation6], 1
    %23 = vsyncpa %s22, 0
    loop: start=0, step=1, limit=4
    $region2: #{tpu_custom_call.1} parent=1 // loop_pre_header
      _
    $region3: #{tpu_custom_call.1} parent=1 // loop_header
      %s25 = sphi 0, %s29
      %p26 = scmp.ge.s32.totalorder %s25, 4
      %s35 = sphi 0, %s37
      %s38 = sphi 0, %s35
      %s39 = sphi 0, %s38
      %s55 = sphi 0, %s39
      %s59 = sphi 0, %s59
      %s61 = sphi 0, %s59
      %s62 = sphi 0, %s61
      %s76 = sphi 0, %s62
      %s80 = sphi 0, %s80
      %s82 = sphi 0, %s80
      %s83 = sphi 0, %s82
      %s97 = sphi 0, %s83
      %s101 = sphi 0, %s101
      %s103 = sphi 0, %s101
      %s104 = sphi 0, %s103
      %s118 = sphi 0, %s104
      %s122 = sphi 0, %s122
      %s124 = sphi 0, %s122
      %s125 = sphi 0, %s124
      %s139 = sphi 0, %s125
      %s143 = sphi 0, %s143
      %s145 = sphi 0, %s143
      %s146 = sphi 0, %s145
      %s160 = sphi 0, %s146
      %s164 = sphi 0, %s164
      %s166 = sphi 0, %s164
      %s167 = sphi 0, %s166
      %s181 = sphi 0, %s167
      %s185 = sphi 0, %s185
      %s187 = sphi 0, %s185
      %s188 = sphi 0, %s187
      %s202 = sphi 0, %s188
      %s206 = sphi 0, %s206
      %s208 = sphi 0, %s206
      %s209 = sphi 0, %s208
      %s223 = sphi 0, %s209
      %s227 = sphi 0, %s227
      %s229 = sphi 0, %s227
      %s230 = sphi 0, %s229
      %s244 = sphi 0, %s230
      %s250 = sphi 0, %s252
      %s253 = sphi 0, %s250
      %s254 = sphi 0, %s253
      %s270 = sphi 0, %s254
    $region4: #{tpu_custom_call.1} parent=1 // loop_header_branch
      %28 = sbr.rel (%p26) target = $region8
    $region5: #{tpu_custom_call.1} parent=1 // loop_body
      %s30 = ssub.s32 %s25, 1
      %s31 = ssub.s32 %s25, 2
      %s32 = sadd.s32 %s25, 1
      %s33 = ssub.s32 %s25, %s32
      %p34 = scmp.eq.s32.totalorder %s33, 0
      %s36 = sadd.s32 %s35, 1
      %s37 = scalar_select %p34, %s35, %s36
      %p40 = pneg %p34
      %p41 = scmp.eq.s32.totalorder %s25, 1
      %p42 = por %p40, %p41
      %p43 = scmp.ne.s32.totalorder %s35, %s38
      %p44 = scmp.eq.s32.totalorder %s25, 0
      %p45 = por %p43, %p44
      %p46 = scmp.ne.s32.totalorder %s35, %s38
      %p47 = scmp.eq.s32.totalorder %s30, 1
      %p48 = por %p46, %p47
      %p49 = scmp.ne.s32.totalorder %s38, %s39
      %p50 = scmp.eq.s32.totalorder %s30, 0
      %p51 = por %p49, %p50
      %p52 = scmp.ne.s32.totalorder %s38, %s39
      %p53 = scmp.eq.s32.totalorder %s31, 1
      %p54 = por %p52, %p53
      %p56 = scmp.ne.s32.totalorder %s39, %s55
      %p57 = scmp.eq.s32.totalorder %s31, 0
      %p58 = por %p56, %p57
      %s60 = sadd.s32 %s59, 1
      %p63 = scmp.eq.s32.totalorder %s25, 1
      %p64 = scmp.ne.s32.totalorder %s59, %s61
      %p65 = scmp.eq.s32.totalorder %s25, 0
      %p66 = por %p64, %p65
      %p67 = scmp.ne.s32.totalorder %s59, %s61
      %p68 = scmp.eq.s32.totalorder %s30, 1
      %p69 = por %p67, %p68
      %p70 = scmp.ne.s32.totalorder %s61, %s62
      %p71 = scmp.eq.s32.totalorder %s30, 0
      %p72 = por %p70, %p71
      %p73 = scmp.ne.s32.totalorder %s61, %s62
      %p74 = scmp.eq.s32.totalorder %s31, 1
      %p75 = por %p73, %p74
      %p77 = scmp.ne.s32.totalorder %s62, %s76
      %p78 = scmp.eq.s32.totalorder %s31, 0
      %p79 = por %p77, %p78
      %s81 = sadd.s32 %s80, 1
      %p84 = scmp.eq.s32.totalorder %s25, 1
      %p85 = scmp.ne.s32.totalorder %s80, %s82
      %p86 = scmp.eq.s32.totalorder %s25, 0
      %p87 = por %p85, %p86
      %p88 = scmp.ne.s32.totalorder %s80, %s82
      %p89 = scmp.eq.s32.totalorder %s30, 1
      %p90 = por %p88, %p89
      %p91 = scmp.ne.s32.totalorder %s82, %s83
      %p92 = scmp.eq.s32.totalorder %s30, 0
      %p93 = por %p91, %p92
      %p94 = scmp.ne.s32.totalorder %s82, %s83
      %p95 = scmp.eq.s32.totalorder %s31, 1
      %p96 = por %p94, %p95
      %p98 = scmp.ne.s32.totalorder %s83, %s97
      %p99 = scmp.eq.s32.totalorder %s31, 0
      %p100 = por %p98, %p99
      %s102 = sadd.s32 %s101, 1
      %p105 = scmp.eq.s32.totalorder %s25, 1
      %p106 = scmp.ne.s32.totalorder %s101, %s103
      %p107 = scmp.eq.s32.totalorder %s25, 0
      %p108 = por %p106, %p107
      %p109 = scmp.ne.s32.totalorder %s101, %s103
      %p110 = scmp.eq.s32.totalorder %s30, 1
      %p111 = por %p109, %p110
      %p112 = scmp.ne.s32.totalorder %s103, %s104
      %p113 = scmp.eq.s32.totalorder %s30, 0
      %p114 = por %p112, %p113
      %p115 = scmp.ne.s32.totalorder %s103, %s104
      %p116 = scmp.eq.s32.totalorder %s31, 1
      %p117 = por %p115, %p116
      %p119 = scmp.ne.s32.totalorder %s104, %s118
      %p120 = scmp.eq.s32.totalorder %s31, 0
      %p121 = por %p119, %p120
      %s123 = sadd.s32 %s122, 1
      %p126 = scmp.eq.s32.totalorder %s25, 1
      %p127 = scmp.ne.s32.totalorder %s122, %s124
      %p128 = scmp.eq.s32.totalorder %s25, 0
      %p129 = por %p127, %p128
      %p130 = scmp.ne.s32.totalorder %s122, %s124
      %p131 = scmp.eq.s32.totalorder %s30, 1
      %p132 = por %p130, %p131
      %p133 = scmp.ne.s32.totalorder %s124, %s125
      %p134 = scmp.eq.s32.totalorder %s30, 0
      %p135 = por %p133, %p134
      %p136 = scmp.ne.s32.totalorder %s124, %s125
      %p137 = scmp.eq.s32.totalorder %s31, 1
      %p138 = por %p136, %p137
      %p140 = scmp.ne.s32.totalorder %s125, %s139
      %p141 = scmp.eq.s32.totalorder %s31, 0
      %p142 = por %p140, %p141
      %s144 = sadd.s32 %s143, 1
      %p147 = scmp.eq.s32.totalorder %s25, 1
      %p148 = scmp.ne.s32.totalorder %s143, %s145
      %p149 = scmp.eq.s32.totalorder %s25, 0
      %p150 = por %p148, %p149
      %p151 = scmp.ne.s32.totalorder %s143, %s145
      %p152 = scmp.eq.s32.totalorder %s30, 1
      %p153 = por %p151, %p152
      %p154 = scmp.ne.s32.totalorder %s145, %s146
      %p155 = scmp.eq.s32.totalorder %s30, 0
      %p156 = por %p154, %p155
      %p157 = scmp.ne.s32.totalorder %s145, %s146
      %p158 = scmp.eq.s32.totalorder %s31, 1
      %p159 = por %p157, %p158
      %p161 = scmp.ne.s32.totalorder %s146, %s160
      %p162 = scmp.eq.s32.totalorder %s31, 0
      %p163 = por %p161, %p162
      %s165 = sadd.s32 %s164, 1
      %p168 = scmp.eq.s32.totalorder %s25, 1
      %p169 = scmp.ne.s32.totalorder %s164, %s166
      %p170 = scmp.eq.s32.totalorder %s25, 0
      %p171 = por %p169, %p170
      %p172 = scmp.ne.s32.totalorder %s164, %s166
      %p173 = scmp.eq.s32.totalorder %s30, 1
      %p174 = por %p172, %p173
      %p175 = scmp.ne.s32.totalorder %s166, %s167
      %p176 = scmp.eq.s32.totalorder %s30, 0
      %p177 = por %p175, %p176
      %p178 = scmp.ne.s32.totalorder %s166, %s167
      %p179 = scmp.eq.s32.totalorder %s31, 1
      %p180 = por %p178, %p179
      %p182 = scmp.ne.s32.totalorder %s167, %s181
      %p183 = scmp.eq.s32.totalorder %s31, 0
      %p184 = por %p182, %p183
      %s186 = sadd.s32 %s185, 1
      %p189 = scmp.eq.s32.totalorder %s25, 1
      %p190 = scmp.ne.s32.totalorder %s185, %s187
      %p191 = scmp.eq.s32.totalorder %s25, 0
      %p192 = por %p190, %p191
      %p193 = scmp.ne.s32.totalorder %s185, %s187
      %p194 = scmp.eq.s32.totalorder %s30, 1
      %p195 = por %p193, %p194
      %p196 = scmp.ne.s32.totalorder %s187, %s188
      %p197 = scmp.eq.s32.totalorder %s30, 0
      %p198 = por %p196, %p197
      %p199 = scmp.ne.s32.totalorder %s187, %s188
      %p200 = scmp.eq.s32.totalorder %s31, 1
      %p201 = por %p199, %p200
      %p203 = scmp.ne.s32.totalorder %s188, %s202
      %p204 = scmp.eq.s32.totalorder %s31, 0
      %p205 = por %p203, %p204
      %s207 = sadd.s32 %s206, 1
      %p210 = scmp.eq.s32.totalorder %s25, 1
      %p211 = scmp.ne.s32.totalorder %s206, %s208
      %p212 = scmp.eq.s32.totalorder %s25, 0
      %p213 = por %p211, %p212
      %p214 = scmp.ne.s32.totalorder %s206, %s208
      %p215 = scmp.eq.s32.totalorder %s30, 1
      %p216 = por %p214, %p215
      %p217 = scmp.ne.s32.totalorder %s208, %s209
      %p218 = scmp.eq.s32.totalorder %s30, 0
      %p219 = por %p217, %p218
      %p220 = scmp.ne.s32.totalorder %s208, %s209
      %p221 = scmp.eq.s32.totalorder %s31, 1
      %p222 = por %p220, %p221
      %p224 = scmp.ne.s32.totalorder %s209, %s223
      %p225 = scmp.eq.s32.totalorder %s31, 0
      %p226 = por %p224, %p225
      %s228 = sadd.s32 %s227, 1
      %p231 = scmp.eq.s32.totalorder %s25, 1
      %p232 = scmp.ne.s32.totalorder %s227, %s229
      %p233 = scmp.eq.s32.totalorder %s25, 0
      %p234 = por %p232, %p233
      %p235 = scmp.ne.s32.totalorder %s227, %s229
      %p236 = scmp.eq.s32.totalorder %s30, 1
      %p237 = por %p235, %p236
      %p238 = scmp.ne.s32.totalorder %s229, %s230
      %p239 = scmp.eq.s32.totalorder %s30, 0
      %p240 = por %p238, %p239
      %p241 = scmp.ne.s32.totalorder %s229, %s230
      %p242 = scmp.eq.s32.totalorder %s31, 1
      %p243 = por %p241, %p242
      %p245 = scmp.ne.s32.totalorder %s230, %s244
      %p246 = scmp.eq.s32.totalorder %s31, 0
      %p247 = por %p245, %p246
      %s248 = ssub.s32 %s25, %s32
      %p249 = scmp.eq.s32.totalorder %s248, 0
      %s251 = sadd.s32 %s250, 1
      %s252 = scalar_select %p249, %s250, %s251
      %p255 = pneg %p249
      %p256 = scmp.eq.s32.totalorder %s25, 1
      %p257 = por %p255, %p256
      %p258 = scmp.ne.s32.totalorder %s250, %s253
      %p259 = scmp.eq.s32.totalorder %s25, 0
      %p260 = por %p258, %p259
      %p261 = scmp.ne.s32.totalorder %s250, %s253
      %p262 = scmp.eq.s32.totalorder %s30, 1
      %p263 = por %p261, %p262
      %p264 = scmp.ne.s32.totalorder %s253, %s254
      %p265 = scmp.eq.s32.totalorder %s30, 0
      %p266 = por %p264, %p265
      %p267 = scmp.ne.s32.totalorder %s253, %s254
      %p268 = scmp.eq.s32.totalorder %s31, 1
      %p269 = por %p267, %p268
      %p271 = scmp.ne.s32.totalorder %s254, %s270
      %p272 = scmp.eq.s32.totalorder %s31, 0
      %p273 = por %p271, %p272
      %p274 = scmp.le.s32.totalorder 1, %s25
      %p275 = scmp.lt.s32.totalorder %s25, 3
      %p276 = pnand %p274, %p275
      %p277 = pneg %p276
      // Predicated region
      $region9: #{tpu_custom_call.1} parent=5 // pred_check
        _
      $region10: #{tpu_custom_call.1} parent=5 // pred_check_branch
        %279 = sbr.rel (%p276) target = $region12
      $region11: #{tpu_custom_call.1} parent=5 // pred_region
        %s280 = ssub.s32 %s25, 1
        // Predicated region
        $region13: #{tpu_custom_call.1} parent=11 // pred_check
          %p281 = pneg %p72
        $region14: #{tpu_custom_call.1} parent=11 // pred_check_branch
          %283 = sbr.rel (%p281) target = $region16
        $region15: #{tpu_custom_call.1} parent=11 // pred_region
          %s285 = ssub.s32 16, 16
          %286 = vsyncadd [#allocation8], %s285
          %s288 = sshll.u32 [#allocation7], 4
          %s289 = int_to_ptr.vmem [resolvable:$true] %s288
          %291 = dma.hbm_to_vmem [thread:$0]  %s1, 16, %s289, [#allocation8]
        $region16: #{tpu_custom_call.1} parent=11 // pred_fallthru
          _
        // Predicated region
        $region17: #{tpu_custom_call.1} parent=11 // pred_check
          %p292 = pneg %p93
        $region18: #{tpu_custom_call.1} parent=11 // pred_check_branch
          %294 = sbr.rel (%p292) target = $region20
        $region19: #{tpu_custom_call.1} parent=11 // pred_region
          %s296 = ssub.s32 16, 16
          %297 = vsyncadd [#allocation8], %s296
          %s299 = sshll.u32 [#allocation9], 4
          %s300 = int_to_ptr.vmem [resolvable:$true] %s299
          %302 = dma.hbm_to_vmem [thread:$0]  %s2, 16, %s300, [#allocation8]
        $region20: #{tpu_custom_call.1} parent=11 // pred_fallthru
          _
        // Predicated region
        $region21: #{tpu_custom_call.1} parent=11 // pred_check
          %p303 = pneg %p114
        $region22: #{tpu_custom_call.1} parent=11 // pred_check_branch
          %305 = sbr.rel (%p303) target = $region24
        $region23: #{tpu_custom_call.1} parent=11 // pred_region
          _
        $region24: #{tpu_custom_call.1} parent=11 // pred_fallthru
          _
        // Predicated region
        $region25: #{tpu_custom_call.1} parent=11 // pred_check
          %p306 = pneg %p135
        $region26: #{tpu_custom_call.1} parent=11 // pred_check_branch
          %308 = sbr.rel (%p306) target = $region28
        $region27: #{tpu_custom_call.1} parent=11 // pred_region
          %s310 = ssub.s32 256, 256
          %311 = vsyncadd [#allocation11], %s310
          %s312 = sshll.u32 [#allocation10], 4
          %s313 = int_to_ptr.vmem [resolvable:$true] %s312
          %318 = dma.hbm_to_vmem [thread:$0]  %s4, 256, %s313, [#allocation11], 64, 64, 4
        $region28: #{tpu_custom_call.1} parent=11 // pred_fallthru
          _
        // Predicated region
        $region29: #{tpu_custom_call.1} parent=11 // pred_check
          %p319 = pneg %p156
        $region30: #{tpu_custom_call.1} parent=11 // pred_check_branch
          %321 = sbr.rel (%p319) target = $region32
        $region31: #{tpu_custom_call.1} parent=11 // pred_region
          %s323 = ssub.s32 16, 16
          %324 = vsyncadd [#allocation11], %s323
          %s326 = sshll.u32 [#allocation12], 4
          %s327 = int_to_ptr.vmem [resolvable:$true] %s326
          %329 = dma.hbm_to_vmem [thread:$0]  %s5, 16, %s327, [#allocation11]
        $region32: #{tpu_custom_call.1} parent=11 // pred_fallthru
          _
        // Predicated region
        $region33: #{tpu_custom_call.1} parent=11 // pred_check
          %p330 = pneg %p177
        $region34: #{tpu_custom_call.1} parent=11 // pred_check_branch
          %332 = sbr.rel (%p330) target = $region36
        $region35: #{tpu_custom_call.1} parent=11 // pred_region
          %s334 = ssub.s32 16, 16
          %335 = vsyncadd [#allocation14], %s334
          %s337 = sshll.u32 [#allocation13], 4
          %s338 = int_to_ptr.vmem [resolvable:$true] %s337
          %340 = dma.hbm_to_vmem [thread:$0]  %s6, 16, %s338, [#allocation14]
        $region36: #{tpu_custom_call.1} parent=11 // pred_fallthru
          _
        // Predicated region
        $region37: #{tpu_custom_call.1} parent=11 // pred_check
          %p341 = pneg %p198
        $region38: #{tpu_custom_call.1} parent=11 // pred_check_branch
          %343 = sbr.rel (%p341) target = $region40
        $region39: #{tpu_custom_call.1} parent=11 // pred_region
          %s345 = ssub.s32 256, 256
          %346 = vsyncadd [#allocation14], %s345
          %s347 = sshll.u32 [#allocation15], 4
          %s348 = int_to_ptr.vmem [resolvable:$true] %s347
          %353 = dma.hbm_to_vmem [thread:$0]  %s7, 256, %s348, [#allocation14], 64, 64, 4
        $region40: #{tpu_custom_call.1} parent=11 // pred_fallthru
          _
        // Predicated region
        $region41: #{tpu_custom_call.1} parent=11 // pred_check
          %p354 = pneg %p219
        $region42: #{tpu_custom_call.1} parent=11 // pred_check_branch
          %356 = sbr.rel (%p354) target = $region44
        $region43: #{tpu_custom_call.1} parent=11 // pred_region
          _
        $region44: #{tpu_custom_call.1} parent=11 // pred_fallthru
          _
        // Predicated region
        $region45: #{tpu_custom_call.1} parent=11 // pred_check
          %p357 = pneg %p240
        $region46: #{tpu_custom_call.1} parent=11 // pred_check_branch
          %359 = sbr.rel (%p357) target = $region48
        $region47: #{tpu_custom_call.1} parent=11 // pred_region
          _
        $region48: #{tpu_custom_call.1} parent=11 // pred_fallthru
          _
      $region12: #{tpu_custom_call.1} parent=5 // pred_fallthru
        _
      %p360 = scmp.lt.s32.totalorder %s25, 2
      // Predicated region
      $region49: #{tpu_custom_call.1} parent=5 // pred_check
        %p361 = pneg %p360
      $region50: #{tpu_custom_call.1} parent=5 // pred_check_branch
        %363 = sbr.rel (%p361) target = $region52
      $region51: #{tpu_custom_call.1} parent=5 // pred_region
        // Predicated region
        $region53: #{tpu_custom_call.1} parent=51 // pred_check
          %p364 = pneg %p45
        $region54: #{tpu_custom_call.1} parent=51 // pred_check_branch
          %366 = sbr.rel (%p364) target = $region56
        $region55: #{tpu_custom_call.1} parent=51 // pred_region
          %s367 = sand.u32 %s35, 1
          %s368 = scalar_lea.sflag [#allocation5], %s367
          %s369 = sand.u32 %s35, 1
          %s370 = smul.addr %s369, 96
          %s371 = scalar_lea.vmem [#allocation4], %s370
          %s372 = smul.u32 2, %s25
          %s374 = ssub.s32 1536, 1536
          %375 = vsyncadd %s368, %s374
          %s376 = smul.addr %s372, 6
          %s377 = smul.addr %s376, 128
          %s378 = scalar_lea.hbm %s0, %s377
          %s379 = sshll.u32 %s371, 4
          %s380 = int_to_ptr.vmem [resolvable:$true] %s379
          %385 = dma.hbm_to_vmem [thread:$0]  %s378, 1536, %s380, %s368, 128, 128, 8
        $region56: #{tpu_custom_call.1} parent=51 // pred_fallthru
          _
      $region52: #{tpu_custom_call.1} parent=5 // pred_fallthru
        _
      %p386 = scmp.le.s32.totalorder 1, %s25
      %p387 = scmp.lt.s32.totalorder %s25, 3
      %p388 = pnand %p386, %p387
      %p389 = pneg %p388
      // Predicated region
      $region57: #{tpu_custom_call.1} parent=5 // pred_check
        _
      $region58: #{tpu_custom_call.1} parent=5 // pred_check_branch
        %391 = sbr.rel (%p388) target = $region60
      $region59: #{tpu_custom_call.1} parent=5 // pred_region
        %s392 = ssub.s32 %s25, 1
        %s393 = sand.u32 %s38, 1
        %s394 = scalar_lea.sflag [#allocation5], %s393
        %s395 = sand.u32 %s38, 1
        %s396 = smul.addr %s395, 96
        %s397 = scalar_lea.vmem [#allocation4], %s396
        // Predicated region
        $region61: #{tpu_custom_call.1} parent=59 // pred_check
          %p398 = pneg %p51
        $region62: #{tpu_custom_call.1} parent=59 // pred_check_branch
          %400 = sbr.rel (%p398) target = $region64
        $region63: #{tpu_custom_call.1} parent=59 // pred_region
          %401 = dma.done %s394, 1536
        $region64: #{tpu_custom_call.1} parent=59 // pred_fallthru
          _
        // Predicated region
        $region65: #{tpu_custom_call.1} parent=59 // pred_check
          %p402 = pneg %p72
        $region66: #{tpu_custom_call.1} parent=59 // pred_check_branch
          %404 = sbr.rel (%p402) target = $region68
        $region67: #{tpu_custom_call.1} parent=59 // pred_region
          %405 = dma.done [#allocation8], 16
        $region68: #{tpu_custom_call.1} parent=59 // pred_fallthru
          _
        // Predicated region
        $region69: #{tpu_custom_call.1} parent=59 // pred_check
          %p406 = pneg %p93
        $region70: #{tpu_custom_call.1} parent=59 // pred_check_branch
          %408 = sbr.rel (%p406) target = $region72
        $region71: #{tpu_custom_call.1} parent=59 // pred_region
          %409 = dma.done [#allocation8], 16
        $region72: #{tpu_custom_call.1} parent=59 // pred_fallthru
          _
        // Predicated region
        $region73: #{tpu_custom_call.1} parent=59 // pred_check
          %p410 = pneg %p135
        $region74: #{tpu_custom_call.1} parent=59 // pred_check_branch
          %412 = sbr.rel (%p410) target = $region76
        $region75: #{tpu_custom_call.1} parent=59 // pred_region
          %413 = dma.done [#allocation11], 256
        $region76: #{tpu_custom_call.1} parent=59 // pred_fallthru
          _
        // Predicated region
        $region77: #{tpu_custom_call.1} parent=59 // pred_check
          %p414 = pneg %p156
        $region78: #{tpu_custom_call.1} parent=59 // pred_check_branch
          %416 = sbr.rel (%p414) target = $region80
        $region79: #{tpu_custom_call.1} parent=59 // pred_region
          %417 = dma.done [#allocation11], 16
        $region80: #{tpu_custom_call.1} parent=59 // pred_fallthru
          _
        // Predicated region
        $region81: #{tpu_custom_call.1} parent=59 // pred_check
          %p418 = pneg %p177
        $region82: #{tpu_custom_call.1} parent=59 // pred_check_branch
          %420 = sbr.rel (%p418) target = $region84
        $region83: #{tpu_custom_call.1} parent=59 // pred_region
          %421 = dma.done [#allocation14], 16
        $region84: #{tpu_custom_call.1} parent=59 // pred_fallthru
          _
        // Predicated region
        $region85: #{tpu_custom_call.1} parent=59 // pred_check
          %p422 = pneg %p198
        $region86: #{tpu_custom_call.1} parent=59 // pred_check_branch
          %424 = sbr.rel (%p422) target = $region88
        $region87: #{tpu_custom_call.1} parent=59 // pred_region
          %425 = dma.done [#allocation14], 256
        $region88: #{tpu_custom_call.1} parent=59 // pred_fallthru
          _
        %s426 = sand.u32 %s38, 1
        %s427 = scalar_lea.sflag [#allocation5], %s426
        %s428 = sand.u32 %s38, 1
        %s429 = smul.addr %s428, 96
        %s430 = scalar_lea.vmem [#allocation4], %s429
        %p431 = pneg %p51
        %p432 = pneg %p48
        %p433 = pneg %p72
        %p434 = pneg %p69
        %p435 = pneg %p93
        %p436 = pneg %p90
        %p437 = pneg %p114
        %p438 = pneg %p111
        %p439 = pneg %p135
        %p440 = pneg %p132
        %p441 = pneg %p156
        %p442 = pneg %p153
        %p443 = pneg %p177
        %p444 = pneg %p174
        %p445 = pneg %p198
        %p446 = pneg %p195
        %p447 = pneg %p219
        %p448 = pneg %p216
        %p449 = pneg %p240
        %p450 = pneg %p237
        %p451 = pneg %p266
        %p452 = pneg %p263
        %s453 = sand.u32 %s253, 1
        %s454 = scalar_lea.sflag [#allocation6], %s453
        %s455 = sand.u32 %s253, 1
        %s456 = smul.addr %s455, 96
        %s457 = scalar_lea.vmem [#allocation16], %s456
        %s458 = smul.u32 2, %s30
        %s459 = smul.u32 2, %s30
        %v461 = vld [vmem:[%s397] sm:$0xff]
        %v462 = vld [vmem:[%s397 + $0x8] sm:$0xff]
        %v463 = vld [vmem:[%s397 + $0x10] sm:$0xff]
        %v464 = vld [vmem:[%s397 + $0x18] sm:$0xff]
        %v465 = vld [vmem:[%s397 + $0x20] sm:$0xff]
        %v466 = vld [vmem:[%s397 + $0x28] sm:$0xff]
        %v467 = vld [vmem:[#allocation7] sm:$0x1]
        %v468 = vld [vmem:[#allocation9] sm:$0x1]
        %v469 = vmul.f32 %v461, %v461
        %v470 = vmul.f32 %v462, %v462
        %v471 = vmul.f32 %v463, %v463
        %v472 = vmul.f32 %v464, %v464
        %v473 = vadd.f32 %v469, %v471
        %v474 = vadd.f32 %v470, %v472
        %v475 = vmul.f32 %v465, %v465
        %v476 = vmul.f32 %v466, %v466
        %v477 = vadd.f32 %v473, %v475
        %v478 = vadd.f32 %v474, %v476
        %v479 = vrsqrt.pop %v477
        %v480 = vmul.f32 %v477, %v479
        %vm481 = vcmp.eq.f32.partialorder %v477, inf
        %v482 = vsel %vm481, %v477, %v480
        %vm483 = vcmp.eq.f32.partialorder %v477, 0.0
        %v484 = vand.u32 %v477, 2147483648
        %v485 = vsel %vm483, %v484, %v482
        %v486 = vrsqrt.pop %v478
        %v487 = vmul.f32 %v478, %v486
        %vm488 = vcmp.eq.f32.partialorder %v478, inf
        %v489 = vsel %vm488, %v478, %v487
        %vm490 = vcmp.eq.f32.partialorder %v478, 0.0
        %v491 = vand.u32 %v478, 2147483648
        %v492 = vsel %vm490, %v491, %v489
        %vm493 = vcmask 261120
        %v494 = vsel %vm493, %v485, 0.0
        %495 = vadd.xlane.f32.xlu0 %v494
        %v496 = vpop.xlane.xlu0 %495
        %v497 = vsel %vm493, %v492, 0.0
        %498 = vadd.xlane.f32.xlu0 %v497
        %v499 = vpop.xlane.xlu0 %498
        %v500 = vrcp.pop 32.0
        %v501 = vmul.f32 %v496, %v500
        %v502 = vmul.f32 %v499, %v500
        %v503 = vsub.f32 %v485, %v501
        %v504 = vsub.f32 %v492, %v502
        %v505 = vmul.f32 %v503, %v503
        %v506 = vmul.f32 %v504, %v504
        %v507 = vsel %vm493, %v505, 0.0
        %508 = vadd.xlane.f32.xlu0 %v507
        %v509 = vpop.xlane.xlu0 %508
        %v510 = vsel %vm493, %v506, 0.0
        %511 = vadd.xlane.f32.xlu0 %v510
        %v512 = vpop.xlane.xlu0 %511
        %v513 = vmul.f32 %v509, %v500
        %v514 = vmul.f32 %v512, %v500
        %v515 = vadd.f32 %v513, 1e-06
        %v516 = vadd.f32 %v514, 1e-06
        %v517 = vrsqrt.pop %v515
        %v518 = vrsqrt.pop %v516
        %v519 = vmul.f32 %v503, %v517
        %v520 = vmul.f32 %v504, %v518
        %v522 = vlaneseq
        %v523 = vshrl.u32 %v522, 7
        %v524 = vsub.s32 0, %v523
        %v525 = vrot.slane %v467, %v524
        %v527 = vmul.f32 %v519, %v525
        %v528 = vmul.f32 %v520, %v525
        %v530 = vlaneseq
        %v531 = vshrl.u32 %v530, 7
        %v532 = vsub.s32 0, %v531
        %v533 = vrot.slane %v468, %v532
        %v535 = vadd.f32 %v527, %v533
        %v536 = vadd.f32 %v528, %v533
        %v537 = vadd.f32 %v485, 1e-06
        %v538 = vadd.f32 %v492, 1e-06
        %v539 = vrcp.pop %v537
        %v540 = vmul.f32 %v535, %v539
        %v541 = vrcp.pop %v538
        %v542 = vmul.f32 %v536, %v541
        %v543 = vmul.f32 %v461, %v540
        %v544 = vmul.f32 %v462, %v542
        %v545 = vmul.f32 %v463, %v540
        %v546 = vmul.f32 %v464, %v542
        %v547 = vmul.f32 %v465, %v540
        %v548 = vmul.f32 %v466, %v542
        %v549 = vpack.c.bf16 %v544, %v543
        %v550 = vpack.c.bf16 %v546, %v545
        %v551 = vpack.c.bf16 %v548, %v547
        %v552 = vld [vmem:[%s3] sm:$0xf]
        %v553 = vld [vmem:[%s3 + $0x4] sm:$0xf]
        %v554 = vld [vmem:[%s3 + $0x8] sm:$0xf]
        %v555 = vld [vmem:[%s3 + $0xc] sm:$0xf]
        %v560 = vunpack.c.l.b16 %v552
        %v561 = vunpack.c.l.b16 %v553
        %v562 = vunpack.c.l.b16 %v554
        %v563 = vunpack.c.l.b16 %v555
        %v564 = vpack.c.b16 %v561, %v560
        %v565 = vpack.c.b16 %v563, %v562
        %v569 = vsel %vm493, %v549, 0
        %v572 = vsel %vm493, %v550, 0
        %v575 = vsel %vm493, %v551, 0
        %577 = vmatprep.subr.bf16.mxu0 0
        %578 = vmatpush1.bf16.msra.mxu0 0
        %579 = vmatprep.subr.bf16.mxu0 0
        %580 = vmatpush1.bf16.msra.mxu0 0
        %581 = vmatprep.subr.bf16.mxu0 0
        %582 = vmatpush1.bf16.msra.mxu0 0
        %583 = vmatprep.subr.bf16.mxu0 0
        %584 = vmatpush1.bf16.msra.mxu0 0
        %585 = vmatprep.subr.bf16.mxu0 0
        %586 = vmatpush1.bf16.msra.mxu0 0
        %587 = vmatprep.subr.bf16.mxu0 0
        %588 = vmatpush1.bf16.msra.mxu0 0
        %589 = vmatprep.subr.bf16.mxu0 0
        %590 = vmatpush1.bf16.msra.mxu0 %v565
        %591 = vmatprep.subr.bf16.mxu0 0
        %592 = vmatpush1.bf16.msra.mxu0 %v564
        %593 = vmatprep.subr.bf16.mxu0 0
        %594 = vmatpush2.bf16.msra.mxu0 0
        %595 = vmatprep.subr.bf16.mxu0 0
        %596 = vmatpush2.bf16.msra.mxu0 0
        %597 = vmatprep.subr.bf16.mxu0 0
        %598 = vmatpush2.bf16.msra.mxu0 0
        %599 = vmatprep.subr.bf16.mxu0 0
        %600 = vmatpush2.bf16.msra.mxu0 0
        %601 = vmatprep.subr.bf16.mxu0 0
        %602 = vmatpush2.bf16.msra.mxu0 0
        %603 = vmatprep.subr.bf16.mxu0 0
        %604 = vmatpush2.bf16.msra.mxu0 0
        %605 = vmatprep.subr.bf16.mxu0 0
        %606 = vmatpush2.bf16.msra.mxu0 0
        %607 = vmatprep.subr.bf16.mxu0 0
        %608 = vmatpush2.bf16.msra.mxu0 0
        %609 = vmatprep.mubr.bf16.mxu0 0
        %610 = vmatmul.mubr.bf16.gmra.mxu0 %v569
        %v611 = vpop.f32.mrf.mxu0
        %v612 = vadd.f32 0.0, %v611
        %v613 = vpop.f32.mrf.mxu0
        %v614 = vpop.f32.mrf.mxu0
        %v615 = vadd.f32 0.0, %v614
        %v616 = vpop.f32.mrf.mxu0
        %617 = vmatprep.mubr.bf16.mxu0 0
        %618 = vmatmul.mubr.bf16.gmra.mxu0 %v572
        %v619 = vpop.f32.mrf.mxu0
        %v620 = vadd.f32 0.0, %v619
        %v621 = vpop.f32.mrf.mxu0
        %v622 = vpop.f32.mrf.mxu0
        %v623 = vadd.f32 0.0, %v622
        %v624 = vpop.f32.mrf.mxu0
        %625 = vmatprep.mubr.bf16.mxu0 0
        %626 = vmatmul.mubr.bf16.gmra.mxu0 %v575
        %v627 = vpop.f32.mrf.mxu0
        %v628 = vadd.f32 0.0, %v627
        %v629 = vpop.f32.mrf.mxu0
        %v630 = vpop.f32.mrf.mxu0
        %v631 = vadd.f32 0.0, %v630
        %v632 = vpop.f32.mrf.mxu0
        %633 = vdwg.mxu0
        %v634 = vpack.c.bf16 %v615, %v612
        %v635 = vpack.c.bf16 %v623, %v620
        %v636 = vpack.c.bf16 %v631, %v628
        %v640 = vunpack.c.l.b16 %v634
        %v641 = vunpack.c.h.b16 %v634
        %v642 = vunpack.c.l.b16 %v635
        %v643 = vunpack.c.h.b16 %v635
        %v644 = vunpack.c.l.b16 %v636
        %v645 = vunpack.c.h.b16 %v636
        %v646 = vpack.c.b16 %v640, %v640
        %v647 = vpack.c.b16 %v641, %v641
        %v648 = vpack.c.b16 %v642, %v642
        %v649 = vpack.c.b16 %v643, %v643
        %v650 = vpack.c.b16 %v644, %v644
        %v651 = vpack.c.b16 %v645, %v645
        %vm658 = vcmask 781312
        %659 = vst.msk [vmem:[#allocation2] sm:$0xf] %vm658, %v646
        %660 = vst.msk [vmem:[#allocation2 + $0x4] sm:$0xf] %vm658, %v647
        %661 = vst.msk [vmem:[#allocation2 + $0x8] sm:$0xf] %vm658, %v648
        %662 = vst.msk [vmem:[#allocation2 + $0xc] sm:$0xf] %vm658, %v649
        %663 = vst.msk [vmem:[#allocation2 + $0x10] sm:$0xf] %vm658, %v650
        %664 = vst.msk [vmem:[#allocation2 + $0x14] sm:$0xf] %vm658, %v651
        %v665 = vld [vmem:[#allocation2] sm:$0xf]
        %v666 = vld [vmem:[#allocation2 + $0x4] sm:$0xf]
        %v667 = vld [vmem:[#allocation2 + $0x8] sm:$0xf]
        %v668 = vld [vmem:[#allocation2 + $0xc] sm:$0xf]
        %v671 = vunpack.c.l.b16 %v667
        %v672 = vunpack.c.l.b16 %v668
        %v673 = vpack.c.b16 %v672, %v671
        %674 = vrot.lane.b32.xlu0 %v673, 96
        %v675 = vpop.permute.xlu0 %674
        %vm676 = vcmask 64512
        %v678 = vsel %vm676, %v673, 0
        %v681 = vsel %vm676, %v675, 0
        %683 = vmatprep.subr.bf16.mxu0 0
        %684 = vmatpush1.bf16.xpose.msra.mxu0 0
        %685 = vmatprep.subr.bf16.mxu0 0
        %686 = vmatpush1.bf16.xpose.msra.mxu0 0
        %687 = vmatprep.subr.bf16.mxu0 0
        %688 = vmatpush1.bf16.xpose.msra.mxu0 0
        %689 = vmatprep.subr.bf16.mxu0 0
        %690 = vmatpush1.bf16.xpose.msra.mxu0 0
        %691 = vmatprep.subr.bf16.mxu0 0
        %692 = vmatpush1.bf16.xpose.msra.mxu0 0
        %693 = vmatprep.subr.bf16.mxu0 0
        %694 = vmatpush1.bf16.xpose.msra.mxu0 0
        %695 = vmatprep.subr.bf16.mxu0 0
        %696 = vmatpush1.bf16.xpose.msra.mxu0 0
        %697 = vmatprep.subr.bf16.mxu0 0
        %698 = vmatpush1.bf16.xpose.msra.mxu0 %v681
        %699 = vmatprep.subr.bf16.mxu0 0
        %700 = vmatpush2.bf16.xpose.msra.mxu0 0
        %701 = vmatprep.subr.bf16.mxu0 0
        %702 = vmatpush2.bf16.xpose.msra.mxu0 0
        %703 = vmatprep.subr.bf16.mxu0 0
        %704 = vmatpush2.bf16.xpose.msra.mxu0 0
        %705 = vmatprep.subr.bf16.mxu0 0
        %706 = vmatpush2.bf16.xpose.msra.mxu0 0
        %707 = vmatprep.subr.bf16.mxu0 0
        %708 = vmatpush2.bf16.xpose.msra.mxu0 0
        %709 = vmatprep.subr.bf16.mxu0 0
        %710 = vmatpush2.bf16.xpose.msra.mxu0 0
        %711 = vmatprep.subr.bf16.mxu0 0
        %712 = vmatpush2.bf16.xpose.msra.mxu0 0
        %713 = vmatprep.subr.bf16.mxu0 0
        %714 = vmatpush2.bf16.xpose.msra.mxu0 0
        %715 = vmatprep.mubr.bf16.mxu0 0
        %716 = vmatmul.mubr.bf16.gmra.mxu0 %v678
        %v717 = vpop.f32.mrf.mxu0
        %v718 = vadd.f32 0.0, %v717
        %v719 = vpop.f32.mrf.mxu0
        %v720 = vpop.f32.mrf.mxu0
        %v721 = vadd.f32 0.0, %v720
        %v722 = vpop.f32.mrf.mxu0
        %723 = vdwg.mxu0
        %v726 = vunpack.c.l.b16 %v665
        %v727 = vunpack.c.l.b16 %v666
        %v728 = vpack.c.b16 %v727, %v726
        %729 = vrot.lane.b32.xlu0 %v728, 96
        %v730 = vpop.permute.xlu0 %729
        %v732 = vsel %vm676, %v728, 0
        %v735 = vsel %vm676, %v730, 0
        %737 = vmatprep.subr.bf16.mxu0 0
        %738 = vmatpush1.bf16.xpose.msra.mxu0 0
        %739 = vmatprep.subr.bf16.mxu0 0
        %740 = vmatpush1.bf16.xpose.msra.mxu0 0
        %741 = vmatprep.subr.bf16.mxu0 0
        %742 = vmatpush1.bf16.xpose.msra.mxu0 0
        %743 = vmatprep.subr.bf16.mxu0 0
        %744 = vmatpush1.bf16.xpose.msra.mxu0 0
        %745 = vmatprep.subr.bf16.mxu0 0
        %746 = vmatpush1.bf16.xpose.msra.mxu0 0
        %747 = vmatprep.subr.bf16.mxu0 0
        %748 = vmatpush1.bf16.xpose.msra.mxu0 0
        %749 = vmatprep.subr.bf16.mxu0 0
        %750 = vmatpush1.bf16.xpose.msra.mxu0 0
        %751 = vmatprep.subr.bf16.mxu0 0
        %752 = vmatpush1.bf16.xpose.msra.mxu0 %v735
        %753 = vmatprep.subr.bf16.mxu0 0
        %754 = vmatpush2.bf16.xpose.msra.mxu0 0
        %755 = vmatprep.subr.bf16.mxu0 0
        %756 = vmatpush2.bf16.xpose.msra.mxu0 0
        %757 = vmatprep.subr.bf16.mxu0 0
        %758 = vmatpush2.bf16.xpose.msra.mxu0 0
        %759 = vmatprep.subr.bf16.mxu0 0
        %760 = vmatpush2.bf16.xpose.msra.mxu0 0
        %761 = vmatprep.subr.bf16.mxu0 0
        %762 = vmatpush2.bf16.xpose.msra.mxu0 0
        %763 = vmatprep.subr.bf16.mxu0 0
        %764 = vmatpush2.bf16.xpose.msra.mxu0 0
        %765 = vmatprep.subr.bf16.mxu0 0
        %766 = vmatpush2.bf16.xpose.msra.mxu0 0
        %767 = vmatprep.subr.bf16.mxu0 0
        %768 = vmatpush2.bf16.xpose.msra.mxu0 0
        %769 = vmatprep.mubr.bf16.mxu0 0
        %770 = vmatmul.mubr.bf16.gmra.mxu0 %v732
        %v771 = vpop.f32.mrf.mxu0
        %v772 = vadd.f32 %v718, %v771
        %v773 = vpop.f32.mrf.mxu0
        %v774 = vpop.f32.mrf.mxu0
        %v775 = vadd.f32 %v721, %v774
        %v776 = vpop.f32.mrf.mxu0
        %777 = vdwg.mxu0
        %v778 = vld [vmem:[#allocation2 + $0x10] sm:$0xf]
        %v779 = vld [vmem:[#allocation2 + $0x14] sm:$0xf]
        %v782 = vunpack.c.l.b16 %v778
        %v783 = vunpack.c.l.b16 %v779
        %v784 = vpack.c.b16 %v783, %v782
        %785 = vrot.lane.b32.xlu0 %v784, 96
        %v786 = vpop.permute.xlu0 %785
        %v788 = vsel %vm676, %v784, 0
        %v791 = vsel %vm676, %v786, 0
        %793 = vmatprep.subr.bf16.mxu0 0
        %794 = vmatpush1.bf16.xpose.msra.mxu0 0
        %795 = vmatprep.subr.bf16.mxu0 0
        %796 = vmatpush1.bf16.xpose.msra.mxu0 0
        %797 = vmatprep.subr.bf16.mxu0 0
        %798 = vmatpush1.bf16.xpose.msra.mxu0 0
        %799 = vmatprep.subr.bf16.mxu0 0
        %800 = vmatpush1.bf16.xpose.msra.mxu0 0
        %801 = vmatprep.subr.bf16.mxu0 0
        %802 = vmatpush1.bf16.xpose.msra.mxu0 0
        %803 = vmatprep.subr.bf16.mxu0 0
        %804 = vmatpush1.bf16.xpose.msra.mxu0 0
        %805 = vmatprep.subr.bf16.mxu0 0
        %806 = vmatpush1.bf16.xpose.msra.mxu0 0
        %807 = vmatprep.subr.bf16.mxu0 0
        %808 = vmatpush1.bf16.xpose.msra.mxu0 %v791
        %809 = vmatprep.subr.bf16.mxu0 0
        %810 = vmatpush2.bf16.xpose.msra.mxu0 0
        %811 = vmatprep.subr.bf16.mxu0 0
        %812 = vmatpush2.bf16.xpose.msra.mxu0 0
        %813 = vmatprep.subr.bf16.mxu0 0
        %814 = vmatpush2.bf16.xpose.msra.mxu0 0
        %815 = vmatprep.subr.bf16.mxu0 0
        %816 = vmatpush2.bf16.xpose.msra.mxu0 0
        %817 = vmatprep.subr.bf16.mxu0 0
        %818 = vmatpush2.bf16.xpose.msra.mxu0 0
        %819 = vmatprep.subr.bf16.mxu0 0
        %820 = vmatpush2.bf16.xpose.msra.mxu0 0
        %821 = vmatprep.subr.bf16.mxu0 0
        %822 = vmatpush2.bf16.xpose.msra.mxu0 0
        %823 = vmatprep.subr.bf16.mxu0 0
        %824 = vmatpush2.bf16.xpose.msra.mxu0 0
        %825 = vmatprep.mubr.bf16.mxu0 0
        %826 = vmatmul.mubr.bf16.gmra.mxu0 %v788
        %v827 = vpop.f32.mrf.mxu0
        %v828 = vadd.f32 0.0, %v827
        %v829 = vpop.f32.mrf.mxu0
        %v830 = vpop.f32.mrf.mxu0
        %v831 = vadd.f32 0.0, %v830
        %v832 = vpop.f32.mrf.mxu0
        %833 = vdwg.mxu0
        %v834 = vadd.f32 %v772, %v828
        %v835 = vadd.f32 %v775, %v831
        %vm836 = vcmask 130048
        %v837 = vsel %vm836, %v834, -inf
        %838 = vmax.xlane.f32.xlu0 %v837
        %v839 = vpop.xlane.xlu0 %838
        %v840 = vsel %vm836, %v835, -inf
        %841 = vmax.xlane.f32.xlu0 %v840
        %v842 = vpop.xlane.xlu0 %841
        %v843 = vsub.f32 %v834, %v839
        %v844 = vsub.f32 %v835, %v842
        %v845 = vmul.f32 %v843, 1.442695
        %v846 = vpow.pop %v845
        %v847 = vmul.f32 %v844, 1.442695
        %v848 = vpow.pop %v847
        %v849 = vsel %vm836, %v846, 0.0
        %850 = vadd.xlane.f32.xlu0 %v849
        %v851 = vpop.xlane.xlu0 %850
        %v852 = vsel %vm836, %v848, 0.0
        %853 = vadd.xlane.f32.xlu0 %v852
        %v854 = vpop.xlane.xlu0 %853
        %v855 = vrcp.pop %v851
        %v856 = vrcp.pop %v854
        %v857 = vmul.f32 %v846, %v855
        %v858 = vmul.f32 %v848, %v856
        %v859 = vpack.c.bf16 %v858, %v857
        %860 = vrot.lane.b32.xlu0 %v728, 64
        %v861 = vpop.permute.xlu0 %860
        %v864 = vsel %vm836, %v859, 0
        %866 = vmatprep.subr.bf16.mxu0 0
        %867 = vmatpush1.bf16.msra.mxu0 0
        %868 = vmatprep.subr.bf16.mxu0 0
        %869 = vmatpush1.bf16.msra.mxu0 0
        %870 = vmatprep.subr.bf16.mxu0 0
        %871 = vmatpush1.bf16.msra.mxu0 0
        %872 = vmatprep.subr.bf16.mxu0 0
        %873 = vmatpush1.bf16.msra.mxu0 0
        %874 = vmatprep.subr.bf16.mxu0 0
        %875 = vmatpush1.bf16.msra.mxu0 0
        %876 = vmatprep.subr.bf16.mxu0 0
        %877 = vmatpush1.bf16.msra.mxu0 0
        %878 = vmatprep.subr.bf16.mxu0 0
        %879 = vmatpush1.bf16.msra.mxu0 0
        %880 = vmatprep.subr.bf16.mxu0 0
        %881 = vmatpush1.bf16.msra.mxu0 %v861
        %882 = vmatprep.subr.bf16.mxu0 0
        %883 = vmatpush2.bf16.msra.mxu0 0
        %884 = vmatprep.subr.bf16.mxu0 0
        %885 = vmatpush2.bf16.msra.mxu0 0
        %886 = vmatprep.subr.bf16.mxu0 0
        %887 = vmatpush2.bf16.msra.mxu0 0
        %888 = vmatprep.subr.bf16.mxu0 0
        %889 = vmatpush2.bf16.msra.mxu0 0
        %890 = vmatprep.subr.bf16.mxu0 0
        %891 = vmatpush2.bf16.msra.mxu0 0
        %892 = vmatprep.subr.bf16.mxu0 0
        %893 = vmatpush2.bf16.msra.mxu0 0
        %894 = vmatprep.subr.bf16.mxu0 0
        %895 = vmatpush2.bf16.msra.mxu0 0
        %896 = vmatprep.subr.bf16.mxu0 0
        %897 = vmatpush2.bf16.msra.mxu0 0
        %898 = vmatprep.mubr.bf16.mxu0 0
        %899 = vmatmul.mubr.bf16.gmra.mxu0 %v864
        %v900 = vpop.f32.mrf.mxu0
        %v901 = vadd.f32 0.0, %v900
        %v902 = vpop.f32.mrf.mxu0
        %v903 = vpop.f32.mrf.mxu0
        %v904 = vadd.f32 0.0, %v903
        %v905 = vpop.f32.mrf.mxu0
        %906 = vdwg.mxu0
        %v907 = vpack.c.bf16 %v904, %v901
        %v909 = vunpack.c.l.b16 %v907
        %v910 = vunpack.c.h.b16 %v907
        %v911 = vpack.c.b16 %v909, %v909
        %v912 = vpack.c.b16 %v910, %v910
        %vm915 = vcmask 60416
        %916 = vst.msk [vmem:[#allocation3] sm:$0xf] %vm915, %v911
        %917 = vst.msk [vmem:[#allocation3 + $0x4] sm:$0xf] %vm915, %v912
        %v918 = vld [vmem:[#allocation2 + $0x8] sm:$0xf]
        %v919 = vld [vmem:[#allocation2 + $0xc] sm:$0xf]
        %v922 = vunpack.c.l.b16 %v918
        %v923 = vunpack.c.l.b16 %v919
        %v924 = vpack.c.b16 %v923, %v922
        %925 = vrot.lane.b32.xlu0 %v924, 64
        %v926 = vpop.permute.xlu0 %925
        %928 = vmatprep.subr.bf16.mxu0 0
        %929 = vmatpush1.bf16.msra.mxu0 0
        %930 = vmatprep.subr.bf16.mxu0 0
        %931 = vmatpush1.bf16.msra.mxu0 0
        %932 = vmatprep.subr.bf16.mxu0 0
        %933 = vmatpush1.bf16.msra.mxu0 0
        %934 = vmatprep.subr.bf16.mxu0 0
        %935 = vmatpush1.bf16.msra.mxu0 0
        %936 = vmatprep.subr.bf16.mxu0 0
        %937 = vmatpush1.bf16.msra.mxu0 0
        %938 = vmatprep.subr.bf16.mxu0 0
        %939 = vmatpush1.bf16.msra.mxu0 0
        %940 = vmatprep.subr.bf16.mxu0 0
        %941 = vmatpush1.bf16.msra.mxu0 0
        %942 = vmatprep.subr.bf16.mxu0 0
        %943 = vmatpush1.bf16.msra.mxu0 %v926
        %944 = vmatprep.subr.bf16.mxu0 0
        %945 = vmatpush2.bf16.msra.mxu0 0
        %946 = vmatprep.subr.bf16.mxu0 0
        %947 = vmatpush2.bf16.msra.mxu0 0
        %948 = vmatprep.subr.bf16.mxu0 0
        %949 = vmatpush2.bf16.msra.mxu0 0
        %950 = vmatprep.subr.bf16.mxu0 0
        %951 = vmatpush2.bf16.msra.mxu0 0
        %952 = vmatprep.subr.bf16.mxu0 0
        %953 = vmatpush2.bf16.msra.mxu0 0
        %954 = vmatprep.subr.bf16.mxu0 0
        %955 = vmatpush2.bf16.msra.mxu0 0
        %956 = vmatprep.subr.bf16.mxu0 0
        %957 = vmatpush2.bf16.msra.mxu0 0
        %958 = vmatprep.subr.bf16.mxu0 0
        %959 = vmatpush2.bf16.msra.mxu0 0
        %960 = vmatprep.mubr.bf16.mxu0 0
        %961 = vmatmul.mubr.bf16.gmra.mxu0 %v864
        %v962 = vpop.f32.mrf.mxu0
        %v963 = vadd.f32 0.0, %v962
        %v964 = vpop.f32.mrf.mxu0
        %v965 = vpop.f32.mrf.mxu0
        %v966 = vadd.f32 0.0, %v965
        %v967 = vpop.f32.mrf.mxu0
        %968 = vdwg.mxu0
        %v969 = vpack.c.bf16 %v966, %v963
        %v971 = vunpack.c.l.b16 %v969
        %v972 = vunpack.c.h.b16 %v969
        %v973 = vpack.c.b16 %v971, %v971
        %v974 = vpack.c.b16 %v972, %v972
        %977 = vst.msk [vmem:[#allocation3 + $0x8] sm:$0xf] %vm915, %v973
        %978 = vst.msk [vmem:[#allocation3 + $0xc] sm:$0xf] %vm915, %v974
        %v979 = vld [vmem:[#allocation2 + $0x10] sm:$0xf]
        %v980 = vld [vmem:[#allocation2 + $0x14] sm:$0xf]
        %v983 = vunpack.c.l.b16 %v979
        %v984 = vunpack.c.l.b16 %v980
        %v985 = vpack.c.b16 %v984, %v983
        %986 = vrot.lane.b32.xlu0 %v985, 64
        %v987 = vpop.permute.xlu0 %986
        %989 = vmatprep.subr.bf16.mxu0 0
        %990 = vmatpush1.bf16.msra.mxu0 0
        %991 = vmatprep.subr.bf16.mxu0 0
        %992 = vmatpush1.bf16.msra.mxu0 0
        %993 = vmatprep.subr.bf16.mxu0 0
        %994 = vmatpush1.bf16.msra.mxu0 0
        %995 = vmatprep.subr.bf16.mxu0 0
        %996 = vmatpush1.bf16.msra.mxu0 0
        %997 = vmatprep.subr.bf16.mxu0 0
        %998 = vmatpush1.bf16.msra.mxu0 0
        %999 = vmatprep.subr.bf16.mxu0 0
        %1000 = vmatpush1.bf16.msra.mxu0 0
        %1001 = vmatprep.subr.bf16.mxu0 0
        %1002 = vmatpush1.bf16.msra.mxu0 0
        %1003 = vmatprep.subr.bf16.mxu0 0
        %1004 = vmatpush1.bf16.msra.mxu0 %v987
        %1005 = vmatprep.subr.bf16.mxu0 0
        %1006 = vmatpush2.bf16.msra.mxu0 0
        %1007 = vmatprep.subr.bf16.mxu0 0
        %1008 = vmatpush2.bf16.msra.mxu0 0
        %1009 = vmatprep.subr.bf16.mxu0 0
        %1010 = vmatpush2.bf16.msra.mxu0 0
        %1011 = vmatprep.subr.bf16.mxu0 0
        %1012 = vmatpush2.bf16.msra.mxu0 0
        %1013 = vmatprep.subr.bf16.mxu0 0
        %1014 = vmatpush2.bf16.msra.mxu0 0
        %1015 = vmatprep.subr.bf16.mxu0 0
        %1016 = vmatpush2.bf16.msra.mxu0 0
        %1017 = vmatprep.subr.bf16.mxu0 0
        %1018 = vmatpush2.bf16.msra.mxu0 0
        %1019 = vmatprep.subr.bf16.mxu0 0
        %1020 = vmatpush2.bf16.msra.mxu0 0
        %1021 = vmatprep.mubr.bf16.mxu0 0
        %1022 = vmatmul.mubr.bf16.gmra.mxu0 %v864
        %v1023 = vpop.f32.mrf.mxu0
        %v1024 = vadd.f32 0.0, %v1023
        %v1025 = vpop.f32.mrf.mxu0
        %v1026 = vpop.f32.mrf.mxu0
        %v1027 = vadd.f32 0.0, %v1026
        %v1028 = vpop.f32.mrf.mxu0
        %1029 = vdwg.mxu0
        %v1030 = vpack.c.bf16 %v1027, %v1024
        %v1032 = vunpack.c.l.b16 %v1030
        %v1033 = vunpack.c.h.b16 %v1030
        %v1034 = vpack.c.b16 %v1032, %v1032
        %v1035 = vpack.c.b16 %v1033, %v1033
        %1038 = vst.msk [vmem:[#allocation3 + $0x10] sm:$0xf] %vm915, %v1034
        %1039 = vst.msk [vmem:[#allocation3 + $0x14] sm:$0xf] %vm915, %v1035
        %v1040 = vld [vmem:[#allocation2] sm:$0xf]
        %v1041 = vld [vmem:[#allocation2 + $0x4] sm:$0xf]
        %v1042 = vld [vmem:[#allocation2 + $0x8] sm:$0xf]
        %v1043 = vld [vmem:[#allocation2 + $0xc] sm:$0xf]
        %v1046 = vunpack.c.l.b16 %v1042
        %v1047 = vunpack.c.l.b16 %v1043
        %v1048 = vpack.c.b16 %v1047, %v1046
        %1049 = vrot.lane.b32.xlu0 %v1048, 120
        %v1050 = vpop.permute.xlu0 %1049
        %1051 = vrot.lane.b32.xlu0 %v1048, 88
        %v1052 = vpop.permute.xlu0 %1051
        %v1054 = vsel %vm676, %v1050, 0
        %v1057 = vsel %vm676, %v1052, 0
        %1059 = vmatprep.subr.bf16.mxu0 0
        %1060 = vmatpush1.bf16.xpose.msra.mxu0 0
        %1061 = vmatprep.subr.bf16.mxu0 0
        %1062 = vmatpush1.bf16.xpose.msra.mxu0 0
        %1063 = vmatprep.subr.bf16.mxu0 0
        %1064 = vmatpush1.bf16.xpose.msra.mxu0 0
        %1065 = vmatprep.subr.bf16.mxu0 0
        %1066 = vmatpush1.bf16.xpose.msra.mxu0 0
        %1067 = vmatprep.subr.bf16.mxu0 0
        %1068 = vmatpush1.bf16.xpose.msra.mxu0 0
        %1069 = vmatprep.subr.bf16.mxu0 0
        %1070 = vmatpush1.bf16.xpose.msra.mxu0 0
        %1071 = vmatprep.subr.bf16.mxu0 0
        %1072 = vmatpush1.bf16.xpose.msra.mxu0 0
        %1073 = vmatprep.subr.bf16.mxu0 0
        %1074 = vmatpush1.bf16.xpose.msra.mxu0 %v1057
        %1075 = vmatprep.subr.bf16.mxu0 0
        %1076 = vmatpush2.bf16.xpose.msra.mxu0 0
        %1077 = vmatprep.subr.bf16.mxu0 0
        %1078 = vmatpush2.bf16.xpose.msra.mxu0 0
        %1079 = vmatprep.subr.bf16.mxu0 0
        %1080 = vmatpush2.bf16.xpose.msra.mxu0 0
        %1081 = vmatprep.subr.bf16.mxu0 0
        %1082 = vmatpush2.bf16.xpose.msra.mxu0 0
        %1083 = vmatprep.subr.bf16.mxu0 0
        %1084 = vmatpush2.bf16.xpose.msra.mxu0 0
        %1085 = vmatprep.subr.bf16.mxu0 0
        %1086 = vmatpush2.bf16.xpose.msra.mxu0 0
        %1087 = vmatprep.subr.bf16.mxu0 0
        %1088 = vmatpush2.bf16.xpose.msra.mxu0 0
        %1089 = vmatprep.subr.bf16.mxu0 0
        %1090 = vmatpush2.bf16.xpose.msra.mxu0 0
        %1091 = vmatprep.mubr.bf16.mxu0 0
        %1092 = vmatmul.mubr.bf16.gmra.mxu0 %v1054
        %v1093 = vpop.f32.mrf.mxu0
        %v1094 = vadd.f32 0.0, %v1093
        %v1095 = vpop.f32.mrf.mxu0
        %v1096 = vpop.f32.mrf.mxu0
        %v1097 = vadd.f32 0.0, %v1096
        %v1098 = vpop.f32.mrf.mxu0
        %1099 = vdwg.mxu0
        %v1102 = vunpack.c.l.b16 %v1040
        %v1103 = vunpack.c.l.b16 %v1041
        %v1104 = vpack.c.b16 %v1103, %v1102
        %1105 = vrot.lane.b32.xlu0 %v1104, 120
        %v1106 = vpop.permute.xlu0 %1105
        %1107 = vrot.lane.b32.xlu0 %v1104, 88
        %v1108 = vpop.permute.xlu0 %1107
        %v1110 = vsel %vm676, %v1106, 0
        %v1113 = vsel %vm676, %v1108, 0
        %1115 = vmatprep.subr.bf16.mxu0 0
        %1116 = vmatpush1.bf16.xpose.msra.mxu0 0
        %1117 = vmatprep.subr.bf16.mxu0 0
        %1118 = vmatpush1.bf16.xpose.msra.mxu0 0
        %1119 = vmatprep.subr.bf16.mxu0 0
        %1120 = vmatpush1.bf16.xpose.msra.mxu0 0
        %1121 = vmatprep.subr.bf16.mxu0 0
        %1122 = vmatpush1.bf16.xpose.msra.mxu0 0
        %1123 = vmatprep.subr.bf16.mxu0 0
        %1124 = vmatpush1.bf16.xpose.msra.mxu0 0
        %1125 = vmatprep.subr.bf16.mxu0 0
        %1126 = vmatpush1.bf16.xpose.msra.mxu0 0
        %1127 = vmatprep.subr.bf16.mxu0 0
        %1128 = vmatpush1.bf16.xpose.msra.mxu0 0
        %1129 = vmatprep.subr.bf16.mxu0 0
        %1130 = vmatpush1.bf16.xpose.msra.mxu0 %v1113
        %1131 = vmatprep.subr.bf16.mxu0 0
        %1132 = vmatpush2.bf16.xpose.msra.mxu0 0
        %1133 = vmatprep.subr.bf16.mxu0 0
        %1134 = vmatpush2.bf16.xpose.msra.mxu0 0
        %1135 = vmatprep.subr.bf16.mxu0 0
        %1136 = vmatpush2.bf16.xpose.msra.mxu0 0
        %1137 = vmatprep.subr.bf16.mxu0 0
        %1138 = vmatpush2.bf16.xpose.msra.mxu0 0
        %1139 = vmatprep.subr.bf16.mxu0 0
        %1140 = vmatpush2.bf16.xpose.msra.mxu0 0
        %1141 = vmatprep.subr.bf16.mxu0 0
        %1142 = vmatpush2.bf16.xpose.msra.mxu0 0
        %1143 = vmatprep.subr.bf16.mxu0 0
        %1144 = vmatpush2.bf16.xpose.msra.mxu0 0
        %1145 = vmatprep.subr.bf16.mxu0 0
        %1146 = vmatpush2.bf16.xpose.msra.mxu0 0
        %1147 = vmatprep.mubr.bf16.mxu0 0
        %1148 = vmatmul.mubr.bf16.gmra.mxu0 %v1110
        %v1149 = vpop.f32.mrf.mxu0
        %v1150 = vadd.f32 %v1094, %v1149
        %v1151 = vpop.f32.mrf.mxu0
        %v1152 = vpop.f32.mrf.mxu0
        %v1153 = vadd.f32 %v1097, %v1152
        %v1154 = vpop.f32.mrf.mxu0
        %1155 = vdwg.mxu0
        %v1156 = vld [vmem:[#allocation2 + $0x10] sm:$0xf]
        %v1157 = vld [vmem:[#allocation2 + $0x14] sm:$0xf]
        %v1160 = vunpack.c.l.b16 %v1156
        %v1161 = vunpack.c.l.b16 %v1157
        %v1162 = vpack.c.b16 %v1161, %v1160
        %1163 = vrot.lane.b32.xlu0 %v1162, 120
        %v1164 = vpop.permute.xlu0 %1163
        %1165 = vrot.lane.b32.xlu0 %v1162, 88
        %v1166 = vpop.permute.xlu0 %1165
        %v1168 = vsel %vm676, %v1164, 0
        %v1171 = vsel %vm676, %v1166, 0
        %1173 = vmatprep.subr.bf16.mxu0 0
        %1174 = vmatpush1.bf16.xpose.msra.mxu0 0
        %1175 = vmatprep.subr.bf16.mxu0 0
        %1176 = vmatpush1.bf16.xpose.msra.mxu0 0
        %1177 = vmatprep.subr.bf16.mxu0 0
        %1178 = vmatpush1.bf16.xpose.msra.mxu0 0
        %1179 = vmatprep.subr.bf16.mxu0 0
        %1180 = vmatpush1.bf16.xpose.msra.mxu0 0
        %1181 = vmatprep.subr.bf16.mxu0 0
        %1182 = vmatpush1.bf16.xpose.msra.mxu0 0
        %1183 = vmatprep.subr.bf16.mxu0 0
        %1184 = vmatpush1.bf16.xpose.msra.mxu0 0
        %1185 = vmatprep.subr.bf16.mxu0 0
        %1186 = vmatpush1.bf16.xpose.msra.mxu0 0
        %1187 = vmatprep.subr.bf16.mxu0 0
        %1188 = vmatpush1.bf16.xpose.msra.mxu0 %v1171
        %1189 = vmatprep.subr.bf16.mxu0 0
        %1190 = vmatpush2.bf16.xpose.msra.mxu0 0
        %1191 = vmatprep.subr.bf16.mxu0 0
        %1192 = vmatpush2.bf16.xpose.msra.mxu0 0
        %1193 = vmatprep.subr.bf16.mxu0 0
        %1194 = vmatpush2.bf16.xpose.msra.mxu0 0
        %1195 = vmatprep.subr.bf16.mxu0 0
        %1196 = vmatpush2.bf16.xpose.msra.mxu0 0
        %1197 = vmatprep.subr.bf16.mxu0 0
        %1198 = vmatpush2.bf16.xpose.msra.mxu0 0
        %1199 = vmatprep.subr.bf16.mxu0 0
        %1200 = vmatpush2.bf16.xpose.msra.mxu0 0
        %1201 = vmatprep.subr.bf16.mxu0 0
        %1202 = vmatpush2.bf16.xpose.msra.mxu0 0
        %1203 = vmatprep.subr.bf16.mxu0 0
        %1204 = vmatpush2.bf16.xpose.msra.mxu0 0
        %1205 = vmatprep.mubr.bf16.mxu0 0
        %1206 = vmatmul.mubr.bf16.gmra.mxu0 %v1168
        %v1207 = vpop.f32.mrf.mxu0
        %v1208 = vadd.f32 0.0, %v1207
        %v1209 = vpop.f32.mrf.mxu0
        %v1210 = vpop.f32.mrf.mxu0
        %v1211 = vadd.f32 0.0, %v1210
        %v1212 = vpop.f32.mrf.mxu0
        %1213 = vdwg.mxu0
        %v1214 = vadd.f32 %v1150, %v1208
        %v1215 = vadd.f32 %v1153, %v1211
        %v1216 = vsel %vm836, %v1214, -inf
        %1217 = vmax.xlane.f32.xlu0 %v1216
        %v1218 = vpop.xlane.xlu0 %1217
        %v1219 = vsel %vm836, %v1215, -inf
        %1220 = vmax.xlane.f32.xlu0 %v1219
        %v1221 = vpop.xlane.xlu0 %1220
        %v1222 = vsub.f32 %v1214, %v1218
        %v1223 = vsub.f32 %v1215, %v1221
        %v1224 = vmul.f32 %v1222, 1.442695
        %v1225 = vpow.pop %v1224
        %v1226 = vmul.f32 %v1223, 1.442695
        %v1227 = vpow.pop %v1226
        %v1228 = vsel %vm836, %v1225, 0.0
        %1229 = vadd.xlane.f32.xlu0 %v1228
        %v1230 = vpop.xlane.xlu0 %1229
        %v1231 = vsel %vm836, %v1227, 0.0
        %1232 = vadd.xlane.f32.xlu0 %v1231
        %v1233 = vpop.xlane.xlu0 %1232
        %v1234 = vrcp.pop %v1230
        %v1235 = vrcp.pop %v1233
        %v1236 = vmul.f32 %v1225, %v1234
        %v1237 = vmul.f32 %v1227, %v1235
        %v1238 = vpack.c.bf16 %v1237, %v1236
        %1239 = vrot.lane.b32.xlu0 %v1104, 56
        %v1240 = vpop.permute.xlu0 %1239
        %v1243 = vsel %vm836, %v1238, 0
        %1245 = vmatprep.subr.bf16.mxu0 0
        %1246 = vmatpush1.bf16.msra.mxu0 0
        %1247 = vmatprep.subr.bf16.mxu0 0
        %1248 = vmatpush1.bf16.msra.mxu0 0
        %1249 = vmatprep.subr.bf16.mxu0 0
        %1250 = vmatpush1.bf16.msra.mxu0 0
        %1251 = vmatprep.subr.bf16.mxu0 0
        %1252 = vmatpush1.bf16.msra.mxu0 0
        %1253 = vmatprep.subr.bf16.mxu0 0
        %1254 = vmatpush1.bf16.msra.mxu0 0
        %1255 = vmatprep.subr.bf16.mxu0 0
        %1256 = vmatpush1.bf16.msra.mxu0 0
        %1257 = vmatprep.subr.bf16.mxu0 0
        %1258 = vmatpush1.bf16.msra.mxu0 0
        %1259 = vmatprep.subr.bf16.mxu0 0
        %1260 = vmatpush1.bf16.msra.mxu0 %v1240
        %1261 = vmatprep.subr.bf16.mxu0 0
        %1262 = vmatpush2.bf16.msra.mxu0 0
        %1263 = vmatprep.subr.bf16.mxu0 0
        %1264 = vmatpush2.bf16.msra.mxu0 0
        %1265 = vmatprep.subr.bf16.mxu0 0
        %1266 = vmatpush2.bf16.msra.mxu0 0
        %1267 = vmatprep.subr.bf16.mxu0 0
        %1268 = vmatpush2.bf16.msra.mxu0 0
        %1269 = vmatprep.subr.bf16.mxu0 0
        %1270 = vmatpush2.bf16.msra.mxu0 0
        %1271 = vmatprep.subr.bf16.mxu0 0
        %1272 = vmatpush2.bf16.msra.mxu0 0
        %1273 = vmatprep.subr.bf16.mxu0 0
        %1274 = vmatpush2.bf16.msra.mxu0 0
        %1275 = vmatprep.subr.bf16.mxu0 0
        %1276 = vmatpush2.bf16.msra.mxu0 0
        %1277 = vmatprep.mubr.bf16.mxu0 0
        %1278 = vmatmul.mubr.bf16.gmra.mxu0 %v1243
        %v1279 = vpop.f32.mrf.mxu0
        %v1280 = vadd.f32 0.0, %v1279
        %v1281 = vpop.f32.mrf.mxu0
        %v1282 = vpop.f32.mrf.mxu0
        %v1283 = vadd.f32 0.0, %v1282
        %v1284 = vpop.f32.mrf.mxu0
        %1285 = vdwg.mxu0
        %v1286 = vpack.c.bf16 %v1283, %v1280
        %v1288 = vunpack.c.l.b16 %v1286
        %v1289 = vunpack.c.h.b16 %v1286
        %v1290 = vpack.c.b16 %v1288, %v1288
        %v1291 = vpack.c.b16 %v1289, %v1289
        %1292 = vrot.lane.b32.xlu0 %v1290, 8
        %v1293 = vpop.permute.xlu0 %1292
        %1294 = vrot.lane.b32.xlu0 %v1291, 8
        %v1295 = vpop.permute.xlu0 %1294
        %vm1298 = vcmask 126016
        %1299 = vst.msk [vmem:[#allocation3] sm:$0xf] %vm1298, %v1293
        %1300 = vst.msk [vmem:[#allocation3 + $0x4] sm:$0xf] %vm1298, %v1295
        %v1301 = vld [vmem:[#allocation2 + $0x8] sm:$0xf]
        %v1302 = vld [vmem:[#allocation2 + $0xc] sm:$0xf]
        %v1305 = vunpack.c.l.b16 %v1301
        %v1306 = vunpack.c.l.b16 %v1302
        %v1307 = vpack.c.b16 %v1306, %v1305
        %1308 = vrot.lane.b32.xlu0 %v1307, 56
        %v1309 = vpop.permute.xlu0 %1308
        %1311 = vmatprep.subr.bf16.mxu0 0
        %1312 = vmatpush1.bf16.msra.mxu0 0
        %1313 = vmatprep.subr.bf16.mxu0 0
        %1314 = vmatpush1.bf16.msra.mxu0 0
        %1315 = vmatprep.subr.bf16.mxu0 0
        %1316 = vmatpush1.bf16.msra.mxu0 0
        %1317 = vmatprep.subr.bf16.mxu0 0
        %1318 = vmatpush1.bf16.msra.mxu0 0
        %1319 = vmatprep.subr.bf16.mxu0 0
        %1320 = vmatpush1.bf16.msra.mxu0 0
        %1321 = vmatprep.subr.bf16.mxu0 0
        %1322 = vmatpush1.bf16.msra.mxu0 0
        %1323 = vmatprep.subr.bf16.mxu0 0
        %1324 = vmatpush1.bf16.msra.mxu0 0
        %1325 = vmatprep.subr.bf16.mxu0 0
        %1326 = vmatpush1.bf16.msra.mxu0 %v1309
        %1327 = vmatprep.subr.bf16.mxu0 0
        %1328 = vmatpush2.bf16.msra.mxu0 0
        %1329 = vmatprep.subr.bf16.mxu0 0
        %1330 = vmatpush2.bf16.msra.mxu0 0
        %1331 = vmatprep.subr.bf16.mxu0 0
        %1332 = vmatpush2.bf16.msra.mxu0 0
        %1333 = vmatprep.subr.bf16.mxu0 0
        %1334 = vmatpush2.bf16.msra.mxu0 0
        %1335 = vmatprep.subr.bf16.mxu0 0
        %1336 = vmatpush2.bf16.msra.mxu0 0
        %1337 = vmatprep.subr.bf16.mxu0 0
        %1338 = vmatpush2.bf16.msra.mxu0 0
        %1339 = vmatprep.subr.bf16.mxu0 0
        %1340 = vmatpush2.bf16.msra.mxu0 0
        %1341 = vmatprep.subr.bf16.mxu0 0
        %1342 = vmatpush2.bf16.msra.mxu0 0
        %1343 = vmatprep.mubr.bf16.mxu0 0
        %1344 = vmatmul.mubr.bf16.gmra.mxu0 %v1243
        %v1345 = vpop.f32.mrf.mxu0
        %v1346 = vadd.f32 0.0, %v1345
        %v1347 = vpop.f32.mrf.mxu0
        %v1348 = vpop.f32.mrf.mxu0
        %v1349 = vadd.f32 0.0, %v1348
        %v1350 = vpop.f32.mrf.mxu0
        %1351 = vdwg.mxu0
        %v1352 = vpack.c.bf16 %v1349, %v1346
        %v1354 = vunpack.c.l.b16 %v1352
        %v1355 = vunpack.c.h.b16 %v1352
        %v1356 = vpack.c.b16 %v1354, %v1354
        %v1357 = vpack.c.b16 %v1355, %v1355
        %1358 = vrot.lane.b32.xlu0 %v1356, 8
        %v1359 = vpop.permute.xlu0 %1358
        %1360 = vrot.lane.b32.xlu0 %v1357, 8
        %v1361 = vpop.permute.xlu0 %1360
        %1364 = vst.msk [vmem:[#allocation3 + $0x8] sm:$0xf] %vm1298, %v1359
        %1365 = vst.msk [vmem:[#allocation3 + $0xc] sm:$0xf] %vm1298, %v1361
        %v1366 = vld [vmem:[#allocation2 + $0x10] sm:$0xf]
        %v1367 = vld [vmem:[#allocation2 + $0x14] sm:$0xf]
        %v1370 = vunpack.c.l.b16 %v1366
        %v1371 = vunpack.c.l.b16 %v1367
        %v1372 = vpack.c.b16 %v1371, %v1370
        %1373 = vrot.lane.b32.xlu0 %v1372, 56
        %v1374 = vpop.permute.xlu0 %1373
        %1376 = vmatprep.subr.bf16.mxu0 0
        %1377 = vmatpush1.bf16.msra.mxu0 0
        %1378 = vmatprep.subr.bf16.mxu0 0
        %1379 = vmatpush1.bf16.msra.mxu0 0
        %1380 = vmatprep.subr.bf16.mxu0 0
        %1381 = vmatpush1.bf16.msra.mxu0 0
        %1382 = vmatprep.subr.bf16.mxu0 0
        %1383 = vmatpush1.bf16.msra.mxu0 0
        %1384 = vmatprep.subr.bf16.mxu0 0
        %1385 = vmatpush1.bf16.msra.mxu0 0
        %1386 = vmatprep.subr.bf16.mxu0 0
        %1387 = vmatpush1.bf16.msra.mxu0 0
        %1388 = vmatprep.subr.bf16.mxu0 0
        %1389 = vmatpush1.bf16.msra.mxu0 0
        %1390 = vmatprep.subr.bf16.mxu0 0
        %1391 = vmatpush1.bf16.msra.mxu0 %v1374
        %1392 = vmatprep.subr.bf16.mxu0 0
        %1393 = vmatpush2.bf16.msra.mxu0 0
        %1394 = vmatprep.subr.bf16.mxu0 0
        %1395 = vmatpush2.bf16.msra.mxu0 0
        %1396 = vmatprep.subr.bf16.mxu0 0
        %1397 = vmatpush2.bf16.msra.mxu0 0
        %1398 = vmatprep.subr.bf16.mxu0 0
        %1399 = vmatpush2.bf16.msra.mxu0 0
        %1400 = vmatprep.subr.bf16.mxu0 0
        %1401 = vmatpush2.bf16.msra.mxu0 0
        %1402 = vmatprep.subr.bf16.mxu0 0
        %1403 = vmatpush2.bf16.msra.mxu0 0
        %1404 = vmatprep.subr.bf16.mxu0 0
        %1405 = vmatpush2.bf16.msra.mxu0 0
        %1406 = vmatprep.subr.bf16.mxu0 0
        %1407 = vmatpush2.bf16.msra.mxu0 0
        %1408 = vmatprep.mubr.bf16.mxu0 0
        %1409 = vmatmul.mubr.bf16.gmra.mxu0 %v1243
        %v1410 = vpop.f32.mrf.mxu0
        %v1411 = vadd.f32 0.0, %v1410
        %v1412 = vpop.f32.mrf.mxu0
        %v1413 = vpop.f32.mrf.mxu0
        %v1414 = vadd.f32 0.0, %v1413
        %v1415 = vpop.f32.mrf.mxu0
        %1416 = vdwg.mxu0
        %v1417 = vpack.c.bf16 %v1414, %v1411
        %v1419 = vunpack.c.l.b16 %v1417
        %v1420 = vunpack.c.h.b16 %v1417
        %v1421 = vpack.c.b16 %v1419, %v1419
        %v1422 = vpack.c.b16 %v1420, %v1420
        %1423 = vrot.lane.b32.xlu0 %v1421, 8
        %v1424 = vpop.permute.xlu0 %1423
        %1425 = vrot.lane.b32.xlu0 %v1422, 8
        %v1426 = vpop.permute.xlu0 %1425
        %1429 = vst.msk [vmem:[#allocation3 + $0x10] sm:$0xf] %vm1298, %v1424
        %1430 = vst.msk [vmem:[#allocation3 + $0x14] sm:$0xf] %vm1298, %v1426
        %v1431 = vld [vmem:[#allocation2] sm:$0xf]
        %v1432 = vld [vmem:[#allocation2 + $0x4] sm:$0xf]
        %v1433 = vld [vmem:[#allocation2 + $0x8] sm:$0xf]
        %v1434 = vld [vmem:[#allocation2 + $0xc] sm:$0xf]
        %v1437 = vunpack.c.l.b16 %v1433
        %v1438 = vunpack.c.l.b16 %v1434
        %v1439 = vpack.c.b16 %v1438, %v1437
        %1440 = vrot.lane.b32.xlu0 %v1439, 112
        %v1441 = vpop.permute.xlu0 %1440
        %1442 = vrot.lane.b32.xlu0 %v1439, 80
        %v1443 = vpop.permute.xlu0 %1442
        %v1445 = vsel %vm676, %v1441, 0
        %v1448 = vsel %vm676, %v1443, 0
        %1450 = vmatprep.subr.bf16.mxu0 0
        %1451 = vmatpush1.bf16.xpose.msra.mxu0 0
        %1452 = vmatprep.subr.bf16.mxu0 0
        %1453 = vmatpush1.bf16.xpose.msra.mxu0 0
        %1454 = vmatprep.subr.bf16.mxu0 0
        %1455 = vmatpush1.bf16.xpose.msra.mxu0 0
        %1456 = vmatprep.subr.bf16.mxu0 0
        %1457 = vmatpush1.bf16.xpose.msra.mxu0 0
        %1458 = vmatprep.subr.bf16.mxu0 0
        %1459 = vmatpush1.bf16.xpose.msra.mxu0 0
        %1460 = vmatprep.subr.bf16.mxu0 0
        %1461 = vmatpush1.bf16.xpose.msra.mxu0 0
        %1462 = vmatprep.subr.bf16.mxu0 0
        %1463 = vmatpush1.bf16.xpose.msra.mxu0 0
        %1464 = vmatprep.subr.bf16.mxu0 0
        %1465 = vmatpush1.bf16.xpose.msra.mxu0 %v1448
        %1466 = vmatprep.subr.bf16.mxu0 0
        %1467 = vmatpush2.bf16.xpose.msra.mxu0 0
        %1468 = vmatprep.subr.bf16.mxu0 0
        %1469 = vmatpush2.bf16.xpose.msra.mxu0 0
        %1470 = vmatprep.subr.bf16.mxu0 0
        %1471 = vmatpush2.bf16.xpose.msra.mxu0 0
        %1472 = vmatprep.subr.bf16.mxu0 0
        %1473 = vmatpush2.bf16.xpose.msra.mxu0 0
        %1474 = vmatprep.subr.bf16.mxu0 0
        %1475 = vmatpush2.bf16.xpose.msra.mxu0 0
        %1476 = vmatprep.subr.bf16.mxu0 0
        %1477 = vmatpush2.bf16.xpose.msra.mxu0 0
        %1478 = vmatprep.subr.bf16.mxu0 0
        %1479 = vmatpush2.bf16.xpose.msra.mxu0 0
        %1480 = vmatprep.subr.bf16.mxu0 0
        %1481 = vmatpush2.bf16.xpose.msra.mxu0 0
        %1482 = vmatprep.mubr.bf16.mxu0 0
        %1483 = vmatmul.mubr.bf16.gmra.mxu0 %v1445
        %v1484 = vpop.f32.mrf.mxu0
        %v1485 = vadd.f32 0.0, %v1484
        %v1486 = vpop.f32.mrf.mxu0
        %v1487 = vpop.f32.mrf.mxu0
        %v1488 = vadd.f32 0.0, %v1487
        %v1489 = vpop.f32.mrf.mxu0
        %1490 = vdwg.mxu0
        %v1493 = vunpack.c.l.b16 %v1431
        %v1494 = vunpack.c.l.b16 %v1432
        %v1495 = vpack.c.b16 %v1494, %v1493
        %1496 = vrot.lane.b32.xlu0 %v1495, 112
        %v1497 = vpop.permute.xlu0 %1496
        %1498 = vrot.lane.b32.xlu0 %v1495, 80
        %v1499 = vpop.permute.xlu0 %1498
        %v1501 = vsel %vm676, %v1497, 0
        %v1504 = vsel %vm676, %v1499, 0
        %1506 = vmatprep.subr.bf16.mxu0 0
        %1507 = vmatpush1.bf16.xpose.msra.mxu0 0
        %1508 = vmatprep.subr.bf16.mxu0 0
        %1509 = vmatpush1.bf16.xpose.msra.mxu0 0
        %1510 = vmatprep.subr.bf16.mxu0 0
        %1511 = vmatpush1.bf16.xpose.msra.mxu0 0
        %1512 = vmatprep.subr.bf16.mxu0 0
        %1513 = vmatpush1.bf16.xpose.msra.mxu0 0
        %1514 = vmatprep.subr.bf16.mxu0 0
        %1515 = vmatpush1.bf16.xpose.msra.mxu0 0
        %1516 = vmatprep.subr.bf16.mxu0 0
        %1517 = vmatpush1.bf16.xpose.msra.mxu0 0
        %1518 = vmatprep.subr.bf16.mxu0 0
        %1519 = vmatpush1.bf16.xpose.msra.mxu0 0
        %1520 = vmatprep.subr.bf16.mxu0 0
        %1521 = vmatpush1.bf16.xpose.msra.mxu0 %v1504
        %1522 = vmatprep.subr.bf16.mxu0 0
        %1523 = vmatpush2.bf16.xpose.msra.mxu0 0
        %1524 = vmatprep.subr.bf16.mxu0 0
        %1525 = vmatpush2.bf16.xpose.msra.mxu0 0
        %1526 = vmatprep.subr.bf16.mxu0 0
        %1527 = vmatpush2.bf16.xpose.msra.mxu0 0
        %1528 = vmatprep.subr.bf16.mxu0 0
        %1529 = vmatpush2.bf16.xpose.msra.mxu0 0
        %1530 = vmatprep.subr.bf16.mxu0 0
        %1531 = vmatpush2.bf16.xpose.msra.mxu0 0
        %1532 = vmatprep.subr.bf16.mxu0 0
        %1533 = vmatpush2.bf16.xpose.msra.mxu0 0
        %1534 = vmatprep.subr.bf16.mxu0 0
        %1535 = vmatpush2.bf16.xpose.msra.mxu0 0
        %1536 = vmatprep.subr.bf16.mxu0 0
        %1537 = vmatpush2.bf16.xpose.msra.mxu0 0
        %1538 = vmatprep.mubr.bf16.mxu0 0
        %1539 = vmatmul.mubr.bf16.gmra.mxu0 %v1501
        %v1540 = vpop.f32.mrf.mxu0
        %v1541 = vadd.f32 %v1485, %v1540
        %v1542 = vpop.f32.mrf.mxu0
        %v1543 = vpop.f32.mrf.mxu0
        %v1544 = vadd.f32 %v1488, %v1543
        %v1545 = vpop.f32.mrf.mxu0
        %1546 = vdwg.mxu0
        %v1547 = vld [vmem:[#allocation2 + $0x10] sm:$0xf]
        %v1548 = vld [vmem:[#allocation2 + $0x14] sm:$0xf]
        %v1551 = vunpack.c.l.b16 %v1547
        %v1552 = vunpack.c.l.b16 %v1548
        %v1553 = vpack.c.b16 %v1552, %v1551
        %1554 = vrot.lane.b32.xlu0 %v1553, 112
        %v1555 = vpop.permute.xlu0 %1554
        %1556 = vrot.lane.b32.xlu0 %v1553, 80
        %v1557 = vpop.permute.xlu0 %1556
        %v1559 = vsel %vm676, %v1555, 0
        %v1562 = vsel %vm676, %v1557, 0
        %1564 = vmatprep.subr.bf16.mxu0 0
        %1565 = vmatpush1.bf16.xpose.msra.mxu0 0
        %1566 = vmatprep.subr.bf16.mxu0 0
        %1567 = vmatpush1.bf16.xpose.msra.mxu0 0
        %1568 = vmatprep.subr.bf16.mxu0 0
        %1569 = vmatpush1.bf16.xpose.msra.mxu0 0
        %1570 = vmatprep.subr.bf16.mxu0 0
        %1571 = vmatpush1.bf16.xpose.msra.mxu0 0
        %1572 = vmatprep.subr.bf16.mxu0 0
        %1573 = vmatpush1.bf16.xpose.msra.mxu0 0
        %1574 = vmatprep.subr.bf16.mxu0 0
        %1575 = vmatpush1.bf16.xpose.msra.mxu0 0
        %1576 = vmatprep.subr.bf16.mxu0 0
        %1577 = vmatpush1.bf16.xpose.msra.mxu0 0
        %1578 = vmatprep.subr.bf16.mxu0 0
        %1579 = vmatpush1.bf16.xpose.msra.mxu0 %v1562
        %1580 = vmatprep.subr.bf16.mxu0 0
        %1581 = vmatpush2.bf16.xpose.msra.mxu0 0
        %1582 = vmatprep.subr.bf16.mxu0 0
        %1583 = vmatpush2.bf16.xpose.msra.mxu0 0
        %1584 = vmatprep.subr.bf16.mxu0 0
        %1585 = vmatpush2.bf16.xpose.msra.mxu0 0
        %1586 = vmatprep.subr.bf16.mxu0 0
        %1587 = vmatpush2.bf16.xpose.msra.mxu0 0
        %1588 = vmatprep.subr.bf16.mxu0 0
        %1589 = vmatpush2.bf16.xpose.msra.mxu0 0
        %1590 = vmatprep.subr.bf16.mxu0 0
        %1591 = vmatpush2.bf16.xpose.msra.mxu0 0
        %1592 = vmatprep.subr.bf16.mxu0 0
        %1593 = vmatpush2.bf16.xpose.msra.mxu0 0
        %1594 = vmatprep.subr.bf16.mxu0 0
        %1595 = vmatpush2.bf16.xpose.msra.mxu0 0
        %1596 = vmatprep.mubr.bf16.mxu0 0
        %1597 = vmatmul.mubr.bf16.gmra.mxu0 %v1559
        %v1598 = vpop.f32.mrf.mxu0
        %v1599 = vadd.f32 0.0, %v1598
        %v1600 = vpop.f32.mrf.mxu0
        %v1601 = vpop.f32.mrf.mxu0
        %v1602 = vadd.f32 0.0, %v1601
        %v1603 = vpop.f32.mrf.mxu0
        %1604 = vdwg.mxu0
        %v1605 = vadd.f32 %v1541, %v1599
        %v1606 = vadd.f32 %v1544, %v1602
        %v1607 = vsel %vm836, %v1605, -inf
        %1608 = vmax.xlane.f32.xlu0 %v1607
        %v1609 = vpop.xlane.xlu0 %1608
        %v1610 = vsel %vm836, %v1606, -inf
        %1611 = vmax.xlane.f32.xlu0 %v1610
        %v1612 = vpop.xlane.xlu0 %1611
        %v1613 = vsub.f32 %v1605, %v1609
        %v1614 = vsub.f32 %v1606, %v1612
        %v1615 = vmul.f32 %v1613, 1.442695
        %v1616 = vpow.pop %v1615
        %v1617 = vmul.f32 %v1614, 1.442695
        %v1618 = vpow.pop %v1617
        %v1619 = vsel %vm836, %v1616, 0.0
        %1620 = vadd.xlane.f32.xlu0 %v1619
        %v1621 = vpop.xlane.xlu0 %1620
        %v1622 = vsel %vm836, %v1618, 0.0
        %1623 = vadd.xlane.f32.xlu0 %v1622
        %v1624 = vpop.xlane.xlu0 %1623
        %v1625 = vrcp.pop %v1621
        %v1626 = vrcp.pop %v1624
        %v1627 = vmul.f32 %v1616, %v1625
        %v1628 = vmul.f32 %v1618, %v1626
        %v1629 = vpack.c.bf16 %v1628, %v1627
        %1630 = vrot.lane.b32.xlu0 %v1495, 48
        %v1631 = vpop.permute.xlu0 %1630
        %v1634 = vsel %vm836, %v1629, 0
        %1636 = vmatprep.subr.bf16.mxu0 0
        %1637 = vmatpush1.bf16.msra.mxu0 0
        %1638 = vmatprep.subr.bf16.mxu0 0
        %1639 = vmatpush1.bf16.msra.mxu0 0
        %1640 = vmatprep.subr.bf16.mxu0 0
        %1641 = vmatpush1.bf16.msra.mxu0 0
        %1642 = vmatprep.subr.bf16.mxu0 0
        %1643 = vmatpush1.bf16.msra.mxu0 0
        %1644 = vmatprep.subr.bf16.mxu0 0
        %1645 = vmatpush1.bf16.msra.mxu0 0
        %1646 = vmatprep.subr.bf16.mxu0 0
        %1647 = vmatpush1.bf16.msra.mxu0 0
        %1648 = vmatprep.subr.bf16.mxu0 0
        %1649 = vmatpush1.bf16.msra.mxu0 0
        %1650 = vmatprep.subr.bf16.mxu0 0
        %1651 = vmatpush1.bf16.msra.mxu0 %v1631
        %1652 = vmatprep.subr.bf16.mxu0 0
        %1653 = vmatpush2.bf16.msra.mxu0 0
        %1654 = vmatprep.subr.bf16.mxu0 0
        %1655 = vmatpush2.bf16.msra.mxu0 0
        %1656 = vmatprep.subr.bf16.mxu0 0
        %1657 = vmatpush2.bf16.msra.mxu0 0
        %1658 = vmatprep.subr.bf16.mxu0 0
        %1659 = vmatpush2.bf16.msra.mxu0 0
        %1660 = vmatprep.subr.bf16.mxu0 0
        %1661 = vmatpush2.bf16.msra.mxu0 0
        %1662 = vmatprep.subr.bf16.mxu0 0
        %1663 = vmatpush2.bf16.msra.mxu0 0
        %1664 = vmatprep.subr.bf16.mxu0 0
        %1665 = vmatpush2.bf16.msra.mxu0 0
        %1666 = vmatprep.subr.bf16.mxu0 0
        %1667 = vmatpush2.bf16.msra.mxu0 0
        %1668 = vmatprep.mubr.bf16.mxu0 0
        %1669 = vmatmul.mubr.bf16.gmra.mxu0 %v1634
        %v1670 = vpop.f32.mrf.mxu0
        %v1671 = vadd.f32 0.0, %v1670
        %v1672 = vpop.f32.mrf.mxu0
        %v1673 = vpop.f32.mrf.mxu0
        %v1674 = vadd.f32 0.0, %v1673
        %v1675 = vpop.f32.mrf.mxu0
        %1676 = vdwg.mxu0
        %v1677 = vpack.c.bf16 %v1674, %v1671
        %v1679 = vunpack.c.l.b16 %v1677
        %v1680 = vunpack.c.h.b16 %v1677
        %v1681 = vpack.c.b16 %v1679, %v1679
        %v1682 = vpack.c.b16 %v1680, %v1680
        %1683 = vrot.lane.b32.xlu0 %v1681, 16
        %v1684 = vpop.permute.xlu0 %1683
        %1685 = vrot.lane.b32.xlu0 %v1682, 16
        %v1686 = vpop.permute.xlu0 %1685
        %vm1689 = vcmask 191616
        %1690 = vst.msk [vmem:[#allocation3] sm:$0xf] %vm1689, %v1684
        %1691 = vst.msk [vmem:[#allocation3 + $0x4] sm:$0xf] %vm1689, %v1686
        %v1692 = vld [vmem:[#allocation2 + $0x8] sm:$0xf]
        %v1693 = vld [vmem:[#allocation2 + $0xc] sm:$0xf]
        %v1696 = vunpack.c.l.b16 %v1692
        %v1697 = vunpack.c.l.b16 %v1693
        %v1698 = vpack.c.b16 %v1697, %v1696
        %1699 = vrot.lane.b32.xlu0 %v1698, 48
        %v1700 = vpop.permute.xlu0 %1699
        %1702 = vmatprep.subr.bf16.mxu0 0
        %1703 = vmatpush1.bf16.msra.mxu0 0
        %1704 = vmatprep.subr.bf16.mxu0 0
        %1705 = vmatpush1.bf16.msra.mxu0 0
        %1706 = vmatprep.subr.bf16.mxu0 0
        %1707 = vmatpush1.bf16.msra.mxu0 0
        %1708 = vmatprep.subr.bf16.mxu0 0
        %1709 = vmatpush1.bf16.msra.mxu0 0
        %1710 = vmatprep.subr.bf16.mxu0 0
        %1711 = vmatpush1.bf16.msra.mxu0 0
        %1712 = vmatprep.subr.bf16.mxu0 0
        %1713 = vmatpush1.bf16.msra.mxu0 0
        %1714 = vmatprep.subr.bf16.mxu0 0
        %1715 = vmatpush1.bf16.msra.mxu0 0
        %1716 = vmatprep.subr.bf16.mxu0 0
        %1717 = vmatpush1.bf16.msra.mxu0 %v1700
        %1718 = vmatprep.subr.bf16.mxu0 0
        %1719 = vmatpush2.bf16.msra.mxu0 0
        %1720 = vmatprep.subr.bf16.mxu0 0
        %1721 = vmatpush2.bf16.msra.mxu0 0
        %1722 = vmatprep.subr.bf16.mxu0 0
        %1723 = vmatpush2.bf16.msra.mxu0 0
        %1724 = vmatprep.subr.bf16.mxu0 0
        %1725 = vmatpush2.bf16.msra.mxu0 0
        %1726 = vmatprep.subr.bf16.mxu0 0
        %1727 = vmatpush2.bf16.msra.mxu0 0
        %1728 = vmatprep.subr.bf16.mxu0 0
        %1729 = vmatpush2.bf16.msra.mxu0 0
        %1730 = vmatprep.subr.bf16.mxu0 0
        %1731 = vmatpush2.bf16.msra.mxu0 0
        %1732 = vmatprep.subr.bf16.mxu0 0
        %1733 = vmatpush2.bf16.msra.mxu0 0
        %1734 = vmatprep.mubr.bf16.mxu0 0
        %1735 = vmatmul.mubr.bf16.gmra.mxu0 %v1634
        %v1736 = vpop.f32.mrf.mxu0
        %v1737 = vadd.f32 0.0, %v1736
        %v1738 = vpop.f32.mrf.mxu0
        %v1739 = vpop.f32.mrf.mxu0
        %v1740 = vadd.f32 0.0, %v1739
        %v1741 = vpop.f32.mrf.mxu0
        %1742 = vdwg.mxu0
        %v1743 = vpack.c.bf16 %v1740, %v1737
        %v1745 = vunpack.c.l.b16 %v1743
        %v1746 = vunpack.c.h.b16 %v1743
        %v1747 = vpack.c.b16 %v1745, %v1745
        %v1748 = vpack.c.b16 %v1746, %v1746
        %1749 = vrot.lane.b32.xlu0 %v1747, 16
        %v1750 = vpop.permute.xlu0 %1749
        %1751 = vrot.lane.b32.xlu0 %v1748, 16
        %v1752 = vpop.permute.xlu0 %1751
        %1755 = vst.msk [vmem:[#allocation3 + $0x8] sm:$0xf] %vm1689, %v1750
        %1756 = vst.msk [vmem:[#allocation3 + $0xc] sm:$0xf] %vm1689, %v1752
        %v1757 = vld [vmem:[#allocation2 + $0x10] sm:$0xf]
        %v1758 = vld [vmem:[#allocation2 + $0x14] sm:$0xf]
        %v1761 = vunpack.c.l.b16 %v1757
        %v1762 = vunpack.c.l.b16 %v1758
        %v1763 = vpack.c.b16 %v1762, %v1761
        %1764 = vrot.lane.b32.xlu0 %v1763, 48
        %v1765 = vpop.permute.xlu0 %1764
        %1767 = vmatprep.subr.bf16.mxu0 0
        %1768 = vmatpush1.bf16.msra.mxu0 0
        %1769 = vmatprep.subr.bf16.mxu0 0
        %1770 = vmatpush1.bf16.msra.mxu0 0
        %1771 = vmatprep.subr.bf16.mxu0 0
        %1772 = vmatpush1.bf16.msra.mxu0 0
        %1773 = vmatprep.subr.bf16.mxu0 0
        %1774 = vmatpush1.bf16.msra.mxu0 0
        %1775 = vmatprep.subr.bf16.mxu0 0
        %1776 = vmatpush1.bf16.msra.mxu0 0
        %1777 = vmatprep.subr.bf16.mxu0 0
        %1778 = vmatpush1.bf16.msra.mxu0 0
        %1779 = vmatprep.subr.bf16.mxu0 0
        %1780 = vmatpush1.bf16.msra.mxu0 0
        %1781 = vmatprep.subr.bf16.mxu0 0
        %1782 = vmatpush1.bf16.msra.mxu0 %v1765
        %1783 = vmatprep.subr.bf16.mxu0 0
        %1784 = vmatpush2.bf16.msra.mxu0 0
        %1785 = vmatprep.subr.bf16.mxu0 0
        %1786 = vmatpush2.bf16.msra.mxu0 0
        %1787 = vmatprep.subr.bf16.mxu0 0
        %1788 = vmatpush2.bf16.msra.mxu0 0
        %1789 = vmatprep.subr.bf16.mxu0 0
        %1790 = vmatpush2.bf16.msra.mxu0 0
        %1791 = vmatprep.subr.bf16.mxu0 0
        %1792 = vmatpush2.bf16.msra.mxu0 0
        %1793 = vmatprep.subr.bf16.mxu0 0
        %1794 = vmatpush2.bf16.msra.mxu0 0
        %1795 = vmatprep.subr.bf16.mxu0 0
        %1796 = vmatpush2.bf16.msra.mxu0 0
        %1797 = vmatprep.subr.bf16.mxu0 0
        %1798 = vmatpush2.bf16.msra.mxu0 0
        %1799 = vmatprep.mubr.bf16.mxu0 0
        %1800 = vmatmul.mubr.bf16.gmra.mxu0 %v1634
        %v1801 = vpop.f32.mrf.mxu0
        %v1802 = vadd.f32 0.0, %v1801
        %v1803 = vpop.f32.mrf.mxu0
        %v1804 = vpop.f32.mrf.mxu0
        %v1805 = vadd.f32 0.0, %v1804
        %v1806 = vpop.f32.mrf.mxu0
        %1807 = vdwg.mxu0
        %v1808 = vpack.c.bf16 %v1805, %v1802
        %v1810 = vunpack.c.l.b16 %v1808
        %v1811 = vunpack.c.h.b16 %v1808
        %v1812 = vpack.c.b16 %v1810, %v1810
        %v1813 = vpack.c.b16 %v1811, %v1811
        %1814 = vrot.lane.b32.xlu0 %v1812, 16
        %v1815 = vpop.permute.xlu0 %1814
        %1816 = vrot.lane.b32.xlu0 %v1813, 16
        %v1817 = vpop.permute.xlu0 %1816
        %1820 = vst.msk [vmem:[#allocation3 + $0x10] sm:$0xf] %vm1689, %v1815
        %1821 = vst.msk [vmem:[#allocation3 + $0x14] sm:$0xf] %vm1689, %v1817
        %v1822 = vld [vmem:[#allocation2] sm:$0xf]
        %v1823 = vld [vmem:[#allocation2 + $0x4] sm:$0xf]
        %v1824 = vld [vmem:[#allocation2 + $0x8] sm:$0xf]
        %v1825 = vld [vmem:[#allocation2 + $0xc] sm:$0xf]
        %v1828 = vunpack.c.l.b16 %v1824
        %v1829 = vunpack.c.l.b16 %v1825
        %v1830 = vpack.c.b16 %v1829, %v1828
        %1831 = vrot.lane.b32.xlu0 %v1830, 104
        %v1832 = vpop.permute.xlu0 %1831
        %1833 = vrot.lane.b32.xlu0 %v1830, 72
        %v1834 = vpop.permute.xlu0 %1833
        %v1836 = vsel %vm676, %v1832, 0
        %v1839 = vsel %vm676, %v1834, 0
        %1841 = vmatprep.subr.bf16.mxu0 0
        %1842 = vmatpush1.bf16.xpose.msra.mxu0 0
        %1843 = vmatprep.subr.bf16.mxu0 0
        %1844 = vmatpush1.bf16.xpose.msra.mxu0 0
        %1845 = vmatprep.subr.bf16.mxu0 0
        %1846 = vmatpush1.bf16.xpose.msra.mxu0 0
        %1847 = vmatprep.subr.bf16.mxu0 0
        %1848 = vmatpush1.bf16.xpose.msra.mxu0 0
        %1849 = vmatprep.subr.bf16.mxu0 0
        %1850 = vmatpush1.bf16.xpose.msra.mxu0 0
        %1851 = vmatprep.subr.bf16.mxu0 0
        %1852 = vmatpush1.bf16.xpose.msra.mxu0 0
        %1853 = vmatprep.subr.bf16.mxu0 0
        %1854 = vmatpush1.bf16.xpose.msra.mxu0 0
        %1855 = vmatprep.subr.bf16.mxu0 0
        %1856 = vmatpush1.bf16.xpose.msra.mxu0 %v1839
        %1857 = vmatprep.subr.bf16.mxu0 0
        %1858 = vmatpush2.bf16.xpose.msra.mxu0 0
        %1859 = vmatprep.subr.bf16.mxu0 0
        %1860 = vmatpush2.bf16.xpose.msra.mxu0 0
        %1861 = vmatprep.subr.bf16.mxu0 0
        %1862 = vmatpush2.bf16.xpose.msra.mxu0 0
        %1863 = vmatprep.subr.bf16.mxu0 0
        %1864 = vmatpush2.bf16.xpose.msra.mxu0 0
        %1865 = vmatprep.subr.bf16.mxu0 0
        %1866 = vmatpush2.bf16.xpose.msra.mxu0 0
        %1867 = vmatprep.subr.bf16.mxu0 0
        %1868 = vmatpush2.bf16.xpose.msra.mxu0 0
        %1869 = vmatprep.subr.bf16.mxu0 0
        %1870 = vmatpush2.bf16.xpose.msra.mxu0 0
        %1871 = vmatprep.subr.bf16.mxu0 0
        %1872 = vmatpush2.bf16.xpose.msra.mxu0 0
        %1873 = vmatprep.mubr.bf16.mxu0 0
        %1874 = vmatmul.mubr.bf16.gmra.mxu0 %v1836
        %v1875 = vpop.f32.mrf.mxu0
        %v1876 = vadd.f32 0.0, %v1875
        %v1877 = vpop.f32.mrf.mxu0
        %v1878 = vpop.f32.mrf.mxu0
        %v1879 = vadd.f32 0.0, %v1878
        %v1880 = vpop.f32.mrf.mxu0
        %1881 = vdwg.mxu0
        %v1884 = vunpack.c.l.b16 %v1822
        %v1885 = vunpack.c.l.b16 %v1823
        %v1886 = vpack.c.b16 %v1885, %v1884
        %1887 = vrot.lane.b32.xlu0 %v1886, 104
        %v1888 = vpop.permute.xlu0 %1887
        %1889 = vrot.lane.b32.xlu0 %v1886, 72
        %v1890 = vpop.permute.xlu0 %1889
        %v1892 = vsel %vm676, %v1888, 0
        %v1895 = vsel %vm676, %v1890, 0
        %1897 = vmatprep.subr.bf16.mxu0 0
        %1898 = vmatpush1.bf16.xpose.msra.mxu0 0
        %1899 = vmatprep.subr.bf16.mxu0 0
        %1900 = vmatpush1.bf16.xpose.msra.mxu0 0
        %1901 = vmatprep.subr.bf16.mxu0 0
        %1902 = vmatpush1.bf16.xpose.msra.mxu0 0
        %1903 = vmatprep.subr.bf16.mxu0 0
        %1904 = vmatpush1.bf16.xpose.msra.mxu0 0
        %1905 = vmatprep.subr.bf16.mxu0 0
        %1906 = vmatpush1.bf16.xpose.msra.mxu0 0
        %1907 = vmatprep.subr.bf16.mxu0 0
        %1908 = vmatpush1.bf16.xpose.msra.mxu0 0
        %1909 = vmatprep.subr.bf16.mxu0 0
        %1910 = vmatpush1.bf16.xpose.msra.mxu0 0
        %1911 = vmatprep.subr.bf16.mxu0 0
        %1912 = vmatpush1.bf16.xpose.msra.mxu0 %v1895
        %1913 = vmatprep.subr.bf16.mxu0 0
        %1914 = vmatpush2.bf16.xpose.msra.mxu0 0
        %1915 = vmatprep.subr.bf16.mxu0 0
        %1916 = vmatpush2.bf16.xpose.msra.mxu0 0
        %1917 = vmatprep.subr.bf16.mxu0 0
        %1918 = vmatpush2.bf16.xpose.msra.mxu0 0
        %1919 = vmatprep.subr.bf16.mxu0 0
        %1920 = vmatpush2.bf16.xpose.msra.mxu0 0
        %1921 = vmatprep.subr.bf16.mxu0 0
        %1922 = vmatpush2.bf16.xpose.msra.mxu0 0
        %1923 = vmatprep.subr.bf16.mxu0 0
        %1924 = vmatpush2.bf16.xpose.msra.mxu0 0
        %1925 = vmatprep.subr.bf16.mxu0 0
        %1926 = vmatpush2.bf16.xpose.msra.mxu0 0
        %1927 = vmatprep.subr.bf16.mxu0 0
        %1928 = vmatpush2.bf16.xpose.msra.mxu0 0
        %1929 = vmatprep.mubr.bf16.mxu0 0
        %1930 = vmatmul.mubr.bf16.gmra.mxu0 %v1892
        %v1931 = vpop.f32.mrf.mxu0
        %v1932 = vadd.f32 %v1876, %v1931
        %v1933 = vpop.f32.mrf.mxu0
        %v1934 = vpop.f32.mrf.mxu0
        %v1935 = vadd.f32 %v1879, %v1934
        %v1936 = vpop.f32.mrf.mxu0
        %1937 = vdwg.mxu0
        %v1938 = vld [vmem:[#allocation2 + $0x10] sm:$0xf]
        %v1939 = vld [vmem:[#allocation2 + $0x14] sm:$0xf]
        %v1942 = vunpack.c.l.b16 %v1938
        %v1943 = vunpack.c.l.b16 %v1939
        %v1944 = vpack.c.b16 %v1943, %v1942
        %1945 = vrot.lane.b32.xlu0 %v1944, 104
        %v1946 = vpop.permute.xlu0 %1945
        %1947 = vrot.lane.b32.xlu0 %v1944, 72
        %v1948 = vpop.permute.xlu0 %1947
        %v1950 = vsel %vm676, %v1946, 0
        %v1953 = vsel %vm676, %v1948, 0
        %1955 = vmatprep.subr.bf16.mxu0 0
        %1956 = vmatpush1.bf16.xpose.msra.mxu0 0
        %1957 = vmatprep.subr.bf16.mxu0 0
        %1958 = vmatpush1.bf16.xpose.msra.mxu0 0
        %1959 = vmatprep.subr.bf16.mxu0 0
        %1960 = vmatpush1.bf16.xpose.msra.mxu0 0
        %1961 = vmatprep.subr.bf16.mxu0 0
        %1962 = vmatpush1.bf16.xpose.msra.mxu0 0
        %1963 = vmatprep.subr.bf16.mxu0 0
        %1964 = vmatpush1.bf16.xpose.msra.mxu0 0
        %1965 = vmatprep.subr.bf16.mxu0 0
        %1966 = vmatpush1.bf16.xpose.msra.mxu0 0
        %1967 = vmatprep.subr.bf16.mxu0 0
        %1968 = vmatpush1.bf16.xpose.msra.mxu0 0
        %1969 = vmatprep.subr.bf16.mxu0 0
        %1970 = vmatpush1.bf16.xpose.msra.mxu0 %v1953
        %1971 = vmatprep.subr.bf16.mxu0 0
        %1972 = vmatpush2.bf16.xpose.msra.mxu0 0
        %1973 = vmatprep.subr.bf16.mxu0 0
        %1974 = vmatpush2.bf16.xpose.msra.mxu0 0
        %1975 = vmatprep.subr.bf16.mxu0 0
        %1976 = vmatpush2.bf16.xpose.msra.mxu0 0
        %1977 = vmatprep.subr.bf16.mxu0 0
        %1978 = vmatpush2.bf16.xpose.msra.mxu0 0
        %1979 = vmatprep.subr.bf16.mxu0 0
        %1980 = vmatpush2.bf16.xpose.msra.mxu0 0
        %1981 = vmatprep.subr.bf16.mxu0 0
        %1982 = vmatpush2.bf16.xpose.msra.mxu0 0
        %1983 = vmatprep.subr.bf16.mxu0 0
        %1984 = vmatpush2.bf16.xpose.msra.mxu0 0
        %1985 = vmatprep.subr.bf16.mxu0 0
        %1986 = vmatpush2.bf16.xpose.msra.mxu0 0
        %1987 = vmatprep.mubr.bf16.mxu0 0
        %1988 = vmatmul.mubr.bf16.gmra.mxu0 %v1950
        %v1989 = vpop.f32.mrf.mxu0
        %v1990 = vadd.f32 0.0, %v1989
        %v1991 = vpop.f32.mrf.mxu0
        %v1992 = vpop.f32.mrf.mxu0
        %v1993 = vadd.f32 0.0, %v1992
        %v1994 = vpop.f32.mrf.mxu0
        %1995 = vdwg.mxu0
        %v1996 = vadd.f32 %v1932, %v1990
        %v1997 = vadd.f32 %v1935, %v1993
        %v1998 = vsel %vm836, %v1996, -inf
        %1999 = vmax.xlane.f32.xlu0 %v1998
        %v2000 = vpop.xlane.xlu0 %1999
        %v2001 = vsel %vm836, %v1997, -inf
        %2002 = vmax.xlane.f32.xlu0 %v2001
        %v2003 = vpop.xlane.xlu0 %2002
        %v2004 = vsub.f32 %v1996, %v2000
        %v2005 = vsub.f32 %v1997, %v2003
        %v2006 = vmul.f32 %v2004, 1.442695
        %v2007 = vpow.pop %v2006
        %v2008 = vmul.f32 %v2005, 1.442695
        %v2009 = vpow.pop %v2008
        %v2010 = vsel %vm836, %v2007, 0.0
        %2011 = vadd.xlane.f32.xlu0 %v2010
        %v2012 = vpop.xlane.xlu0 %2011
        %v2013 = vsel %vm836, %v2009, 0.0
        %2014 = vadd.xlane.f32.xlu0 %v2013
        %v2015 = vpop.xlane.xlu0 %2014
        %v2016 = vrcp.pop %v2012
        %v2017 = vrcp.pop %v2015
        %v2018 = vmul.f32 %v2007, %v2016
        %v2019 = vmul.f32 %v2009, %v2017
        %v2020 = vpack.c.bf16 %v2019, %v2018
        %2021 = vrot.lane.b32.xlu0 %v1886, 40
        %v2022 = vpop.permute.xlu0 %2021
        %v2025 = vsel %vm836, %v2020, 0
        %2027 = vmatprep.subr.bf16.mxu0 0
        %2028 = vmatpush1.bf16.msra.mxu0 0
        %2029 = vmatprep.subr.bf16.mxu0 0
        %2030 = vmatpush1.bf16.msra.mxu0 0
        %2031 = vmatprep.subr.bf16.mxu0 0
        %2032 = vmatpush1.bf16.msra.mxu0 0
        %2033 = vmatprep.subr.bf16.mxu0 0
        %2034 = vmatpush1.bf16.msra.mxu0 0
        %2035 = vmatprep.subr.bf16.mxu0 0
        %2036 = vmatpush1.bf16.msra.mxu0 0
        %2037 = vmatprep.subr.bf16.mxu0 0
        %2038 = vmatpush1.bf16.msra.mxu0 0
        %2039 = vmatprep.subr.bf16.mxu0 0
        %2040 = vmatpush1.bf16.msra.mxu0 0
        %2041 = vmatprep.subr.bf16.mxu0 0
        %2042 = vmatpush1.bf16.msra.mxu0 %v2022
        %2043 = vmatprep.subr.bf16.mxu0 0
        %2044 = vmatpush2.bf16.msra.mxu0 0
        %2045 = vmatprep.subr.bf16.mxu0 0
        %2046 = vmatpush2.bf16.msra.mxu0 0
        %2047 = vmatprep.subr.bf16.mxu0 0
        %2048 = vmatpush2.bf16.msra.mxu0 0
        %2049 = vmatprep.subr.bf16.mxu0 0
        %2050 = vmatpush2.bf16.msra.mxu0 0
        %2051 = vmatprep.subr.bf16.mxu0 0
        %2052 = vmatpush2.bf16.msra.mxu0 0
        %2053 = vmatprep.subr.bf16.mxu0 0
        %2054 = vmatpush2.bf16.msra.mxu0 0
        %2055 = vmatprep.subr.bf16.mxu0 0
        %2056 = vmatpush2.bf16.msra.mxu0 0
        %2057 = vmatprep.subr.bf16.mxu0 0
        %2058 = vmatpush2.bf16.msra.mxu0 0
        %2059 = vmatprep.mubr.bf16.mxu0 0
        %2060 = vmatmul.mubr.bf16.gmra.mxu0 %v2025
        %v2061 = vpop.f32.mrf.mxu0
        %v2062 = vadd.f32 0.0, %v2061
        %v2063 = vpop.f32.mrf.mxu0
        %v2064 = vpop.f32.mrf.mxu0
        %v2065 = vadd.f32 0.0, %v2064
        %v2066 = vpop.f32.mrf.mxu0
        %2067 = vdwg.mxu0
        %v2068 = vpack.c.bf16 %v2065, %v2062
        %v2070 = vunpack.c.l.b16 %v2068
        %v2071 = vunpack.c.h.b16 %v2068
        %v2072 = vpack.c.b16 %v2070, %v2070
        %v2073 = vpack.c.b16 %v2071, %v2071
        %2074 = vrot.lane.b32.xlu0 %v2072, 24
        %v2075 = vpop.permute.xlu0 %2074
        %2076 = vrot.lane.b32.xlu0 %v2073, 24
        %v2077 = vpop.permute.xlu0 %2076
        %vm2080 = vcmask 257216
        %2081 = vst.msk [vmem:[#allocation3] sm:$0xf] %vm2080, %v2075
        %2082 = vst.msk [vmem:[#allocation3 + $0x4] sm:$0xf] %vm2080, %v2077
        %v2083 = vld [vmem:[#allocation2 + $0x8] sm:$0xf]
        %v2084 = vld [vmem:[#allocation2 + $0xc] sm:$0xf]
        %v2087 = vunpack.c.l.b16 %v2083
        %v2088 = vunpack.c.l.b16 %v2084
        %v2089 = vpack.c.b16 %v2088, %v2087
        %2090 = vrot.lane.b32.xlu0 %v2089, 40
        %v2091 = vpop.permute.xlu0 %2090
        %2093 = vmatprep.subr.bf16.mxu0 0
        %2094 = vmatpush1.bf16.msra.mxu0 0
        %2095 = vmatprep.subr.bf16.mxu0 0
        %2096 = vmatpush1.bf16.msra.mxu0 0
        %2097 = vmatprep.subr.bf16.mxu0 0
        %2098 = vmatpush1.bf16.msra.mxu0 0
        %2099 = vmatprep.subr.bf16.mxu0 0
        %2100 = vmatpush1.bf16.msra.mxu0 0
        %2101 = vmatprep.subr.bf16.mxu0 0
        %2102 = vmatpush1.bf16.msra.mxu0 0
        %2103 = vmatprep.subr.bf16.mxu0 0
        %2104 = vmatpush1.bf16.msra.mxu0 0
        %2105 = vmatprep.subr.bf16.mxu0 0
        %2106 = vmatpush1.bf16.msra.mxu0 0
        %2107 = vmatprep.subr.bf16.mxu0 0
        %2108 = vmatpush1.bf16.msra.mxu0 %v2091
        %2109 = vmatprep.subr.bf16.mxu0 0
        %2110 = vmatpush2.bf16.msra.mxu0 0
        %2111 = vmatprep.subr.bf16.mxu0 0
        %2112 = vmatpush2.bf16.msra.mxu0 0
        %2113 = vmatprep.subr.bf16.mxu0 0
        %2114 = vmatpush2.bf16.msra.mxu0 0
        %2115 = vmatprep.subr.bf16.mxu0 0
        %2116 = vmatpush2.bf16.msra.mxu0 0
        %2117 = vmatprep.subr.bf16.mxu0 0
        %2118 = vmatpush2.bf16.msra.mxu0 0
        %2119 = vmatprep.subr.bf16.mxu0 0
        %2120 = vmatpush2.bf16.msra.mxu0 0
        %2121 = vmatprep.subr.bf16.mxu0 0
        %2122 = vmatpush2.bf16.msra.mxu0 0
        %2123 = vmatprep.subr.bf16.mxu0 0
        %2124 = vmatpush2.bf16.msra.mxu0 0
        %2125 = vmatprep.mubr.bf16.mxu0 0
        %2126 = vmatmul.mubr.bf16.gmra.mxu0 %v2025
        %v2127 = vpop.f32.mrf.mxu0
        %v2128 = vadd.f32 0.0, %v2127
        %v2129 = vpop.f32.mrf.mxu0
        %v2130 = vpop.f32.mrf.mxu0
        %v2131 = vadd.f32 0.0, %v2130
        %v2132 = vpop.f32.mrf.mxu0
        %2133 = vdwg.mxu0
        %v2134 = vpack.c.bf16 %v2131, %v2128
        %v2136 = vunpack.c.l.b16 %v2134
        %v2137 = vunpack.c.h.b16 %v2134
        %v2138 = vpack.c.b16 %v2136, %v2136
        %v2139 = vpack.c.b16 %v2137, %v2137
        %2140 = vrot.lane.b32.xlu0 %v2138, 24
        %v2141 = vpop.permute.xlu0 %2140
        %2142 = vrot.lane.b32.xlu0 %v2139, 24
        %v2143 = vpop.permute.xlu0 %2142
        %2146 = vst.msk [vmem:[#allocation3 + $0x8] sm:$0xf] %vm2080, %v2141
        %2147 = vst.msk [vmem:[#allocation3 + $0xc] sm:$0xf] %vm2080, %v2143
        %v2148 = vld [vmem:[#allocation2 + $0x10] sm:$0xf]
        %v2149 = vld [vmem:[#allocation2 + $0x14] sm:$0xf]
        %v2152 = vunpack.c.l.b16 %v2148
        %v2153 = vunpack.c.l.b16 %v2149
        %v2154 = vpack.c.b16 %v2153, %v2152
        %2155 = vrot.lane.b32.xlu0 %v2154, 40
        %v2156 = vpop.permute.xlu0 %2155
        %2158 = vmatprep.subr.bf16.mxu0 0
        %2159 = vmatpush1.bf16.msra.mxu0 0
        %2160 = vmatprep.subr.bf16.mxu0 0
        %2161 = vmatpush1.bf16.msra.mxu0 0
        %2162 = vmatprep.subr.bf16.mxu0 0
        %2163 = vmatpush1.bf16.msra.mxu0 0
        %2164 = vmatprep.subr.bf16.mxu0 0
        %2165 = vmatpush1.bf16.msra.mxu0 0
        %2166 = vmatprep.subr.bf16.mxu0 0
        %2167 = vmatpush1.bf16.msra.mxu0 0
        %2168 = vmatprep.subr.bf16.mxu0 0
        %2169 = vmatpush1.bf16.msra.mxu0 0
        %2170 = vmatprep.subr.bf16.mxu0 0
        %2171 = vmatpush1.bf16.msra.mxu0 0
        %2172 = vmatprep.subr.bf16.mxu0 0
        %2173 = vmatpush1.bf16.msra.mxu0 %v2156
        %2174 = vmatprep.subr.bf16.mxu0 0
        %2175 = vmatpush2.bf16.msra.mxu0 0
        %2176 = vmatprep.subr.bf16.mxu0 0
        %2177 = vmatpush2.bf16.msra.mxu0 0
        %2178 = vmatprep.subr.bf16.mxu0 0
        %2179 = vmatpush2.bf16.msra.mxu0 0
        %2180 = vmatprep.subr.bf16.mxu0 0
        %2181 = vmatpush2.bf16.msra.mxu0 0
        %2182 = vmatprep.subr.bf16.mxu0 0
        %2183 = vmatpush2.bf16.msra.mxu0 0
        %2184 = vmatprep.subr.bf16.mxu0 0
        %2185 = vmatpush2.bf16.msra.mxu0 0
        %2186 = vmatprep.subr.bf16.mxu0 0
        %2187 = vmatpush2.bf16.msra.mxu0 0
        %2188 = vmatprep.subr.bf16.mxu0 0
        %2189 = vmatpush2.bf16.msra.mxu0 0
        %2190 = vmatprep.mubr.bf16.mxu0 0
        %2191 = vmatmul.mubr.bf16.gmra.mxu0 %v2025
        %v2192 = vpop.f32.mrf.mxu0
        %v2193 = vadd.f32 0.0, %v2192
        %v2194 = vpop.f32.mrf.mxu0
        %v2195 = vpop.f32.mrf.mxu0
        %v2196 = vadd.f32 0.0, %v2195
        %v2197 = vpop.f32.mrf.mxu0
        %2198 = vdwg.mxu0
        %v2199 = vpack.c.bf16 %v2196, %v2193
        %v2201 = vunpack.c.l.b16 %v2199
        %v2202 = vunpack.c.h.b16 %v2199
        %v2203 = vpack.c.b16 %v2201, %v2201
        %v2204 = vpack.c.b16 %v2202, %v2202
        %2205 = vrot.lane.b32.xlu0 %v2203, 24
        %v2206 = vpop.permute.xlu0 %2205
        %2207 = vrot.lane.b32.xlu0 %v2204, 24
        %v2208 = vpop.permute.xlu0 %2207
        %2211 = vst.msk [vmem:[#allocation3 + $0x10] sm:$0xf] %vm2080, %v2206
        %2212 = vst.msk [vmem:[#allocation3 + $0x14] sm:$0xf] %vm2080, %v2208
        %v2213 = vld [vmem:[#allocation3] sm:$0xf]
        %v2214 = vld [vmem:[#allocation3 + $0x4] sm:$0xf]
        %v2215 = vld [vmem:[#allocation3 + $0x8] sm:$0xf]
        %v2216 = vld [vmem:[#allocation3 + $0xc] sm:$0xf]
        %v2217 = vld [vmem:[#allocation3 + $0x10] sm:$0xf]
        %v2218 = vld [vmem:[#allocation3 + $0x14] sm:$0xf]
        %v2219 = vld [vmem:[#allocation10] sm:$0xf]
        %v2220 = vld [vmem:[#allocation10 + $0x4] sm:$0xf]
        %v2221 = vld [vmem:[#allocation10 + $0x8] sm:$0xf]
        %v2222 = vld [vmem:[#allocation10 + $0xc] sm:$0xf]
        %v2229 = vunpack.c.l.b16 %v2213
        %v2230 = vunpack.c.l.b16 %v2214
        %v2231 = vunpack.c.l.b16 %v2215
        %v2232 = vunpack.c.l.b16 %v2216
        %v2233 = vunpack.c.l.b16 %v2217
        %v2234 = vunpack.c.l.b16 %v2218
        %v2235 = vpack.c.b16 %v2230, %v2229
        %v2236 = vpack.c.b16 %v2232, %v2231
        %v2237 = vpack.c.b16 %v2234, %v2233
        %v2242 = vunpack.c.l.b16 %v2219
        %v2243 = vunpack.c.l.b16 %v2220
        %v2244 = vunpack.c.l.b16 %v2221
        %v2245 = vunpack.c.l.b16 %v2222
        %v2246 = vpack.c.b16 %v2243, %v2242
        %v2247 = vpack.c.b16 %v2245, %v2244
        %v2251 = vsel %vm493, %v2235, 0
        %v2254 = vsel %vm493, %v2236, 0
        %v2257 = vsel %vm493, %v2237, 0
        %2259 = vmatprep.subr.bf16.mxu0 0
        %2260 = vmatpush1.bf16.msra.mxu0 0
        %2261 = vmatprep.subr.bf16.mxu0 0
        %2262 = vmatpush1.bf16.msra.mxu0 0
        %2263 = vmatprep.subr.bf16.mxu0 0
        %2264 = vmatpush1.bf16.msra.mxu0 0
        %2265 = vmatprep.subr.bf16.mxu0 0
        %2266 = vmatpush1.bf16.msra.mxu0 0
        %2267 = vmatprep.subr.bf16.mxu0 0
        %2268 = vmatpush1.bf16.msra.mxu0 0
        %2269 = vmatprep.subr.bf16.mxu0 0
        %2270 = vmatpush1.bf16.msra.mxu0 0
        %2271 = vmatprep.subr.bf16.mxu0 0
        %2272 = vmatpush1.bf16.msra.mxu0 %v2247
        %2273 = vmatprep.subr.bf16.mxu0 0
        %2274 = vmatpush1.bf16.msra.mxu0 %v2246
        %2275 = vmatprep.subr.bf16.mxu0 0
        %2276 = vmatpush2.bf16.msra.mxu0 0
        %2277 = vmatprep.subr.bf16.mxu0 0
        %2278 = vmatpush2.bf16.msra.mxu0 0
        %2279 = vmatprep.subr.bf16.mxu0 0
        %2280 = vmatpush2.bf16.msra.mxu0 0
        %2281 = vmatprep.subr.bf16.mxu0 0
        %2282 = vmatpush2.bf16.msra.mxu0 0
        %2283 = vmatprep.subr.bf16.mxu0 0
        %2284 = vmatpush2.bf16.msra.mxu0 0
        %2285 = vmatprep.subr.bf16.mxu0 0
        %2286 = vmatpush2.bf16.msra.mxu0 0
        %2287 = vmatprep.subr.bf16.mxu0 0
        %2288 = vmatpush2.bf16.msra.mxu0 0
        %2289 = vmatprep.subr.bf16.mxu0 0
        %2290 = vmatpush2.bf16.msra.mxu0 0
        %2291 = vmatprep.mubr.bf16.mxu0 0
        %2292 = vmatmul.mubr.bf16.gmra.mxu0 %v2251
        %v2293 = vpop.f32.mrf.mxu0
        %v2294 = vadd.f32 0.0, %v2293
        %v2295 = vpop.f32.mrf.mxu0
        %v2296 = vpop.f32.mrf.mxu0
        %v2297 = vadd.f32 0.0, %v2296
        %v2298 = vpop.f32.mrf.mxu0
        %2299 = vmatprep.mubr.bf16.mxu0 0
        %2300 = vmatmul.mubr.bf16.gmra.mxu0 %v2254
        %v2301 = vpop.f32.mrf.mxu0
        %v2302 = vadd.f32 0.0, %v2301
        %v2303 = vpop.f32.mrf.mxu0
        %v2304 = vpop.f32.mrf.mxu0
        %v2305 = vadd.f32 0.0, %v2304
        %v2306 = vpop.f32.mrf.mxu0
        %2307 = vmatprep.mubr.bf16.mxu0 0
        %2308 = vmatmul.mubr.bf16.gmra.mxu0 %v2257
        %v2309 = vpop.f32.mrf.mxu0
        %v2310 = vadd.f32 0.0, %v2309
        %v2311 = vpop.f32.mrf.mxu0
        %v2312 = vpop.f32.mrf.mxu0
        %v2313 = vadd.f32 0.0, %v2312
        %v2314 = vpop.f32.mrf.mxu0
        %2315 = vdwg.mxu0
        %v2316 = vadd.f32 %v461, %v2294
        %v2317 = vadd.f32 %v462, %v2297
        %v2318 = vadd.f32 %v463, %v2302
        %v2319 = vadd.f32 %v464, %v2305
        %v2320 = vadd.f32 %v465, %v2310
        %v2321 = vadd.f32 %v466, %v2313
        %v2322 = vld [vmem:[#allocation12] sm:$0x1]
        %v2323 = vld [vmem:[#allocation13] sm:$0x1]
        %v2324 = vmul.f32 %v2316, %v2316
        %v2325 = vmul.f32 %v2317, %v2317
        %v2326 = vmul.f32 %v2318, %v2318
        %v2327 = vmul.f32 %v2319, %v2319
        %v2328 = vadd.f32 %v2324, %v2326
        %v2329 = vadd.f32 %v2325, %v2327
        %v2330 = vmul.f32 %v2320, %v2320
        %v2331 = vmul.f32 %v2321, %v2321
        %v2332 = vadd.f32 %v2328, %v2330
        %v2333 = vadd.f32 %v2329, %v2331
        %v2334 = vrsqrt.pop %v2332
        %v2335 = vmul.f32 %v2332, %v2334
        %vm2336 = vcmp.eq.f32.partialorder %v2332, inf
        %v2337 = vsel %vm2336, %v2332, %v2335
        %vm2338 = vcmp.eq.f32.partialorder %v2332, 0.0
        %v2339 = vand.u32 %v2332, 2147483648
        %v2340 = vsel %vm2338, %v2339, %v2337
        %v2341 = vrsqrt.pop %v2333
        %v2342 = vmul.f32 %v2333, %v2341
        %vm2343 = vcmp.eq.f32.partialorder %v2333, inf
        %v2344 = vsel %vm2343, %v2333, %v2342
        %vm2345 = vcmp.eq.f32.partialorder %v2333, 0.0
        %v2346 = vand.u32 %v2333, 2147483648
        %v2347 = vsel %vm2345, %v2346, %v2344
        %v2348 = vsel %vm493, %v2340, 0.0
        %2349 = vadd.xlane.f32.xlu0 %v2348
        %v2350 = vpop.xlane.xlu0 %2349
        %v2351 = vsel %vm493, %v2347, 0.0
        %2352 = vadd.xlane.f32.xlu0 %v2351
        %v2353 = vpop.xlane.xlu0 %2352
        %v2354 = vmul.f32 %v2350, %v500
        %v2355 = vmul.f32 %v2353, %v500
        %v2356 = vsub.f32 %v2340, %v2354
        %v2357 = vsub.f32 %v2347, %v2355
        %v2358 = vmul.f32 %v2356, %v2356
        %v2359 = vmul.f32 %v2357, %v2357
        %v2360 = vsel %vm493, %v2358, 0.0
        %2361 = vadd.xlane.f32.xlu0 %v2360
        %v2362 = vpop.xlane.xlu0 %2361
        %v2363 = vsel %vm493, %v2359, 0.0
        %2364 = vadd.xlane.f32.xlu0 %v2363
        %v2365 = vpop.xlane.xlu0 %2364
        %v2366 = vmul.f32 %v2362, %v500
        %v2367 = vmul.f32 %v2365, %v500
        %v2368 = vadd.f32 %v2366, 1e-06
        %v2369 = vadd.f32 %v2367, 1e-06
        %v2370 = vrsqrt.pop %v2368
        %v2371 = vrsqrt.pop %v2369
        %v2372 = vmul.f32 %v2356, %v2370
        %v2373 = vmul.f32 %v2357, %v2371
        %v2375 = vlaneseq
        %v2376 = vshrl.u32 %v2375, 7
        %v2377 = vsub.s32 0, %v2376
        %v2378 = vrot.slane %v2322, %v2377
        %v2380 = vmul.f32 %v2372, %v2378
        %v2381 = vmul.f32 %v2373, %v2378
        %v2383 = vlaneseq
        %v2384 = vshrl.u32 %v2383, 7
        %v2385 = vsub.s32 0, %v2384
        %v2386 = vrot.slane %v2323, %v2385
        %v2388 = vadd.f32 %v2380, %v2386
        %v2389 = vadd.f32 %v2381, %v2386
        %v2390 = vadd.f32 %v2340, 1e-06
        %v2391 = vadd.f32 %v2347, 1e-06
        %v2392 = vrcp.pop %v2390
        %v2393 = vmul.f32 %v2388, %v2392
        %v2394 = vrcp.pop %v2391
        %v2395 = vmul.f32 %v2389, %v2394
        %v2396 = vmul.f32 %v2316, %v2393
        %v2397 = vmul.f32 %v2317, %v2395
        %v2398 = vmul.f32 %v2318, %v2393
        %v2399 = vmul.f32 %v2319, %v2395
        %v2400 = vmul.f32 %v2320, %v2393
        %v2401 = vmul.f32 %v2321, %v2395
        %v2402 = vpack.c.bf16 %v2397, %v2396
        %v2403 = vpack.c.bf16 %v2399, %v2398
        %v2404 = vpack.c.bf16 %v2401, %v2400
        %v2405 = vld [vmem:[#allocation15] sm:$0xf]
        %v2406 = vld [vmem:[#allocation15 + $0x4] sm:$0xf]
        %v2407 = vld [vmem:[#allocation15 + $0x8] sm:$0xf]
        %v2408 = vld [vmem:[#allocation15 + $0xc] sm:$0xf]
        %v2413 = vunpack.c.l.b16 %v2405
        %v2414 = vunpack.c.l.b16 %v2406
        %v2415 = vunpack.c.l.b16 %v2407
        %v2416 = vunpack.c.l.b16 %v2408
        %v2417 = vpack.c.b16 %v2414, %v2413
        %v2418 = vpack.c.b16 %v2416, %v2415
        %v2422 = vsel %vm493, %v2402, 0
        %v2425 = vsel %vm493, %v2403, 0
        %v2428 = vsel %vm493, %v2404, 0
        %2430 = vmatprep.subr.bf16.mxu0 0
        %2431 = vmatpush1.bf16.msra.mxu0 0
        %2432 = vmatprep.subr.bf16.mxu0 0
        %2433 = vmatpush1.bf16.msra.mxu0 0
        %2434 = vmatprep.subr.bf16.mxu0 0
        %2435 = vmatpush1.bf16.msra.mxu0 0
        %2436 = vmatprep.subr.bf16.mxu0 0
        %2437 = vmatpush1.bf16.msra.mxu0 0
        %2438 = vmatprep.subr.bf16.mxu0 0
        %2439 = vmatpush1.bf16.msra.mxu0 0
        %2440 = vmatprep.subr.bf16.mxu0 0
        %2441 = vmatpush1.bf16.msra.mxu0 0
        %2442 = vmatprep.subr.bf16.mxu0 0
        %2443 = vmatpush1.bf16.msra.mxu0 %v2418
        %2444 = vmatprep.subr.bf16.mxu0 0
        %2445 = vmatpush1.bf16.msra.mxu0 %v2417
        %2446 = vmatprep.subr.bf16.mxu0 0
        %2447 = vmatpush2.bf16.msra.mxu0 0
        %2448 = vmatprep.subr.bf16.mxu0 0
        %2449 = vmatpush2.bf16.msra.mxu0 0
        %2450 = vmatprep.subr.bf16.mxu0 0
        %2451 = vmatpush2.bf16.msra.mxu0 0
        %2452 = vmatprep.subr.bf16.mxu0 0
        %2453 = vmatpush2.bf16.msra.mxu0 0
        %2454 = vmatprep.subr.bf16.mxu0 0
        %2455 = vmatpush2.bf16.msra.mxu0 0
        %2456 = vmatprep.subr.bf16.mxu0 0
        %2457 = vmatpush2.bf16.msra.mxu0 0
        %2458 = vmatprep.subr.bf16.mxu0 0
        %2459 = vmatpush2.bf16.msra.mxu0 0
        %2460 = vmatprep.subr.bf16.mxu0 0
        %2461 = vmatpush2.bf16.msra.mxu0 0
        %2462 = vmatprep.mubr.bf16.mxu0 0
        %2463 = vmatmul.mubr.bf16.gmra.mxu0 %v2422
        %v2464 = vpop.f32.mrf.mxu0
        %v2465 = vadd.f32 0.0, %v2464
        %v2466 = vpop.f32.mrf.mxu0
        %v2467 = vpop.f32.mrf.mxu0
        %v2468 = vadd.f32 0.0, %v2467
        %v2469 = vpop.f32.mrf.mxu0
        %2470 = vmatprep.mubr.bf16.mxu0 0
        %2471 = vmatmul.mubr.bf16.gmra.mxu0 %v2425
        %v2472 = vpop.f32.mrf.mxu0
        %v2473 = vadd.f32 0.0, %v2472
        %v2474 = vpop.f32.mrf.mxu0
        %v2475 = vpop.f32.mrf.mxu0
        %v2476 = vadd.f32 0.0, %v2475
        %v2477 = vpop.f32.mrf.mxu0
        %2478 = vmatprep.mubr.bf16.mxu0 0
        %2479 = vmatmul.mubr.bf16.gmra.mxu0 %v2428
        %v2480 = vpop.f32.mrf.mxu0
        %v2481 = vadd.f32 0.0, %v2480
        %v2482 = vpop.f32.mrf.mxu0
        %v2483 = vpop.f32.mrf.mxu0
        %v2484 = vadd.f32 0.0, %v2483
        %v2485 = vpop.f32.mrf.mxu0
        %2486 = vdwg.mxu0
        %v2487 = vld [vmem:[%s8] sm:$0xf]
        %v2488 = vld [vmem:[%s8 + $0x4] sm:$0xf]
        %v2489 = vld [vmem:[%s8 + $0x8] sm:$0xf]
        %v2490 = vld [vmem:[%s8 + $0xc] sm:$0xf]
        %v2491 = vld [vmem:[%s8 + $0x10] sm:$0xf]
        %v2492 = vld [vmem:[%s8 + $0x14] sm:$0xf]
        %v2493 = vld [vmem:[%s8 + $0x18] sm:$0xf]
        %v2494 = vld [vmem:[%s8 + $0x1c] sm:$0xf]
        %v2495 = vld [vmem:[%s8 + $0x20] sm:$0xf]
        %v2496 = vld [vmem:[%s8 + $0x24] sm:$0xf]
        %v2497 = vld [vmem:[%s8 + $0x28] sm:$0xf]
        %v2498 = vld [vmem:[%s8 + $0x2c] sm:$0xf]
        %v2499 = vld [vmem:[%s8 + $0x30] sm:$0xf]
        %v2500 = vld [vmem:[%s8 + $0x34] sm:$0xf]
        %v2501 = vld [vmem:[%s8 + $0x38] sm:$0xf]
        %v2502 = vld [vmem:[%s8 + $0x3c] sm:$0xf]
        %v2503 = vpack.c.bf16 %v2468, %v2465
        %v2504 = vpack.c.bf16 %v2476, %v2473
        %v2505 = vpack.c.bf16 %v2484, %v2481
        %v2522 = vunpack.c.l.b16 %v2487
        %v2523 = vunpack.c.l.b16 %v2488
        %v2524 = vunpack.c.l.b16 %v2489
        %v2525 = vunpack.c.l.b16 %v2490
        %v2526 = vunpack.c.l.b16 %v2491
        %v2527 = vunpack.c.l.b16 %v2492
        %v2528 = vunpack.c.l.b16 %v2493
        %v2529 = vunpack.c.l.b16 %v2494
        %v2530 = vunpack.c.l.b16 %v2495
        %v2531 = vunpack.c.l.b16 %v2496
        %v2532 = vunpack.c.l.b16 %v2497
        %v2533 = vunpack.c.l.b16 %v2498
        %v2534 = vunpack.c.l.b16 %v2499
        %v2535 = vunpack.c.l.b16 %v2500
        %v2536 = vunpack.c.l.b16 %v2501
        %v2537 = vunpack.c.l.b16 %v2502
        %v2538 = vpack.c.b16 %v2523, %v2522
        %v2539 = vpack.c.b16 %v2525, %v2524
        %v2540 = vpack.c.b16 %v2527, %v2526
        %v2541 = vpack.c.b16 %v2529, %v2528
        %v2542 = vpack.c.b16 %v2531, %v2530
        %v2543 = vpack.c.b16 %v2533, %v2532
        %v2544 = vpack.c.b16 %v2535, %v2534
        %v2545 = vpack.c.b16 %v2537, %v2536
        %2554 = vmatprep.subr.bf16.mxu0 0
        %2555 = vmatpush1.bf16.msra.mxu0 %v2545
        %2556 = vmatprep.subr.bf16.mxu0 0
        %2557 = vmatpush1.bf16.msra.mxu0 %v2544
        %2558 = vmatprep.subr.bf16.mxu0 0
        %2559 = vmatpush1.bf16.msra.mxu0 %v2543
        %2560 = vmatprep.subr.bf16.mxu0 0
        %2561 = vmatpush1.bf16.msra.mxu0 %v2542
        %2562 = vmatprep.subr.bf16.mxu0 0
        %2563 = vmatpush1.bf16.msra.mxu0 %v2541
        %2564 = vmatprep.subr.bf16.mxu0 0
        %2565 = vmatpush1.bf16.msra.mxu0 %v2540
        %2566 = vmatprep.subr.bf16.mxu0 0
        %2567 = vmatpush1.bf16.msra.mxu0 %v2539
        %2568 = vmatprep.subr.bf16.mxu0 0
        %2569 = vmatpush1.bf16.msra.mxu0 %v2538
        %2570 = vmatprep.subr.bf16.mxu0 0
        %2571 = vmatpush2.bf16.msra.mxu0 0
        %2572 = vmatprep.subr.bf16.mxu0 0
        %2573 = vmatpush2.bf16.msra.mxu0 0
        %2574 = vmatprep.subr.bf16.mxu0 0
        %2575 = vmatpush2.bf16.msra.mxu0 0
        %2576 = vmatprep.subr.bf16.mxu0 0
        %2577 = vmatpush2.bf16.msra.mxu0 0
        %2578 = vmatprep.subr.bf16.mxu0 0
        %2579 = vmatpush2.bf16.msra.mxu0 0
        %2580 = vmatprep.subr.bf16.mxu0 0
        %2581 = vmatpush2.bf16.msra.mxu0 0
        %2582 = vmatprep.subr.bf16.mxu0 0
        %2583 = vmatpush2.bf16.msra.mxu0 0
        %2584 = vmatprep.subr.bf16.mxu0 0
        %2585 = vmatpush2.bf16.msra.mxu0 0
        %2586 = vmatprep.mubr.bf16.mxu0 0
        %2587 = vmatmul.mubr.bf16.gmra.mxu0 %v2503
        %v2588 = vpop.f32.mrf.mxu0
        %v2589 = vadd.f32 0.0, %v2588
        %v2590 = vpop.f32.mrf.mxu0
        %v2591 = vpop.f32.mrf.mxu0
        %v2592 = vadd.f32 0.0, %v2591
        %v2593 = vpop.f32.mrf.mxu0
        %2594 = vmatprep.mubr.bf16.mxu0 0
        %2595 = vmatmul.mubr.bf16.gmra.mxu0 %v2504
        %v2596 = vpop.f32.mrf.mxu0
        %v2597 = vadd.f32 0.0, %v2596
        %v2598 = vpop.f32.mrf.mxu0
        %v2599 = vpop.f32.mrf.mxu0
        %v2600 = vadd.f32 0.0, %v2599
        %v2601 = vpop.f32.mrf.mxu0
        %2602 = vmatprep.mubr.bf16.mxu0 0
        %2603 = vmatmul.mubr.bf16.gmra.mxu0 %v2505
        %v2604 = vpop.f32.mrf.mxu0
        %v2605 = vadd.f32 0.0, %v2604
        %v2606 = vpop.f32.mrf.mxu0
        %v2607 = vpop.f32.mrf.mxu0
        %v2608 = vadd.f32 0.0, %v2607
        %v2609 = vpop.f32.mrf.mxu0
        %2610 = vdwg.mxu0
        %v2611 = vmul.f32 %v2589, %v2589
        %v2612 = vmul.f32 %v2592, %v2592
        %v2613 = vmul.f32 %v2597, %v2597
        %v2614 = vmul.f32 %v2600, %v2600
        %v2615 = vadd.f32 %v2611, %v2613
        %v2616 = vadd.f32 %v2612, %v2614
        %v2617 = vmul.f32 %v2605, %v2605
        %v2618 = vmul.f32 %v2608, %v2608
        %v2619 = vadd.f32 %v2615, %v2617
        %v2620 = vadd.f32 %v2616, %v2618
        %v2621 = vrsqrt.pop %v2619
        %v2622 = vmul.f32 %v2619, %v2621
        %vm2623 = vcmp.eq.f32.partialorder %v2619, inf
        %v2624 = vsel %vm2623, %v2619, %v2622
        %vm2625 = vcmp.eq.f32.partialorder %v2619, 0.0
        %v2626 = vand.u32 %v2619, 2147483648
        %v2627 = vsel %vm2625, %v2626, %v2624
        %v2628 = vrsqrt.pop %v2620
        %v2629 = vmul.f32 %v2620, %v2628
        %vm2630 = vcmp.eq.f32.partialorder %v2620, inf
        %v2631 = vsel %vm2630, %v2620, %v2629
        %vm2632 = vcmp.eq.f32.partialorder %v2620, 0.0
        %v2633 = vand.u32 %v2620, 2147483648
        %v2634 = vsel %vm2632, %v2633, %v2631
        %v2635 = vadd.f32 %v2627, 1e-06
        %v2636 = vadd.f32 %v2634, 1e-06
        %v2637 = vrcp.pop %v2635
        %v2638 = vmul.f32 %v2589, %v2637
        %v2639 = vrcp.pop %v2636
        %v2640 = vmul.f32 %v2592, %v2639
        %v2641 = vmul.f32 %v2597, %v2637
        %v2642 = vmul.f32 %v2600, %v2639
        %v2643 = vmul.f32 %v2605, %v2637
        %v2644 = vmul.f32 %v2608, %v2639
        %v2645 = vmul.f32 %v2465, %v2638
        %v2646 = vmul.f32 %v2468, %v2640
        %v2647 = vmul.f32 %v2473, %v2641
        %v2648 = vmul.f32 %v2476, %v2642
        %v2649 = vadd.f32 %v2645, %v2647
        %v2650 = vadd.f32 %v2646, %v2648
        %v2651 = vmul.f32 %v2481, %v2643
        %v2652 = vmul.f32 %v2484, %v2644
        %v2653 = vadd.f32 %v2649, %v2651
        %v2654 = vadd.f32 %v2650, %v2652
        %v2655 = vmul.f32 %v2653, %v2638
        %v2656 = vmul.f32 %v2654, %v2640
        %v2657 = vmul.f32 %v2653, %v2641
        %v2658 = vmul.f32 %v2654, %v2642
        %v2659 = vmul.f32 %v2653, %v2643
        %v2660 = vmul.f32 %v2654, %v2644
        %v2661 = vsub.f32 %v2465, %v2655
        %v2662 = vsub.f32 %v2468, %v2656
        %v2663 = vsub.f32 %v2473, %v2657
        %v2664 = vsub.f32 %v2476, %v2658
        %v2665 = vsub.f32 %v2481, %v2659
        %v2666 = vsub.f32 %v2484, %v2660
        %vm2667 = vcmp.ge.f32.partialorder %v2653, 0.0
        %vm2668 = vcmp.ge.f32.partialorder %v2654, 0.0
        %v2669 = vmul.f32 %v2653, 0.2
        %v2670 = vmul.f32 %v2654, 0.2
        %v2671 = vsel %vm2667, %v2653, %v2669
        %v2672 = vsel %vm2668, %v2654, %v2670
        %v2673 = vmul.f32 %v2671, %v2638
        %v2674 = vmul.f32 %v2672, %v2640
        %v2675 = vmul.f32 %v2671, %v2641
        %v2676 = vmul.f32 %v2672, %v2642
        %v2677 = vmul.f32 %v2671, %v2643
        %v2678 = vmul.f32 %v2672, %v2644
        %v2679 = vadd.f32 %v2661, %v2673
        %v2680 = vadd.f32 %v2662, %v2674
        %v2681 = vadd.f32 %v2663, %v2675
        %v2682 = vadd.f32 %v2664, %v2676
        %v2683 = vadd.f32 %v2665, %v2677
        %v2684 = vadd.f32 %v2666, %v2678
        %v2685 = vpack.c.bf16 %v2680, %v2679
        %v2686 = vpack.c.bf16 %v2682, %v2681
        %v2687 = vpack.c.bf16 %v2684, %v2683
        %v2688 = vld [vmem:[%s9] sm:$0xf]
        %v2689 = vld [vmem:[%s9 + $0x4] sm:$0xf]
        %v2690 = vld [vmem:[%s9 + $0x8] sm:$0xf]
        %v2691 = vld [vmem:[%s9 + $0xc] sm:$0xf]
        %v2692 = vld [vmem:[%s9 + $0x10] sm:$0xf]
        %v2693 = vld [vmem:[%s9 + $0x14] sm:$0xf]
        %v2694 = vld [vmem:[%s9 + $0x18] sm:$0xf]
        %v2695 = vld [vmem:[%s9 + $0x1c] sm:$0xf]
        %v2696 = vld [vmem:[%s9 + $0x20] sm:$0xf]
        %v2697 = vld [vmem:[%s9 + $0x24] sm:$0xf]
        %v2698 = vld [vmem:[%s9 + $0x28] sm:$0xf]
        %v2699 = vld [vmem:[%s9 + $0x2c] sm:$0xf]
        %v2700 = vld [vmem:[%s9 + $0x30] sm:$0xf]
        %v2701 = vld [vmem:[%s9 + $0x34] sm:$0xf]
        %v2702 = vld [vmem:[%s9 + $0x38] sm:$0xf]
        %v2703 = vld [vmem:[%s9 + $0x3c] sm:$0xf]
        %v2720 = vunpack.c.l.b16 %v2688
        %v2721 = vunpack.c.l.b16 %v2689
        %v2722 = vunpack.c.l.b16 %v2690
        %v2723 = vunpack.c.l.b16 %v2691
        %v2724 = vunpack.c.l.b16 %v2692
        %v2725 = vunpack.c.l.b16 %v2693
        %v2726 = vunpack.c.l.b16 %v2694
        %v2727 = vunpack.c.l.b16 %v2695
        %v2728 = vunpack.c.l.b16 %v2696
        %v2729 = vunpack.c.l.b16 %v2697
        %v2730 = vunpack.c.l.b16 %v2698
        %v2731 = vunpack.c.l.b16 %v2699
        %v2732 = vunpack.c.l.b16 %v2700
        %v2733 = vunpack.c.l.b16 %v2701
        %v2734 = vunpack.c.l.b16 %v2702
        %v2735 = vunpack.c.l.b16 %v2703
        %v2736 = vpack.c.b16 %v2721, %v2720
        %v2737 = vpack.c.b16 %v2723, %v2722
        %v2738 = vpack.c.b16 %v2725, %v2724
        %v2739 = vpack.c.b16 %v2727, %v2726
        %v2740 = vpack.c.b16 %v2729, %v2728
        %v2741 = vpack.c.b16 %v2731, %v2730
        %v2742 = vpack.c.b16 %v2733, %v2732
        %v2743 = vpack.c.b16 %v2735, %v2734
        %2752 = vmatprep.subr.bf16.mxu0 0
        %2753 = vmatpush1.bf16.msra.mxu0 %v2743
        %2754 = vmatprep.subr.bf16.mxu0 0
        %2755 = vmatpush1.bf16.msra.mxu0 %v2742
        %2756 = vmatprep.subr.bf16.mxu0 0
        %2757 = vmatpush1.bf16.msra.mxu0 %v2741
        %2758 = vmatprep.subr.bf16.mxu0 0
        %2759 = vmatpush1.bf16.msra.mxu0 %v2740
        %2760 = vmatprep.subr.bf16.mxu0 0
        %2761 = vmatpush1.bf16.msra.mxu0 %v2739
        %2762 = vmatprep.subr.bf16.mxu0 0
        %2763 = vmatpush1.bf16.msra.mxu0 %v2738
        %2764 = vmatprep.subr.bf16.mxu0 0
        %2765 = vmatpush1.bf16.msra.mxu0 %v2737
        %2766 = vmatprep.subr.bf16.mxu0 0
        %2767 = vmatpush1.bf16.msra.mxu0 %v2736
        %2768 = vmatprep.subr.bf16.mxu0 0
        %2769 = vmatpush2.bf16.msra.mxu0 0
        %2770 = vmatprep.subr.bf16.mxu0 0
        %2771 = vmatpush2.bf16.msra.mxu0 0
        %2772 = vmatprep.subr.bf16.mxu0 0
        %2773 = vmatpush2.bf16.msra.mxu0 0
        %2774 = vmatprep.subr.bf16.mxu0 0
        %2775 = vmatpush2.bf16.msra.mxu0 0
        %2776 = vmatprep.subr.bf16.mxu0 0
        %2777 = vmatpush2.bf16.msra.mxu0 0
        %2778 = vmatprep.subr.bf16.mxu0 0
        %2779 = vmatpush2.bf16.msra.mxu0 0
        %2780 = vmatprep.subr.bf16.mxu0 0
        %2781 = vmatpush2.bf16.msra.mxu0 0
        %2782 = vmatprep.subr.bf16.mxu0 0
        %2783 = vmatpush2.bf16.msra.mxu0 0
        %2784 = vmatprep.mubr.bf16.mxu0 0
        %2785 = vmatmul.mubr.bf16.gmra.mxu0 %v2685
        %v2786 = vpop.f32.mrf.mxu0
        %v2787 = vadd.f32 0.0, %v2786
        %v2788 = vpop.f32.mrf.mxu0
        %v2789 = vpop.f32.mrf.mxu0
        %v2790 = vadd.f32 0.0, %v2789
        %v2791 = vpop.f32.mrf.mxu0
        %2792 = vmatprep.mubr.bf16.mxu0 0
        %2793 = vmatmul.mubr.bf16.gmra.mxu0 %v2686
        %v2794 = vpop.f32.mrf.mxu0
        %v2795 = vadd.f32 0.0, %v2794
        %v2796 = vpop.f32.mrf.mxu0
        %v2797 = vpop.f32.mrf.mxu0
        %v2798 = vadd.f32 0.0, %v2797
        %v2799 = vpop.f32.mrf.mxu0
        %2800 = vmatprep.mubr.bf16.mxu0 0
        %2801 = vmatmul.mubr.bf16.gmra.mxu0 %v2687
        %v2802 = vpop.f32.mrf.mxu0
        %v2803 = vadd.f32 0.0, %v2802
        %v2804 = vpop.f32.mrf.mxu0
        %v2805 = vpop.f32.mrf.mxu0
        %v2806 = vadd.f32 0.0, %v2805
        %v2807 = vpop.f32.mrf.mxu0
        %2808 = vdwg.mxu0
        %v2809 = vadd.f32 %v2316, %v2787
        %v2810 = vadd.f32 %v2317, %v2790
        %v2811 = vadd.f32 %v2318, %v2795
        %v2812 = vadd.f32 %v2319, %v2798
        %v2813 = vadd.f32 %v2320, %v2803
        %v2814 = vadd.f32 %v2321, %v2806
        %2815 = vst.msk [vmem:[%s457] sm:$0xff] %vm493, %v2809
        %2816 = vst.msk [vmem:[%s457 + $0x8] sm:$0xff] %vm493, %v2810
        %2817 = vst.msk [vmem:[%s457 + $0x10] sm:$0xff] %vm493, %v2811
        %2818 = vst.msk [vmem:[%s457 + $0x18] sm:$0xff] %vm493, %v2812
        %2819 = vst.msk [vmem:[%s457 + $0x20] sm:$0xff] %vm493, %v2813
        %2820 = vst.msk [vmem:[%s457 + $0x28] sm:$0xff] %vm493, %v2814
        %s2821 = scalar_lea.vmem %s397, 48 [#allocation4]
        %v2822 = vld [vmem:[%s2821] sm:$0xff]
        %v2823 = vld [vmem:[%s2821 + $0x8] sm:$0xff]
        %v2824 = vld [vmem:[%s2821 + $0x10] sm:$0xff]
        %v2825 = vld [vmem:[%s2821 + $0x18] sm:$0xff]
        %v2826 = vld [vmem:[%s2821 + $0x20] sm:$0xff]
        %v2827 = vld [vmem:[%s2821 + $0x28] sm:$0xff]
        %v2828 = vld [vmem:[#allocation7] sm:$0x1]
        %v2829 = vld [vmem:[#allocation9] sm:$0x1]
        %v2830 = vmul.f32 %v2822, %v2822
        %v2831 = vmul.f32 %v2823, %v2823
        %v2832 = vmul.f32 %v2824, %v2824
        %v2833 = vmul.f32 %v2825, %v2825
        %v2834 = vadd.f32 %v2830, %v2832
        %v2835 = vadd.f32 %v2831, %v2833
        %v2836 = vmul.f32 %v2826, %v2826
        %v2837 = vmul.f32 %v2827, %v2827
        %v2838 = vadd.f32 %v2834, %v2836
        %v2839 = vadd.f32 %v2835, %v2837
        %v2840 = vrsqrt.pop %v2838
        %v2841 = vmul.f32 %v2838, %v2840
        %vm2842 = vcmp.eq.f32.partialorder %v2838, inf
        %v2843 = vsel %vm2842, %v2838, %v2841
        %vm2844 = vcmp.eq.f32.partialorder %v2838, 0.0
        %v2845 = vand.u32 %v2838, 2147483648
        %v2846 = vsel %vm2844, %v2845, %v2843
        %v2847 = vrsqrt.pop %v2839
        %v2848 = vmul.f32 %v2839, %v2847
        %vm2849 = vcmp.eq.f32.partialorder %v2839, inf
        %v2850 = vsel %vm2849, %v2839, %v2848
        %vm2851 = vcmp.eq.f32.partialorder %v2839, 0.0
        %v2852 = vand.u32 %v2839, 2147483648
        %v2853 = vsel %vm2851, %v2852, %v2850
        %v2854 = vsel %vm493, %v2846, 0.0
        %2855 = vadd.xlane.f32.xlu0 %v2854
        %v2856 = vpop.xlane.xlu0 %2855
        %v2857 = vsel %vm493, %v2853, 0.0
        %2858 = vadd.xlane.f32.xlu0 %v2857
        %v2859 = vpop.xlane.xlu0 %2858
        %v2860 = vmul.f32 %v2856, %v500
        %v2861 = vmul.f32 %v2859, %v500
        %v2862 = vsub.f32 %v2846, %v2860
        %v2863 = vsub.f32 %v2853, %v2861
        %v2864 = vmul.f32 %v2862, %v2862
        %v2865 = vmul.f32 %v2863, %v2863
        %v2866 = vsel %vm493, %v2864, 0.0
        %2867 = vadd.xlane.f32.xlu0 %v2866
        %v2868 = vpop.xlane.xlu0 %2867
        %v2869 = vsel %vm493, %v2865, 0.0
        %2870 = vadd.xlane.f32.xlu0 %v2869
        %v2871 = vpop.xlane.xlu0 %2870
        %v2872 = vmul.f32 %v2868, %v500
        %v2873 = vmul.f32 %v2871, %v500
        %v2874 = vadd.f32 %v2872, 1e-06
        %v2875 = vadd.f32 %v2873, 1e-06
        %v2876 = vrsqrt.pop %v2874
        %v2877 = vrsqrt.pop %v2875
        %v2878 = vmul.f32 %v2862, %v2876
        %v2879 = vmul.f32 %v2863, %v2877
        %v2881 = vlaneseq
        %v2882 = vshrl.u32 %v2881, 7
        %v2883 = vsub.s32 0, %v2882
        %v2884 = vrot.slane %v2828, %v2883
        %v2886 = vmul.f32 %v2878, %v2884
        %v2887 = vmul.f32 %v2879, %v2884
        %v2889 = vlaneseq
        %v2890 = vshrl.u32 %v2889, 7
        %v2891 = vsub.s32 0, %v2890
        %v2892 = vrot.slane %v2829, %v2891
        %v2894 = vadd.f32 %v2886, %v2892
        %v2895 = vadd.f32 %v2887, %v2892
        %v2896 = vadd.f32 %v2846, 1e-06
        %v2897 = vadd.f32 %v2853, 1e-06
        %v2898 = vrcp.pop %v2896
        %v2899 = vmul.f32 %v2894, %v2898
        %v2900 = vrcp.pop %v2897
        %v2901 = vmul.f32 %v2895, %v2900
        %v2902 = vmul.f32 %v2822, %v2899
        %v2903 = vmul.f32 %v2823, %v2901
        %v2904 = vmul.f32 %v2824, %v2899
        %v2905 = vmul.f32 %v2825, %v2901
        %v2906 = vmul.f32 %v2826, %v2899
        %v2907 = vmul.f32 %v2827, %v2901
        %v2908 = vpack.c.bf16 %v2903, %v2902
        %v2909 = vpack.c.bf16 %v2905, %v2904
        %v2910 = vpack.c.bf16 %v2907, %v2906
        %v2911 = vld [vmem:[%s3] sm:$0xf]
        %v2912 = vld [vmem:[%s3 + $0x4] sm:$0xf]
        %v2913 = vld [vmem:[%s3 + $0x8] sm:$0xf]
        %v2914 = vld [vmem:[%s3 + $0xc] sm:$0xf]
        %v2919 = vunpack.c.l.b16 %v2911
        %v2920 = vunpack.c.l.b16 %v2912
        %v2921 = vunpack.c.l.b16 %v2913
        %v2922 = vunpack.c.l.b16 %v2914
        %v2923 = vpack.c.b16 %v2920, %v2919
        %v2924 = vpack.c.b16 %v2922, %v2921
        %v2928 = vsel %vm493, %v2908, 0
        %v2931 = vsel %vm493, %v2909, 0
        %v2934 = vsel %vm493, %v2910, 0
        %2936 = vmatprep.subr.bf16.mxu0 0
        %2937 = vmatpush1.bf16.msra.mxu0 0
        %2938 = vmatprep.subr.bf16.mxu0 0
        %2939 = vmatpush1.bf16.msra.mxu0 0
        %2940 = vmatprep.subr.bf16.mxu0 0
        %2941 = vmatpush1.bf16.msra.mxu0 0
        %2942 = vmatprep.subr.bf16.mxu0 0
        %2943 = vmatpush1.bf16.msra.mxu0 0
        %2944 = vmatprep.subr.bf16.mxu0 0
        %2945 = vmatpush1.bf16.msra.mxu0 0
        %2946 = vmatprep.subr.bf16.mxu0 0
        %2947 = vmatpush1.bf16.msra.mxu0 0
        %2948 = vmatprep.subr.bf16.mxu0 0
        %2949 = vmatpush1.bf16.msra.mxu0 %v2924
        %2950 = vmatprep.subr.bf16.mxu0 0
        %2951 = vmatpush1.bf16.msra.mxu0 %v2923
        %2952 = vmatprep.subr.bf16.mxu0 0
        %2953 = vmatpush2.bf16.msra.mxu0 0
        %2954 = vmatprep.subr.bf16.mxu0 0
        %2955 = vmatpush2.bf16.msra.mxu0 0
        %2956 = vmatprep.subr.bf16.mxu0 0
        %2957 = vmatpush2.bf16.msra.mxu0 0
        %2958 = vmatprep.subr.bf16.mxu0 0
        %2959 = vmatpush2.bf16.msra.mxu0 0
        %2960 = vmatprep.subr.bf16.mxu0 0
        %2961 = vmatpush2.bf16.msra.mxu0 0
        %2962 = vmatprep.subr.bf16.mxu0 0
        %2963 = vmatpush2.bf16.msra.mxu0 0
        %2964 = vmatprep.subr.bf16.mxu0 0
        %2965 = vmatpush2.bf16.msra.mxu0 0
        %2966 = vmatprep.subr.bf16.mxu0 0
        %2967 = vmatpush2.bf16.msra.mxu0 0
        %2968 = vmatprep.mubr.bf16.mxu0 0
        %2969 = vmatmul.mubr.bf16.gmra.mxu0 %v2928
        %v2970 = vpop.f32.mrf.mxu0
        %v2971 = vadd.f32 0.0, %v2970
        %v2972 = vpop.f32.mrf.mxu0
        %v2973 = vpop.f32.mrf.mxu0
        %v2974 = vadd.f32 0.0, %v2973
        %v2975 = vpop.f32.mrf.mxu0
        %2976 = vmatprep.mubr.bf16.mxu0 0
        %2977 = vmatmul.mubr.bf16.gmra.mxu0 %v2931
        %v2978 = vpop.f32.mrf.mxu0
        %v2979 = vadd.f32 0.0, %v2978
        %v2980 = vpop.f32.mrf.mxu0
        %v2981 = vpop.f32.mrf.mxu0
        %v2982 = vadd.f32 0.0, %v2981
        %v2983 = vpop.f32.mrf.mxu0
        %2984 = vmatprep.mubr.bf16.mxu0 0
        %2985 = vmatmul.mubr.bf16.gmra.mxu0 %v2934
        %v2986 = vpop.f32.mrf.mxu0
        %v2987 = vadd.f32 0.0, %v2986
        %v2988 = vpop.f32.mrf.mxu0
        %v2989 = vpop.f32.mrf.mxu0
        %v2990 = vadd.f32 0.0, %v2989
        %v2991 = vpop.f32.mrf.mxu0
        %2992 = vdwg.mxu0
        %v2993 = vpack.c.bf16 %v2974, %v2971
        %v2994 = vpack.c.bf16 %v2982, %v2979
        %v2995 = vpack.c.bf16 %v2990, %v2987
        %v2999 = vunpack.c.l.b16 %v2993
        %v3000 = vunpack.c.h.b16 %v2993
        %v3001 = vunpack.c.l.b16 %v2994
        %v3002 = vunpack.c.h.b16 %v2994
        %v3003 = vunpack.c.l.b16 %v2995
        %v3004 = vunpack.c.h.b16 %v2995
        %v3005 = vpack.c.b16 %v2999, %v2999
        %v3006 = vpack.c.b16 %v3000, %v3000
        %v3007 = vpack.c.b16 %v3001, %v3001
        %v3008 = vpack.c.b16 %v3002, %v3002
        %v3009 = vpack.c.b16 %v3003, %v3003
        %v3010 = vpack.c.b16 %v3004, %v3004
        %3017 = vst.msk [vmem:[#allocation2] sm:$0xf] %vm658, %v3005
        %3018 = vst.msk [vmem:[#allocation2 + $0x4] sm:$0xf] %vm658, %v3006
        %3019 = vst.msk [vmem:[#allocation2 + $0x8] sm:$0xf] %vm658, %v3007
        %3020 = vst.msk [vmem:[#allocation2 + $0xc] sm:$0xf] %vm658, %v3008
        %3021 = vst.msk [vmem:[#allocation2 + $0x10] sm:$0xf] %vm658, %v3009
        %3022 = vst.msk [vmem:[#allocation2 + $0x14] sm:$0xf] %vm658, %v3010
        %v3023 = vld [vmem:[#allocation2] sm:$0xf]
        %v3024 = vld [vmem:[#allocation2 + $0x4] sm:$0xf]
        %v3025 = vld [vmem:[#allocation2 + $0x8] sm:$0xf]
        %v3026 = vld [vmem:[#allocation2 + $0xc] sm:$0xf]
        %v3029 = vunpack.c.l.b16 %v3025
        %v3030 = vunpack.c.l.b16 %v3026
        %v3031 = vpack.c.b16 %v3030, %v3029
        %3032 = vrot.lane.b32.xlu0 %v3031, 96
        %v3033 = vpop.permute.xlu0 %3032
        %v3035 = vsel %vm676, %v3031, 0
        %v3038 = vsel %vm676, %v3033, 0
        %3040 = vmatprep.subr.bf16.mxu0 0
        %3041 = vmatpush1.bf16.xpose.msra.mxu0 0
        %3042 = vmatprep.subr.bf16.mxu0 0
        %3043 = vmatpush1.bf16.xpose.msra.mxu0 0
        %3044 = vmatprep.subr.bf16.mxu0 0
        %3045 = vmatpush1.bf16.xpose.msra.mxu0 0
        %3046 = vmatprep.subr.bf16.mxu0 0
        %3047 = vmatpush1.bf16.xpose.msra.mxu0 0
        %3048 = vmatprep.subr.bf16.mxu0 0
        %3049 = vmatpush1.bf16.xpose.msra.mxu0 0
        %3050 = vmatprep.subr.bf16.mxu0 0
        %3051 = vmatpush1.bf16.xpose.msra.mxu0 0
        %3052 = vmatprep.subr.bf16.mxu0 0
        %3053 = vmatpush1.bf16.xpose.msra.mxu0 0
        %3054 = vmatprep.subr.bf16.mxu0 0
        %3055 = vmatpush1.bf16.xpose.msra.mxu0 %v3038
        %3056 = vmatprep.subr.bf16.mxu0 0
        %3057 = vmatpush2.bf16.xpose.msra.mxu0 0
        %3058 = vmatprep.subr.bf16.mxu0 0
        %3059 = vmatpush2.bf16.xpose.msra.mxu0 0
        %3060 = vmatprep.subr.bf16.mxu0 0
        %3061 = vmatpush2.bf16.xpose.msra.mxu0 0
        %3062 = vmatprep.subr.bf16.mxu0 0
        %3063 = vmatpush2.bf16.xpose.msra.mxu0 0
        %3064 = vmatprep.subr.bf16.mxu0 0
        %3065 = vmatpush2.bf16.xpose.msra.mxu0 0
        %3066 = vmatprep.subr.bf16.mxu0 0
        %3067 = vmatpush2.bf16.xpose.msra.mxu0 0
        %3068 = vmatprep.subr.bf16.mxu0 0
        %3069 = vmatpush2.bf16.xpose.msra.mxu0 0
        %3070 = vmatprep.subr.bf16.mxu0 0
        %3071 = vmatpush2.bf16.xpose.msra.mxu0 0
        %3072 = vmatprep.mubr.bf16.mxu0 0
        %3073 = vmatmul.mubr.bf16.gmra.mxu0 %v3035
        %v3074 = vpop.f32.mrf.mxu0
        %v3075 = vadd.f32 0.0, %v3074
        %v3076 = vpop.f32.mrf.mxu0
        %v3077 = vpop.f32.mrf.mxu0
        %v3078 = vadd.f32 0.0, %v3077
        %v3079 = vpop.f32.mrf.mxu0
        %3080 = vdwg.mxu0
        %v3083 = vunpack.c.l.b16 %v3023
        %v3084 = vunpack.c.l.b16 %v3024
        %v3085 = vpack.c.b16 %v3084, %v3083
        %3086 = vrot.lane.b32.xlu0 %v3085, 96
        %v3087 = vpop.permute.xlu0 %3086
        %v3089 = vsel %vm676, %v3085, 0
        %v3092 = vsel %vm676, %v3087, 0
        %3094 = vmatprep.subr.bf16.mxu0 0
        %3095 = vmatpush1.bf16.xpose.msra.mxu0 0
        %3096 = vmatprep.subr.bf16.mxu0 0
        %3097 = vmatpush1.bf16.xpose.msra.mxu0 0
        %3098 = vmatprep.subr.bf16.mxu0 0
        %3099 = vmatpush1.bf16.xpose.msra.mxu0 0
        %3100 = vmatprep.subr.bf16.mxu0 0
        %3101 = vmatpush1.bf16.xpose.msra.mxu0 0
        %3102 = vmatprep.subr.bf16.mxu0 0
        %3103 = vmatpush1.bf16.xpose.msra.mxu0 0
        %3104 = vmatprep.subr.bf16.mxu0 0
        %3105 = vmatpush1.bf16.xpose.msra.mxu0 0
        %3106 = vmatprep.subr.bf16.mxu0 0
        %3107 = vmatpush1.bf16.xpose.msra.mxu0 0
        %3108 = vmatprep.subr.bf16.mxu0 0
        %3109 = vmatpush1.bf16.xpose.msra.mxu0 %v3092
        %3110 = vmatprep.subr.bf16.mxu0 0
        %3111 = vmatpush2.bf16.xpose.msra.mxu0 0
        %3112 = vmatprep.subr.bf16.mxu0 0
        %3113 = vmatpush2.bf16.xpose.msra.mxu0 0
        %3114 = vmatprep.subr.bf16.mxu0 0
        %3115 = vmatpush2.bf16.xpose.msra.mxu0 0
        %3116 = vmatprep.subr.bf16.mxu0 0
        %3117 = vmatpush2.bf16.xpose.msra.mxu0 0
        %3118 = vmatprep.subr.bf16.mxu0 0
        %3119 = vmatpush2.bf16.xpose.msra.mxu0 0
        %3120 = vmatprep.subr.bf16.mxu0 0
        %3121 = vmatpush2.bf16.xpose.msra.mxu0 0
        %3122 = vmatprep.subr.bf16.mxu0 0
        %3123 = vmatpush2.bf16.xpose.msra.mxu0 0
        %3124 = vmatprep.subr.bf16.mxu0 0
        %3125 = vmatpush2.bf16.xpose.msra.mxu0 0
        %3126 = vmatprep.mubr.bf16.mxu0 0
        %3127 = vmatmul.mubr.bf16.gmra.mxu0 %v3089
        %v3128 = vpop.f32.mrf.mxu0
        %v3129 = vadd.f32 %v3075, %v3128
        %v3130 = vpop.f32.mrf.mxu0
        %v3131 = vpop.f32.mrf.mxu0
        %v3132 = vadd.f32 %v3078, %v3131
        %v3133 = vpop.f32.mrf.mxu0
        %3134 = vdwg.mxu0
        %v3135 = vld [vmem:[#allocation2 + $0x10] sm:$0xf]
        %v3136 = vld [vmem:[#allocation2 + $0x14] sm:$0xf]
        %v3139 = vunpack.c.l.b16 %v3135
        %v3140 = vunpack.c.l.b16 %v3136
        %v3141 = vpack.c.b16 %v3140, %v3139
        %3142 = vrot.lane.b32.xlu0 %v3141, 96
        %v3143 = vpop.permute.xlu0 %3142
        %v3145 = vsel %vm676, %v3141, 0
        %v3148 = vsel %vm676, %v3143, 0
        %3150 = vmatprep.subr.bf16.mxu0 0
        %3151 = vmatpush1.bf16.xpose.msra.mxu0 0
        %3152 = vmatprep.subr.bf16.mxu0 0
        %3153 = vmatpush1.bf16.xpose.msra.mxu0 0
        %3154 = vmatprep.subr.bf16.mxu0 0
        %3155 = vmatpush1.bf16.xpose.msra.mxu0 0
        %3156 = vmatprep.subr.bf16.mxu0 0
        %3157 = vmatpush1.bf16.xpose.msra.mxu0 0
        %3158 = vmatprep.subr.bf16.mxu0 0
        %3159 = vmatpush1.bf16.xpose.msra.mxu0 0
        %3160 = vmatprep.subr.bf16.mxu0 0
        %3161 = vmatpush1.bf16.xpose.msra.mxu0 0
        %3162 = vmatprep.subr.bf16.mxu0 0
        %3163 = vmatpush1.bf16.xpose.msra.mxu0 0
        %3164 = vmatprep.subr.bf16.mxu0 0
        %3165 = vmatpush1.bf16.xpose.msra.mxu0 %v3148
        %3166 = vmatprep.subr.bf16.mxu0 0
        %3167 = vmatpush2.bf16.xpose.msra.mxu0 0
        %3168 = vmatprep.subr.bf16.mxu0 0
        %3169 = vmatpush2.bf16.xpose.msra.mxu0 0
        %3170 = vmatprep.subr.bf16.mxu0 0
        %3171 = vmatpush2.bf16.xpose.msra.mxu0 0
        %3172 = vmatprep.subr.bf16.mxu0 0
        %3173 = vmatpush2.bf16.xpose.msra.mxu0 0
        %3174 = vmatprep.subr.bf16.mxu0 0
        %3175 = vmatpush2.bf16.xpose.msra.mxu0 0
        %3176 = vmatprep.subr.bf16.mxu0 0
        %3177 = vmatpush2.bf16.xpose.msra.mxu0 0
        %3178 = vmatprep.subr.bf16.mxu0 0
        %3179 = vmatpush2.bf16.xpose.msra.mxu0 0
        %3180 = vmatprep.subr.bf16.mxu0 0
        %3181 = vmatpush2.bf16.xpose.msra.mxu0 0
        %3182 = vmatprep.mubr.bf16.mxu0 0
        %3183 = vmatmul.mubr.bf16.gmra.mxu0 %v3145
        %v3184 = vpop.f32.mrf.mxu0
        %v3185 = vadd.f32 0.0, %v3184
        %v3186 = vpop.f32.mrf.mxu0
        %v3187 = vpop.f32.mrf.mxu0
        %v3188 = vadd.f32 0.0, %v3187
        %v3189 = vpop.f32.mrf.mxu0
        %3190 = vdwg.mxu0
        %v3191 = vadd.f32 %v3129, %v3185
        %v3192 = vadd.f32 %v3132, %v3188
        %v3193 = vsel %vm836, %v3191, -inf
        %3194 = vmax.xlane.f32.xlu0 %v3193
        %v3195 = vpop.xlane.xlu0 %3194
        %v3196 = vsel %vm836, %v3192, -inf
        %3197 = vmax.xlane.f32.xlu0 %v3196
        %v3198 = vpop.xlane.xlu0 %3197
        %v3199 = vsub.f32 %v3191, %v3195
        %v3200 = vsub.f32 %v3192, %v3198
        %v3201 = vmul.f32 %v3199, 1.442695
        %v3202 = vpow.pop %v3201
        %v3203 = vmul.f32 %v3200, 1.442695
        %v3204 = vpow.pop %v3203
        %v3205 = vsel %vm836, %v3202, 0.0
        %3206 = vadd.xlane.f32.xlu0 %v3205
        %v3207 = vpop.xlane.xlu0 %3206
        %v3208 = vsel %vm836, %v3204, 0.0
        %3209 = vadd.xlane.f32.xlu0 %v3208
        %v3210 = vpop.xlane.xlu0 %3209
        %v3211 = vrcp.pop %v3207
        %v3212 = vrcp.pop %v3210
        %v3213 = vmul.f32 %v3202, %v3211
        %v3214 = vmul.f32 %v3204, %v3212
        %v3215 = vpack.c.bf16 %v3214, %v3213
        %3216 = vrot.lane.b32.xlu0 %v3085, 64
        %v3217 = vpop.permute.xlu0 %3216
        %v3220 = vsel %vm836, %v3215, 0
        %3222 = vmatprep.subr.bf16.mxu0 0
        %3223 = vmatpush1.bf16.msra.mxu0 0
        %3224 = vmatprep.subr.bf16.mxu0 0
        %3225 = vmatpush1.bf16.msra.mxu0 0
        %3226 = vmatprep.subr.bf16.mxu0 0
        %3227 = vmatpush1.bf16.msra.mxu0 0
        %3228 = vmatprep.subr.bf16.mxu0 0
        %3229 = vmatpush1.bf16.msra.mxu0 0
        %3230 = vmatprep.subr.bf16.mxu0 0
        %3231 = vmatpush1.bf16.msra.mxu0 0
        %3232 = vmatprep.subr.bf16.mxu0 0
        %3233 = vmatpush1.bf16.msra.mxu0 0
        %3234 = vmatprep.subr.bf16.mxu0 0
        %3235 = vmatpush1.bf16.msra.mxu0 0
        %3236 = vmatprep.subr.bf16.mxu0 0
        %3237 = vmatpush1.bf16.msra.mxu0 %v3217
        %3238 = vmatprep.subr.bf16.mxu0 0
        %3239 = vmatpush2.bf16.msra.mxu0 0
        %3240 = vmatprep.subr.bf16.mxu0 0
        %3241 = vmatpush2.bf16.msra.mxu0 0
        %3242 = vmatprep.subr.bf16.mxu0 0
        %3243 = vmatpush2.bf16.msra.mxu0 0
        %3244 = vmatprep.subr.bf16.mxu0 0
        %3245 = vmatpush2.bf16.msra.mxu0 0
        %3246 = vmatprep.subr.bf16.mxu0 0
        %3247 = vmatpush2.bf16.msra.mxu0 0
        %3248 = vmatprep.subr.bf16.mxu0 0
        %3249 = vmatpush2.bf16.msra.mxu0 0
        %3250 = vmatprep.subr.bf16.mxu0 0
        %3251 = vmatpush2.bf16.msra.mxu0 0
        %3252 = vmatprep.subr.bf16.mxu0 0
        %3253 = vmatpush2.bf16.msra.mxu0 0
        %3254 = vmatprep.mubr.bf16.mxu0 0
        %3255 = vmatmul.mubr.bf16.gmra.mxu0 %v3220
        %v3256 = vpop.f32.mrf.mxu0
        %v3257 = vadd.f32 0.0, %v3256
        %v3258 = vpop.f32.mrf.mxu0
        %v3259 = vpop.f32.mrf.mxu0
        %v3260 = vadd.f32 0.0, %v3259
        %v3261 = vpop.f32.mrf.mxu0
        %3262 = vdwg.mxu0
        %v3263 = vpack.c.bf16 %v3260, %v3257
        %v3265 = vunpack.c.l.b16 %v3263
        %v3266 = vunpack.c.h.b16 %v3263
        %v3267 = vpack.c.b16 %v3265, %v3265
        %v3268 = vpack.c.b16 %v3266, %v3266
        %3271 = vst.msk [vmem:[#allocation3] sm:$0xf] %vm915, %v3267
        %3272 = vst.msk [vmem:[#allocation3 + $0x4] sm:$0xf] %vm915, %v3268
        %v3273 = vld [vmem:[#allocation2 + $0x8] sm:$0xf]
        %v3274 = vld [vmem:[#allocation2 + $0xc] sm:$0xf]
        %v3277 = vunpack.c.l.b16 %v3273
        %v3278 = vunpack.c.l.b16 %v3274
        %v3279 = vpack.c.b16 %v3278, %v3277
        %3280 = vrot.lane.b32.xlu0 %v3279, 64
        %v3281 = vpop.permute.xlu0 %3280
        %3283 = vmatprep.subr.bf16.mxu0 0
        %3284 = vmatpush1.bf16.msra.mxu0 0
        %3285 = vmatprep.subr.bf16.mxu0 0
        %3286 = vmatpush1.bf16.msra.mxu0 0
        %3287 = vmatprep.subr.bf16.mxu0 0
        %3288 = vmatpush1.bf16.msra.mxu0 0
        %3289 = vmatprep.subr.bf16.mxu0 0
        %3290 = vmatpush1.bf16.msra.mxu0 0
        %3291 = vmatprep.subr.bf16.mxu0 0
        %3292 = vmatpush1.bf16.msra.mxu0 0
        %3293 = vmatprep.subr.bf16.mxu0 0
        %3294 = vmatpush1.bf16.msra.mxu0 0
        %3295 = vmatprep.subr.bf16.mxu0 0
        %3296 = vmatpush1.bf16.msra.mxu0 0
        %3297 = vmatprep.subr.bf16.mxu0 0
        %3298 = vmatpush1.bf16.msra.mxu0 %v3281
        %3299 = vmatprep.subr.bf16.mxu0 0
        %3300 = vmatpush2.bf16.msra.mxu0 0
        %3301 = vmatprep.subr.bf16.mxu0 0
        %3302 = vmatpush2.bf16.msra.mxu0 0
        %3303 = vmatprep.subr.bf16.mxu0 0
        %3304 = vmatpush2.bf16.msra.mxu0 0
        %3305 = vmatprep.subr.bf16.mxu0 0
        %3306 = vmatpush2.bf16.msra.mxu0 0
        %3307 = vmatprep.subr.bf16.mxu0 0
        %3308 = vmatpush2.bf16.msra.mxu0 0
        %3309 = vmatprep.subr.bf16.mxu0 0
        %3310 = vmatpush2.bf16.msra.mxu0 0
        %3311 = vmatprep.subr.bf16.mxu0 0
        %3312 = vmatpush2.bf16.msra.mxu0 0
        %3313 = vmatprep.subr.bf16.mxu0 0
        %3314 = vmatpush2.bf16.msra.mxu0 0
        %3315 = vmatprep.mubr.bf16.mxu0 0
        %3316 = vmatmul.mubr.bf16.gmra.mxu0 %v3220
        %v3317 = vpop.f32.mrf.mxu0
        %v3318 = vadd.f32 0.0, %v3317
        %v3319 = vpop.f32.mrf.mxu0
        %v3320 = vpop.f32.mrf.mxu0
        %v3321 = vadd.f32 0.0, %v3320
        %v3322 = vpop.f32.mrf.mxu0
        %3323 = vdwg.mxu0
        %v3324 = vpack.c.bf16 %v3321, %v3318
        %v3326 = vunpack.c.l.b16 %v3324
        %v3327 = vunpack.c.h.b16 %v3324
        %v3328 = vpack.c.b16 %v3326, %v3326
        %v3329 = vpack.c.b16 %v3327, %v3327
        %3332 = vst.msk [vmem:[#allocation3 + $0x8] sm:$0xf] %vm915, %v3328
        %3333 = vst.msk [vmem:[#allocation3 + $0xc] sm:$0xf] %vm915, %v3329
        %v3334 = vld [vmem:[#allocation2 + $0x10] sm:$0xf]
        %v3335 = vld [vmem:[#allocation2 + $0x14] sm:$0xf]
        %v3338 = vunpack.c.l.b16 %v3334
        %v3339 = vunpack.c.l.b16 %v3335
        %v3340 = vpack.c.b16 %v3339, %v3338
        %3341 = vrot.lane.b32.xlu0 %v3340, 64
        %v3342 = vpop.permute.xlu0 %3341
        %3344 = vmatprep.subr.bf16.mxu0 0
        %3345 = vmatpush1.bf16.msra.mxu0 0
        %3346 = vmatprep.subr.bf16.mxu0 0
        %3347 = vmatpush1.bf16.msra.mxu0 0
        %3348 = vmatprep.subr.bf16.mxu0 0
        %3349 = vmatpush1.bf16.msra.mxu0 0
        %3350 = vmatprep.subr.bf16.mxu0 0
        %3351 = vmatpush1.bf16.msra.mxu0 0
        %3352 = vmatprep.subr.bf16.mxu0 0
        %3353 = vmatpush1.bf16.msra.mxu0 0
        %3354 = vmatprep.subr.bf16.mxu0 0
        %3355 = vmatpush1.bf16.msra.mxu0 0
        %3356 = vmatprep.subr.bf16.mxu0 0
        %3357 = vmatpush1.bf16.msra.mxu0 0
        %3358 = vmatprep.subr.bf16.mxu0 0
        %3359 = vmatpush1.bf16.msra.mxu0 %v3342
        %3360 = vmatprep.subr.bf16.mxu0 0
        %3361 = vmatpush2.bf16.msra.mxu0 0
        %3362 = vmatprep.subr.bf16.mxu0 0
        %3363 = vmatpush2.bf16.msra.mxu0 0
        %3364 = vmatprep.subr.bf16.mxu0 0
        %3365 = vmatpush2.bf16.msra.mxu0 0
        %3366 = vmatprep.subr.bf16.mxu0 0
        %3367 = vmatpush2.bf16.msra.mxu0 0
        %3368 = vmatprep.subr.bf16.mxu0 0
        %3369 = vmatpush2.bf16.msra.mxu0 0
        %3370 = vmatprep.subr.bf16.mxu0 0
        %3371 = vmatpush2.bf16.msra.mxu0 0
        %3372 = vmatprep.subr.bf16.mxu0 0
        %3373 = vmatpush2.bf16.msra.mxu0 0
        %3374 = vmatprep.subr.bf16.mxu0 0
        %3375 = vmatpush2.bf16.msra.mxu0 0
        %3376 = vmatprep.mubr.bf16.mxu0 0
        %3377 = vmatmul.mubr.bf16.gmra.mxu0 %v3220
        %v3378 = vpop.f32.mrf.mxu0
        %v3379 = vadd.f32 0.0, %v3378
        %v3380 = vpop.f32.mrf.mxu0
        %v3381 = vpop.f32.mrf.mxu0
        %v3382 = vadd.f32 0.0, %v3381
        %v3383 = vpop.f32.mrf.mxu0
        %3384 = vdwg.mxu0
        %v3385 = vpack.c.bf16 %v3382, %v3379
        %v3387 = vunpack.c.l.b16 %v3385
        %v3388 = vunpack.c.h.b16 %v3385
        %v3389 = vpack.c.b16 %v3387, %v3387
        %v3390 = vpack.c.b16 %v3388, %v3388
        %3393 = vst.msk [vmem:[#allocation3 + $0x10] sm:$0xf] %vm915, %v3389
        %3394 = vst.msk [vmem:[#allocation3 + $0x14] sm:$0xf] %vm915, %v3390
        %v3395 = vld [vmem:[#allocation2] sm:$0xf]
        %v3396 = vld [vmem:[#allocation2 + $0x4] sm:$0xf]
        %v3397 = vld [vmem:[#allocation2 + $0x8] sm:$0xf]
        %v3398 = vld [vmem:[#allocation2 + $0xc] sm:$0xf]
        %v3401 = vunpack.c.l.b16 %v3397
        %v3402 = vunpack.c.l.b16 %v3398
        %v3403 = vpack.c.b16 %v3402, %v3401
        %3404 = vrot.lane.b32.xlu0 %v3403, 120
        %v3405 = vpop.permute.xlu0 %3404
        %3406 = vrot.lane.b32.xlu0 %v3403, 88
        %v3407 = vpop.permute.xlu0 %3406
        %v3409 = vsel %vm676, %v3405, 0
        %v3412 = vsel %vm676, %v3407, 0
        %3414 = vmatprep.subr.bf16.mxu0 0
        %3415 = vmatpush1.bf16.xpose.msra.mxu0 0
        %3416 = vmatprep.subr.bf16.mxu0 0
        %3417 = vmatpush1.bf16.xpose.msra.mxu0 0
        %3418 = vmatprep.subr.bf16.mxu0 0
        %3419 = vmatpush1.bf16.xpose.msra.mxu0 0
        %3420 = vmatprep.subr.bf16.mxu0 0
        %3421 = vmatpush1.bf16.xpose.msra.mxu0 0
        %3422 = vmatprep.subr.bf16.mxu0 0
        %3423 = vmatpush1.bf16.xpose.msra.mxu0 0
        %3424 = vmatprep.subr.bf16.mxu0 0
        %3425 = vmatpush1.bf16.xpose.msra.mxu0 0
        %3426 = vmatprep.subr.bf16.mxu0 0
        %3427 = vmatpush1.bf16.xpose.msra.mxu0 0
        %3428 = vmatprep.subr.bf16.mxu0 0
        %3429 = vmatpush1.bf16.xpose.msra.mxu0 %v3412
        %3430 = vmatprep.subr.bf16.mxu0 0
        %3431 = vmatpush2.bf16.xpose.msra.mxu0 0
        %3432 = vmatprep.subr.bf16.mxu0 0
        %3433 = vmatpush2.bf16.xpose.msra.mxu0 0
        %3434 = vmatprep.subr.bf16.mxu0 0
        %3435 = vmatpush2.bf16.xpose.msra.mxu0 0
        %3436 = vmatprep.subr.bf16.mxu0 0
        %3437 = vmatpush2.bf16.xpose.msra.mxu0 0
        %3438 = vmatprep.subr.bf16.mxu0 0
        %3439 = vmatpush2.bf16.xpose.msra.mxu0 0
        %3440 = vmatprep.subr.bf16.mxu0 0
        %3441 = vmatpush2.bf16.xpose.msra.mxu0 0
        %3442 = vmatprep.subr.bf16.mxu0 0
        %3443 = vmatpush2.bf16.xpose.msra.mxu0 0
        %3444 = vmatprep.subr.bf16.mxu0 0
        %3445 = vmatpush2.bf16.xpose.msra.mxu0 0
        %3446 = vmatprep.mubr.bf16.mxu0 0
        %3447 = vmatmul.mubr.bf16.gmra.mxu0 %v3409
        %v3448 = vpop.f32.mrf.mxu0
        %v3449 = vadd.f32 0.0, %v3448
        %v3450 = vpop.f32.mrf.mxu0
        %v3451 = vpop.f32.mrf.mxu0
        %v3452 = vadd.f32 0.0, %v3451
        %v3453 = vpop.f32.mrf.mxu0
        %3454 = vdwg.mxu0
        %v3457 = vunpack.c.l.b16 %v3395
        %v3458 = vunpack.c.l.b16 %v3396
        %v3459 = vpack.c.b16 %v3458, %v3457
        %3460 = vrot.lane.b32.xlu0 %v3459, 120
        %v3461 = vpop.permute.xlu0 %3460
        %3462 = vrot.lane.b32.xlu0 %v3459, 88
        %v3463 = vpop.permute.xlu0 %3462
        %v3465 = vsel %vm676, %v3461, 0
        %v3468 = vsel %vm676, %v3463, 0
        %3470 = vmatprep.subr.bf16.mxu0 0
        %3471 = vmatpush1.bf16.xpose.msra.mxu0 0
        %3472 = vmatprep.subr.bf16.mxu0 0
        %3473 = vmatpush1.bf16.xpose.msra.mxu0 0
        %3474 = vmatprep.subr.bf16.mxu0 0
        %3475 = vmatpush1.bf16.xpose.msra.mxu0 0
        %3476 = vmatprep.subr.bf16.mxu0 0
        %3477 = vmatpush1.bf16.xpose.msra.mxu0 0
        %3478 = vmatprep.subr.bf16.mxu0 0
        %3479 = vmatpush1.bf16.xpose.msra.mxu0 0
        %3480 = vmatprep.subr.bf16.mxu0 0
        %3481 = vmatpush1.bf16.xpose.msra.mxu0 0
        %3482 = vmatprep.subr.bf16.mxu0 0
        %3483 = vmatpush1.bf16.xpose.msra.mxu0 0
        %3484 = vmatprep.subr.bf16.mxu0 0
        %3485 = vmatpush1.bf16.xpose.msra.mxu0 %v3468
        %3486 = vmatprep.subr.bf16.mxu0 0
        %3487 = vmatpush2.bf16.xpose.msra.mxu0 0
        %3488 = vmatprep.subr.bf16.mxu0 0
        %3489 = vmatpush2.bf16.xpose.msra.mxu0 0
        %3490 = vmatprep.subr.bf16.mxu0 0
        %3491 = vmatpush2.bf16.xpose.msra.mxu0 0
        %3492 = vmatprep.subr.bf16.mxu0 0
        %3493 = vmatpush2.bf16.xpose.msra.mxu0 0
        %3494 = vmatprep.subr.bf16.mxu0 0
        %3495 = vmatpush2.bf16.xpose.msra.mxu0 0
        %3496 = vmatprep.subr.bf16.mxu0 0
        %3497 = vmatpush2.bf16.xpose.msra.mxu0 0
        %3498 = vmatprep.subr.bf16.mxu0 0
        %3499 = vmatpush2.bf16.xpose.msra.mxu0 0
        %3500 = vmatprep.subr.bf16.mxu0 0
        %3501 = vmatpush2.bf16.xpose.msra.mxu0 0
        %3502 = vmatprep.mubr.bf16.mxu0 0
        %3503 = vmatmul.mubr.bf16.gmra.mxu0 %v3465
        %v3504 = vpop.f32.mrf.mxu0
        %v3505 = vadd.f32 %v3449, %v3504
        %v3506 = vpop.f32.mrf.mxu0
        %v3507 = vpop.f32.mrf.mxu0
        %v3508 = vadd.f32 %v3452, %v3507
        %v3509 = vpop.f32.mrf.mxu0
        %3510 = vdwg.mxu0
        %v3511 = vld [vmem:[#allocation2 + $0x10] sm:$0xf]
        %v3512 = vld [vmem:[#allocation2 + $0x14] sm:$0xf]
        %v3515 = vunpack.c.l.b16 %v3511
        %v3516 = vunpack.c.l.b16 %v3512
        %v3517 = vpack.c.b16 %v3516, %v3515
        %3518 = vrot.lane.b32.xlu0 %v3517, 120
        %v3519 = vpop.permute.xlu0 %3518
        %3520 = vrot.lane.b32.xlu0 %v3517, 88
        %v3521 = vpop.permute.xlu0 %3520
        %v3523 = vsel %vm676, %v3519, 0
        %v3526 = vsel %vm676, %v3521, 0
        %3528 = vmatprep.subr.bf16.mxu0 0
        %3529 = vmatpush1.bf16.xpose.msra.mxu0 0
        %3530 = vmatprep.subr.bf16.mxu0 0
        %3531 = vmatpush1.bf16.xpose.msra.mxu0 0
        %3532 = vmatprep.subr.bf16.mxu0 0
        %3533 = vmatpush1.bf16.xpose.msra.mxu0 0
        %3534 = vmatprep.subr.bf16.mxu0 0
        %3535 = vmatpush1.bf16.xpose.msra.mxu0 0
        %3536 = vmatprep.subr.bf16.mxu0 0
        %3537 = vmatpush1.bf16.xpose.msra.mxu0 0
        %3538 = vmatprep.subr.bf16.mxu0 0
        %3539 = vmatpush1.bf16.xpose.msra.mxu0 0
        %3540 = vmatprep.subr.bf16.mxu0 0
        %3541 = vmatpush1.bf16.xpose.msra.mxu0 0
        %3542 = vmatprep.subr.bf16.mxu0 0
        %3543 = vmatpush1.bf16.xpose.msra.mxu0 %v3526
        %3544 = vmatprep.subr.bf16.mxu0 0
        %3545 = vmatpush2.bf16.xpose.msra.mxu0 0
        %3546 = vmatprep.subr.bf16.mxu0 0
        %3547 = vmatpush2.bf16.xpose.msra.mxu0 0
        %3548 = vmatprep.subr.bf16.mxu0 0
        %3549 = vmatpush2.bf16.xpose.msra.mxu0 0
        %3550 = vmatprep.subr.bf16.mxu0 0
        %3551 = vmatpush2.bf16.xpose.msra.mxu0 0
        %3552 = vmatprep.subr.bf16.mxu0 0
        %3553 = vmatpush2.bf16.xpose.msra.mxu0 0
        %3554 = vmatprep.subr.bf16.mxu0 0
        %3555 = vmatpush2.bf16.xpose.msra.mxu0 0
        %3556 = vmatprep.subr.bf16.mxu0 0
        %3557 = vmatpush2.bf16.xpose.msra.mxu0 0
        %3558 = vmatprep.subr.bf16.mxu0 0
        %3559 = vmatpush2.bf16.xpose.msra.mxu0 0
        %3560 = vmatprep.mubr.bf16.mxu0 0
        %3561 = vmatmul.mubr.bf16.gmra.mxu0 %v3523
        %v3562 = vpop.f32.mrf.mxu0
        %v3563 = vadd.f32 0.0, %v3562
        %v3564 = vpop.f32.mrf.mxu0
        %v3565 = vpop.f32.mrf.mxu0
        %v3566 = vadd.f32 0.0, %v3565
        %v3567 = vpop.f32.mrf.mxu0
        %3568 = vdwg.mxu0
        %v3569 = vadd.f32 %v3505, %v3563
        %v3570 = vadd.f32 %v3508, %v3566
        %v3571 = vsel %vm836, %v3569, -inf
        %3572 = vmax.xlane.f32.xlu0 %v3571
        %v3573 = vpop.xlane.xlu0 %3572
        %v3574 = vsel %vm836, %v3570, -inf
        %3575 = vmax.xlane.f32.xlu0 %v3574
        %v3576 = vpop.xlane.xlu0 %3575
        %v3577 = vsub.f32 %v3569, %v3573
        %v3578 = vsub.f32 %v3570, %v3576
        %v3579 = vmul.f32 %v3577, 1.442695
        %v3580 = vpow.pop %v3579
        %v3581 = vmul.f32 %v3578, 1.442695
        %v3582 = vpow.pop %v3581
        %v3583 = vsel %vm836, %v3580, 0.0
        %3584 = vadd.xlane.f32.xlu0 %v3583
        %v3585 = vpop.xlane.xlu0 %3584
        %v3586 = vsel %vm836, %v3582, 0.0
        %3587 = vadd.xlane.f32.xlu0 %v3586
        %v3588 = vpop.xlane.xlu0 %3587
        %v3589 = vrcp.pop %v3585
        %v3590 = vrcp.pop %v3588
        %v3591 = vmul.f32 %v3580, %v3589
        %v3592 = vmul.f32 %v3582, %v3590
        %v3593 = vpack.c.bf16 %v3592, %v3591
        %3594 = vrot.lane.b32.xlu0 %v3459, 56
        %v3595 = vpop.permute.xlu0 %3594
        %v3598 = vsel %vm836, %v3593, 0
        %3600 = vmatprep.subr.bf16.mxu0 0
        %3601 = vmatpush1.bf16.msra.mxu0 0
        %3602 = vmatprep.subr.bf16.mxu0 0
        %3603 = vmatpush1.bf16.msra.mxu0 0
        %3604 = vmatprep.subr.bf16.mxu0 0
        %3605 = vmatpush1.bf16.msra.mxu0 0
        %3606 = vmatprep.subr.bf16.mxu0 0
        %3607 = vmatpush1.bf16.msra.mxu0 0
        %3608 = vmatprep.subr.bf16.mxu0 0
        %3609 = vmatpush1.bf16.msra.mxu0 0
        %3610 = vmatprep.subr.bf16.mxu0 0
        %3611 = vmatpush1.bf16.msra.mxu0 0
        %3612 = vmatprep.subr.bf16.mxu0 0
        %3613 = vmatpush1.bf16.msra.mxu0 0
        %3614 = vmatprep.subr.bf16.mxu0 0
        %3615 = vmatpush1.bf16.msra.mxu0 %v3595
        %3616 = vmatprep.subr.bf16.mxu0 0
        %3617 = vmatpush2.bf16.msra.mxu0 0
        %3618 = vmatprep.subr.bf16.mxu0 0
        %3619 = vmatpush2.bf16.msra.mxu0 0
        %3620 = vmatprep.subr.bf16.mxu0 0
        %3621 = vmatpush2.bf16.msra.mxu0 0
        %3622 = vmatprep.subr.bf16.mxu0 0
        %3623 = vmatpush2.bf16.msra.mxu0 0
        %3624 = vmatprep.subr.bf16.mxu0 0
        %3625 = vmatpush2.bf16.msra.mxu0 0
        %3626 = vmatprep.subr.bf16.mxu0 0
        %3627 = vmatpush2.bf16.msra.mxu0 0
        %3628 = vmatprep.subr.bf16.mxu0 0
        %3629 = vmatpush2.bf16.msra.mxu0 0
        %3630 = vmatprep.subr.bf16.mxu0 0
        %3631 = vmatpush2.bf16.msra.mxu0 0
        %3632 = vmatprep.mubr.bf16.mxu0 0
        %3633 = vmatmul.mubr.bf16.gmra.mxu0 %v3598
        %v3634 = vpop.f32.mrf.mxu0
        %v3635 = vadd.f32 0.0, %v3634
        %v3636 = vpop.f32.mrf.mxu0
        %v3637 = vpop.f32.mrf.mxu0
        %v3638 = vadd.f32 0.0, %v3637
        %v3639 = vpop.f32.mrf.mxu0
        %3640 = vdwg.mxu0
        %v3641 = vpack.c.bf16 %v3638, %v3635
        %v3643 = vunpack.c.l.b16 %v3641
        %v3644 = vunpack.c.h.b16 %v3641
        %v3645 = vpack.c.b16 %v3643, %v3643
        %v3646 = vpack.c.b16 %v3644, %v3644
        %3647 = vrot.lane.b32.xlu0 %v3645, 8
        %v3648 = vpop.permute.xlu0 %3647
        %3649 = vrot.lane.b32.xlu0 %v3646, 8
        %v3650 = vpop.permute.xlu0 %3649
        %3653 = vst.msk [vmem:[#allocation3] sm:$0xf] %vm1298, %v3648
        %3654 = vst.msk [vmem:[#allocation3 + $0x4] sm:$0xf] %vm1298, %v3650
        %v3655 = vld [vmem:[#allocation2 + $0x8] sm:$0xf]
        %v3656 = vld [vmem:[#allocation2 + $0xc] sm:$0xf]
        %v3659 = vunpack.c.l.b16 %v3655
        %v3660 = vunpack.c.l.b16 %v3656
        %v3661 = vpack.c.b16 %v3660, %v3659
        %3662 = vrot.lane.b32.xlu0 %v3661, 56
        %v3663 = vpop.permute.xlu0 %3662
        %3665 = vmatprep.subr.bf16.mxu0 0
        %3666 = vmatpush1.bf16.msra.mxu0 0
        %3667 = vmatprep.subr.bf16.mxu0 0
        %3668 = vmatpush1.bf16.msra.mxu0 0
        %3669 = vmatprep.subr.bf16.mxu0 0
        %3670 = vmatpush1.bf16.msra.mxu0 0
        %3671 = vmatprep.subr.bf16.mxu0 0
        %3672 = vmatpush1.bf16.msra.mxu0 0
        %3673 = vmatprep.subr.bf16.mxu0 0
        %3674 = vmatpush1.bf16.msra.mxu0 0
        %3675 = vmatprep.subr.bf16.mxu0 0
        %3676 = vmatpush1.bf16.msra.mxu0 0
        %3677 = vmatprep.subr.bf16.mxu0 0
        %3678 = vmatpush1.bf16.msra.mxu0 0
        %3679 = vmatprep.subr.bf16.mxu0 0
        %3680 = vmatpush1.bf16.msra.mxu0 %v3663
        %3681 = vmatprep.subr.bf16.mxu0 0
        %3682 = vmatpush2.bf16.msra.mxu0 0
        %3683 = vmatprep.subr.bf16.mxu0 0
        %3684 = vmatpush2.bf16.msra.mxu0 0
        %3685 = vmatprep.subr.bf16.mxu0 0
        %3686 = vmatpush2.bf16.msra.mxu0 0
        %3687 = vmatprep.subr.bf16.mxu0 0
        %3688 = vmatpush2.bf16.msra.mxu0 0
        %3689 = vmatprep.subr.bf16.mxu0 0
        %3690 = vmatpush2.bf16.msra.mxu0 0
        %3691 = vmatprep.subr.bf16.mxu0 0
        %3692 = vmatpush2.bf16.msra.mxu0 0
        %3693 = vmatprep.subr.bf16.mxu0 0
        %3694 = vmatpush2.bf16.msra.mxu0 0
        %3695 = vmatprep.subr.bf16.mxu0 0
        %3696 = vmatpush2.bf16.msra.mxu0 0
        %3697 = vmatprep.mubr.bf16.mxu0 0
        %3698 = vmatmul.mubr.bf16.gmra.mxu0 %v3598
        %v3699 = vpop.f32.mrf.mxu0
        %v3700 = vadd.f32 0.0, %v3699
        %v3701 = vpop.f32.mrf.mxu0
        %v3702 = vpop.f32.mrf.mxu0
        %v3703 = vadd.f32 0.0, %v3702
        %v3704 = vpop.f32.mrf.mxu0
        %3705 = vdwg.mxu0
        %v3706 = vpack.c.bf16 %v3703, %v3700
        %v3708 = vunpack.c.l.b16 %v3706
        %v3709 = vunpack.c.h.b16 %v3706
        %v3710 = vpack.c.b16 %v3708, %v3708
        %v3711 = vpack.c.b16 %v3709, %v3709
        %3712 = vrot.lane.b32.xlu0 %v3710, 8
        %v3713 = vpop.permute.xlu0 %3712
        %3714 = vrot.lane.b32.xlu0 %v3711, 8
        %v3715 = vpop.permute.xlu0 %3714
        %3718 = vst.msk [vmem:[#allocation3 + $0x8] sm:$0xf] %vm1298, %v3713
        %3719 = vst.msk [vmem:[#allocation3 + $0xc] sm:$0xf] %vm1298, %v3715
        %v3720 = vld [vmem:[#allocation2 + $0x10] sm:$0xf]
        %v3721 = vld [vmem:[#allocation2 + $0x14] sm:$0xf]
        %v3724 = vunpack.c.l.b16 %v3720
        %v3725 = vunpack.c.l.b16 %v3721
        %v3726 = vpack.c.b16 %v3725, %v3724
        %3727 = vrot.lane.b32.xlu0 %v3726, 56
        %v3728 = vpop.permute.xlu0 %3727
        %3730 = vmatprep.subr.bf16.mxu0 0
        %3731 = vmatpush1.bf16.msra.mxu0 0
        %3732 = vmatprep.subr.bf16.mxu0 0
        %3733 = vmatpush1.bf16.msra.mxu0 0
        %3734 = vmatprep.subr.bf16.mxu0 0
        %3735 = vmatpush1.bf16.msra.mxu0 0
        %3736 = vmatprep.subr.bf16.mxu0 0
        %3737 = vmatpush1.bf16.msra.mxu0 0
        %3738 = vmatprep.subr.bf16.mxu0 0
        %3739 = vmatpush1.bf16.msra.mxu0 0
        %3740 = vmatprep.subr.bf16.mxu0 0
        %3741 = vmatpush1.bf16.msra.mxu0 0
        %3742 = vmatprep.subr.bf16.mxu0 0
        %3743 = vmatpush1.bf16.msra.mxu0 0
        %3744 = vmatprep.subr.bf16.mxu0 0
        %3745 = vmatpush1.bf16.msra.mxu0 %v3728
        %3746 = vmatprep.subr.bf16.mxu0 0
        %3747 = vmatpush2.bf16.msra.mxu0 0
        %3748 = vmatprep.subr.bf16.mxu0 0
        %3749 = vmatpush2.bf16.msra.mxu0 0
        %3750 = vmatprep.subr.bf16.mxu0 0
        %3751 = vmatpush2.bf16.msra.mxu0 0
        %3752 = vmatprep.subr.bf16.mxu0 0
        %3753 = vmatpush2.bf16.msra.mxu0 0
        %3754 = vmatprep.subr.bf16.mxu0 0
        %3755 = vmatpush2.bf16.msra.mxu0 0
        %3756 = vmatprep.subr.bf16.mxu0 0
        %3757 = vmatpush2.bf16.msra.mxu0 0
        %3758 = vmatprep.subr.bf16.mxu0 0
        %3759 = vmatpush2.bf16.msra.mxu0 0
        %3760 = vmatprep.subr.bf16.mxu0 0
        %3761 = vmatpush2.bf16.msra.mxu0 0
        %3762 = vmatprep.mubr.bf16.mxu0 0
        %3763 = vmatmul.mubr.bf16.gmra.mxu0 %v3598
        %v3764 = vpop.f32.mrf.mxu0
        %v3765 = vadd.f32 0.0, %v3764
        %v3766 = vpop.f32.mrf.mxu0
        %v3767 = vpop.f32.mrf.mxu0
        %v3768 = vadd.f32 0.0, %v3767
        %v3769 = vpop.f32.mrf.mxu0
        %3770 = vdwg.mxu0
        %v3771 = vpack.c.bf16 %v3768, %v3765
        %v3773 = vunpack.c.l.b16 %v3771
        %v3774 = vunpack.c.h.b16 %v3771
        %v3775 = vpack.c.b16 %v3773, %v3773
        %v3776 = vpack.c.b16 %v3774, %v3774
        %3777 = vrot.lane.b32.xlu0 %v3775, 8
        %v3778 = vpop.permute.xlu0 %3777
        %3779 = vrot.lane.b32.xlu0 %v3776, 8
        %v3780 = vpop.permute.xlu0 %3779
        %3783 = vst.msk [vmem:[#allocation3 + $0x10] sm:$0xf] %vm1298, %v3778
        %3784 = vst.msk [vmem:[#allocation3 + $0x14] sm:$0xf] %vm1298, %v3780
        %v3785 = vld [vmem:[#allocation2] sm:$0xf]
        %v3786 = vld [vmem:[#allocation2 + $0x4] sm:$0xf]
        %v3787 = vld [vmem:[#allocation2 + $0x8] sm:$0xf]
        %v3788 = vld [vmem:[#allocation2 + $0xc] sm:$0xf]
        %v3791 = vunpack.c.l.b16 %v3787
        %v3792 = vunpack.c.l.b16 %v3788
        %v3793 = vpack.c.b16 %v3792, %v3791
        %3794 = vrot.lane.b32.xlu0 %v3793, 112
        %v3795 = vpop.permute.xlu0 %3794
        %3796 = vrot.lane.b32.xlu0 %v3793, 80
        %v3797 = vpop.permute.xlu0 %3796
        %v3799 = vsel %vm676, %v3795, 0
        %v3802 = vsel %vm676, %v3797, 0
        %3804 = vmatprep.subr.bf16.mxu0 0
        %3805 = vmatpush1.bf16.xpose.msra.mxu0 0
        %3806 = vmatprep.subr.bf16.mxu0 0
        %3807 = vmatpush1.bf16.xpose.msra.mxu0 0
        %3808 = vmatprep.subr.bf16.mxu0 0
        %3809 = vmatpush1.bf16.xpose.msra.mxu0 0
        %3810 = vmatprep.subr.bf16.mxu0 0
        %3811 = vmatpush1.bf16.xpose.msra.mxu0 0
        %3812 = vmatprep.subr.bf16.mxu0 0
        %3813 = vmatpush1.bf16.xpose.msra.mxu0 0
        %3814 = vmatprep.subr.bf16.mxu0 0
        %3815 = vmatpush1.bf16.xpose.msra.mxu0 0
        %3816 = vmatprep.subr.bf16.mxu0 0
        %3817 = vmatpush1.bf16.xpose.msra.mxu0 0
        %3818 = vmatprep.subr.bf16.mxu0 0
        %3819 = vmatpush1.bf16.xpose.msra.mxu0 %v3802
        %3820 = vmatprep.subr.bf16.mxu0 0
        %3821 = vmatpush2.bf16.xpose.msra.mxu0 0
        %3822 = vmatprep.subr.bf16.mxu0 0
        %3823 = vmatpush2.bf16.xpose.msra.mxu0 0
        %3824 = vmatprep.subr.bf16.mxu0 0
        %3825 = vmatpush2.bf16.xpose.msra.mxu0 0
        %3826 = vmatprep.subr.bf16.mxu0 0
        %3827 = vmatpush2.bf16.xpose.msra.mxu0 0
        %3828 = vmatprep.subr.bf16.mxu0 0
        %3829 = vmatpush2.bf16.xpose.msra.mxu0 0
        %3830 = vmatprep.subr.bf16.mxu0 0
        %3831 = vmatpush2.bf16.xpose.msra.mxu0 0
        %3832 = vmatprep.subr.bf16.mxu0 0
        %3833 = vmatpush2.bf16.xpose.msra.mxu0 0
        %3834 = vmatprep.subr.bf16.mxu0 0
        %3835 = vmatpush2.bf16.xpose.msra.mxu0 0
        %3836 = vmatprep.mubr.bf16.mxu0 0
        %3837 = vmatmul.mubr.bf16.gmra.mxu0 %v3799
        %v3838 = vpop.f32.mrf.mxu0
        %v3839 = vadd.f32 0.0, %v3838
        %v3840 = vpop.f32.mrf.mxu0
        %v3841 = vpop.f32.mrf.mxu0
        %v3842 = vadd.f32 0.0, %v3841
        %v3843 = vpop.f32.mrf.mxu0
        %3844 = vdwg.mxu0
        %v3847 = vunpack.c.l.b16 %v3785
        %v3848 = vunpack.c.l.b16 %v3786
        %v3849 = vpack.c.b16 %v3848, %v3847
        %3850 = vrot.lane.b32.xlu0 %v3849, 112
        %v3851 = vpop.permute.xlu0 %3850
        %3852 = vrot.lane.b32.xlu0 %v3849, 80
        %v3853 = vpop.permute.xlu0 %3852
        %v3855 = vsel %vm676, %v3851, 0
        %v3858 = vsel %vm676, %v3853, 0
        %3860 = vmatprep.subr.bf16.mxu0 0
        %3861 = vmatpush1.bf16.xpose.msra.mxu0 0
        %3862 = vmatprep.subr.bf16.mxu0 0
        %3863 = vmatpush1.bf16.xpose.msra.mxu0 0
        %3864 = vmatprep.subr.bf16.mxu0 0
        %3865 = vmatpush1.bf16.xpose.msra.mxu0 0
        %3866 = vmatprep.subr.bf16.mxu0 0
        %3867 = vmatpush1.bf16.xpose.msra.mxu0 0
        %3868 = vmatprep.subr.bf16.mxu0 0
        %3869 = vmatpush1.bf16.xpose.msra.mxu0 0
        %3870 = vmatprep.subr.bf16.mxu0 0
        %3871 = vmatpush1.bf16.xpose.msra.mxu0 0
        %3872 = vmatprep.subr.bf16.mxu0 0
        %3873 = vmatpush1.bf16.xpose.msra.mxu0 0
        %3874 = vmatprep.subr.bf16.mxu0 0
        %3875 = vmatpush1.bf16.xpose.msra.mxu0 %v3858
        %3876 = vmatprep.subr.bf16.mxu0 0
        %3877 = vmatpush2.bf16.xpose.msra.mxu0 0
        %3878 = vmatprep.subr.bf16.mxu0 0
        %3879 = vmatpush2.bf16.xpose.msra.mxu0 0
        %3880 = vmatprep.subr.bf16.mxu0 0
        %3881 = vmatpush2.bf16.xpose.msra.mxu0 0
        %3882 = vmatprep.subr.bf16.mxu0 0
        %3883 = vmatpush2.bf16.xpose.msra.mxu0 0
        %3884 = vmatprep.subr.bf16.mxu0 0
        %3885 = vmatpush2.bf16.xpose.msra.mxu0 0
        %3886 = vmatprep.subr.bf16.mxu0 0
        %3887 = vmatpush2.bf16.xpose.msra.mxu0 0
        %3888 = vmatprep.subr.bf16.mxu0 0
        %3889 = vmatpush2.bf16.xpose.msra.mxu0 0
        %3890 = vmatprep.subr.bf16.mxu0 0
        %3891 = vmatpush2.bf16.xpose.msra.mxu0 0
        %3892 = vmatprep.mubr.bf16.mxu0 0
        %3893 = vmatmul.mubr.bf16.gmra.mxu0 %v3855
        %v3894 = vpop.f32.mrf.mxu0
        %v3895 = vadd.f32 %v3839, %v3894
        %v3896 = vpop.f32.mrf.mxu0
        %v3897 = vpop.f32.mrf.mxu0
        %v3898 = vadd.f32 %v3842, %v3897
        %v3899 = vpop.f32.mrf.mxu0
        %3900 = vdwg.mxu0
        %v3901 = vld [vmem:[#allocation2 + $0x10] sm:$0xf]
        %v3902 = vld [vmem:[#allocation2 + $0x14] sm:$0xf]
        %v3905 = vunpack.c.l.b16 %v3901
        %v3906 = vunpack.c.l.b16 %v3902
        %v3907 = vpack.c.b16 %v3906, %v3905
        %3908 = vrot.lane.b32.xlu0 %v3907, 112
        %v3909 = vpop.permute.xlu0 %3908
        %3910 = vrot.lane.b32.xlu0 %v3907, 80
        %v3911 = vpop.permute.xlu0 %3910
        %v3913 = vsel %vm676, %v3909, 0
        %v3916 = vsel %vm676, %v3911, 0
        %3918 = vmatprep.subr.bf16.mxu0 0
        %3919 = vmatpush1.bf16.xpose.msra.mxu0 0
        %3920 = vmatprep.subr.bf16.mxu0 0
        %3921 = vmatpush1.bf16.xpose.msra.mxu0 0
        %3922 = vmatprep.subr.bf16.mxu0 0
        %3923 = vmatpush1.bf16.xpose.msra.mxu0 0
        %3924 = vmatprep.subr.bf16.mxu0 0
        %3925 = vmatpush1.bf16.xpose.msra.mxu0 0
        %3926 = vmatprep.subr.bf16.mxu0 0
        %3927 = vmatpush1.bf16.xpose.msra.mxu0 0
        %3928 = vmatprep.subr.bf16.mxu0 0
        %3929 = vmatpush1.bf16.xpose.msra.mxu0 0
        %3930 = vmatprep.subr.bf16.mxu0 0
        %3931 = vmatpush1.bf16.xpose.msra.mxu0 0
        %3932 = vmatprep.subr.bf16.mxu0 0
        %3933 = vmatpush1.bf16.xpose.msra.mxu0 %v3916
        %3934 = vmatprep.subr.bf16.mxu0 0
        %3935 = vmatpush2.bf16.xpose.msra.mxu0 0
        %3936 = vmatprep.subr.bf16.mxu0 0
        %3937 = vmatpush2.bf16.xpose.msra.mxu0 0
        %3938 = vmatprep.subr.bf16.mxu0 0
        %3939 = vmatpush2.bf16.xpose.msra.mxu0 0
        %3940 = vmatprep.subr.bf16.mxu0 0
        %3941 = vmatpush2.bf16.xpose.msra.mxu0 0
        %3942 = vmatprep.subr.bf16.mxu0 0
        %3943 = vmatpush2.bf16.xpose.msra.mxu0 0
        %3944 = vmatprep.subr.bf16.mxu0 0
        %3945 = vmatpush2.bf16.xpose.msra.mxu0 0
        %3946 = vmatprep.subr.bf16.mxu0 0
        %3947 = vmatpush2.bf16.xpose.msra.mxu0 0
        %3948 = vmatprep.subr.bf16.mxu0 0
        %3949 = vmatpush2.bf16.xpose.msra.mxu0 0
        %3950 = vmatprep.mubr.bf16.mxu0 0
        %3951 = vmatmul.mubr.bf16.gmra.mxu0 %v3913
        %v3952 = vpop.f32.mrf.mxu0
        %v3953 = vadd.f32 0.0, %v3952
        %v3954 = vpop.f32.mrf.mxu0
        %v3955 = vpop.f32.mrf.mxu0
        %v3956 = vadd.f32 0.0, %v3955
        %v3957 = vpop.f32.mrf.mxu0
        %3958 = vdwg.mxu0
        %v3959 = vadd.f32 %v3895, %v3953
        %v3960 = vadd.f32 %v3898, %v3956
        %v3961 = vsel %vm836, %v3959, -inf
        %3962 = vmax.xlane.f32.xlu0 %v3961
        %v3963 = vpop.xlane.xlu0 %3962
        %v3964 = vsel %vm836, %v3960, -inf
        %3965 = vmax.xlane.f32.xlu0 %v3964
        %v3966 = vpop.xlane.xlu0 %3965
        %v3967 = vsub.f32 %v3959, %v3963
        %v3968 = vsub.f32 %v3960, %v3966
        %v3969 = vmul.f32 %v3967, 1.442695
        %v3970 = vpow.pop %v3969
        %v3971 = vmul.f32 %v3968, 1.442695
        %v3972 = vpow.pop %v3971
        %v3973 = vsel %vm836, %v3970, 0.0
        %3974 = vadd.xlane.f32.xlu0 %v3973
        %v3975 = vpop.xlane.xlu0 %3974
        %v3976 = vsel %vm836, %v3972, 0.0
        %3977 = vadd.xlane.f32.xlu0 %v3976
        %v3978 = vpop.xlane.xlu0 %3977
        %v3979 = vrcp.pop %v3975
        %v3980 = vrcp.pop %v3978
        %v3981 = vmul.f32 %v3970, %v3979
        %v3982 = vmul.f32 %v3972, %v3980
        %v3983 = vpack.c.bf16 %v3982, %v3981
        %3984 = vrot.lane.b32.xlu0 %v3849, 48
        %v3985 = vpop.permute.xlu0 %3984
        %v3988 = vsel %vm836, %v3983, 0
        %3990 = vmatprep.subr.bf16.mxu0 0
        %3991 = vmatpush1.bf16.msra.mxu0 0
        %3992 = vmatprep.subr.bf16.mxu0 0
        %3993 = vmatpush1.bf16.msra.mxu0 0
        %3994 = vmatprep.subr.bf16.mxu0 0
        %3995 = vmatpush1.bf16.msra.mxu0 0
        %3996 = vmatprep.subr.bf16.mxu0 0
        %3997 = vmatpush1.bf16.msra.mxu0 0
        %3998 = vmatprep.subr.bf16.mxu0 0
        %3999 = vmatpush1.bf16.msra.mxu0 0
        %4000 = vmatprep.subr.bf16.mxu0 0
        %4001 = vmatpush1.bf16.msra.mxu0 0
        %4002 = vmatprep.subr.bf16.mxu0 0
        %4003 = vmatpush1.bf16.msra.mxu0 0
        %4004 = vmatprep.subr.bf16.mxu0 0
        %4005 = vmatpush1.bf16.msra.mxu0 %v3985
        %4006 = vmatprep.subr.bf16.mxu0 0
        %4007 = vmatpush2.bf16.msra.mxu0 0
        %4008 = vmatprep.subr.bf16.mxu0 0
        %4009 = vmatpush2.bf16.msra.mxu0 0
        %4010 = vmatprep.subr.bf16.mxu0 0
        %4011 = vmatpush2.bf16.msra.mxu0 0
        %4012 = vmatprep.subr.bf16.mxu0 0
        %4013 = vmatpush2.bf16.msra.mxu0 0
        %4014 = vmatprep.subr.bf16.mxu0 0
        %4015 = vmatpush2.bf16.msra.mxu0 0
        %4016 = vmatprep.subr.bf16.mxu0 0
        %4017 = vmatpush2.bf16.msra.mxu0 0
        %4018 = vmatprep.subr.bf16.mxu0 0
        %4019 = vmatpush2.bf16.msra.mxu0 0
        %4020 = vmatprep.subr.bf16.mxu0 0
        %4021 = vmatpush2.bf16.msra.mxu0 0
        %4022 = vmatprep.mubr.bf16.mxu0 0
        %4023 = vmatmul.mubr.bf16.gmra.mxu0 %v3988
        %v4024 = vpop.f32.mrf.mxu0
        %v4025 = vadd.f32 0.0, %v4024
        %v4026 = vpop.f32.mrf.mxu0
        %v4027 = vpop.f32.mrf.mxu0
        %v4028 = vadd.f32 0.0, %v4027
        %v4029 = vpop.f32.mrf.mxu0
        %4030 = vdwg.mxu0
        %v4031 = vpack.c.bf16 %v4028, %v4025
        %v4033 = vunpack.c.l.b16 %v4031
        %v4034 = vunpack.c.h.b16 %v4031
        %v4035 = vpack.c.b16 %v4033, %v4033
        %v4036 = vpack.c.b16 %v4034, %v4034
        %4037 = vrot.lane.b32.xlu0 %v4035, 16
        %v4038 = vpop.permute.xlu0 %4037
        %4039 = vrot.lane.b32.xlu0 %v4036, 16
        %v4040 = vpop.permute.xlu0 %4039
        %4043 = vst.msk [vmem:[#allocation3] sm:$0xf] %vm1689, %v4038
        %4044 = vst.msk [vmem:[#allocation3 + $0x4] sm:$0xf] %vm1689, %v4040
        %v4045 = vld [vmem:[#allocation2 + $0x8] sm:$0xf]
        %v4046 = vld [vmem:[#allocation2 + $0xc] sm:$0xf]
        %v4049 = vunpack.c.l.b16 %v4045
        %v4050 = vunpack.c.l.b16 %v4046
        %v4051 = vpack.c.b16 %v4050, %v4049
        %4052 = vrot.lane.b32.xlu0 %v4051, 48
        %v4053 = vpop.permute.xlu0 %4052
        %4055 = vmatprep.subr.bf16.mxu0 0
        %4056 = vmatpush1.bf16.msra.mxu0 0
        %4057 = vmatprep.subr.bf16.mxu0 0
        %4058 = vmatpush1.bf16.msra.mxu0 0
        %4059 = vmatprep.subr.bf16.mxu0 0
        %4060 = vmatpush1.bf16.msra.mxu0 0
        %4061 = vmatprep.subr.bf16.mxu0 0
        %4062 = vmatpush1.bf16.msra.mxu0 0
        %4063 = vmatprep.subr.bf16.mxu0 0
        %4064 = vmatpush1.bf16.msra.mxu0 0
        %4065 = vmatprep.subr.bf16.mxu0 0
        %4066 = vmatpush1.bf16.msra.mxu0 0
        %4067 = vmatprep.subr.bf16.mxu0 0
        %4068 = vmatpush1.bf16.msra.mxu0 0
        %4069 = vmatprep.subr.bf16.mxu0 0
        %4070 = vmatpush1.bf16.msra.mxu0 %v4053
        %4071 = vmatprep.subr.bf16.mxu0 0
        %4072 = vmatpush2.bf16.msra.mxu0 0
        %4073 = vmatprep.subr.bf16.mxu0 0
        %4074 = vmatpush2.bf16.msra.mxu0 0
        %4075 = vmatprep.subr.bf16.mxu0 0
        %4076 = vmatpush2.bf16.msra.mxu0 0
        %4077 = vmatprep.subr.bf16.mxu0 0
        %4078 = vmatpush2.bf16.msra.mxu0 0
        %4079 = vmatprep.subr.bf16.mxu0 0
        %4080 = vmatpush2.bf16.msra.mxu0 0
        %4081 = vmatprep.subr.bf16.mxu0 0
        %4082 = vmatpush2.bf16.msra.mxu0 0
        %4083 = vmatprep.subr.bf16.mxu0 0
        %4084 = vmatpush2.bf16.msra.mxu0 0
        %4085 = vmatprep.subr.bf16.mxu0 0
        %4086 = vmatpush2.bf16.msra.mxu0 0
        %4087 = vmatprep.mubr.bf16.mxu0 0
        %4088 = vmatmul.mubr.bf16.gmra.mxu0 %v3988
        %v4089 = vpop.f32.mrf.mxu0
        %v4090 = vadd.f32 0.0, %v4089
        %v4091 = vpop.f32.mrf.mxu0
        %v4092 = vpop.f32.mrf.mxu0
        %v4093 = vadd.f32 0.0, %v4092
        %v4094 = vpop.f32.mrf.mxu0
        %4095 = vdwg.mxu0
        %v4096 = vpack.c.bf16 %v4093, %v4090
        %v4098 = vunpack.c.l.b16 %v4096
        %v4099 = vunpack.c.h.b16 %v4096
        %v4100 = vpack.c.b16 %v4098, %v4098
        %v4101 = vpack.c.b16 %v4099, %v4099
        %4102 = vrot.lane.b32.xlu0 %v4100, 16
        %v4103 = vpop.permute.xlu0 %4102
        %4104 = vrot.lane.b32.xlu0 %v4101, 16
        %v4105 = vpop.permute.xlu0 %4104
        %4108 = vst.msk [vmem:[#allocation3 + $0x8] sm:$0xf] %vm1689, %v4103
        %4109 = vst.msk [vmem:[#allocation3 + $0xc] sm:$0xf] %vm1689, %v4105
        %v4110 = vld [vmem:[#allocation2 + $0x10] sm:$0xf]
        %v4111 = vld [vmem:[#allocation2 + $0x14] sm:$0xf]
        %v4114 = vunpack.c.l.b16 %v4110
        %v4115 = vunpack.c.l.b16 %v4111
        %v4116 = vpack.c.b16 %v4115, %v4114
        %4117 = vrot.lane.b32.xlu0 %v4116, 48
        %v4118 = vpop.permute.xlu0 %4117
        %4120 = vmatprep.subr.bf16.mxu0 0
        %4121 = vmatpush1.bf16.msra.mxu0 0
        %4122 = vmatprep.subr.bf16.mxu0 0
        %4123 = vmatpush1.bf16.msra.mxu0 0
        %4124 = vmatprep.subr.bf16.mxu0 0
        %4125 = vmatpush1.bf16.msra.mxu0 0
        %4126 = vmatprep.subr.bf16.mxu0 0
        %4127 = vmatpush1.bf16.msra.mxu0 0
        %4128 = vmatprep.subr.bf16.mxu0 0
        %4129 = vmatpush1.bf16.msra.mxu0 0
        %4130 = vmatprep.subr.bf16.mxu0 0
        %4131 = vmatpush1.bf16.msra.mxu0 0
        %4132 = vmatprep.subr.bf16.mxu0 0
        %4133 = vmatpush1.bf16.msra.mxu0 0
        %4134 = vmatprep.subr.bf16.mxu0 0
        %4135 = vmatpush1.bf16.msra.mxu0 %v4118
        %4136 = vmatprep.subr.bf16.mxu0 0
        %4137 = vmatpush2.bf16.msra.mxu0 0
        %4138 = vmatprep.subr.bf16.mxu0 0
        %4139 = vmatpush2.bf16.msra.mxu0 0
        %4140 = vmatprep.subr.bf16.mxu0 0
        %4141 = vmatpush2.bf16.msra.mxu0 0
        %4142 = vmatprep.subr.bf16.mxu0 0
        %4143 = vmatpush2.bf16.msra.mxu0 0
        %4144 = vmatprep.subr.bf16.mxu0 0
        %4145 = vmatpush2.bf16.msra.mxu0 0
        %4146 = vmatprep.subr.bf16.mxu0 0
        %4147 = vmatpush2.bf16.msra.mxu0 0
        %4148 = vmatprep.subr.bf16.mxu0 0
        %4149 = vmatpush2.bf16.msra.mxu0 0
        %4150 = vmatprep.subr.bf16.mxu0 0
        %4151 = vmatpush2.bf16.msra.mxu0 0
        %4152 = vmatprep.mubr.bf16.mxu0 0
        %4153 = vmatmul.mubr.bf16.gmra.mxu0 %v3988
        %v4154 = vpop.f32.mrf.mxu0
        %v4155 = vadd.f32 0.0, %v4154
        %v4156 = vpop.f32.mrf.mxu0
        %v4157 = vpop.f32.mrf.mxu0
        %v4158 = vadd.f32 0.0, %v4157
        %v4159 = vpop.f32.mrf.mxu0
        %4160 = vdwg.mxu0
        %v4161 = vpack.c.bf16 %v4158, %v4155
        %v4163 = vunpack.c.l.b16 %v4161
        %v4164 = vunpack.c.h.b16 %v4161
        %v4165 = vpack.c.b16 %v4163, %v4163
        %v4166 = vpack.c.b16 %v4164, %v4164
        %4167 = vrot.lane.b32.xlu0 %v4165, 16
        %v4168 = vpop.permute.xlu0 %4167
        %4169 = vrot.lane.b32.xlu0 %v4166, 16
        %v4170 = vpop.permute.xlu0 %4169
        %4173 = vst.msk [vmem:[#allocation3 + $0x10] sm:$0xf] %vm1689, %v4168
        %4174 = vst.msk [vmem:[#allocation3 + $0x14] sm:$0xf] %vm1689, %v4170
        %v4175 = vld [vmem:[#allocation2] sm:$0xf]
        %v4176 = vld [vmem:[#allocation2 + $0x4] sm:$0xf]
        %v4177 = vld [vmem:[#allocation2 + $0x8] sm:$0xf]
        %v4178 = vld [vmem:[#allocation2 + $0xc] sm:$0xf]
        %v4181 = vunpack.c.l.b16 %v4177
        %v4182 = vunpack.c.l.b16 %v4178
        %v4183 = vpack.c.b16 %v4182, %v4181
        %4184 = vrot.lane.b32.xlu0 %v4183, 104
        %v4185 = vpop.permute.xlu0 %4184
        %4186 = vrot.lane.b32.xlu0 %v4183, 72
        %v4187 = vpop.permute.xlu0 %4186
        %v4189 = vsel %vm676, %v4185, 0
        %v4192 = vsel %vm676, %v4187, 0
        %4194 = vmatprep.subr.bf16.mxu0 0
        %4195 = vmatpush1.bf16.xpose.msra.mxu0 0
        %4196 = vmatprep.subr.bf16.mxu0 0
        %4197 = vmatpush1.bf16.xpose.msra.mxu0 0
        %4198 = vmatprep.subr.bf16.mxu0 0
        %4199 = vmatpush1.bf16.xpose.msra.mxu0 0
        %4200 = vmatprep.subr.bf16.mxu0 0
        %4201 = vmatpush1.bf16.xpose.msra.mxu0 0
        %4202 = vmatprep.subr.bf16.mxu0 0
        %4203 = vmatpush1.bf16.xpose.msra.mxu0 0
        %4204 = vmatprep.subr.bf16.mxu0 0
        %4205 = vmatpush1.bf16.xpose.msra.mxu0 0
        %4206 = vmatprep.subr.bf16.mxu0 0
        %4207 = vmatpush1.bf16.xpose.msra.mxu0 0
        %4208 = vmatprep.subr.bf16.mxu0 0
        %4209 = vmatpush1.bf16.xpose.msra.mxu0 %v4192
        %4210 = vmatprep.subr.bf16.mxu0 0
        %4211 = vmatpush2.bf16.xpose.msra.mxu0 0
        %4212 = vmatprep.subr.bf16.mxu0 0
        %4213 = vmatpush2.bf16.xpose.msra.mxu0 0
        %4214 = vmatprep.subr.bf16.mxu0 0
        %4215 = vmatpush2.bf16.xpose.msra.mxu0 0
        %4216 = vmatprep.subr.bf16.mxu0 0
        %4217 = vmatpush2.bf16.xpose.msra.mxu0 0
        %4218 = vmatprep.subr.bf16.mxu0 0
        %4219 = vmatpush2.bf16.xpose.msra.mxu0 0
        %4220 = vmatprep.subr.bf16.mxu0 0
        %4221 = vmatpush2.bf16.xpose.msra.mxu0 0
        %4222 = vmatprep.subr.bf16.mxu0 0
        %4223 = vmatpush2.bf16.xpose.msra.mxu0 0
        %4224 = vmatprep.subr.bf16.mxu0 0
        %4225 = vmatpush2.bf16.xpose.msra.mxu0 0
        %4226 = vmatprep.mubr.bf16.mxu0 0
        %4227 = vmatmul.mubr.bf16.gmra.mxu0 %v4189
        %v4228 = vpop.f32.mrf.mxu0
        %v4229 = vadd.f32 0.0, %v4228
        %v4230 = vpop.f32.mrf.mxu0
        %v4231 = vpop.f32.mrf.mxu0
        %v4232 = vadd.f32 0.0, %v4231
        %v4233 = vpop.f32.mrf.mxu0
        %4234 = vdwg.mxu0
        %v4237 = vunpack.c.l.b16 %v4175
        %v4238 = vunpack.c.l.b16 %v4176
        %v4239 = vpack.c.b16 %v4238, %v4237
        %4240 = vrot.lane.b32.xlu0 %v4239, 104
        %v4241 = vpop.permute.xlu0 %4240
        %4242 = vrot.lane.b32.xlu0 %v4239, 72
        %v4243 = vpop.permute.xlu0 %4242
        %v4245 = vsel %vm676, %v4241, 0
        %v4248 = vsel %vm676, %v4243, 0
        %4250 = vmatprep.subr.bf16.mxu0 0
        %4251 = vmatpush1.bf16.xpose.msra.mxu0 0
        %4252 = vmatprep.subr.bf16.mxu0 0
        %4253 = vmatpush1.bf16.xpose.msra.mxu0 0
        %4254 = vmatprep.subr.bf16.mxu0 0
        %4255 = vmatpush1.bf16.xpose.msra.mxu0 0
        %4256 = vmatprep.subr.bf16.mxu0 0
        %4257 = vmatpush1.bf16.xpose.msra.mxu0 0
        %4258 = vmatprep.subr.bf16.mxu0 0
        %4259 = vmatpush1.bf16.xpose.msra.mxu0 0
        %4260 = vmatprep.subr.bf16.mxu0 0
        %4261 = vmatpush1.bf16.xpose.msra.mxu0 0
        %4262 = vmatprep.subr.bf16.mxu0 0
        %4263 = vmatpush1.bf16.xpose.msra.mxu0 0
        %4264 = vmatprep.subr.bf16.mxu0 0
        %4265 = vmatpush1.bf16.xpose.msra.mxu0 %v4248
        %4266 = vmatprep.subr.bf16.mxu0 0
        %4267 = vmatpush2.bf16.xpose.msra.mxu0 0
        %4268 = vmatprep.subr.bf16.mxu0 0
        %4269 = vmatpush2.bf16.xpose.msra.mxu0 0
        %4270 = vmatprep.subr.bf16.mxu0 0
        %4271 = vmatpush2.bf16.xpose.msra.mxu0 0
        %4272 = vmatprep.subr.bf16.mxu0 0
        %4273 = vmatpush2.bf16.xpose.msra.mxu0 0
        %4274 = vmatprep.subr.bf16.mxu0 0
        %4275 = vmatpush2.bf16.xpose.msra.mxu0 0
        %4276 = vmatprep.subr.bf16.mxu0 0
        %4277 = vmatpush2.bf16.xpose.msra.mxu0 0
        %4278 = vmatprep.subr.bf16.mxu0 0
        %4279 = vmatpush2.bf16.xpose.msra.mxu0 0
        %4280 = vmatprep.subr.bf16.mxu0 0
        %4281 = vmatpush2.bf16.xpose.msra.mxu0 0
        %4282 = vmatprep.mubr.bf16.mxu0 0
        %4283 = vmatmul.mubr.bf16.gmra.mxu0 %v4245
        %v4284 = vpop.f32.mrf.mxu0
        %v4285 = vadd.f32 %v4229, %v4284
        %v4286 = vpop.f32.mrf.mxu0
        %v4287 = vpop.f32.mrf.mxu0
        %v4288 = vadd.f32 %v4232, %v4287
        %v4289 = vpop.f32.mrf.mxu0
        %4290 = vdwg.mxu0
        %v4291 = vld [vmem:[#allocation2 + $0x10] sm:$0xf]
        %v4292 = vld [vmem:[#allocation2 + $0x14] sm:$0xf]
        %v4295 = vunpack.c.l.b16 %v4291
        %v4296 = vunpack.c.l.b16 %v4292
        %v4297 = vpack.c.b16 %v4296, %v4295
        %4298 = vrot.lane.b32.xlu0 %v4297, 104
        %v4299 = vpop.permute.xlu0 %4298
        %4300 = vrot.lane.b32.xlu0 %v4297, 72
        %v4301 = vpop.permute.xlu0 %4300
        %v4303 = vsel %vm676, %v4299, 0
        %v4306 = vsel %vm676, %v4301, 0
        %4308 = vmatprep.subr.bf16.mxu0 0
        %4309 = vmatpush1.bf16.xpose.msra.mxu0 0
        %4310 = vmatprep.subr.bf16.mxu0 0
        %4311 = vmatpush1.bf16.xpose.msra.mxu0 0
        %4312 = vmatprep.subr.bf16.mxu0 0
        %4313 = vmatpush1.bf16.xpose.msra.mxu0 0
        %4314 = vmatprep.subr.bf16.mxu0 0
        %4315 = vmatpush1.bf16.xpose.msra.mxu0 0
        %4316 = vmatprep.subr.bf16.mxu0 0
        %4317 = vmatpush1.bf16.xpose.msra.mxu0 0
        %4318 = vmatprep.subr.bf16.mxu0 0
        %4319 = vmatpush1.bf16.xpose.msra.mxu0 0
        %4320 = vmatprep.subr.bf16.mxu0 0
        %4321 = vmatpush1.bf16.xpose.msra.mxu0 0
        %4322 = vmatprep.subr.bf16.mxu0 0
        %4323 = vmatpush1.bf16.xpose.msra.mxu0 %v4306
        %4324 = vmatprep.subr.bf16.mxu0 0
        %4325 = vmatpush2.bf16.xpose.msra.mxu0 0
        %4326 = vmatprep.subr.bf16.mxu0 0
        %4327 = vmatpush2.bf16.xpose.msra.mxu0 0
        %4328 = vmatprep.subr.bf16.mxu0 0
        %4329 = vmatpush2.bf16.xpose.msra.mxu0 0
        %4330 = vmatprep.subr.bf16.mxu0 0
        %4331 = vmatpush2.bf16.xpose.msra.mxu0 0
        %4332 = vmatprep.subr.bf16.mxu0 0
        %4333 = vmatpush2.bf16.xpose.msra.mxu0 0
        %4334 = vmatprep.subr.bf16.mxu0 0
        %4335 = vmatpush2.bf16.xpose.msra.mxu0 0
        %4336 = vmatprep.subr.bf16.mxu0 0
        %4337 = vmatpush2.bf16.xpose.msra.mxu0 0
        %4338 = vmatprep.subr.bf16.mxu0 0
        %4339 = vmatpush2.bf16.xpose.msra.mxu0 0
        %4340 = vmatprep.mubr.bf16.mxu0 0
        %4341 = vmatmul.mubr.bf16.gmra.mxu0 %v4303
        %v4342 = vpop.f32.mrf.mxu0
        %v4343 = vadd.f32 0.0, %v4342
        %v4344 = vpop.f32.mrf.mxu0
        %v4345 = vpop.f32.mrf.mxu0
        %v4346 = vadd.f32 0.0, %v4345
        %v4347 = vpop.f32.mrf.mxu0
        %4348 = vdwg.mxu0
        %v4349 = vadd.f32 %v4285, %v4343
        %v4350 = vadd.f32 %v4288, %v4346
        %v4351 = vsel %vm836, %v4349, -inf
        %4352 = vmax.xlane.f32.xlu0 %v4351
        %v4353 = vpop.xlane.xlu0 %4352
        %v4354 = vsel %vm836, %v4350, -inf
        %4355 = vmax.xlane.f32.xlu0 %v4354
        %v4356 = vpop.xlane.xlu0 %4355
        %v4357 = vsub.f32 %v4349, %v4353
        %v4358 = vsub.f32 %v4350, %v4356
        %v4359 = vmul.f32 %v4357, 1.442695
        %v4360 = vpow.pop %v4359
        %v4361 = vmul.f32 %v4358, 1.442695
        %v4362 = vpow.pop %v4361
        %v4363 = vsel %vm836, %v4360, 0.0
        %4364 = vadd.xlane.f32.xlu0 %v4363
        %v4365 = vpop.xlane.xlu0 %4364
        %v4366 = vsel %vm836, %v4362, 0.0
        %4367 = vadd.xlane.f32.xlu0 %v4366
        %v4368 = vpop.xlane.xlu0 %4367
        %v4369 = vrcp.pop %v4365
        %v4370 = vrcp.pop %v4368
        %v4371 = vmul.f32 %v4360, %v4369
        %v4372 = vmul.f32 %v4362, %v4370
        %v4373 = vpack.c.bf16 %v4372, %v4371
        %4374 = vrot.lane.b32.xlu0 %v4239, 40
        %v4375 = vpop.permute.xlu0 %4374
        %v4378 = vsel %vm836, %v4373, 0
        %4380 = vmatprep.subr.bf16.mxu0 0
        %4381 = vmatpush1.bf16.msra.mxu0 0
        %4382 = vmatprep.subr.bf16.mxu0 0
        %4383 = vmatpush1.bf16.msra.mxu0 0
        %4384 = vmatprep.subr.bf16.mxu0 0
        %4385 = vmatpush1.bf16.msra.mxu0 0
        %4386 = vmatprep.subr.bf16.mxu0 0
        %4387 = vmatpush1.bf16.msra.mxu0 0
        %4388 = vmatprep.subr.bf16.mxu0 0
        %4389 = vmatpush1.bf16.msra.mxu0 0
        %4390 = vmatprep.subr.bf16.mxu0 0
        %4391 = vmatpush1.bf16.msra.mxu0 0
        %4392 = vmatprep.subr.bf16.mxu0 0
        %4393 = vmatpush1.bf16.msra.mxu0 0
        %4394 = vmatprep.subr.bf16.mxu0 0
        %4395 = vmatpush1.bf16.msra.mxu0 %v4375
        %4396 = vmatprep.subr.bf16.mxu0 0
        %4397 = vmatpush2.bf16.msra.mxu0 0
        %4398 = vmatprep.subr.bf16.mxu0 0
        %4399 = vmatpush2.bf16.msra.mxu0 0
        %4400 = vmatprep.subr.bf16.mxu0 0
        %4401 = vmatpush2.bf16.msra.mxu0 0
        %4402 = vmatprep.subr.bf16.mxu0 0
        %4403 = vmatpush2.bf16.msra.mxu0 0
        %4404 = vmatprep.subr.bf16.mxu0 0
        %4405 = vmatpush2.bf16.msra.mxu0 0
        %4406 = vmatprep.subr.bf16.mxu0 0
        %4407 = vmatpush2.bf16.msra.mxu0 0
        %4408 = vmatprep.subr.bf16.mxu0 0
        %4409 = vmatpush2.bf16.msra.mxu0 0
        %4410 = vmatprep.subr.bf16.mxu0 0
        %4411 = vmatpush2.bf16.msra.mxu0 0
        %4412 = vmatprep.mubr.bf16.mxu0 0
        %4413 = vmatmul.mubr.bf16.gmra.mxu0 %v4378
        %v4414 = vpop.f32.mrf.mxu0
        %v4415 = vadd.f32 0.0, %v4414
        %v4416 = vpop.f32.mrf.mxu0
        %v4417 = vpop.f32.mrf.mxu0
        %v4418 = vadd.f32 0.0, %v4417
        %v4419 = vpop.f32.mrf.mxu0
        %4420 = vdwg.mxu0
        %v4421 = vpack.c.bf16 %v4418, %v4415
        %v4423 = vunpack.c.l.b16 %v4421
        %v4424 = vunpack.c.h.b16 %v4421
        %v4425 = vpack.c.b16 %v4423, %v4423
        %v4426 = vpack.c.b16 %v4424, %v4424
        %4427 = vrot.lane.b32.xlu0 %v4425, 24
        %v4428 = vpop.permute.xlu0 %4427
        %4429 = vrot.lane.b32.xlu0 %v4426, 24
        %v4430 = vpop.permute.xlu0 %4429
        %4433 = vst.msk [vmem:[#allocation3] sm:$0xf] %vm2080, %v4428
        %4434 = vst.msk [vmem:[#allocation3 + $0x4] sm:$0xf] %vm2080, %v4430
        %v4435 = vld [vmem:[#allocation2 + $0x8] sm:$0xf]
        %v4436 = vld [vmem:[#allocation2 + $0xc] sm:$0xf]
        %v4439 = vunpack.c.l.b16 %v4435
        %v4440 = vunpack.c.l.b16 %v4436
        %v4441 = vpack.c.b16 %v4440, %v4439
        %4442 = vrot.lane.b32.xlu0 %v4441, 40
        %v4443 = vpop.permute.xlu0 %4442
        %4445 = vmatprep.subr.bf16.mxu0 0
        %4446 = vmatpush1.bf16.msra.mxu0 0
        %4447 = vmatprep.subr.bf16.mxu0 0
        %4448 = vmatpush1.bf16.msra.mxu0 0
        %4449 = vmatprep.subr.bf16.mxu0 0
        %4450 = vmatpush1.bf16.msra.mxu0 0
        %4451 = vmatprep.subr.bf16.mxu0 0
        %4452 = vmatpush1.bf16.msra.mxu0 0
        %4453 = vmatprep.subr.bf16.mxu0 0
        %4454 = vmatpush1.bf16.msra.mxu0 0
        %4455 = vmatprep.subr.bf16.mxu0 0
        %4456 = vmatpush1.bf16.msra.mxu0 0
        %4457 = vmatprep.subr.bf16.mxu0 0
        %4458 = vmatpush1.bf16.msra.mxu0 0
        %4459 = vmatprep.subr.bf16.mxu0 0
        %4460 = vmatpush1.bf16.msra.mxu0 %v4443
        %4461 = vmatprep.subr.bf16.mxu0 0
        %4462 = vmatpush2.bf16.msra.mxu0 0
        %4463 = vmatprep.subr.bf16.mxu0 0
        %4464 = vmatpush2.bf16.msra.mxu0 0
        %4465 = vmatprep.subr.bf16.mxu0 0
        %4466 = vmatpush2.bf16.msra.mxu0 0
        %4467 = vmatprep.subr.bf16.mxu0 0
        %4468 = vmatpush2.bf16.msra.mxu0 0
        %4469 = vmatprep.subr.bf16.mxu0 0
        %4470 = vmatpush2.bf16.msra.mxu0 0
        %4471 = vmatprep.subr.bf16.mxu0 0
        %4472 = vmatpush2.bf16.msra.mxu0 0
        %4473 = vmatprep.subr.bf16.mxu0 0
        %4474 = vmatpush2.bf16.msra.mxu0 0
        %4475 = vmatprep.subr.bf16.mxu0 0
        %4476 = vmatpush2.bf16.msra.mxu0 0
        %4477 = vmatprep.mubr.bf16.mxu0 0
        %4478 = vmatmul.mubr.bf16.gmra.mxu0 %v4378
        %v4479 = vpop.f32.mrf.mxu0
        %v4480 = vadd.f32 0.0, %v4479
        %v4481 = vpop.f32.mrf.mxu0
        %v4482 = vpop.f32.mrf.mxu0
        %v4483 = vadd.f32 0.0, %v4482
        %v4484 = vpop.f32.mrf.mxu0
        %4485 = vdwg.mxu0
        %v4486 = vpack.c.bf16 %v4483, %v4480
        %v4488 = vunpack.c.l.b16 %v4486
        %v4489 = vunpack.c.h.b16 %v4486
        %v4490 = vpack.c.b16 %v4488, %v4488
        %v4491 = vpack.c.b16 %v4489, %v4489
        %4492 = vrot.lane.b32.xlu0 %v4490, 24
        %v4493 = vpop.permute.xlu0 %4492
        %4494 = vrot.lane.b32.xlu0 %v4491, 24
        %v4495 = vpop.permute.xlu0 %4494
        %4498 = vst.msk [vmem:[#allocation3 + $0x8] sm:$0xf] %vm2080, %v4493
        %4499 = vst.msk [vmem:[#allocation3 + $0xc] sm:$0xf] %vm2080, %v4495
        %v4500 = vld [vmem:[#allocation2 + $0x10] sm:$0xf]
        %v4501 = vld [vmem:[#allocation2 + $0x14] sm:$0xf]
        %v4504 = vunpack.c.l.b16 %v4500
        %v4505 = vunpack.c.l.b16 %v4501
        %v4506 = vpack.c.b16 %v4505, %v4504
        %4507 = vrot.lane.b32.xlu0 %v4506, 40
        %v4508 = vpop.permute.xlu0 %4507
        %4510 = vmatprep.subr.bf16.mxu0 0
        %4511 = vmatpush1.bf16.msra.mxu0 0
        %4512 = vmatprep.subr.bf16.mxu0 0
        %4513 = vmatpush1.bf16.msra.mxu0 0
        %4514 = vmatprep.subr.bf16.mxu0 0
        %4515 = vmatpush1.bf16.msra.mxu0 0
        %4516 = vmatprep.subr.bf16.mxu0 0
        %4517 = vmatpush1.bf16.msra.mxu0 0
        %4518 = vmatprep.subr.bf16.mxu0 0
        %4519 = vmatpush1.bf16.msra.mxu0 0
        %4520 = vmatprep.subr.bf16.mxu0 0
        %4521 = vmatpush1.bf16.msra.mxu0 0
        %4522 = vmatprep.subr.bf16.mxu0 0
        %4523 = vmatpush1.bf16.msra.mxu0 0
        %4524 = vmatprep.subr.bf16.mxu0 0
        %4525 = vmatpush1.bf16.msra.mxu0 %v4508
        %4526 = vmatprep.subr.bf16.mxu0 0
        %4527 = vmatpush2.bf16.msra.mxu0 0
        %4528 = vmatprep.subr.bf16.mxu0 0
        %4529 = vmatpush2.bf16.msra.mxu0 0
        %4530 = vmatprep.subr.bf16.mxu0 0
        %4531 = vmatpush2.bf16.msra.mxu0 0
        %4532 = vmatprep.subr.bf16.mxu0 0
        %4533 = vmatpush2.bf16.msra.mxu0 0
        %4534 = vmatprep.subr.bf16.mxu0 0
        %4535 = vmatpush2.bf16.msra.mxu0 0
        %4536 = vmatprep.subr.bf16.mxu0 0
        %4537 = vmatpush2.bf16.msra.mxu0 0
        %4538 = vmatprep.subr.bf16.mxu0 0
        %4539 = vmatpush2.bf16.msra.mxu0 0
        %4540 = vmatprep.subr.bf16.mxu0 0
        %4541 = vmatpush2.bf16.msra.mxu0 0
        %4542 = vmatprep.mubr.bf16.mxu0 0
        %4543 = vmatmul.mubr.bf16.gmra.mxu0 %v4378
        %v4544 = vpop.f32.mrf.mxu0
        %v4545 = vadd.f32 0.0, %v4544
        %v4546 = vpop.f32.mrf.mxu0
        %v4547 = vpop.f32.mrf.mxu0
        %v4548 = vadd.f32 0.0, %v4547
        %v4549 = vpop.f32.mrf.mxu0
        %4550 = vdwg.mxu0
        %v4551 = vpack.c.bf16 %v4548, %v4545
        %v4553 = vunpack.c.l.b16 %v4551
        %v4554 = vunpack.c.h.b16 %v4551
        %v4555 = vpack.c.b16 %v4553, %v4553
        %v4556 = vpack.c.b16 %v4554, %v4554
        %4557 = vrot.lane.b32.xlu0 %v4555, 24
        %v4558 = vpop.permute.xlu0 %4557
        %4559 = vrot.lane.b32.xlu0 %v4556, 24
        %v4560 = vpop.permute.xlu0 %4559
        %4563 = vst.msk [vmem:[#allocation3 + $0x10] sm:$0xf] %vm2080, %v4558
        %4564 = vst.msk [vmem:[#allocation3 + $0x14] sm:$0xf] %vm2080, %v4560
        %v4565 = vld [vmem:[#allocation3] sm:$0xf]
        %v4566 = vld [vmem:[#allocation3 + $0x4] sm:$0xf]
        %v4567 = vld [vmem:[#allocation3 + $0x8] sm:$0xf]
        %v4568 = vld [vmem:[#allocation3 + $0xc] sm:$0xf]
        %v4569 = vld [vmem:[#allocation3 + $0x10] sm:$0xf]
        %v4570 = vld [vmem:[#allocation3 + $0x14] sm:$0xf]
        %v4571 = vld [vmem:[#allocation10] sm:$0xf]
        %v4572 = vld [vmem:[#allocation10 + $0x4] sm:$0xf]
        %v4573 = vld [vmem:[#allocation10 + $0x8] sm:$0xf]
        %v4574 = vld [vmem:[#allocation10 + $0xc] sm:$0xf]
        %v4581 = vunpack.c.l.b16 %v4565
        %v4582 = vunpack.c.l.b16 %v4566
        %v4583 = vunpack.c.l.b16 %v4567
        %v4584 = vunpack.c.l.b16 %v4568
        %v4585 = vunpack.c.l.b16 %v4569
        %v4586 = vunpack.c.l.b16 %v4570
        %v4587 = vpack.c.b16 %v4582, %v4581
        %v4588 = vpack.c.b16 %v4584, %v4583
        %v4589 = vpack.c.b16 %v4586, %v4585
        %v4594 = vunpack.c.l.b16 %v4571
        %v4595 = vunpack.c.l.b16 %v4572
        %v4596 = vunpack.c.l.b16 %v4573
        %v4597 = vunpack.c.l.b16 %v4574
        %v4598 = vpack.c.b16 %v4595, %v4594
        %v4599 = vpack.c.b16 %v4597, %v4596
        %v4603 = vsel %vm493, %v4587, 0
        %v4606 = vsel %vm493, %v4588, 0
        %v4609 = vsel %vm493, %v4589, 0
        %4611 = vmatprep.subr.bf16.mxu0 0
        %4612 = vmatpush1.bf16.msra.mxu0 0
        %4613 = vmatprep.subr.bf16.mxu0 0
        %4614 = vmatpush1.bf16.msra.mxu0 0
        %4615 = vmatprep.subr.bf16.mxu0 0
        %4616 = vmatpush1.bf16.msra.mxu0 0
        %4617 = vmatprep.subr.bf16.mxu0 0
        %4618 = vmatpush1.bf16.msra.mxu0 0
        %4619 = vmatprep.subr.bf16.mxu0 0
        %4620 = vmatpush1.bf16.msra.mxu0 0
        %4621 = vmatprep.subr.bf16.mxu0 0
        %4622 = vmatpush1.bf16.msra.mxu0 0
        %4623 = vmatprep.subr.bf16.mxu0 0
        %4624 = vmatpush1.bf16.msra.mxu0 %v4599
        %4625 = vmatprep.subr.bf16.mxu0 0
        %4626 = vmatpush1.bf16.msra.mxu0 %v4598
        %4627 = vmatprep.subr.bf16.mxu0 0
        %4628 = vmatpush2.bf16.msra.mxu0 0
        %4629 = vmatprep.subr.bf16.mxu0 0
        %4630 = vmatpush2.bf16.msra.mxu0 0
        %4631 = vmatprep.subr.bf16.mxu0 0
        %4632 = vmatpush2.bf16.msra.mxu0 0
        %4633 = vmatprep.subr.bf16.mxu0 0
        %4634 = vmatpush2.bf16.msra.mxu0 0
        %4635 = vmatprep.subr.bf16.mxu0 0
        %4636 = vmatpush2.bf16.msra.mxu0 0
        %4637 = vmatprep.subr.bf16.mxu0 0
        %4638 = vmatpush2.bf16.msra.mxu0 0
        %4639 = vmatprep.subr.bf16.mxu0 0
        %4640 = vmatpush2.bf16.msra.mxu0 0
        %4641 = vmatprep.subr.bf16.mxu0 0
        %4642 = vmatpush2.bf16.msra.mxu0 0
        %4643 = vmatprep.mubr.bf16.mxu0 0
        %4644 = vmatmul.mubr.bf16.gmra.mxu0 %v4603
        %v4645 = vpop.f32.mrf.mxu0
        %v4646 = vadd.f32 0.0, %v4645
        %v4647 = vpop.f32.mrf.mxu0
        %v4648 = vpop.f32.mrf.mxu0
        %v4649 = vadd.f32 0.0, %v4648
        %v4650 = vpop.f32.mrf.mxu0
        %4651 = vmatprep.mubr.bf16.mxu0 0
        %4652 = vmatmul.mubr.bf16.gmra.mxu0 %v4606
        %v4653 = vpop.f32.mrf.mxu0
        %v4654 = vadd.f32 0.0, %v4653
        %v4655 = vpop.f32.mrf.mxu0
        %v4656 = vpop.f32.mrf.mxu0
        %v4657 = vadd.f32 0.0, %v4656
        %v4658 = vpop.f32.mrf.mxu0
        %4659 = vmatprep.mubr.bf16.mxu0 0
        %4660 = vmatmul.mubr.bf16.gmra.mxu0 %v4609
        %v4661 = vpop.f32.mrf.mxu0
        %v4662 = vadd.f32 0.0, %v4661
        %v4663 = vpop.f32.mrf.mxu0
        %v4664 = vpop.f32.mrf.mxu0
        %v4665 = vadd.f32 0.0, %v4664
        %v4666 = vpop.f32.mrf.mxu0
        %4667 = vdwg.mxu0
        %v4668 = vadd.f32 %v2822, %v4646
        %v4669 = vadd.f32 %v2823, %v4649
        %v4670 = vadd.f32 %v2824, %v4654
        %v4671 = vadd.f32 %v2825, %v4657
        %v4672 = vadd.f32 %v2826, %v4662
        %v4673 = vadd.f32 %v2827, %v4665
        %v4674 = vld [vmem:[#allocation12] sm:$0x1]
        %v4675 = vld [vmem:[#allocation13] sm:$0x1]
        %v4676 = vmul.f32 %v4668, %v4668
        %v4677 = vmul.f32 %v4669, %v4669
        %v4678 = vmul.f32 %v4670, %v4670
        %v4679 = vmul.f32 %v4671, %v4671
        %v4680 = vadd.f32 %v4676, %v4678
        %v4681 = vadd.f32 %v4677, %v4679
        %v4682 = vmul.f32 %v4672, %v4672
        %v4683 = vmul.f32 %v4673, %v4673
        %v4684 = vadd.f32 %v4680, %v4682
        %v4685 = vadd.f32 %v4681, %v4683
        %v4686 = vrsqrt.pop %v4684
        %v4687 = vmul.f32 %v4684, %v4686
        %vm4688 = vcmp.eq.f32.partialorder %v4684, inf
        %v4689 = vsel %vm4688, %v4684, %v4687
        %vm4690 = vcmp.eq.f32.partialorder %v4684, 0.0
        %v4691 = vand.u32 %v4684, 2147483648
        %v4692 = vsel %vm4690, %v4691, %v4689
        %v4693 = vrsqrt.pop %v4685
        %v4694 = vmul.f32 %v4685, %v4693
        %vm4695 = vcmp.eq.f32.partialorder %v4685, inf
        %v4696 = vsel %vm4695, %v4685, %v4694
        %vm4697 = vcmp.eq.f32.partialorder %v4685, 0.0
        %v4698 = vand.u32 %v4685, 2147483648
        %v4699 = vsel %vm4697, %v4698, %v4696
        %v4700 = vsel %vm493, %v4692, 0.0
        %4701 = vadd.xlane.f32.xlu0 %v4700
        %v4702 = vpop.xlane.xlu0 %4701
        %v4703 = vsel %vm493, %v4699, 0.0
        %4704 = vadd.xlane.f32.xlu0 %v4703
        %v4705 = vpop.xlane.xlu0 %4704
        %v4706 = vmul.f32 %v4702, %v500
        %v4707 = vmul.f32 %v4705, %v500
        %v4708 = vsub.f32 %v4692, %v4706
        %v4709 = vsub.f32 %v4699, %v4707
        %v4710 = vmul.f32 %v4708, %v4708
        %v4711 = vmul.f32 %v4709, %v4709
        %v4712 = vsel %vm493, %v4710, 0.0
        %4713 = vadd.xlane.f32.xlu0 %v4712
        %v4714 = vpop.xlane.xlu0 %4713
        %v4715 = vsel %vm493, %v4711, 0.0
        %4716 = vadd.xlane.f32.xlu0 %v4715
        %v4717 = vpop.xlane.xlu0 %4716
        %v4718 = vmul.f32 %v4714, %v500
        %v4719 = vmul.f32 %v4717, %v500
        %v4720 = vadd.f32 %v4718, 1e-06
        %v4721 = vadd.f32 %v4719, 1e-06
        %v4722 = vrsqrt.pop %v4720
        %v4723 = vrsqrt.pop %v4721
        %v4724 = vmul.f32 %v4708, %v4722
        %v4725 = vmul.f32 %v4709, %v4723
        %v4727 = vlaneseq
        %v4728 = vshrl.u32 %v4727, 7
        %v4729 = vsub.s32 0, %v4728
        %v4730 = vrot.slane %v4674, %v4729
        %v4732 = vmul.f32 %v4724, %v4730
        %v4733 = vmul.f32 %v4725, %v4730
        %v4735 = vlaneseq
        %v4736 = vshrl.u32 %v4735, 7
        %v4737 = vsub.s32 0, %v4736
        %v4738 = vrot.slane %v4675, %v4737
        %v4740 = vadd.f32 %v4732, %v4738
        %v4741 = vadd.f32 %v4733, %v4738
        %v4742 = vadd.f32 %v4692, 1e-06
        %v4743 = vadd.f32 %v4699, 1e-06
        %v4744 = vrcp.pop %v4742
        %v4745 = vmul.f32 %v4740, %v4744
        %v4746 = vrcp.pop %v4743
        %v4747 = vmul.f32 %v4741, %v4746
        %v4748 = vmul.f32 %v4668, %v4745
        %v4749 = vmul.f32 %v4669, %v4747
        %v4750 = vmul.f32 %v4670, %v4745
        %v4751 = vmul.f32 %v4671, %v4747
        %v4752 = vmul.f32 %v4672, %v4745
        %v4753 = vmul.f32 %v4673, %v4747
        %v4754 = vpack.c.bf16 %v4749, %v4748
        %v4755 = vpack.c.bf16 %v4751, %v4750
        %v4756 = vpack.c.bf16 %v4753, %v4752
        %v4757 = vld [vmem:[#allocation15] sm:$0xf]
        %v4758 = vld [vmem:[#allocation15 + $0x4] sm:$0xf]
        %v4759 = vld [vmem:[#allocation15 + $0x8] sm:$0xf]
        %v4760 = vld [vmem:[#allocation15 + $0xc] sm:$0xf]
        %v4765 = vunpack.c.l.b16 %v4757
        %v4766 = vunpack.c.l.b16 %v4758
        %v4767 = vunpack.c.l.b16 %v4759
        %v4768 = vunpack.c.l.b16 %v4760
        %v4769 = vpack.c.b16 %v4766, %v4765
        %v4770 = vpack.c.b16 %v4768, %v4767
        %v4774 = vsel %vm493, %v4754, 0
        %v4777 = vsel %vm493, %v4755, 0
        %v4780 = vsel %vm493, %v4756, 0
        %4782 = vmatprep.subr.bf16.mxu0 0
        %4783 = vmatpush1.bf16.msra.mxu0 0
        %4784 = vmatprep.subr.bf16.mxu0 0
        %4785 = vmatpush1.bf16.msra.mxu0 0
        %4786 = vmatprep.subr.bf16.mxu0 0
        %4787 = vmatpush1.bf16.msra.mxu0 0
        %4788 = vmatprep.subr.bf16.mxu0 0
        %4789 = vmatpush1.bf16.msra.mxu0 0
        %4790 = vmatprep.subr.bf16.mxu0 0
        %4791 = vmatpush1.bf16.msra.mxu0 0
        %4792 = vmatprep.subr.bf16.mxu0 0
        %4793 = vmatpush1.bf16.msra.mxu0 0
        %4794 = vmatprep.subr.bf16.mxu0 0
        %4795 = vmatpush1.bf16.msra.mxu0 %v4770
        %4796 = vmatprep.subr.bf16.mxu0 0
        %4797 = vmatpush1.bf16.msra.mxu0 %v4769
        %4798 = vmatprep.subr.bf16.mxu0 0
        %4799 = vmatpush2.bf16.msra.mxu0 0
        %4800 = vmatprep.subr.bf16.mxu0 0
        %4801 = vmatpush2.bf16.msra.mxu0 0
        %4802 = vmatprep.subr.bf16.mxu0 0
        %4803 = vmatpush2.bf16.msra.mxu0 0
        %4804 = vmatprep.subr.bf16.mxu0 0
        %4805 = vmatpush2.bf16.msra.mxu0 0
        %4806 = vmatprep.subr.bf16.mxu0 0
        %4807 = vmatpush2.bf16.msra.mxu0 0
        %4808 = vmatprep.subr.bf16.mxu0 0
        %4809 = vmatpush2.bf16.msra.mxu0 0
        %4810 = vmatprep.subr.bf16.mxu0 0
        %4811 = vmatpush2.bf16.msra.mxu0 0
        %4812 = vmatprep.subr.bf16.mxu0 0
        %4813 = vmatpush2.bf16.msra.mxu0 0
        %4814 = vmatprep.mubr.bf16.mxu0 0
        %4815 = vmatmul.mubr.bf16.gmra.mxu0 %v4774
        %v4816 = vpop.f32.mrf.mxu0
        %v4817 = vadd.f32 0.0, %v4816
        %v4818 = vpop.f32.mrf.mxu0
        %v4819 = vpop.f32.mrf.mxu0
        %v4820 = vadd.f32 0.0, %v4819
        %v4821 = vpop.f32.mrf.mxu0
        %4822 = vmatprep.mubr.bf16.mxu0 0
        %4823 = vmatmul.mubr.bf16.gmra.mxu0 %v4777
        %v4824 = vpop.f32.mrf.mxu0
        %v4825 = vadd.f32 0.0, %v4824
        %v4826 = vpop.f32.mrf.mxu0
        %v4827 = vpop.f32.mrf.mxu0
        %v4828 = vadd.f32 0.0, %v4827
        %v4829 = vpop.f32.mrf.mxu0
        %4830 = vmatprep.mubr.bf16.mxu0 0
        %4831 = vmatmul.mubr.bf16.gmra.mxu0 %v4780
        %v4832 = vpop.f32.mrf.mxu0
        %v4833 = vadd.f32 0.0, %v4832
        %v4834 = vpop.f32.mrf.mxu0
        %v4835 = vpop.f32.mrf.mxu0
        %v4836 = vadd.f32 0.0, %v4835
        %v4837 = vpop.f32.mrf.mxu0
        %4838 = vdwg.mxu0
        %v4839 = vld [vmem:[%s8] sm:$0xf]
        %v4840 = vld [vmem:[%s8 + $0x4] sm:$0xf]
        %v4841 = vld [vmem:[%s8 + $0x8] sm:$0xf]
        %v4842 = vld [vmem:[%s8 + $0xc] sm:$0xf]
        %v4843 = vld [vmem:[%s8 + $0x10] sm:$0xf]
        %v4844 = vld [vmem:[%s8 + $0x14] sm:$0xf]
        %v4845 = vld [vmem:[%s8 + $0x18] sm:$0xf]
        %v4846 = vld [vmem:[%s8 + $0x1c] sm:$0xf]
        %v4847 = vld [vmem:[%s8 + $0x20] sm:$0xf]
        %v4848 = vld [vmem:[%s8 + $0x24] sm:$0xf]
        %v4849 = vld [vmem:[%s8 + $0x28] sm:$0xf]
        %v4850 = vld [vmem:[%s8 + $0x2c] sm:$0xf]
        %v4851 = vld [vmem:[%s8 + $0x30] sm:$0xf]
        %v4852 = vld [vmem:[%s8 + $0x34] sm:$0xf]
        %v4853 = vld [vmem:[%s8 + $0x38] sm:$0xf]
        %v4854 = vld [vmem:[%s8 + $0x3c] sm:$0xf]
        %v4855 = vpack.c.bf16 %v4820, %v4817
        %v4856 = vpack.c.bf16 %v4828, %v4825
        %v4857 = vpack.c.bf16 %v4836, %v4833
        %v4874 = vunpack.c.l.b16 %v4839
        %v4875 = vunpack.c.l.b16 %v4840
        %v4876 = vunpack.c.l.b16 %v4841
        %v4877 = vunpack.c.l.b16 %v4842
        %v4878 = vunpack.c.l.b16 %v4843
        %v4879 = vunpack.c.l.b16 %v4844
        %v4880 = vunpack.c.l.b16 %v4845
        %v4881 = vunpack.c.l.b16 %v4846
        %v4882 = vunpack.c.l.b16 %v4847
        %v4883 = vunpack.c.l.b16 %v4848
        %v4884 = vunpack.c.l.b16 %v4849
        %v4885 = vunpack.c.l.b16 %v4850
        %v4886 = vunpack.c.l.b16 %v4851
        %v4887 = vunpack.c.l.b16 %v4852
        %v4888 = vunpack.c.l.b16 %v4853
        %v4889 = vunpack.c.l.b16 %v4854
        %v4890 = vpack.c.b16 %v4875, %v4874
        %v4891 = vpack.c.b16 %v4877, %v4876
        %v4892 = vpack.c.b16 %v4879, %v4878
        %v4893 = vpack.c.b16 %v4881, %v4880
        %v4894 = vpack.c.b16 %v4883, %v4882
        %v4895 = vpack.c.b16 %v4885, %v4884
        %v4896 = vpack.c.b16 %v4887, %v4886
        %v4897 = vpack.c.b16 %v4889, %v4888
        %4906 = vmatprep.subr.bf16.mxu0 0
        %4907 = vmatpush1.bf16.msra.mxu0 %v4897
        %4908 = vmatprep.subr.bf16.mxu0 0
        %4909 = vmatpush1.bf16.msra.mxu0 %v4896
        %4910 = vmatprep.subr.bf16.mxu0 0
        %4911 = vmatpush1.bf16.msra.mxu0 %v4895
        %4912 = vmatprep.subr.bf16.mxu0 0
        %4913 = vmatpush1.bf16.msra.mxu0 %v4894
        %4914 = vmatprep.subr.bf16.mxu0 0
        %4915 = vmatpush1.bf16.msra.mxu0 %v4893
        %4916 = vmatprep.subr.bf16.mxu0 0
        %4917 = vmatpush1.bf16.msra.mxu0 %v4892
        %4918 = vmatprep.subr.bf16.mxu0 0
        %4919 = vmatpush1.bf16.msra.mxu0 %v4891
        %4920 = vmatprep.subr.bf16.mxu0 0
        %4921 = vmatpush1.bf16.msra.mxu0 %v4890
        %4922 = vmatprep.subr.bf16.mxu0 0
        %4923 = vmatpush2.bf16.msra.mxu0 0
        %4924 = vmatprep.subr.bf16.mxu0 0
        %4925 = vmatpush2.bf16.msra.mxu0 0
        %4926 = vmatprep.subr.bf16.mxu0 0
        %4927 = vmatpush2.bf16.msra.mxu0 0
        %4928 = vmatprep.subr.bf16.mxu0 0
        %4929 = vmatpush2.bf16.msra.mxu0 0
        %4930 = vmatprep.subr.bf16.mxu0 0
        %4931 = vmatpush2.bf16.msra.mxu0 0
        %4932 = vmatprep.subr.bf16.mxu0 0
        %4933 = vmatpush2.bf16.msra.mxu0 0
        %4934 = vmatprep.subr.bf16.mxu0 0
        %4935 = vmatpush2.bf16.msra.mxu0 0
        %4936 = vmatprep.subr.bf16.mxu0 0
        %4937 = vmatpush2.bf16.msra.mxu0 0
        %4938 = vmatprep.mubr.bf16.mxu0 0
        %4939 = vmatmul.mubr.bf16.gmra.mxu0 %v4855
        %v4940 = vpop.f32.mrf.mxu0
        %v4941 = vadd.f32 0.0, %v4940
        %v4942 = vpop.f32.mrf.mxu0
        %v4943 = vpop.f32.mrf.mxu0
        %v4944 = vadd.f32 0.0, %v4943
        %v4945 = vpop.f32.mrf.mxu0
        %4946 = vmatprep.mubr.bf16.mxu0 0
        %4947 = vmatmul.mubr.bf16.gmra.mxu0 %v4856
        %v4948 = vpop.f32.mrf.mxu0
        %v4949 = vadd.f32 0.0, %v4948
        %v4950 = vpop.f32.mrf.mxu0
        %v4951 = vpop.f32.mrf.mxu0
        %v4952 = vadd.f32 0.0, %v4951
        %v4953 = vpop.f32.mrf.mxu0
        %4954 = vmatprep.mubr.bf16.mxu0 0
        %4955 = vmatmul.mubr.bf16.gmra.mxu0 %v4857
        %v4956 = vpop.f32.mrf.mxu0
        %v4957 = vadd.f32 0.0, %v4956
        %v4958 = vpop.f32.mrf.mxu0
        %v4959 = vpop.f32.mrf.mxu0
        %v4960 = vadd.f32 0.0, %v4959
        %v4961 = vpop.f32.mrf.mxu0
        %4962 = vdwg.mxu0
        %v4963 = vmul.f32 %v4941, %v4941
        %v4964 = vmul.f32 %v4944, %v4944
        %v4965 = vmul.f32 %v4949, %v4949
        %v4966 = vmul.f32 %v4952, %v4952
        %v4967 = vadd.f32 %v4963, %v4965
        %v4968 = vadd.f32 %v4964, %v4966
        %v4969 = vmul.f32 %v4957, %v4957
        %v4970 = vmul.f32 %v4960, %v4960
        %v4971 = vadd.f32 %v4967, %v4969
        %v4972 = vadd.f32 %v4968, %v4970
        %v4973 = vrsqrt.pop %v4971
        %v4974 = vmul.f32 %v4971, %v4973
        %vm4975 = vcmp.eq.f32.partialorder %v4971, inf
        %v4976 = vsel %vm4975, %v4971, %v4974
        %vm4977 = vcmp.eq.f32.partialorder %v4971, 0.0
        %v4978 = vand.u32 %v4971, 2147483648
        %v4979 = vsel %vm4977, %v4978, %v4976
        %v4980 = vrsqrt.pop %v4972
        %v4981 = vmul.f32 %v4972, %v4980
        %vm4982 = vcmp.eq.f32.partialorder %v4972, inf
        %v4983 = vsel %vm4982, %v4972, %v4981
        %vm4984 = vcmp.eq.f32.partialorder %v4972, 0.0
        %v4985 = vand.u32 %v4972, 2147483648
        %v4986 = vsel %vm4984, %v4985, %v4983
        %v4987 = vadd.f32 %v4979, 1e-06
        %v4988 = vadd.f32 %v4986, 1e-06
        %v4989 = vrcp.pop %v4987
        %v4990 = vmul.f32 %v4941, %v4989
        %v4991 = vrcp.pop %v4988
        %v4992 = vmul.f32 %v4944, %v4991
        %v4993 = vmul.f32 %v4949, %v4989
        %v4994 = vmul.f32 %v4952, %v4991
        %v4995 = vmul.f32 %v4957, %v4989
        %v4996 = vmul.f32 %v4960, %v4991
        %v4997 = vmul.f32 %v4817, %v4990
        %v4998 = vmul.f32 %v4820, %v4992
        %v4999 = vmul.f32 %v4825, %v4993
        %v5000 = vmul.f32 %v4828, %v4994
        %v5001 = vadd.f32 %v4997, %v4999
        %v5002 = vadd.f32 %v4998, %v5000
        %v5003 = vmul.f32 %v4833, %v4995
        %v5004 = vmul.f32 %v4836, %v4996
        %v5005 = vadd.f32 %v5001, %v5003
        %v5006 = vadd.f32 %v5002, %v5004
        %v5007 = vmul.f32 %v5005, %v4990
        %v5008 = vmul.f32 %v5006, %v4992
        %v5009 = vmul.f32 %v5005, %v4993
        %v5010 = vmul.f32 %v5006, %v4994
        %v5011 = vmul.f32 %v5005, %v4995
        %v5012 = vmul.f32 %v5006, %v4996
        %v5013 = vsub.f32 %v4817, %v5007
        %v5014 = vsub.f32 %v4820, %v5008
        %v5015 = vsub.f32 %v4825, %v5009
        %v5016 = vsub.f32 %v4828, %v5010
        %v5017 = vsub.f32 %v4833, %v5011
        %v5018 = vsub.f32 %v4836, %v5012
        %vm5019 = vcmp.ge.f32.partialorder %v5005, 0.0
        %vm5020 = vcmp.ge.f32.partialorder %v5006, 0.0
        %v5021 = vmul.f32 %v5005, 0.2
        %v5022 = vmul.f32 %v5006, 0.2
        %v5023 = vsel %vm5019, %v5005, %v5021
        %v5024 = vsel %vm5020, %v5006, %v5022
        %v5025 = vmul.f32 %v5023, %v4990
        %v5026 = vmul.f32 %v5024, %v4992
        %v5027 = vmul.f32 %v5023, %v4993
        %v5028 = vmul.f32 %v5024, %v4994
        %v5029 = vmul.f32 %v5023, %v4995
        %v5030 = vmul.f32 %v5024, %v4996
        %v5031 = vadd.f32 %v5013, %v5025
        %v5032 = vadd.f32 %v5014, %v5026
        %v5033 = vadd.f32 %v5015, %v5027
        %v5034 = vadd.f32 %v5016, %v5028
        %v5035 = vadd.f32 %v5017, %v5029
        %v5036 = vadd.f32 %v5018, %v5030
        %v5037 = vpack.c.bf16 %v5032, %v5031
        %v5038 = vpack.c.bf16 %v5034, %v5033
        %v5039 = vpack.c.bf16 %v5036, %v5035
        %v5040 = vld [vmem:[%s9] sm:$0xf]
        %v5041 = vld [vmem:[%s9 + $0x4] sm:$0xf]
        %v5042 = vld [vmem:[%s9 + $0x8] sm:$0xf]
        %v5043 = vld [vmem:[%s9 + $0xc] sm:$0xf]
        %v5044 = vld [vmem:[%s9 + $0x10] sm:$0xf]
        %v5045 = vld [vmem:[%s9 + $0x14] sm:$0xf]
        %v5046 = vld [vmem:[%s9 + $0x18] sm:$0xf]
        %v5047 = vld [vmem:[%s9 + $0x1c] sm:$0xf]
        %v5048 = vld [vmem:[%s9 + $0x20] sm:$0xf]
        %v5049 = vld [vmem:[%s9 + $0x24] sm:$0xf]
        %v5050 = vld [vmem:[%s9 + $0x28] sm:$0xf]
        %v5051 = vld [vmem:[%s9 + $0x2c] sm:$0xf]
        %v5052 = vld [vmem:[%s9 + $0x30] sm:$0xf]
        %v5053 = vld [vmem:[%s9 + $0x34] sm:$0xf]
        %v5054 = vld [vmem:[%s9 + $0x38] sm:$0xf]
        %v5055 = vld [vmem:[%s9 + $0x3c] sm:$0xf]
        %v5072 = vunpack.c.l.b16 %v5040
        %v5073 = vunpack.c.l.b16 %v5041
        %v5074 = vunpack.c.l.b16 %v5042
        %v5075 = vunpack.c.l.b16 %v5043
        %v5076 = vunpack.c.l.b16 %v5044
        %v5077 = vunpack.c.l.b16 %v5045
        %v5078 = vunpack.c.l.b16 %v5046
        %v5079 = vunpack.c.l.b16 %v5047
        %v5080 = vunpack.c.l.b16 %v5048
        %v5081 = vunpack.c.l.b16 %v5049
        %v5082 = vunpack.c.l.b16 %v5050
        %v5083 = vunpack.c.l.b16 %v5051
        %v5084 = vunpack.c.l.b16 %v5052
        %v5085 = vunpack.c.l.b16 %v5053
        %v5086 = vunpack.c.l.b16 %v5054
        %v5087 = vunpack.c.l.b16 %v5055
        %v5088 = vpack.c.b16 %v5073, %v5072
        %v5089 = vpack.c.b16 %v5075, %v5074
        %v5090 = vpack.c.b16 %v5077, %v5076
        %v5091 = vpack.c.b16 %v5079, %v5078
        %v5092 = vpack.c.b16 %v5081, %v5080
        %v5093 = vpack.c.b16 %v5083, %v5082
        %v5094 = vpack.c.b16 %v5085, %v5084
        %v5095 = vpack.c.b16 %v5087, %v5086
        %5104 = vmatprep.subr.bf16.mxu0 0
        %5105 = vmatpush1.bf16.msra.mxu0 %v5095
        %5106 = vmatprep.subr.bf16.mxu0 0
        %5107 = vmatpush1.bf16.msra.mxu0 %v5094
        %5108 = vmatprep.subr.bf16.mxu0 0
        %5109 = vmatpush1.bf16.msra.mxu0 %v5093
        %5110 = vmatprep.subr.bf16.mxu0 0
        %5111 = vmatpush1.bf16.msra.mxu0 %v5092
        %5112 = vmatprep.subr.bf16.mxu0 0
        %5113 = vmatpush1.bf16.msra.mxu0 %v5091
        %5114 = vmatprep.subr.bf16.mxu0 0
        %5115 = vmatpush1.bf16.msra.mxu0 %v5090
        %5116 = vmatprep.subr.bf16.mxu0 0
        %5117 = vmatpush1.bf16.msra.mxu0 %v5089
        %5118 = vmatprep.subr.bf16.mxu0 0
        %5119 = vmatpush1.bf16.msra.mxu0 %v5088
        %5120 = vmatprep.subr.bf16.mxu0 0
        %5121 = vmatpush2.bf16.msra.mxu0 0
        %5122 = vmatprep.subr.bf16.mxu0 0
        %5123 = vmatpush2.bf16.msra.mxu0 0
        %5124 = vmatprep.subr.bf16.mxu0 0
        %5125 = vmatpush2.bf16.msra.mxu0 0
        %5126 = vmatprep.subr.bf16.mxu0 0
        %5127 = vmatpush2.bf16.msra.mxu0 0
        %5128 = vmatprep.subr.bf16.mxu0 0
        %5129 = vmatpush2.bf16.msra.mxu0 0
        %5130 = vmatprep.subr.bf16.mxu0 0
        %5131 = vmatpush2.bf16.msra.mxu0 0
        %5132 = vmatprep.subr.bf16.mxu0 0
        %5133 = vmatpush2.bf16.msra.mxu0 0
        %5134 = vmatprep.subr.bf16.mxu0 0
        %5135 = vmatpush2.bf16.msra.mxu0 0
        %5136 = vmatprep.mubr.bf16.mxu0 0
        %5137 = vmatmul.mubr.bf16.gmra.mxu0 %v5037
        %v5138 = vpop.f32.mrf.mxu0
        %v5139 = vadd.f32 0.0, %v5138
        %v5140 = vpop.f32.mrf.mxu0
        %v5141 = vpop.f32.mrf.mxu0
        %v5142 = vadd.f32 0.0, %v5141
        %v5143 = vpop.f32.mrf.mxu0
        %5144 = vmatprep.mubr.bf16.mxu0 0
        %5145 = vmatmul.mubr.bf16.gmra.mxu0 %v5038
        %v5146 = vpop.f32.mrf.mxu0
        %v5147 = vadd.f32 0.0, %v5146
        %v5148 = vpop.f32.mrf.mxu0
        %v5149 = vpop.f32.mrf.mxu0
        %v5150 = vadd.f32 0.0, %v5149
        %v5151 = vpop.f32.mrf.mxu0
        %5152 = vmatprep.mubr.bf16.mxu0 0
        %5153 = vmatmul.mubr.bf16.gmra.mxu0 %v5039
        %v5154 = vpop.f32.mrf.mxu0
        %v5155 = vadd.f32 0.0, %v5154
        %v5156 = vpop.f32.mrf.mxu0
        %v5157 = vpop.f32.mrf.mxu0
        %v5158 = vadd.f32 0.0, %v5157
        %v5159 = vpop.f32.mrf.mxu0
        %5160 = vdwg.mxu0
        %v5161 = vadd.f32 %v4668, %v5139
        %v5162 = vadd.f32 %v4669, %v5142
        %v5163 = vadd.f32 %v4670, %v5147
        %v5164 = vadd.f32 %v4671, %v5150
        %v5165 = vadd.f32 %v4672, %v5155
        %v5166 = vadd.f32 %v4673, %v5158
        %s5167 = scalar_lea.vmem %s457, 48 [#allocation16]
        %5168 = vst.msk [vmem:[%s5167] sm:$0xff] %vm493, %v5161
        %5169 = vst.msk [vmem:[%s5167 + $0x8] sm:$0xff] %vm493, %v5162
        %5170 = vst.msk [vmem:[%s5167 + $0x10] sm:$0xff] %vm493, %v5163
        %5171 = vst.msk [vmem:[%s5167 + $0x18] sm:$0xff] %vm493, %v5164
        %5172 = vst.msk [vmem:[%s5167 + $0x20] sm:$0xff] %vm493, %v5165
        %5173 = vst.msk [vmem:[%s5167 + $0x28] sm:$0xff] %vm493, %v5166
        %s5174 = sand.u32 %s253, 1
        %s5175 = scalar_lea.sflag [#allocation6], %s5174
        %s5176 = sand.u32 %s253, 1
        %s5177 = smul.addr %s5176, 96
        %s5178 = scalar_lea.vmem [#allocation16], %s5177
        // Predicated region
        $region89: #{tpu_custom_call.1} parent=59 // pred_check
          %p5179 = pneg %p263
        $region90: #{tpu_custom_call.1} parent=59 // pred_check_branch
          %5181 = sbr.rel (%p5179) target = $region92
        $region91: #{tpu_custom_call.1} parent=59 // pred_region
          %s5182 = smul.u32 2, %s30
          %s5184 = ssub.s32 1536, 1536
          %5185 = vsyncadd %s5175, %s5184
          %s5186 = smul.addr %s5182, 6
          %s5187 = smul.addr %s5186, 128
          %s5188 = scalar_lea.hbm %s10, %s5187
          %s5189 = sshll.u32 %s5178, 4
          %s5190 = int_to_ptr.vmem [resolvable:$true] %s5189
          %5195 = dma.vmem_to_hbm [thread:$0]  %s5190, 1536, %s5188, %s5175, 128, 128, 8
        $region92: #{tpu_custom_call.1} parent=59 // pred_fallthru
          _
      $region60: #{tpu_custom_call.1} parent=5 // pred_fallthru
        _
      %p5196 = scmp.le.s32.totalorder 2, %s25
      // Predicated region
      $region93: #{tpu_custom_call.1} parent=5 // pred_check
        %p5197 = pneg %p5196
      $region94: #{tpu_custom_call.1} parent=5 // pred_check_branch
        %5199 = sbr.rel (%p5197) target = $region96
      $region95: #{tpu_custom_call.1} parent=5 // pred_region
        %s5200 = ssub.s32 %s25, 2
        // Predicated region
        $region97: #{tpu_custom_call.1} parent=95 // pred_check
          %p5201 = pneg %p269
        $region98: #{tpu_custom_call.1} parent=95 // pred_check_branch
          %5203 = sbr.rel (%p5201) target = $region100
        $region99: #{tpu_custom_call.1} parent=95 // pred_region
          %s5204 = sand.u32 %s254, 1
          %s5205 = scalar_lea.sflag [#allocation6], %s5204
          %s5206 = sand.u32 %s254, 1
          %s5207 = smul.addr %s5206, 96
          %s5208 = scalar_lea.vmem [#allocation16], %s5207
          %5209 = dma.done %s5205, 1536
        $region100: #{tpu_custom_call.1} parent=95 // pred_fallthru
          _
      $region96: #{tpu_custom_call.1} parent=5 // pred_fallthru
        _
    $region6: #{tpu_custom_call.1} parent=1 // loop_footer
      %s29 = sadd.s32 1, %s25
    $region7: #{tpu_custom_call.1} parent=1 // loop_footer_branch
      %24 = sbr.rel target = $region3
    $region8: #{tpu_custom_call.1} parent=1 // loop_exit
      _
    %5210 = vsyncpa [#allocation5], 1
    %s5211 = scalar_lea.sflag [#allocation5], 1
    %5212 = vsyncpa %s5211, 1
    %5213 = vsyncpa [#allocation8], 1
    %5214 = vsyncpa [#allocation11], 1
    %5215 = vsyncpa [#allocation14], 1
    %5216 = vsyncpa [#allocation6], 1
    %s5217 = scalar_lea.sflag [#allocation6], 1
    %5218 = vsyncpa %s5217, 1

</llo_original>
